<compile_context>
chip_gen: v5e
topology: v5e:2x2
jax: 0.10.0
libtpu: 0.0.40
codegen_flags: <defaults>
</compile_context>

<pallas_src>
import numpy as np
import jax
import jax.numpy as jnp
from jax import lax
from jax.experimental import pallas as pl
from jax.experimental.pallas import tpu as pltpu

_LANE = 128     # channel dims are padded up to a multiple of this (lane width)


def bottleneck_kernel(x_ref, w1_ref, b1_ref, w2_ref, b2_ref, w3_ref, b3_ref,
                      o_ref, col_ref):
    # x_ref:   (B, H, W, C)        f32   one batch tile, C padded to 128*k
    # w1_ref:  (C, P)              bf16  folded conv1 (1x1) weight
    # b1_ref:  (1, P)              f32   folded bn1 bias
    # w2_ref:  (3, 3*P, P)         bf16  folded conv2 weight: [dh][dw*P+cin, cout]
    # b2_ref:  (1, P)              f32   folded bn2 bias
    # w3_ref:  (P, C)              bf16  folded conv3 (1x1) weight
    # b3_ref:  (1, C)              f32   folded bn3 bias
    # col_ref: (B, H+2, W+2, 3*P)  bf16  persistent im2col scratch (with halo)
    B, H, W, C = x_ref.shape
    P = w1_ref.shape[1]
    M = B * H * W

    x_f32 = x_ref[...].reshape(M, C)

    # --- conv1 (1x1) + bn1 + relu : channel matmul (bf16 in, f32 acc) --------
    h1 = jnp.dot(x_f32.astype(jnp.bfloat16), w1_ref[...],
                 preferred_element_type=jnp.float32)
    h1 = jnp.maximum(h1 + b1_ref[...], 0.0)                      # (M, P) f32
    h1b = h1.astype(jnp.bfloat16).reshape(B, H, W, P)

    # --- conv2 (3x3, stride=1, pad=1) + bn2 + relu ---------------------------
    # Scratch contract (read window: rows dh..dh+H-1, cols 1..W):
    #   col_ref[b, r, c, dw*P:(dw+1)*P] == zero-padded h1[b, r-1, c-1+dw, :]
    # built by direct bf16 stores of h1 at the three dw column offsets.
    #
    # Halo zeroing (re-done every step: cheap, and correct no matter which
    # TensorCore runs which grid steps under "parallel" semantics):
    zrow = jnp.zeros((B, 1, W + 2, 3 * P), jnp.bfloat16)
    col_ref[:, 0:1] = zrow                                        # top row
    col_ref[:, H + 1:H + 2] = zrow                                # bottom row
    zcol = jnp.zeros((B, H, 1, P), jnp.bfloat16)
    col_ref[:, 1:H + 1, 1:2, 0 * P:1 * P] = zcol                  # dw=0 left halo
    col_ref[:, 1:H + 1, W:W + 1, 2 * P:3 * P] = zcol              # dw=2 right halo

    # Direct bf16 stores of h1 (no f32 reads, no concat/cast slab):
    col_ref[:, 1:H + 1, 2:W + 2, 0 * P:1 * P] = h1b               # dw = 0 tap
    col_ref[:, 1:H + 1, 1:W + 1, 1 * P:2 * P] = h1b               # dw = 1 tap
    col_ref[:, 1:H + 1, 0:W,     2 * P:3 * P] = h1b               # dw = 2 tap

    # Three accumulating matmuls, one per dh row shift (K = 3*P each).
    acc = jnp.dot(col_ref[:, 0:H, 1:W + 1, :].reshape(M, 3 * P), w2_ref[0],
                  preferred_element_type=jnp.float32)
    for dh in (1, 2):
        acc += jnp.dot(col_ref[:, dh:dh + H, 1:W + 1, :].reshape(M, 3 * P),
                       w2_ref[dh], preferred_element_type=jnp.float32)
    h2 = jnp.maximum(acc + b2_ref[...], 0.0)                      # (M, P) f32

    # --- conv3 (1x1) + bn3 + residual add + relu (identity: C == 4*planes) --
    out = jnp.dot(h2.astype(jnp.bfloat16), w3_ref[...],
                  preferred_element_type=jnp.float32)
    out = jnp.maximum(out + b3_ref[...] + x_f32, 0.0)
    o_ref[...] = out.reshape(B, H, W, C).astype(o_ref.dtype)


def _round_up(n, m):
    return ((n + m - 1) // m) * m


def _pad_axis_to(a, axis, target):
    if a.shape[axis] == target:
        return a
    pads = [(0, 0)] * a.ndim
    pads[axis] = (0, target - a.shape[axis])
    return jnp.pad(a, pads)


def _vmem_bytes(B, H, W, Cp, Pp):
    """Rough per-step VMEM estimate (double-buffered I/O blocks + weights +
    persistent scratch + main transients)."""
    f32, bf16 = 4, 2
    io_blocks = 2 * 2 * B * H * W * Cp * f32                     # x + out blocks
    weights = 2 * ((Cp * Pp + 9 * Pp * Pp + Pp * Cp) * bf16
                   + (2 * Pp + Cp) * f32)
    col = B * (H + 2) * (W + 2) * 3 * Pp * bf16
    transient = B * H * W * (Cp * (f32 + bf16)                    # x_f32, x_bf16
                             + Pp * (2 * f32 + 4 * bf16)          # h1/acc + taps/slab
                             + Cp * f32)                          # out
    return io_blocks + weights + col + transient


def _pick_batch_tile(N, H, W, Cp, Pp, m_target=512, vmem_budget=24 << 20):
    """Smallest divisor of N whose matmul M dim reaches m_target, capped by a
    VMEM budget (falls back to 1)."""
    best = 1
    for b in range(1, N + 1):
        if N % b:
            continue
        if _vmem_bytes(b, H, W, Cp, Pp) > vmem_budget:
            break
        best = b
        if b * H * W >= m_target:
            break
    return best


def bottleneck_pallas(x_nhwc, w1, b1, w2_hwio, b2, w3, b3):
    """x_nhwc: (N,H,W,Cin) f32.  Folded params:
       w1 (Cin,P), b1 (1,P), w2_hwio (3,3,P,P), b2 (1,P), w3 (P,Cin), b3 (1,Cin)."""
    N, H, W, Cin = x_nhwc.shape
    P = w1.shape[1]
    # Only the stride=1, downsample=None configuration is implemented: the
    # residual is the raw input, which requires inplanes == 4 * planes.
    assert w1.shape[0] == Cin and w3.shape == (P, Cin) and Cin == 4 * P, (
        "kernel implements the stride=1, downsample=None Bottleneck "
        "(inplanes == 4 * planes)")

    Cp = _round_up(Cin, _LANE)
    Pp = _round_up(P, _LANE)

    # Zero-pad channels to lane-dense widths.  Padded channels stay exactly
    # zero through every stage (zero weights/biases + relu), so slicing the
    # output back to Cin reproduces the unpadded result.
    xp = _pad_axis_to(x_nhwc, 3, Cp)
    w1p = _pad_axis_to(_pad_axis_to(w1, 0, Cp), 1, Pp).astype(jnp.bfloat16)
    b1p = _pad_axis_to(b1, 1, Pp).astype(jnp.float32)
    w2p = _pad_axis_to(_pad_axis_to(w2_hwio, 2, Pp), 3, Pp)       # (3,3,Pp,Pp)
    w2p = w2p.reshape(3, 3 * Pp, Pp).astype(jnp.bfloat16)         # [dh][dw*Pp+cin, cout]
    b2p = _pad_axis_to(b2, 1, Pp).astype(jnp.float32)
    w3p = _pad_axis_to(_pad_axis_to(w3, 0, Pp), 1, Cp).astype(jnp.bfloat16)
    b3p = _pad_axis_to(b3, 1, Cp).astype(jnp.float32)

    BT = _pick_batch_tile(N, H, W, Cp, Pp)
    est = _vmem_bytes(BT, H, W, Cp, Pp)
    vmem_limit = int(min(max(2 * est, 32 << 20), 64 << 20))       # v7x-safe cap

    full = lambda a: pl.BlockSpec(a.shape, lambda n, nd=a.ndim: (0,) * nd)

    out_p = pl.pallas_call(
        bottleneck_kernel,
        out_shape=jax.ShapeDtypeStruct((N, H, W, Cp), x_nhwc.dtype),
        grid_spec=pltpu.PrefetchScalarGridSpec(
            num_scalar_prefetch=0,
            grid=(N // BT,),
            in_specs=[
                pl.BlockSpec((BT, H, W, Cp), lambda n: (n, 0, 0, 0)),
                full(w1p), full(b1p), full(w2p), full(b2p), full(w3p), full(b3p),
            ],
            out_specs=pl.BlockSpec((BT, H, W, Cp), lambda n: (n, 0, 0, 0)),
            scratch_shapes=[pltpu.VMEM((BT, H + 2, W + 2, 3 * Pp), jnp.bfloat16)],
        ),
        compiler_params=pltpu.CompilerParams(
            dimension_semantics=("parallel",),
            vmem_limit_bytes=vmem_limit),
    )(xp, w1p, b1p, w2p, b2p, w3p, b3p)

    return out_p[..., :Cin]


def fold_bn(w_oi, gamma, beta, mean, var, eps=1e-5):
    """Fold inference-mode BN into conv: y = conv(x, w) * s + b."""
    s = gamma / jnp.sqrt(var + eps)           # (Cout,)
    b = beta - mean * s                       # (Cout,)
    return w_oi * s, b                        # w_oi has Cout as last axis


def reference_forward(x_nhwc, w1, b1, w2, b2, w3, b3):
    """Plain-JAX f32 reference (NHWC) using the folded parameters."""
    h1 = jnp.maximum(jnp.einsum('nhwc,cp->nhwp', x_nhwc, w1) + b1[0], 0.0)
    h2 = lax.conv_general_dilated(
        h1, w2, window_strides=(1, 1), padding=((1, 1), (1, 1)),
        dimension_numbers=('NHWC', 'HWIO', 'NHWC'))
    h2 = jnp.maximum(h2 + b2[0], 0.0)
    out = jnp.einsum('nhwp,pc->nhwc', h2, w3) + b3[0] + x_nhwc
    return jnp.maximum(out, 0.0)


if __name__ == "__main__":
    key = jax.random.PRNGKey(0)
    ks = jax.random.split(key, 16)

    # Small shapes: inplanes = 4 * planes (downsample=None, stride=1).
    planes = 8
    inplanes = planes * 4          # = 32
    N, H, W = 4, 16, 16

    x_nchw = jax.random.normal(ks[0], (N, inplanes, H, W), jnp.float32)

    # Deterministic parameter init (PyTorch OIHW shapes, then converted).
    cw1 = 0.1 * jax.random.normal(ks[1], (planes, inplanes, 1, 1), jnp.float32)
    cw2 = 0.1 * jax.random.normal(ks[2], (planes, planes, 3, 3), jnp.float32)
    cw3 = 0.1 * jax.random.normal(ks[3], (4 * planes, planes, 1, 1), jnp.float32)

    def bn_params(k, c):
        k1, k2, k3, k4 = jax.random.split(k, 4)
        gamma = 1.0 + 0.1 * jax.random.normal(k1, (c,), jnp.float32)
        beta = 0.1 * jax.random.normal(k2, (c,), jnp.float32)
        mean = 0.1 * jax.random.normal(k3, (c,), jnp.float32)
        var = jax.random.uniform(k4, (c,), jnp.float32, 0.5, 1.5)
        return gamma, beta, mean, var

    g1, be1, m1, v1 = bn_params(ks[4], planes)
    g2, be2, m2, v2 = bn_params(ks[5], planes)
    g3, be3, m3, v3 = bn_params(ks[6], 4 * planes)

    # Convert conv weights to matmul / HWIO layouts and fold BN.
    w1_mat = jnp.transpose(cw1[:, :, 0, 0], (1, 0))          # (Cin, P)
    w2_hwio = jnp.transpose(cw2, (2, 3, 1, 0))               # (3, 3, P, P)
    w3_mat = jnp.transpose(cw3[:, :, 0, 0], (1, 0))          # (P, 4P)

    w1f, b1f = fold_bn(w1_mat, g1, be1, m1, v1)
    w2f, b2f = fold_bn(w2_hwio, g2, be2, m2, v2)
    w3f, b3f = fold_bn(w3_mat, g3, be3, m3, v3)
    b1f = b1f.reshape(1, -1)
    b2f = b2f.reshape(1, -1)
    b3f = b3f.reshape(1, -1)

    # NCHW -> NHWC for the kernel.
    x_nhwc = jnp.transpose(x_nchw, (0, 2, 3, 1))

    out_nhwc = bottleneck_pallas(x_nhwc, w1f, b1f, w2f, b2f, w3f, b3f)
    out_nhwc = jax.block_until_ready(out_nhwc)
    out_nchw = jnp.transpose(out_nhwc, (0, 3, 1, 2))

    # Verify against a plain-JAX f32 reference.  The kernel uses bf16 MXU
    # inputs with f32 accumulation, so the tolerance is loosened accordingly.
    ref = reference_forward(x_nhwc, w1f, b1f, w2f, b2f, w3f, b3f)
    np.testing.assert_allclose(np.asarray(out_nhwc), np.asarray(ref),
                               rtol=2e-2, atol=2e-2)
    assert out_nchw.shape == (N, inplanes, H, W)
    print("KERNEL_OK")
</pallas_src>

<mosaic_0001>
module attributes {stable_mosaic.version = 11 : i64} {
  func.func @bottleneck_kernel(%arg0: i32, %arg1: memref<2x16x16x128xf32, #tpu.memory_space<vmem>>, %arg2: memref<128x128xbf16, #tpu.memory_space<vmem>>, %arg3: memref<1x128xf32, #tpu.memory_space<vmem>>, %arg4: memref<3x384x128xbf16, #tpu.memory_space<vmem>>, %arg5: memref<1x128xf32, #tpu.memory_space<vmem>>, %arg6: memref<128x128xbf16, #tpu.memory_space<vmem>>, %arg7: memref<1x128xf32, #tpu.memory_space<vmem>>, %arg8: memref<2x16x16x128xf32, #tpu.memory_space<vmem>>, %arg9: memref<2x18x18x384xbf16, #tpu.memory_space<vmem>>) attributes {dimension_semantics = [#tpu.dimension_semantics<parallel>], iteration_bounds = array<i64: 2>, scalar_prefetch = 0 : i64, scratch_operands = 1 : i64, tpu.core_type = #tpu.core_type<tc>, window_params = [{transform_indices = @transform_0, window_bounds = array<i64: 2, 16, 16, 128>}, {pipeline_mode = #tpu.pipeline_mode<synchronous>, transform_indices = @transform_1, window_bounds = array<i64: 128, 128>}, {pipeline_mode = #tpu.pipeline_mode<synchronous>, transform_indices = @transform_2, window_bounds = array<i64: 1, 128>}, {pipeline_mode = #tpu.pipeline_mode<synchronous>, transform_indices = @transform_3, window_bounds = array<i64: 3, 384, 128>}, {pipeline_mode = #tpu.pipeline_mode<synchronous>, transform_indices = @transform_4, window_bounds = array<i64: 1, 128>}, {pipeline_mode = #tpu.pipeline_mode<synchronous>, transform_indices = @transform_5, window_bounds = array<i64: 128, 128>}, {pipeline_mode = #tpu.pipeline_mode<synchronous>, transform_indices = @transform_6, window_bounds = array<i64: 1, 128>}, {transform_indices = @transform_7, window_bounds = array<i64: 2, 16, 16, 128>}]} {
    %c0 = arith.constant 0 : index
    %c0_0 = arith.constant 0 : index
    %c0_1 = arith.constant 0 : index
    %c0_2 = arith.constant 0 : index
    %0 = vector.load %arg1[%c0, %c0_0, %c0_1, %c0_2] : memref<2x16x16x128xf32, #tpu.memory_space<vmem>>, vector<2x16x16x128xf32>
    %1 = vector.shape_cast %0 : vector<2x16x16x128xf32> to vector<512x128xf32>
    %2 = arith.truncf %1 : vector<512x128xf32> to vector<512x128xbf16>
    %c0_3 = arith.constant 0 : index
    %c0_4 = arith.constant 0 : index
    %3 = vector.load %arg2[%c0_3, %c0_4] : memref<128x128xbf16, #tpu.memory_space<vmem>>, vector<128x128xbf16>
    %cst = arith.constant dense<0.000000e+00> : vector<512x128xf32>
    %4 = tpu.matmul %2, %3, %cst {dimension_numbers = #tpu.dot_dimension_numbers<[1], [0], [0], [1], [0, 0, 1, 1], [], []>} : vector<512x128xbf16>, vector<128x128xbf16>, vector<512x128xf32> -> vector<512x128xf32>
    %c0_5 = arith.constant 0 : index
    %c0_6 = arith.constant 0 : index
    %5 = vector.load %arg3[%c0_5, %c0_6] : memref<1x128xf32, #tpu.memory_space<vmem>>, vector<1x128xf32>
    %6 = vector.broadcast %5 : vector<1x128xf32> to vector<512x128xf32>
    %7 = arith.addf %4, %6 : vector<512x128xf32>
    %cst_7 = arith.constant 0.000000e+00 : f32
    %8 = vector.broadcast %cst_7 : f32 to vector<512x128xf32>
    %9 = arith.maximumf %7, %8 : vector<512x128xf32>
    %10 = arith.truncf %9 : vector<512x128xf32> to vector<512x128xbf16>
    %11 = vector.shape_cast %10 : vector<512x128xbf16> to vector<2x16x16x128xbf16>
    %cst_8 = arith.constant 0.000000e+00 : bf16
    %12 = vector.broadcast %cst_8 : bf16 to vector<2x1x18x384xbf16>
    %c0_9 = arith.constant 0 : index
    %c0_10 = arith.constant 0 : index
    %c0_11 = arith.constant 0 : index
    %c0_12 = arith.constant 0 : index
    %13 = vector.load %arg9[%c0_9, %c0_10, %c0_11, %c0_12] : memref<2x18x18x384xbf16, #tpu.memory_space<vmem>>, vector<2x1x18x384xbf16>
    tpu.vector_store %arg9[%c0_9, %c0_10, %c0_11, %c0_12], %12 {strides = array<i32>} : memref<2x18x18x384xbf16, #tpu.memory_space<vmem>>, vector<2x1x18x384xbf16>,
    %c0_13 = arith.constant 0 : index
    %c17 = arith.constant 17 : index
    %c0_14 = arith.constant 0 : index
    %c0_15 = arith.constant 0 : index
    %14 = vector.load %arg9[%c0_13, %c17, %c0_14, %c0_15] : memref<2x18x18x384xbf16, #tpu.memory_space<vmem>>, vector<2x1x18x384xbf16>
    tpu.vector_store %arg9[%c0_13, %c17, %c0_14, %c0_15], %12 {strides = array<i32>} : memref<2x18x18x384xbf16, #tpu.memory_space<vmem>>, vector<2x1x18x384xbf16>,
    %cst_16 = arith.constant 0.000000e+00 : bf16
    %15 = vector.broadcast %cst_16 : bf16 to vector<2x16x1x128xbf16>
    %c0_17 = arith.constant 0 : index
    %c1 = arith.constant 1 : index
    %c1_18 = arith.constant 1 : index
    %c0_19 = arith.constant 0 : index
    %16 = vector.load %arg9[%c0_17, %c1, %c1_18, %c0_19] : memref<2x18x18x384xbf16, #tpu.memory_space<vmem>>, vector<2x16x1x128xbf16>
    tpu.vector_store %arg9[%c0_17, %c1, %c1_18, %c0_19], %15 {strides = array<i32>} : memref<2x18x18x384xbf16, #tpu.memory_space<vmem>>, vector<2x16x1x128xbf16>,
    %c0_20 = arith.constant 0 : index
    %c1_21 = arith.constant 1 : index
    %c16 = arith.constant 16 : index
    %c256 = arith.constant 256 : index
    %17 = vector.load %arg9[%c0_20, %c1_21, %c16, %c256] : memref<2x18x18x384xbf16, #tpu.memory_space<vmem>>, vector<2x16x1x128xbf16>
    tpu.vector_store %arg9[%c0_20, %c1_21, %c16, %c256], %15 {strides = array<i32>} : memref<2x18x18x384xbf16, #tpu.memory_space<vmem>>, vector<2x16x1x128xbf16>,
    %c0_22 = arith.constant 0 : index
    %c1_23 = arith.constant 1 : index
    %c2 = arith.constant 2 : index
    %c0_24 = arith.constant 0 : index
    %18 = vector.load %arg9[%c0_22, %c1_23, %c2, %c0_24] : memref<2x18x18x384xbf16, #tpu.memory_space<vmem>>, vector<2x16x16x128xbf16>
    tpu.vector_store %arg9[%c0_22, %c1_23, %c2, %c0_24], %11 {strides = array<i32>} : memref<2x18x18x384xbf16, #tpu.memory_space<vmem>>, vector<2x16x16x128xbf16>,
    %c0_25 = arith.constant 0 : index
    %c1_26 = arith.constant 1 : index
    %c1_27 = arith.constant 1 : index
    %c128 = arith.constant 128 : index
    %19 = vector.load %arg9[%c0_25, %c1_26, %c1_27, %c128] : memref<2x18x18x384xbf16, #tpu.memory_space<vmem>>, vector<2x16x16x128xbf16>
    tpu.vector_store %arg9[%c0_25, %c1_26, %c1_27, %c128], %11 {strides = array<i32>} : memref<2x18x18x384xbf16, #tpu.memory_space<vmem>>, vector<2x16x16x128xbf16>,
    %c0_28 = arith.constant 0 : index
    %c1_29 = arith.constant 1 : index
    %c0_30 = arith.constant 0 : index
    %c256_31 = arith.constant 256 : index
    %20 = vector.load %arg9[%c0_28, %c1_29, %c0_30, %c256_31] : memref<2x18x18x384xbf16, #tpu.memory_space<vmem>>, vector<2x16x16x128xbf16>
    tpu.vector_store %arg9[%c0_28, %c1_29, %c0_30, %c256_31], %11 {strides = array<i32>} : memref<2x18x18x384xbf16, #tpu.memory_space<vmem>>, vector<2x16x16x128xbf16>,
    %c0_32 = arith.constant 0 : index
    %c0_33 = arith.constant 0 : index
    %c1_34 = arith.constant 1 : index
    %c0_35 = arith.constant 0 : index
    %21 = vector.load %arg9[%c0_32, %c0_33, %c1_34, %c0_35] : memref<2x18x18x384xbf16, #tpu.memory_space<vmem>>, vector<2x16x16x384xbf16>
    %22 = vector.shape_cast %21 : vector<2x16x16x384xbf16> to vector<512x384xbf16>
    %c0_36 = arith.constant 0 : index
    %c0_37 = arith.constant 0 : index
    %c0_38 = arith.constant 0 : index
    %23 = vector.load %arg4[%c0_36, %c0_37, %c0_38] : memref<3x384x128xbf16, #tpu.memory_space<vmem>>, vector<1x384x128xbf16>
    %24 = vector.shape_cast %23 : vector<1x384x128xbf16> to vector<384x128xbf16>
    %cst_39 = arith.constant dense<0.000000e+00> : vector<512x128xf32>
    %25 = tpu.matmul %22, %24, %cst_39 {dimension_numbers = #tpu.dot_dimension_numbers<[1], [0], [0], [1], [0, 0, 1, 1], [], []>} : vector<512x384xbf16>, vector<384x128xbf16>, vector<512x128xf32> -> vector<512x128xf32>
    %c0_40 = arith.constant 0 : index
    %c1_41 = arith.constant 1 : index
    %c1_42 = arith.constant 1 : index
    %c0_43 = arith.constant 0 : index
    %26 = vector.load %arg9[%c0_40, %c1_41, %c1_42, %c0_43] : memref<2x18x18x384xbf16, #tpu.memory_space<vmem>>, vector<2x16x16x384xbf16>
    %27 = vector.shape_cast %26 : vector<2x16x16x384xbf16> to vector<512x384xbf16>
    %c1_44 = arith.constant 1 : index
    %c0_45 = arith.constant 0 : index
    %c0_46 = arith.constant 0 : index
    %28 = vector.load %arg4[%c1_44, %c0_45, %c0_46] : memref<3x384x128xbf16, #tpu.memory_space<vmem>>, vector<1x384x128xbf16>
    %29 = vector.shape_cast %28 : vector<1x384x128xbf16> to vector<384x128xbf16>
    %cst_47 = arith.constant dense<0.000000e+00> : vector<512x128xf32>
    %30 = tpu.matmul %27, %29, %cst_47 {dimension_numbers = #tpu.dot_dimension_numbers<[1], [0], [0], [1], [0, 0, 1, 1], [], []>} : vector<512x384xbf16>, vector<384x128xbf16>, vector<512x128xf32> -> vector<512x128xf32>
    %31 = arith.addf %25, %30 : vector<512x128xf32>
    %c0_48 = arith.constant 0 : index
    %c2_49 = arith.constant 2 : index
    %c1_50 = arith.constant 1 : index
    %c0_51 = arith.constant 0 : index
    %32 = vector.load %arg9[%c0_48, %c2_49, %c1_50, %c0_51] : memref<2x18x18x384xbf16, #tpu.memory_space<vmem>>, vector<2x16x16x384xbf16>
    %33 = vector.shape_cast %32 : vector<2x16x16x384xbf16> to vector<512x384xbf16>
    %c2_52 = arith.constant 2 : index
    %c0_53 = arith.constant 0 : index
    %c0_54 = arith.constant 0 : index
    %34 = vector.load %arg4[%c2_52, %c0_53, %c0_54] : memref<3x384x128xbf16, #tpu.memory_space<vmem>>, vector<1x384x128xbf16>
    %35 = vector.shape_cast %34 : vector<1x384x128xbf16> to vector<384x128xbf16>
    %cst_55 = arith.constant dense<0.000000e+00> : vector<512x128xf32>
    %36 = tpu.matmul %33, %35, %cst_55 {dimension_numbers = #tpu.dot_dimension_numbers<[1], [0], [0], [1], [0, 0, 1, 1], [], []>} : vector<512x384xbf16>, vector<384x128xbf16>, vector<512x128xf32> -> vector<512x128xf32>
    %37 = arith.addf %31, %36 : vector<512x128xf32>
    %c0_56 = arith.constant 0 : index
    %c0_57 = arith.constant 0 : index
    %38 = vector.load %arg5[%c0_56, %c0_57] : memref<1x128xf32, #tpu.memory_space<vmem>>, vector<1x128xf32>
    %39 = vector.broadcast %38 : vector<1x128xf32> to vector<512x128xf32>
    %40 = arith.addf %37, %39 : vector<512x128xf32>
    %cst_58 = arith.constant 0.000000e+00 : f32
    %41 = vector.broadcast %cst_58 : f32 to vector<512x128xf32>
    %42 = arith.maximumf %40, %41 : vector<512x128xf32>
    %43 = arith.truncf %42 : vector<512x128xf32> to vector<512x128xbf16>
    %c0_59 = arith.constant 0 : index
    %c0_60 = arith.constant 0 : index
    %44 = vector.load %arg6[%c0_59, %c0_60] : memref<128x128xbf16, #tpu.memory_space<vmem>>, vector<128x128xbf16>
    %cst_61 = arith.constant dense<0.000000e+00> : vector<512x128xf32>
    %45 = tpu.matmul %43, %44, %cst_61 {dimension_numbers = #tpu.dot_dimension_numbers<[1], [0], [0], [1], [0, 0, 1, 1], [], []>} : vector<512x128xbf16>, vector<128x128xbf16>, vector<512x128xf32> -> vector<512x128xf32>
    %c0_62 = arith.constant 0 : index
    %c0_63 = arith.constant 0 : index
    %46 = vector.load %arg7[%c0_62, %c0_63] : memref<1x128xf32, #tpu.memory_space<vmem>>, vector<1x128xf32>
    %47 = vector.broadcast %46 : vector<1x128xf32> to vector<512x128xf32>
    %48 = arith.addf %45, %47 : vector<512x128xf32>
    %49 = arith.addf %48, %1 : vector<512x128xf32>
    %cst_64 = arith.constant 0.000000e+00 : f32
    %50 = vector.broadcast %cst_64 : f32 to vector<512x128xf32>
    %51 = arith.maximumf %49, %50 : vector<512x128xf32>
    %52 = vector.shape_cast %51 : vector<512x128xf32> to vector<2x16x16x128xf32>
    %c0_65 = arith.constant 0 : index
    %c0_66 = arith.constant 0 : index
    %c0_67 = arith.constant 0 : index
    %c0_68 = arith.constant 0 : index
    %53 = vector.load %arg8[%c0_65, %c0_66, %c0_67, %c0_68] : memref<2x16x16x128xf32, #tpu.memory_space<vmem>>, vector<2x16x16x128xf32>
    tpu.vector_store %arg8[%c0_65, %c0_66, %c0_67, %c0_68], %52 {strides = array<i32>} : memref<2x16x16x128xf32, #tpu.memory_space<vmem>>, vector<2x16x16x128xf32>,
    return
  }
  func.func @transform_0(%arg0: i32) -> (i32, i32, i32, i32) {
    %c0_i32 = arith.constant 0 : i32
    %c0_i32_0 = arith.constant 0 : i32
    %c0_i32_1 = arith.constant 0 : i32
    %c0_i32_2 = arith.constant 0 : i32
    return %arg0, %c0_i32, %c0_i32_0, %c0_i32_1 : i32, i32, i32, i32
  }
  func.func @transform_1(%arg0: i32) -> (i32, i32) {
    %c0_i32 = arith.constant 0 : i32
    %c0_i32_0 = arith.constant 0 : i32
    %c0_i32_1 = arith.constant 0 : i32
    return %c0_i32, %c0_i32_0 : i32, i32
  }
  func.func @transform_2(%arg0: i32) -> (i32, i32) {
    %c0_i32 = arith.constant 0 : i32
    %c0_i32_0 = arith.constant 0 : i32
    %c0_i32_1 = arith.constant 0 : i32
    return %c0_i32, %c0_i32_0 : i32, i32
  }
  func.func @transform_3(%arg0: i32) -> (i32, i32, i32) {
    %c0_i32 = arith.constant 0 : i32
    %c0_i32_0 = arith.constant 0 : i32
    %c0_i32_1 = arith.constant 0 : i32
    %c0_i32_2 = arith.constant 0 : i32
    return %c0_i32, %c0_i32_0, %c0_i32_1 : i32, i32, i32
  }
  func.func @transform_4(%arg0: i32) -> (i32, i32) {
    %c0_i32 = arith.constant 0 : i32
    %c0_i32_0 = arith.constant 0 : i32
    %c0_i32_1 = arith.constant 0 : i32
    return %c0_i32, %c0_i32_0 : i32, i32
  }
  func.func @transform_5(%arg0: i32) -> (i32, i32) {
    %c0_i32 = arith.constant 0 : i32
    %c0_i32_0 = arith.constant 0 : i32
    %c0_i32_1 = arith.constant 0 : i32
    return %c0_i32, %c0_i32_0 : i32, i32
  }
  func.func @transform_6(%arg0: i32) -> (i32, i32) {
    %c0_i32 = arith.constant 0 : i32
    %c0_i32_0 = arith.constant 0 : i32
    %c0_i32_1 = arith.constant 0 : i32
    return %c0_i32, %c0_i32_0 : i32, i32
  }
  func.func @transform_7(%arg0: i32) -> (i32, i32, i32, i32) {
    %c0_i32 = arith.constant 0 : i32
    %c0_i32_0 = arith.constant 0 : i32
    %c0_i32_1 = arith.constant 0 : i32
    %c0_i32_2 = arith.constant 0 : i32
    return %arg0, %c0_i32, %c0_i32_0, %c0_i32_1 : i32, i32, i32, i32
  }
}

</mosaic_0001>

<llo_original>
// kernel: tpu_custom_call.1
$region0: #{tpu_custom_call.1}
  #allocation0 [shape = 'u32[]', space=smem, size = 0x4, offset = 0x4, fixed_abs, tag = 'smem constant byte address 0x4 - core index']
  #allocation1 [shape = 'u32[72,128]{1,0:T(1,128)}', space=vmem, size = 0x9000, scoped, tag = 'internal scratch']
  #allocation2 [shape = 'bf16[2,18,18,384]{3,2,1,0:T(8,128)(2,1)}', space=vmem, size = 0xa2000, scoped, tag = 'scratch operand']
  %s0 = inlined_call_operand.hbm [shape: f32[4,16,16,128], index: 0, kind: input, shape index: {}]
  %s1 = inlined_call_operand.hbm [shape: bf16[128,128], index: 1, kind: input, shape index: {}]
  %s2 = inlined_call_operand.vmem [shape: f32[1,128], index: 2, kind: input, shape index: {}]
  %s3 = inlined_call_operand.hbm [shape: bf16[3,384,128], index: 3, kind: input, shape index: {}]
  %s4 = inlined_call_operand.vmem [shape: f32[1,128], index: 4, kind: input, shape index: {}]
  %s5 = inlined_call_operand.hbm [shape: bf16[128,128], index: 5, kind: input, shape index: {}]
  %s6 = inlined_call_operand.vmem [shape: f32[1,128], index: 6, kind: input, shape index: {}]
  %s7 = inlined_call_operand.hbm [shape: f32[4,16,16,128], index: 7, kind: output, shape index: {}]
  %s8 = sld [smem:[#allocation0]]
  $region77: #{tpu_custom_call.1} parent=0
    _
  %s10 = ssub.s32 1, %s8
  %s11 = scalar_select 0, %s10, %s8
  $region1: #{tpu_custom_call.1} parent=0
    #allocation3 [shape = 'u8[524288]{0}', space=vmem, size = 0x80000, scoped, tag = 'input window, operand 0']
    #allocation4 [shape = 's32[2]{0}', space=sflag, size = 0x8, scoped, tag = 'scoped memory for tpu_custom_call.1']
    #allocation5 [shape = 's32[2]{0}', space=sflag, size = 0x8, scoped, tag = 'scoped memory for tpu_custom_call.1']
    #allocation6 [shape = 'u8[32768]{0}', space=vmem, size = 0x8000, scoped, tag = 'input window, operand 1, single buffered']
    #allocation7 [shape = 's32[1]{0}', space=sflag, size = 0x4, scoped, tag = 'scoped memory for tpu_custom_call.1']
    #allocation8 [shape = 'u8[294912]{0}', space=vmem, size = 0x48000, scoped, tag = 'input window, operand 3, single buffered']
    #allocation9 [shape = 'u8[32768]{0}', space=vmem, size = 0x8000, scoped, tag = 'input window, operand 5, single buffered']
    #allocation10 [shape = 's32[1]{0}', space=sflag, size = 0x4, scoped, tag = 'scoped memory for tpu_custom_call.1']
    #allocation11 [shape = 'u8[524288]{0}', space=vmem, size = 0x80000, scoped, tag = 'output window, operand 0']
    %12 = vsyncpa [#allocation4], 0
    %s13 = scalar_lea.sflag [#allocation4], 1
    %14 = vsyncpa %s13, 0
    %15 = vsyncpa [#allocation7], 0
    %16 = vsyncpa [#allocation10], 0
    %17 = vsyncpa [#allocation5], 0
    %s18 = scalar_lea.sflag [#allocation5], 1
    %19 = vsyncpa %s18, 0
    loop: start=0, step=1, limit=4
    $region2: #{tpu_custom_call.1} parent=1 // loop_pre_header
      _
    $region3: #{tpu_custom_call.1} parent=1 // loop_header
      %s21 = sphi 0, %s25
      %p22 = scmp.ge.s32.totalorder %s21, 4
      %s31 = sphi 0, %s33
      %s34 = sphi 0, %s31
      %s35 = sphi 0, %s34
      %s51 = sphi 0, %s35
      %s55 = sphi 0, %s55
      %s57 = sphi 0, %s55
      %s58 = sphi 0, %s57
      %s72 = sphi 0, %s58
      %s76 = sphi 0, %s76
      %s78 = sphi 0, %s76
      %s79 = sphi 0, %s78
      %s93 = sphi 0, %s79
      %s97 = sphi 0, %s97
      %s99 = sphi 0, %s97
      %s100 = sphi 0, %s99
      %s114 = sphi 0, %s100
      %s118 = sphi 0, %s118
      %s120 = sphi 0, %s118
      %s121 = sphi 0, %s120
      %s135 = sphi 0, %s121
      %s139 = sphi 0, %s139
      %s141 = sphi 0, %s139
      %s142 = sphi 0, %s141
      %s156 = sphi 0, %s142
      %s160 = sphi 0, %s160
      %s162 = sphi 0, %s160
      %s163 = sphi 0, %s162
      %s177 = sphi 0, %s163
      %s183 = sphi 0, %s185
      %s186 = sphi 0, %s183
      %s187 = sphi 0, %s186
      %s203 = sphi 0, %s187
    $region4: #{tpu_custom_call.1} parent=1 // loop_header_branch
      %24 = sbr.rel (%p22) target = $region8
    $region5: #{tpu_custom_call.1} parent=1 // loop_body
      %s26 = ssub.s32 %s21, 1
      %s27 = ssub.s32 %s21, 2
      %s28 = sadd.s32 %s21, 1
      %s29 = ssub.s32 %s21, %s28
      %p30 = scmp.eq.s32.totalorder %s29, 0
      %s32 = sadd.s32 %s31, 1
      %s33 = scalar_select %p30, %s31, %s32
      %p36 = pneg %p30
      %p37 = scmp.eq.s32.totalorder %s21, 1
      %p38 = por %p36, %p37
      %p39 = scmp.ne.s32.totalorder %s31, %s34
      %p40 = scmp.eq.s32.totalorder %s21, 0
      %p41 = por %p39, %p40
      %p42 = scmp.ne.s32.totalorder %s31, %s34
      %p43 = scmp.eq.s32.totalorder %s26, 1
      %p44 = por %p42, %p43
      %p45 = scmp.ne.s32.totalorder %s34, %s35
      %p46 = scmp.eq.s32.totalorder %s26, 0
      %p47 = por %p45, %p46
      %p48 = scmp.ne.s32.totalorder %s34, %s35
      %p49 = scmp.eq.s32.totalorder %s27, 1
      %p50 = por %p48, %p49
      %p52 = scmp.ne.s32.totalorder %s35, %s51
      %p53 = scmp.eq.s32.totalorder %s27, 0
      %p54 = por %p52, %p53
      %s56 = sadd.s32 %s55, 1
      %p59 = scmp.eq.s32.totalorder %s21, 1
      %p60 = scmp.ne.s32.totalorder %s55, %s57
      %p61 = scmp.eq.s32.totalorder %s21, 0
      %p62 = por %p60, %p61
      %p63 = scmp.ne.s32.totalorder %s55, %s57
      %p64 = scmp.eq.s32.totalorder %s26, 1
      %p65 = por %p63, %p64
      %p66 = scmp.ne.s32.totalorder %s57, %s58
      %p67 = scmp.eq.s32.totalorder %s26, 0
      %p68 = por %p66, %p67
      %p69 = scmp.ne.s32.totalorder %s57, %s58
      %p70 = scmp.eq.s32.totalorder %s27, 1
      %p71 = por %p69, %p70
      %p73 = scmp.ne.s32.totalorder %s58, %s72
      %p74 = scmp.eq.s32.totalorder %s27, 0
      %p75 = por %p73, %p74
      %s77 = sadd.s32 %s76, 1
      %p80 = scmp.eq.s32.totalorder %s21, 1
      %p81 = scmp.ne.s32.totalorder %s76, %s78
      %p82 = scmp.eq.s32.totalorder %s21, 0
      %p83 = por %p81, %p82
      %p84 = scmp.ne.s32.totalorder %s76, %s78
      %p85 = scmp.eq.s32.totalorder %s26, 1
      %p86 = por %p84, %p85
      %p87 = scmp.ne.s32.totalorder %s78, %s79
      %p88 = scmp.eq.s32.totalorder %s26, 0
      %p89 = por %p87, %p88
      %p90 = scmp.ne.s32.totalorder %s78, %s79
      %p91 = scmp.eq.s32.totalorder %s27, 1
      %p92 = por %p90, %p91
      %p94 = scmp.ne.s32.totalorder %s79, %s93
      %p95 = scmp.eq.s32.totalorder %s27, 0
      %p96 = por %p94, %p95
      %s98 = sadd.s32 %s97, 1
      %p101 = scmp.eq.s32.totalorder %s21, 1
      %p102 = scmp.ne.s32.totalorder %s97, %s99
      %p103 = scmp.eq.s32.totalorder %s21, 0
      %p104 = por %p102, %p103
      %p105 = scmp.ne.s32.totalorder %s97, %s99
      %p106 = scmp.eq.s32.totalorder %s26, 1
      %p107 = por %p105, %p106
      %p108 = scmp.ne.s32.totalorder %s99, %s100
      %p109 = scmp.eq.s32.totalorder %s26, 0
      %p110 = por %p108, %p109
      %p111 = scmp.ne.s32.totalorder %s99, %s100
      %p112 = scmp.eq.s32.totalorder %s27, 1
      %p113 = por %p111, %p112
      %p115 = scmp.ne.s32.totalorder %s100, %s114
      %p116 = scmp.eq.s32.totalorder %s27, 0
      %p117 = por %p115, %p116
      %s119 = sadd.s32 %s118, 1
      %p122 = scmp.eq.s32.totalorder %s21, 1
      %p123 = scmp.ne.s32.totalorder %s118, %s120
      %p124 = scmp.eq.s32.totalorder %s21, 0
      %p125 = por %p123, %p124
      %p126 = scmp.ne.s32.totalorder %s118, %s120
      %p127 = scmp.eq.s32.totalorder %s26, 1
      %p128 = por %p126, %p127
      %p129 = scmp.ne.s32.totalorder %s120, %s121
      %p130 = scmp.eq.s32.totalorder %s26, 0
      %p131 = por %p129, %p130
      %p132 = scmp.ne.s32.totalorder %s120, %s121
      %p133 = scmp.eq.s32.totalorder %s27, 1
      %p134 = por %p132, %p133
      %p136 = scmp.ne.s32.totalorder %s121, %s135
      %p137 = scmp.eq.s32.totalorder %s27, 0
      %p138 = por %p136, %p137
      %s140 = sadd.s32 %s139, 1
      %p143 = scmp.eq.s32.totalorder %s21, 1
      %p144 = scmp.ne.s32.totalorder %s139, %s141
      %p145 = scmp.eq.s32.totalorder %s21, 0
      %p146 = por %p144, %p145
      %p147 = scmp.ne.s32.totalorder %s139, %s141
      %p148 = scmp.eq.s32.totalorder %s26, 1
      %p149 = por %p147, %p148
      %p150 = scmp.ne.s32.totalorder %s141, %s142
      %p151 = scmp.eq.s32.totalorder %s26, 0
      %p152 = por %p150, %p151
      %p153 = scmp.ne.s32.totalorder %s141, %s142
      %p154 = scmp.eq.s32.totalorder %s27, 1
      %p155 = por %p153, %p154
      %p157 = scmp.ne.s32.totalorder %s142, %s156
      %p158 = scmp.eq.s32.totalorder %s27, 0
      %p159 = por %p157, %p158
      %s161 = sadd.s32 %s160, 1
      %p164 = scmp.eq.s32.totalorder %s21, 1
      %p165 = scmp.ne.s32.totalorder %s160, %s162
      %p166 = scmp.eq.s32.totalorder %s21, 0
      %p167 = por %p165, %p166
      %p168 = scmp.ne.s32.totalorder %s160, %s162
      %p169 = scmp.eq.s32.totalorder %s26, 1
      %p170 = por %p168, %p169
      %p171 = scmp.ne.s32.totalorder %s162, %s163
      %p172 = scmp.eq.s32.totalorder %s26, 0
      %p173 = por %p171, %p172
      %p174 = scmp.ne.s32.totalorder %s162, %s163
      %p175 = scmp.eq.s32.totalorder %s27, 1
      %p176 = por %p174, %p175
      %p178 = scmp.ne.s32.totalorder %s163, %s177
      %p179 = scmp.eq.s32.totalorder %s27, 0
      %p180 = por %p178, %p179
      %s181 = ssub.s32 %s21, %s28
      %p182 = scmp.eq.s32.totalorder %s181, 0
      %s184 = sadd.s32 %s183, 1
      %s185 = scalar_select %p182, %s183, %s184
      %p188 = pneg %p182
      %p189 = scmp.eq.s32.totalorder %s21, 1
      %p190 = por %p188, %p189
      %p191 = scmp.ne.s32.totalorder %s183, %s186
      %p192 = scmp.eq.s32.totalorder %s21, 0
      %p193 = por %p191, %p192
      %p194 = scmp.ne.s32.totalorder %s183, %s186
      %p195 = scmp.eq.s32.totalorder %s26, 1
      %p196 = por %p194, %p195
      %p197 = scmp.ne.s32.totalorder %s186, %s187
      %p198 = scmp.eq.s32.totalorder %s26, 0
      %p199 = por %p197, %p198
      %p200 = scmp.ne.s32.totalorder %s186, %s187
      %p201 = scmp.eq.s32.totalorder %s27, 1
      %p202 = por %p200, %p201
      %p204 = scmp.ne.s32.totalorder %s187, %s203
      %p205 = scmp.eq.s32.totalorder %s27, 0
      %p206 = por %p204, %p205
      %p207 = scmp.le.s32.totalorder 1, %s21
      %p208 = scmp.lt.s32.totalorder %s21, 3
      %p209 = pnand %p207, %p208
      %p210 = pneg %p209
      // Predicated region
      $region9: #{tpu_custom_call.1} parent=5 // pred_check
        _
      $region10: #{tpu_custom_call.1} parent=5 // pred_check_branch
        %212 = sbr.rel (%p209) target = $region12
      $region11: #{tpu_custom_call.1} parent=5 // pred_region
        %s213 = ssub.s32 %s21, 1
        // Predicated region
        $region13: #{tpu_custom_call.1} parent=11 // pred_check
          %p214 = pneg %p68
        $region14: #{tpu_custom_call.1} parent=11 // pred_check_branch
          %216 = sbr.rel (%p214) target = $region16
        $region15: #{tpu_custom_call.1} parent=11 // pred_region
          %218 = vsyncadd [#allocation7], 0
          %s219 = sshll.u32 %s1, 4
          %s220 = int_to_ptr.hbm [resolvable:$true] %s219
          %s221 = sshll.u32 [#allocation6], 4
          %s222 = int_to_ptr.vmem [resolvable:$true] %s221
          %227 = dma.hbm_to_vmem [thread:$0]  %s220, 1024, %s222, [#allocation7], 64, 64, 4
        $region16: #{tpu_custom_call.1} parent=11 // pred_fallthru
          _
        // Predicated region
        $region17: #{tpu_custom_call.1} parent=11 // pred_check
          %p228 = pneg %p89
        $region18: #{tpu_custom_call.1} parent=11 // pred_check_branch
          %230 = sbr.rel (%p228) target = $region20
        $region19: #{tpu_custom_call.1} parent=11 // pred_region
          _
        $region20: #{tpu_custom_call.1} parent=11 // pred_fallthru
          _
        // Predicated region
        $region21: #{tpu_custom_call.1} parent=11 // pred_check
          %p231 = pneg %p110
        $region22: #{tpu_custom_call.1} parent=11 // pred_check_branch
          %233 = sbr.rel (%p231) target = $region24
        $region23: #{tpu_custom_call.1} parent=11 // pred_region
          %235 = vsyncadd [#allocation7], 0
          %s236 = sshll.u32 %s3, 4
          %s237 = int_to_ptr.hbm [resolvable:$true] %s236
          %s238 = sshll.u32 [#allocation8], 4
          %s239 = int_to_ptr.vmem [resolvable:$true] %s238
          %244 = dma.hbm_to_vmem [thread:$0]  %s237, 9216, %s239, [#allocation7], 64, 64, 4
        $region24: #{tpu_custom_call.1} parent=11 // pred_fallthru
          _
        // Predicated region
        $region25: #{tpu_custom_call.1} parent=11 // pred_check
          %p245 = pneg %p131
        $region26: #{tpu_custom_call.1} parent=11 // pred_check_branch
          %247 = sbr.rel (%p245) target = $region28
        $region27: #{tpu_custom_call.1} parent=11 // pred_region
          _
        $region28: #{tpu_custom_call.1} parent=11 // pred_fallthru
          _
        // Predicated region
        $region29: #{tpu_custom_call.1} parent=11 // pred_check
          %p248 = pneg %p152
        $region30: #{tpu_custom_call.1} parent=11 // pred_check_branch
          %250 = sbr.rel (%p248) target = $region32
        $region31: #{tpu_custom_call.1} parent=11 // pred_region
          %252 = vsyncadd [#allocation10], 0
          %s253 = sshll.u32 %s5, 4
          %s254 = int_to_ptr.hbm [resolvable:$true] %s253
          %s255 = sshll.u32 [#allocation9], 4
          %s256 = int_to_ptr.vmem [resolvable:$true] %s255
          %261 = dma.hbm_to_vmem [thread:$0]  %s254, 1024, %s256, [#allocation10], 64, 64, 4
        $region32: #{tpu_custom_call.1} parent=11 // pred_fallthru
          _
        // Predicated region
        $region33: #{tpu_custom_call.1} parent=11 // pred_check
          %p262 = pneg %p173
        $region34: #{tpu_custom_call.1} parent=11 // pred_check_branch
          %264 = sbr.rel (%p262) target = $region36
        $region35: #{tpu_custom_call.1} parent=11 // pred_region
          _
        $region36: #{tpu_custom_call.1} parent=11 // pred_fallthru
          _
      $region12: #{tpu_custom_call.1} parent=5 // pred_fallthru
        _
      %p265 = scmp.lt.s32.totalorder %s21, 2
      // Predicated region
      $region37: #{tpu_custom_call.1} parent=5 // pred_check
        %p266 = pneg %p265
      $region38: #{tpu_custom_call.1} parent=5 // pred_check_branch
        %268 = sbr.rel (%p266) target = $region40
      $region39: #{tpu_custom_call.1} parent=5 // pred_region
        // Predicated region
        $region41: #{tpu_custom_call.1} parent=39 // pred_check
          %p269 = pneg %p41
        $region42: #{tpu_custom_call.1} parent=39 // pred_check_branch
          %271 = sbr.rel (%p269) target = $region44
        $region43: #{tpu_custom_call.1} parent=39 // pred_region
          %s272 = sand.u32 %s31, 1
          %s273 = scalar_lea.sflag [#allocation4], %s272
          %s274 = sand.u32 %s31, 1
          %s275 = smul.addr %s274, 512
          %s276 = scalar_lea.vmem [#allocation3], %s275
          %s277 = smul.u32 2, %s21
          %279 = vsyncadd %s273, 0
          %s280 = smul.addr %s277, 32
          %s281 = smul.addr %s280, 8
          %s282 = scalar_lea.hbm %s0, %s281
          %s283 = sshll.u32 %s282, 4
          %s284 = int_to_ptr.hbm [resolvable:$true] %s283
          %s285 = sshll.u32 %s276, 4
          %s286 = int_to_ptr.vmem [resolvable:$true] %s285
          %291 = dma.hbm_to_vmem [thread:$0]  %s284, 8192, %s286, %s273, 128, 128, 8
        $region44: #{tpu_custom_call.1} parent=39 // pred_fallthru
          _
      $region40: #{tpu_custom_call.1} parent=5 // pred_fallthru
        _
      %p292 = scmp.le.s32.totalorder 1, %s21
      %p293 = scmp.lt.s32.totalorder %s21, 3
      %p294 = pnand %p292, %p293
      %p295 = pneg %p294
      // Predicated region
      $region45: #{tpu_custom_call.1} parent=5 // pred_check
        _
      $region46: #{tpu_custom_call.1} parent=5 // pred_check_branch
        %297 = sbr.rel (%p294) target = $region48
      $region47: #{tpu_custom_call.1} parent=5 // pred_region
        %s298 = ssub.s32 %s21, 1
        %s299 = sand.u32 %s34, 1
        %s300 = scalar_lea.sflag [#allocation4], %s299
        %s301 = sand.u32 %s34, 1
        %s302 = smul.addr %s301, 512
        %s303 = scalar_lea.vmem [#allocation3], %s302
        // Predicated region
        $region49: #{tpu_custom_call.1} parent=47 // pred_check
          %p304 = pneg %p47
        $region50: #{tpu_custom_call.1} parent=47 // pred_check_branch
          %306 = sbr.rel (%p304) target = $region52
        $region51: #{tpu_custom_call.1} parent=47 // pred_region
          %308 = dma.done %s300, 8192
        $region52: #{tpu_custom_call.1} parent=47 // pred_fallthru
          _
        // Predicated region
        $region53: #{tpu_custom_call.1} parent=47 // pred_check
          %p309 = pneg %p68
        $region54: #{tpu_custom_call.1} parent=47 // pred_check_branch
          %311 = sbr.rel (%p309) target = $region56
        $region55: #{tpu_custom_call.1} parent=47 // pred_region
          %313 = dma.done [#allocation7], 1024
        $region56: #{tpu_custom_call.1} parent=47 // pred_fallthru
          _
        // Predicated region
        $region57: #{tpu_custom_call.1} parent=47 // pred_check
          %p314 = pneg %p110
        $region58: #{tpu_custom_call.1} parent=47 // pred_check_branch
          %316 = sbr.rel (%p314) target = $region60
        $region59: #{tpu_custom_call.1} parent=47 // pred_region
          %318 = dma.done [#allocation7], 9216
        $region60: #{tpu_custom_call.1} parent=47 // pred_fallthru
          _
        // Predicated region
        $region61: #{tpu_custom_call.1} parent=47 // pred_check
          %p319 = pneg %p152
        $region62: #{tpu_custom_call.1} parent=47 // pred_check_branch
          %321 = sbr.rel (%p319) target = $region64
        $region63: #{tpu_custom_call.1} parent=47 // pred_region
          %323 = dma.done [#allocation10], 1024
        $region64: #{tpu_custom_call.1} parent=47 // pred_fallthru
          _
        %s324 = sand.u32 %s34, 1
        %s325 = scalar_lea.sflag [#allocation4], %s324
        %s326 = sand.u32 %s34, 1
        %s327 = smul.addr %s326, 512
        %s328 = scalar_lea.vmem [#allocation3], %s327
        %p329 = pneg %p47
        %p330 = pneg %p44
        %p331 = pneg %p68
        %p332 = pneg %p65
        %p333 = pneg %p89
        %p334 = pneg %p86
        %p335 = pneg %p110
        %p336 = pneg %p107
        %p337 = pneg %p131
        %p338 = pneg %p128
        %p339 = pneg %p152
        %p340 = pneg %p149
        %p341 = pneg %p173
        %p342 = pneg %p170
        %p343 = pneg %p199
        %p344 = pneg %p196
        %s345 = sand.u32 %s186, 1
        %s346 = scalar_lea.sflag [#allocation5], %s345
        %s347 = sand.u32 %s186, 1
        %s348 = smul.addr %s347, 512
        %s349 = scalar_lea.vmem [#allocation11], %s348
        %s350 = smul.u32 2, %s26
        %s351 = smul.u32 2, %s26
        %v353 = vld [vmem:[%s303] sm:$0xff]
        %v354 = vld [vmem:[%s303 + $0x8] sm:$0xff]
        %v355 = vld [vmem:[%s303 + $0x10] sm:$0xff]
        %v356 = vld [vmem:[%s303 + $0x18] sm:$0xff]
        %v357 = vld [vmem:[%s303 + $0x20] sm:$0xff]
        %v358 = vld [vmem:[%s303 + $0x28] sm:$0xff]
        %v359 = vld [vmem:[%s303 + $0x30] sm:$0xff]
        %v360 = vld [vmem:[%s303 + $0x38] sm:$0xff]
        %v361 = vld [vmem:[%s303 + $0x40] sm:$0xff]
        %v362 = vld [vmem:[%s303 + $0x48] sm:$0xff]
        %v363 = vld [vmem:[%s303 + $0x50] sm:$0xff]
        %v364 = vld [vmem:[%s303 + $0x58] sm:$0xff]
        %v365 = vld [vmem:[%s303 + $0x60] sm:$0xff]
        %v366 = vld [vmem:[%s303 + $0x68] sm:$0xff]
        %v367 = vld [vmem:[%s303 + $0x70] sm:$0xff]
        %v368 = vld [vmem:[%s303 + $0x78] sm:$0xff]
        %v369 = vld [vmem:[%s303 + $0x80] sm:$0xff]
        %v370 = vld [vmem:[%s303 + $0x88] sm:$0xff]
        %v371 = vld [vmem:[%s303 + $0x90] sm:$0xff]
        %v372 = vld [vmem:[%s303 + $0x98] sm:$0xff]
        %v373 = vld [vmem:[%s303 + $0xa0] sm:$0xff]
        %v374 = vld [vmem:[%s303 + $0xa8] sm:$0xff]
        %v375 = vld [vmem:[%s303 + $0xb0] sm:$0xff]
        %v376 = vld [vmem:[%s303 + $0xb8] sm:$0xff]
        %v377 = vld [vmem:[%s303 + $0xc0] sm:$0xff]
        %v378 = vld [vmem:[%s303 + $0xc8] sm:$0xff]
        %v379 = vld [vmem:[%s303 + $0xd0] sm:$0xff]
        %v380 = vld [vmem:[%s303 + $0xd8] sm:$0xff]
        %v381 = vld [vmem:[%s303 + $0xe0] sm:$0xff]
        %v382 = vld [vmem:[%s303 + $0xe8] sm:$0xff]
        %v383 = vld [vmem:[%s303 + $0xf0] sm:$0xff]
        %v384 = vld [vmem:[%s303 + $0xf8] sm:$0xff]
        %v385 = vld [vmem:[%s303 + $0x100] sm:$0xff]
        %v386 = vld [vmem:[%s303 + $0x108] sm:$0xff]
        %v387 = vld [vmem:[%s303 + $0x110] sm:$0xff]
        %v388 = vld [vmem:[%s303 + $0x118] sm:$0xff]
        %v389 = vld [vmem:[%s303 + $0x120] sm:$0xff]
        %v390 = vld [vmem:[%s303 + $0x128] sm:$0xff]
        %v391 = vld [vmem:[%s303 + $0x130] sm:$0xff]
        %v392 = vld [vmem:[%s303 + $0x138] sm:$0xff]
        %v393 = vld [vmem:[%s303 + $0x140] sm:$0xff]
        %v394 = vld [vmem:[%s303 + $0x148] sm:$0xff]
        %v395 = vld [vmem:[%s303 + $0x150] sm:$0xff]
        %v396 = vld [vmem:[%s303 + $0x158] sm:$0xff]
        %v397 = vld [vmem:[%s303 + $0x160] sm:$0xff]
        %v398 = vld [vmem:[%s303 + $0x168] sm:$0xff]
        %v399 = vld [vmem:[%s303 + $0x170] sm:$0xff]
        %v400 = vld [vmem:[%s303 + $0x178] sm:$0xff]
        %v401 = vld [vmem:[%s303 + $0x180] sm:$0xff]
        %v402 = vld [vmem:[%s303 + $0x188] sm:$0xff]
        %v403 = vld [vmem:[%s303 + $0x190] sm:$0xff]
        %v404 = vld [vmem:[%s303 + $0x198] sm:$0xff]
        %v405 = vld [vmem:[%s303 + $0x1a0] sm:$0xff]
        %v406 = vld [vmem:[%s303 + $0x1a8] sm:$0xff]
        %v407 = vld [vmem:[%s303 + $0x1b0] sm:$0xff]
        %v408 = vld [vmem:[%s303 + $0x1b8] sm:$0xff]
        %v409 = vld [vmem:[%s303 + $0x1c0] sm:$0xff]
        %v410 = vld [vmem:[%s303 + $0x1c8] sm:$0xff]
        %v411 = vld [vmem:[%s303 + $0x1d0] sm:$0xff]
        %v412 = vld [vmem:[%s303 + $0x1d8] sm:$0xff]
        %v413 = vld [vmem:[%s303 + $0x1e0] sm:$0xff]
        %v414 = vld [vmem:[%s303 + $0x1e8] sm:$0xff]
        %v415 = vld [vmem:[%s303 + $0x1f0] sm:$0xff]
        %v416 = vld [vmem:[%s303 + $0x1f8] sm:$0xff]
        %v417 = vpack.c.bf16 %v354, %v353
        %v418 = vpack.c.bf16 %v356, %v355
        %v419 = vpack.c.bf16 %v358, %v357
        %v420 = vpack.c.bf16 %v360, %v359
        %v421 = vpack.c.bf16 %v362, %v361
        %v422 = vpack.c.bf16 %v364, %v363
        %v423 = vpack.c.bf16 %v366, %v365
        %v424 = vpack.c.bf16 %v368, %v367
        %v425 = vpack.c.bf16 %v370, %v369
        %v426 = vpack.c.bf16 %v372, %v371
        %v427 = vpack.c.bf16 %v374, %v373
        %v428 = vpack.c.bf16 %v376, %v375
        %v429 = vpack.c.bf16 %v378, %v377
        %v430 = vpack.c.bf16 %v380, %v379
        %v431 = vpack.c.bf16 %v382, %v381
        %v432 = vpack.c.bf16 %v384, %v383
        %v433 = vpack.c.bf16 %v386, %v385
        %v434 = vpack.c.bf16 %v388, %v387
        %v435 = vpack.c.bf16 %v390, %v389
        %v436 = vpack.c.bf16 %v392, %v391
        %v437 = vpack.c.bf16 %v394, %v393
        %v438 = vpack.c.bf16 %v396, %v395
        %v439 = vpack.c.bf16 %v398, %v397
        %v440 = vpack.c.bf16 %v400, %v399
        %v441 = vpack.c.bf16 %v402, %v401
        %v442 = vpack.c.bf16 %v404, %v403
        %v443 = vpack.c.bf16 %v406, %v405
        %v444 = vpack.c.bf16 %v408, %v407
        %v445 = vpack.c.bf16 %v410, %v409
        %v446 = vpack.c.bf16 %v412, %v411
        %v447 = vpack.c.bf16 %v414, %v413
        %v448 = vpack.c.bf16 %v416, %v415
        %v449 = vld [vmem:[#allocation6] sm:$0xf]
        %v450 = vld [vmem:[#allocation6 + $0x4] sm:$0xf]
        %v451 = vld [vmem:[#allocation6 + $0x8] sm:$0xf]
        %v452 = vld [vmem:[#allocation6 + $0xc] sm:$0xf]
        %v453 = vld [vmem:[#allocation6 + $0x10] sm:$0xf]
        %v454 = vld [vmem:[#allocation6 + $0x14] sm:$0xf]
        %v455 = vld [vmem:[#allocation6 + $0x18] sm:$0xf]
        %v456 = vld [vmem:[#allocation6 + $0x1c] sm:$0xf]
        %v457 = vld [vmem:[#allocation6 + $0x20] sm:$0xf]
        %v458 = vld [vmem:[#allocation6 + $0x24] sm:$0xf]
        %v459 = vld [vmem:[#allocation6 + $0x28] sm:$0xf]
        %v460 = vld [vmem:[#allocation6 + $0x2c] sm:$0xf]
        %v461 = vld [vmem:[#allocation6 + $0x30] sm:$0xf]
        %v462 = vld [vmem:[#allocation6 + $0x34] sm:$0xf]
        %v463 = vld [vmem:[#allocation6 + $0x38] sm:$0xf]
        %v464 = vld [vmem:[#allocation6 + $0x3c] sm:$0xf]
        %v465 = vld [vmem:[%s2] sm:$0x1]
        %v467 = vperm.slane %v465, 0
        %v485 = vunpack.c.l.b16 %v449
        %v486 = vunpack.c.l.b16 %v450
        %v487 = vunpack.c.l.b16 %v451
        %v488 = vunpack.c.l.b16 %v452
        %v489 = vunpack.c.l.b16 %v453
        %v490 = vunpack.c.l.b16 %v454
        %v491 = vunpack.c.l.b16 %v455
        %v492 = vunpack.c.l.b16 %v456
        %v493 = vunpack.c.l.b16 %v457
        %v494 = vunpack.c.l.b16 %v458
        %v495 = vunpack.c.l.b16 %v459
        %v496 = vunpack.c.l.b16 %v460
        %v497 = vunpack.c.l.b16 %v461
        %v498 = vunpack.c.l.b16 %v462
        %v499 = vunpack.c.l.b16 %v463
        %v500 = vunpack.c.l.b16 %v464
        %v501 = vpack.c.b16 %v486, %v485
        %v502 = vpack.c.b16 %v488, %v487
        %v503 = vpack.c.b16 %v490, %v489
        %v504 = vpack.c.b16 %v492, %v491
        %v505 = vpack.c.b16 %v494, %v493
        %v506 = vpack.c.b16 %v496, %v495
        %v507 = vpack.c.b16 %v498, %v497
        %v508 = vpack.c.b16 %v500, %v499
        %517 = vmatpush.bf16.msra.mxu0 %v508
        %518 = vmatpush.bf16.msra.mxu0 %v507
        %519 = vmatpush.bf16.msra.mxu0 %v506
        %520 = vmatpush.bf16.msra.mxu0 %v505
        %521 = vmatpush.bf16.msra.mxu0 %v504
        %522 = vmatpush.bf16.msra.mxu0 %v503
        %523 = vmatpush.bf16.msra.mxu0 %v502
        %524 = vmatpush.bf16.msra.mxu0 %v501
        %525 = vmatmul.bf16.gmra.mxu0 %v417
        %v526 = vpop.f32.mrf.mxu0
        %v527 = vadd.f32 %v467, %v526
        %v528 = vpop.f32.mrf.mxu0
        %v529 = vadd.f32 %v467, %v528
        %530 = vmatmul.bf16.gmra.mxu0 %v418
        %v531 = vpop.f32.mrf.mxu0
        %v532 = vadd.f32 %v467, %v531
        %v533 = vpop.f32.mrf.mxu0
        %v534 = vadd.f32 %v467, %v533
        %535 = vmatmul.bf16.gmra.mxu0 %v419
        %v536 = vpop.f32.mrf.mxu0
        %v537 = vadd.f32 %v467, %v536
        %v538 = vpop.f32.mrf.mxu0
        %v539 = vadd.f32 %v467, %v538
        %540 = vmatmul.bf16.gmra.mxu0 %v420
        %v541 = vpop.f32.mrf.mxu0
        %v542 = vadd.f32 %v467, %v541
        %v543 = vpop.f32.mrf.mxu0
        %v544 = vadd.f32 %v467, %v543
        %545 = vmatmul.bf16.gmra.mxu0 %v421
        %v546 = vpop.f32.mrf.mxu0
        %v547 = vadd.f32 %v467, %v546
        %v548 = vpop.f32.mrf.mxu0
        %v549 = vadd.f32 %v467, %v548
        %550 = vmatmul.bf16.gmra.mxu0 %v422
        %v551 = vpop.f32.mrf.mxu0
        %v552 = vadd.f32 %v467, %v551
        %v553 = vpop.f32.mrf.mxu0
        %v554 = vadd.f32 %v467, %v553
        %555 = vmatmul.bf16.gmra.mxu0 %v423
        %v556 = vpop.f32.mrf.mxu0
        %v557 = vadd.f32 %v467, %v556
        %v558 = vpop.f32.mrf.mxu0
        %v559 = vadd.f32 %v467, %v558
        %560 = vmatmul.bf16.gmra.mxu0 %v424
        %v561 = vpop.f32.mrf.mxu0
        %v562 = vadd.f32 %v467, %v561
        %v563 = vpop.f32.mrf.mxu0
        %v564 = vadd.f32 %v467, %v563
        %565 = vmatmul.bf16.gmra.mxu0 %v425
        %v566 = vpop.f32.mrf.mxu0
        %v567 = vadd.f32 %v467, %v566
        %v568 = vpop.f32.mrf.mxu0
        %v569 = vadd.f32 %v467, %v568
        %570 = vmatmul.bf16.gmra.mxu0 %v426
        %v571 = vpop.f32.mrf.mxu0
        %v572 = vadd.f32 %v467, %v571
        %v573 = vpop.f32.mrf.mxu0
        %v574 = vadd.f32 %v467, %v573
        %575 = vmatmul.bf16.gmra.mxu0 %v427
        %v576 = vpop.f32.mrf.mxu0
        %v577 = vadd.f32 %v467, %v576
        %v578 = vpop.f32.mrf.mxu0
        %v579 = vadd.f32 %v467, %v578
        %580 = vmatmul.bf16.gmra.mxu0 %v428
        %v581 = vpop.f32.mrf.mxu0
        %v582 = vadd.f32 %v467, %v581
        %v583 = vpop.f32.mrf.mxu0
        %v584 = vadd.f32 %v467, %v583
        %585 = vmatmul.bf16.gmra.mxu0 %v429
        %v586 = vpop.f32.mrf.mxu0
        %v587 = vadd.f32 %v467, %v586
        %v588 = vpop.f32.mrf.mxu0
        %v589 = vadd.f32 %v467, %v588
        %590 = vmatmul.bf16.gmra.mxu0 %v430
        %v591 = vpop.f32.mrf.mxu0
        %v592 = vadd.f32 %v467, %v591
        %v593 = vpop.f32.mrf.mxu0
        %v594 = vadd.f32 %v467, %v593
        %595 = vmatmul.bf16.gmra.mxu0 %v431
        %v596 = vpop.f32.mrf.mxu0
        %v597 = vadd.f32 %v467, %v596
        %v598 = vpop.f32.mrf.mxu0
        %v599 = vadd.f32 %v467, %v598
        %600 = vmatmul.bf16.gmra.mxu0 %v432
        %v601 = vpop.f32.mrf.mxu0
        %v602 = vadd.f32 %v467, %v601
        %v603 = vpop.f32.mrf.mxu0
        %v604 = vadd.f32 %v467, %v603
        %605 = vmatmul.bf16.gmra.mxu0 %v433
        %v606 = vpop.f32.mrf.mxu0
        %v607 = vadd.f32 %v467, %v606
        %v608 = vpop.f32.mrf.mxu0
        %v609 = vadd.f32 %v467, %v608
        %610 = vmatmul.bf16.gmra.mxu0 %v434
        %v611 = vpop.f32.mrf.mxu0
        %v612 = vadd.f32 %v467, %v611
        %v613 = vpop.f32.mrf.mxu0
        %v614 = vadd.f32 %v467, %v613
        %615 = vmatmul.bf16.gmra.mxu0 %v435
        %v616 = vpop.f32.mrf.mxu0
        %v617 = vadd.f32 %v467, %v616
        %v618 = vpop.f32.mrf.mxu0
        %v619 = vadd.f32 %v467, %v618
        %620 = vmatmul.bf16.gmra.mxu0 %v436
        %v621 = vpop.f32.mrf.mxu0
        %v622 = vadd.f32 %v467, %v621
        %v623 = vpop.f32.mrf.mxu0
        %v624 = vadd.f32 %v467, %v623
        %625 = vmatmul.bf16.gmra.mxu0 %v437
        %v626 = vpop.f32.mrf.mxu0
        %v627 = vadd.f32 %v467, %v626
        %v628 = vpop.f32.mrf.mxu0
        %v629 = vadd.f32 %v467, %v628
        %630 = vmatmul.bf16.gmra.mxu0 %v438
        %v631 = vpop.f32.mrf.mxu0
        %v632 = vadd.f32 %v467, %v631
        %v633 = vpop.f32.mrf.mxu0
        %v634 = vadd.f32 %v467, %v633
        %635 = vmatmul.bf16.gmra.mxu0 %v439
        %v636 = vpop.f32.mrf.mxu0
        %v637 = vadd.f32 %v467, %v636
        %v638 = vpop.f32.mrf.mxu0
        %v639 = vadd.f32 %v467, %v638
        %640 = vmatmul.bf16.gmra.mxu0 %v440
        %v641 = vpop.f32.mrf.mxu0
        %v642 = vadd.f32 %v467, %v641
        %v643 = vpop.f32.mrf.mxu0
        %v644 = vadd.f32 %v467, %v643
        %645 = vmatmul.bf16.gmra.mxu0 %v441
        %v646 = vpop.f32.mrf.mxu0
        %v647 = vadd.f32 %v467, %v646
        %v648 = vpop.f32.mrf.mxu0
        %v649 = vadd.f32 %v467, %v648
        %650 = vmatmul.bf16.gmra.mxu0 %v442
        %v651 = vpop.f32.mrf.mxu0
        %v652 = vadd.f32 %v467, %v651
        %v653 = vpop.f32.mrf.mxu0
        %v654 = vadd.f32 %v467, %v653
        %655 = vmatmul.bf16.gmra.mxu0 %v443
        %v656 = vpop.f32.mrf.mxu0
        %v657 = vadd.f32 %v467, %v656
        %v658 = vpop.f32.mrf.mxu0
        %v659 = vadd.f32 %v467, %v658
        %660 = vmatmul.bf16.gmra.mxu0 %v444
        %v661 = vpop.f32.mrf.mxu0
        %v662 = vadd.f32 %v467, %v661
        %v663 = vpop.f32.mrf.mxu0
        %v664 = vadd.f32 %v467, %v663
        %665 = vmatmul.bf16.gmra.mxu0 %v445
        %v666 = vpop.f32.mrf.mxu0
        %v667 = vadd.f32 %v467, %v666
        %v668 = vpop.f32.mrf.mxu0
        %v669 = vadd.f32 %v467, %v668
        %670 = vmatmul.bf16.gmra.mxu0 %v446
        %v671 = vpop.f32.mrf.mxu0
        %v672 = vadd.f32 %v467, %v671
        %v673 = vpop.f32.mrf.mxu0
        %v674 = vadd.f32 %v467, %v673
        %675 = vmatmul.bf16.gmra.mxu0 %v447
        %v676 = vpop.f32.mrf.mxu0
        %v677 = vadd.f32 %v467, %v676
        %v678 = vpop.f32.mrf.mxu0
        %v679 = vadd.f32 %v467, %v678
        %680 = vmatmul.bf16.gmra.mxu0 %v448
        %v681 = vpop.f32.mrf.mxu0
        %v682 = vadd.f32 %v467, %v681
        %v683 = vpop.f32.mrf.mxu0
        %v684 = vadd.f32 %v467, %v683
        %685 = vdwg.mxu0
        %v686 = vmax.f32 %v527, 0.0
        %v687 = vmax.f32 %v529, 0.0
        %v688 = vmax.f32 %v532, 0.0
        %v689 = vmax.f32 %v534, 0.0
        %v690 = vmax.f32 %v537, 0.0
        %v691 = vmax.f32 %v539, 0.0
        %v692 = vmax.f32 %v542, 0.0
        %v693 = vmax.f32 %v544, 0.0
        %v694 = vmax.f32 %v547, 0.0
        %v695 = vmax.f32 %v549, 0.0
        %v696 = vmax.f32 %v552, 0.0
        %v697 = vmax.f32 %v554, 0.0
        %v698 = vmax.f32 %v557, 0.0
        %v699 = vmax.f32 %v559, 0.0
        %v700 = vmax.f32 %v562, 0.0
        %v701 = vmax.f32 %v564, 0.0
        %v702 = vmax.f32 %v567, 0.0
        %v703 = vmax.f32 %v569, 0.0
        %v704 = vmax.f32 %v572, 0.0
        %v705 = vmax.f32 %v574, 0.0
        %v706 = vmax.f32 %v577, 0.0
        %v707 = vmax.f32 %v579, 0.0
        %v708 = vmax.f32 %v582, 0.0
        %v709 = vmax.f32 %v584, 0.0
        %v710 = vmax.f32 %v587, 0.0
        %v711 = vmax.f32 %v589, 0.0
        %v712 = vmax.f32 %v592, 0.0
        %v713 = vmax.f32 %v594, 0.0
        %v714 = vmax.f32 %v597, 0.0
        %v715 = vmax.f32 %v599, 0.0
        %v716 = vmax.f32 %v602, 0.0
        %v717 = vmax.f32 %v604, 0.0
        %v718 = vmax.f32 %v607, 0.0
        %v719 = vmax.f32 %v609, 0.0
        %v720 = vmax.f32 %v612, 0.0
        %v721 = vmax.f32 %v614, 0.0
        %v722 = vmax.f32 %v617, 0.0
        %v723 = vmax.f32 %v619, 0.0
        %v724 = vmax.f32 %v622, 0.0
        %v725 = vmax.f32 %v624, 0.0
        %v726 = vmax.f32 %v627, 0.0
        %v727 = vmax.f32 %v629, 0.0
        %v728 = vmax.f32 %v632, 0.0
        %v729 = vmax.f32 %v634, 0.0
        %v730 = vmax.f32 %v637, 0.0
        %v731 = vmax.f32 %v639, 0.0
        %v732 = vmax.f32 %v642, 0.0
        %v733 = vmax.f32 %v644, 0.0
        %v734 = vmax.f32 %v647, 0.0
        %v735 = vmax.f32 %v649, 0.0
        %v736 = vmax.f32 %v652, 0.0
        %v737 = vmax.f32 %v654, 0.0
        %v738 = vmax.f32 %v657, 0.0
        %v739 = vmax.f32 %v659, 0.0
        %v740 = vmax.f32 %v662, 0.0
        %v741 = vmax.f32 %v664, 0.0
        %v742 = vmax.f32 %v667, 0.0
        %v743 = vmax.f32 %v669, 0.0
        %v744 = vmax.f32 %v672, 0.0
        %v745 = vmax.f32 %v674, 0.0
        %v746 = vmax.f32 %v677, 0.0
        %v747 = vmax.f32 %v679, 0.0
        %v748 = vmax.f32 %v682, 0.0
        %v749 = vmax.f32 %v684, 0.0
        %v750 = vpack.c.bf16 %v686, %v686
        %v751 = vpack.c.bf16 %v687, %v687
        %v752 = vpack.c.bf16 %v688, %v688
        %v753 = vpack.c.bf16 %v689, %v689
        %v754 = vpack.c.bf16 %v690, %v690
        %v755 = vpack.c.bf16 %v691, %v691
        %v756 = vpack.c.bf16 %v692, %v692
        %v757 = vpack.c.bf16 %v693, %v693
        %v758 = vpack.c.bf16 %v694, %v694
        %v759 = vpack.c.bf16 %v695, %v695
        %v760 = vpack.c.bf16 %v696, %v696
        %v761 = vpack.c.bf16 %v697, %v697
        %v762 = vpack.c.bf16 %v698, %v698
        %v763 = vpack.c.bf16 %v699, %v699
        %v764 = vpack.c.bf16 %v700, %v700
        %v765 = vpack.c.bf16 %v701, %v701
        %v766 = vpack.c.bf16 %v702, %v702
        %v767 = vpack.c.bf16 %v703, %v703
        %v768 = vpack.c.bf16 %v704, %v704
        %v769 = vpack.c.bf16 %v705, %v705
        %v770 = vpack.c.bf16 %v706, %v706
        %v771 = vpack.c.bf16 %v707, %v707
        %v772 = vpack.c.bf16 %v708, %v708
        %v773 = vpack.c.bf16 %v709, %v709
        %v774 = vpack.c.bf16 %v710, %v710
        %v775 = vpack.c.bf16 %v711, %v711
        %v776 = vpack.c.bf16 %v712, %v712
        %v777 = vpack.c.bf16 %v713, %v713
        %v778 = vpack.c.bf16 %v714, %v714
        %v779 = vpack.c.bf16 %v715, %v715
        %v780 = vpack.c.bf16 %v716, %v716
        %v781 = vpack.c.bf16 %v717, %v717
        %v782 = vpack.c.bf16 %v718, %v718
        %v783 = vpack.c.bf16 %v719, %v719
        %v784 = vpack.c.bf16 %v720, %v720
        %v785 = vpack.c.bf16 %v721, %v721
        %v786 = vpack.c.bf16 %v722, %v722
        %v787 = vpack.c.bf16 %v723, %v723
        %v788 = vpack.c.bf16 %v724, %v724
        %v789 = vpack.c.bf16 %v725, %v725
        %v790 = vpack.c.bf16 %v726, %v726
        %v791 = vpack.c.bf16 %v727, %v727
        %v792 = vpack.c.bf16 %v728, %v728
        %v793 = vpack.c.bf16 %v729, %v729
        %v794 = vpack.c.bf16 %v730, %v730
        %v795 = vpack.c.bf16 %v731, %v731
        %v796 = vpack.c.bf16 %v732, %v732
        %v797 = vpack.c.bf16 %v733, %v733
        %v798 = vpack.c.bf16 %v734, %v734
        %v799 = vpack.c.bf16 %v735, %v735
        %v800 = vpack.c.bf16 %v736, %v736
        %v801 = vpack.c.bf16 %v737, %v737
        %v802 = vpack.c.bf16 %v738, %v738
        %v803 = vpack.c.bf16 %v739, %v739
        %v804 = vpack.c.bf16 %v740, %v740
        %v805 = vpack.c.bf16 %v741, %v741
        %v806 = vpack.c.bf16 %v742, %v742
        %v807 = vpack.c.bf16 %v743, %v743
        %v808 = vpack.c.bf16 %v744, %v744
        %v809 = vpack.c.bf16 %v745, %v745
        %v810 = vpack.c.bf16 %v746, %v746
        %v811 = vpack.c.bf16 %v747, %v747
        %v812 = vpack.c.bf16 %v748, %v748
        %v813 = vpack.c.bf16 %v749, %v749
        %814 = vst [vmem:[#allocation2] sm:$0xff] 0
        %815 = vst [vmem:[#allocation2 + $0x8] sm:$0xf] 0
        %816 = vst [vmem:[#allocation2 + $0xc] sm:$0xff] 0
        %817 = vst [vmem:[#allocation2 + $0x14] sm:$0xf] 0
        %818 = vst [vmem:[#allocation2 + $0x18] sm:$0x11] 0
        %819 = vst [vmem:[#allocation2 + $0x20] sm:$0x1] 0
        %820 = vst [vmem:[#allocation2 + $0x288] sm:$0xff] 0
        %821 = vst [vmem:[#allocation2 + $0x290] sm:$0xf] 0
        %822 = vst [vmem:[#allocation2 + $0x294] sm:$0xff] 0
        %823 = vst [vmem:[#allocation2 + $0x29c] sm:$0xf] 0
        %824 = vst [vmem:[#allocation2 + $0x2a0] sm:$0x11] 0
        %825 = vst [vmem:[#allocation2 + $0x2a8] sm:$0x1] 0
        %s826 = scalar_lea.vmem [#allocation2], 612
        %827 = vst [vmem:[%s826] sm:$0xff] 0
        %828 = vst [vmem:[%s826 + $0x8] sm:$0xf] 0
        %829 = vst [vmem:[%s826 + $0xc] sm:$0xff] 0
        %830 = vst [vmem:[%s826 + $0x14] sm:$0xf] 0
        %831 = vst [vmem:[%s826 + $0x18] sm:$0x11] 0
        %832 = vst [vmem:[%s826 + $0x20] sm:$0x1] 0
        %833 = vst [vmem:[%s826 + $0x288] sm:$0xff] 0
        %834 = vst [vmem:[%s826 + $0x290] sm:$0xf] 0
        %835 = vst [vmem:[%s826 + $0x294] sm:$0xff] 0
        %836 = vst [vmem:[%s826 + $0x29c] sm:$0xf] 0
        %837 = vst [vmem:[%s826 + $0x2a0] sm:$0x11] 0
        %838 = vst [vmem:[%s826 + $0x2a8] sm:$0x1] 0
        %s839 = scalar_lea.vmem [#allocation2], 36
        %vm840 = vcmask 1040384
        %vm841 = vsmask.f32 7938
        %vm842 = vmand %vm840, %vm841
        %v843 = vld [vmem:[%s839] sm:$0x1]
        %v844 = vsel %vm842, 0, %v843
        %845 = vst [vmem:[%s839] sm:$0x1] %v844
        %v846 = vld [vmem:[%s839 + $0x24] sm:$0x1]
        %v847 = vsel %vm842, 0, %v846
        %848 = vst [vmem:[%s839 + $0x24] sm:$0x1] %v847
        %v849 = vld [vmem:[%s839 + $0x48] sm:$0x1]
        %v850 = vsel %vm842, 0, %v849
        %851 = vst [vmem:[%s839 + $0x48] sm:$0x1] %v850
        %v852 = vld [vmem:[%s839 + $0x6c] sm:$0x1]
        %v853 = vsel %vm842, 0, %v852
        %854 = vst [vmem:[%s839 + $0x6c] sm:$0x1] %v853
        %v855 = vld [vmem:[%s839 + $0x90] sm:$0x1]
        %v856 = vsel %vm842, 0, %v855
        %857 = vst [vmem:[%s839 + $0x90] sm:$0x1] %v856
        %v858 = vld [vmem:[%s839 + $0xb4] sm:$0x1]
        %v859 = vsel %vm842, 0, %v858
        %860 = vst [vmem:[%s839 + $0xb4] sm:$0x1] %v859
        %v861 = vld [vmem:[%s839 + $0xd8] sm:$0x1]
        %v862 = vsel %vm842, 0, %v861
        %863 = vst [vmem:[%s839 + $0xd8] sm:$0x1] %v862
        %v864 = vld [vmem:[%s839 + $0xfc] sm:$0x1]
        %v865 = vsel %vm842, 0, %v864
        %866 = vst [vmem:[%s839 + $0xfc] sm:$0x1] %v865
        %v867 = vld [vmem:[%s839 + $0x120] sm:$0x1]
        %v868 = vsel %vm842, 0, %v867
        %869 = vst [vmem:[%s839 + $0x120] sm:$0x1] %v868
        %v870 = vld [vmem:[%s839 + $0x144] sm:$0x1]
        %v871 = vsel %vm842, 0, %v870
        %872 = vst [vmem:[%s839 + $0x144] sm:$0x1] %v871
        %v873 = vld [vmem:[%s839 + $0x168] sm:$0x1]
        %v874 = vsel %vm842, 0, %v873
        %875 = vst [vmem:[%s839 + $0x168] sm:$0x1] %v874
        %v876 = vld [vmem:[%s839 + $0x18c] sm:$0x1]
        %v877 = vsel %vm842, 0, %v876
        %878 = vst [vmem:[%s839 + $0x18c] sm:$0x1] %v877
        %v879 = vld [vmem:[%s839 + $0x1b0] sm:$0x1]
        %v880 = vsel %vm842, 0, %v879
        %881 = vst [vmem:[%s839 + $0x1b0] sm:$0x1] %v880
        %v882 = vld [vmem:[%s839 + $0x1d4] sm:$0x1]
        %v883 = vsel %vm842, 0, %v882
        %884 = vst [vmem:[%s839 + $0x1d4] sm:$0x1] %v883
        %v885 = vld [vmem:[%s839 + $0x1f8] sm:$0x1]
        %v886 = vsel %vm842, 0, %v885
        %887 = vst [vmem:[%s839 + $0x1f8] sm:$0x1] %v886
        %v888 = vld [vmem:[%s839 + $0x21c] sm:$0x1]
        %v889 = vsel %vm842, 0, %v888
        %890 = vst [vmem:[%s839 + $0x21c] sm:$0x1] %v889
        %v891 = vld [vmem:[%s839 + $0x288] sm:$0x1]
        %v892 = vsel %vm842, 0, %v891
        %893 = vst [vmem:[%s839 + $0x288] sm:$0x1] %v892
        %v894 = vld [vmem:[%s839 + $0x2ac] sm:$0x1]
        %v895 = vsel %vm842, 0, %v894
        %896 = vst [vmem:[%s839 + $0x2ac] sm:$0x1] %v895
        %v897 = vld [vmem:[%s839 + $0x2d0] sm:$0x1]
        %v898 = vsel %vm842, 0, %v897
        %899 = vst [vmem:[%s839 + $0x2d0] sm:$0x1] %v898
        %v900 = vld [vmem:[%s839 + $0x2f4] sm:$0x1]
        %v901 = vsel %vm842, 0, %v900
        %902 = vst [vmem:[%s839 + $0x2f4] sm:$0x1] %v901
        %v903 = vld [vmem:[%s839 + $0x318] sm:$0x1]
        %v904 = vsel %vm842, 0, %v903
        %905 = vst [vmem:[%s839 + $0x318] sm:$0x1] %v904
        %v906 = vld [vmem:[%s839 + $0x33c] sm:$0x1]
        %v907 = vsel %vm842, 0, %v906
        %908 = vst [vmem:[%s839 + $0x33c] sm:$0x1] %v907
        %v909 = vld [vmem:[%s839 + $0x360] sm:$0x1]
        %v910 = vsel %vm842, 0, %v909
        %911 = vst [vmem:[%s839 + $0x360] sm:$0x1] %v910
        %v912 = vld [vmem:[%s839 + $0x384] sm:$0x1]
        %v913 = vsel %vm842, 0, %v912
        %914 = vst [vmem:[%s839 + $0x384] sm:$0x1] %v913
        %v915 = vld [vmem:[%s839 + $0x3a8] sm:$0x1]
        %v916 = vsel %vm842, 0, %v915
        %917 = vst [vmem:[%s839 + $0x3a8] sm:$0x1] %v916
        %v918 = vld [vmem:[%s839 + $0x3cc] sm:$0x1]
        %v919 = vsel %vm842, 0, %v918
        %920 = vst [vmem:[%s839 + $0x3cc] sm:$0x1] %v919
        %v921 = vld [vmem:[%s839 + $0x3f0] sm:$0x1]
        %v922 = vsel %vm842, 0, %v921
        %923 = vst [vmem:[%s839 + $0x3f0] sm:$0x1] %v922
        %v924 = vld [vmem:[%s839 + $0x414] sm:$0x1]
        %v925 = vsel %vm842, 0, %v924
        %926 = vst [vmem:[%s839 + $0x414] sm:$0x1] %v925
        %v927 = vld [vmem:[%s839 + $0x438] sm:$0x1]
        %v928 = vsel %vm842, 0, %v927
        %929 = vst [vmem:[%s839 + $0x438] sm:$0x1] %v928
        %v930 = vld [vmem:[%s839 + $0x45c] sm:$0x1]
        %v931 = vsel %vm842, 0, %v930
        %932 = vst [vmem:[%s839 + $0x45c] sm:$0x1] %v931
        %v933 = vld [vmem:[%s839 + $0x480] sm:$0x1]
        %v934 = vsel %vm842, 0, %v933
        %935 = vst [vmem:[%s839 + $0x480] sm:$0x1] %v934
        %v936 = vld [vmem:[%s839 + $0x4a4] sm:$0x1]
        %v937 = vsel %vm842, 0, %v936
        %938 = vst [vmem:[%s839 + $0x4a4] sm:$0x1] %v937
        %vm939 = vsmask.f32 256
        %vm940 = vmand %vm840, %vm939
        %v941 = vld [vmem:[%s839 + $0x20] sm:$0x1]
        %v942 = vsel %vm940, 0, %v941
        %943 = vst [vmem:[%s839 + $0x20] sm:$0x1] %v942
        %v944 = vld [vmem:[%s839 + $0x44] sm:$0x1]
        %v945 = vsel %vm940, 0, %v944
        %946 = vst [vmem:[%s839 + $0x44] sm:$0x1] %v945
        %v947 = vld [vmem:[%s839 + $0x68] sm:$0x1]
        %v948 = vsel %vm940, 0, %v947
        %949 = vst [vmem:[%s839 + $0x68] sm:$0x1] %v948
        %v950 = vld [vmem:[%s839 + $0x8c] sm:$0x1]
        %v951 = vsel %vm940, 0, %v950
        %952 = vst [vmem:[%s839 + $0x8c] sm:$0x1] %v951
        %v953 = vld [vmem:[%s839 + $0xb0] sm:$0x1]
        %v954 = vsel %vm940, 0, %v953
        %955 = vst [vmem:[%s839 + $0xb0] sm:$0x1] %v954
        %v956 = vld [vmem:[%s839 + $0xd4] sm:$0x1]
        %v957 = vsel %vm940, 0, %v956
        %958 = vst [vmem:[%s839 + $0xd4] sm:$0x1] %v957
        %v959 = vld [vmem:[%s839 + $0xf8] sm:$0x1]
        %v960 = vsel %vm940, 0, %v959
        %961 = vst [vmem:[%s839 + $0xf8] sm:$0x1] %v960
        %v962 = vld [vmem:[%s839 + $0x11c] sm:$0x1]
        %v963 = vsel %vm940, 0, %v962
        %964 = vst [vmem:[%s839 + $0x11c] sm:$0x1] %v963
        %v965 = vld [vmem:[%s839 + $0x140] sm:$0x1]
        %v966 = vsel %vm940, 0, %v965
        %967 = vst [vmem:[%s839 + $0x140] sm:$0x1] %v966
        %v968 = vld [vmem:[%s839 + $0x164] sm:$0x1]
        %v969 = vsel %vm940, 0, %v968
        %970 = vst [vmem:[%s839 + $0x164] sm:$0x1] %v969
        %v971 = vld [vmem:[%s839 + $0x188] sm:$0x1]
        %v972 = vsel %vm940, 0, %v971
        %973 = vst [vmem:[%s839 + $0x188] sm:$0x1] %v972
        %v974 = vld [vmem:[%s839 + $0x1ac] sm:$0x1]
        %v975 = vsel %vm940, 0, %v974
        %976 = vst [vmem:[%s839 + $0x1ac] sm:$0x1] %v975
        %v977 = vld [vmem:[%s839 + $0x1d0] sm:$0x1]
        %v978 = vsel %vm940, 0, %v977
        %979 = vst [vmem:[%s839 + $0x1d0] sm:$0x1] %v978
        %v980 = vld [vmem:[%s839 + $0x1f4] sm:$0x1]
        %v981 = vsel %vm940, 0, %v980
        %982 = vst [vmem:[%s839 + $0x1f4] sm:$0x1] %v981
        %v983 = vld [vmem:[%s839 + $0x218] sm:$0x1]
        %v984 = vsel %vm940, 0, %v983
        %985 = vst [vmem:[%s839 + $0x218] sm:$0x1] %v984
        %v986 = vld [vmem:[%s839 + $0x23c] sm:$0x1]
        %v987 = vsel %vm940, 0, %v986
        %988 = vst [vmem:[%s839 + $0x23c] sm:$0x1] %v987
        %v989 = vld [vmem:[%s839 + $0x2a8] sm:$0x1]
        %v990 = vsel %vm940, 0, %v989
        %991 = vst [vmem:[%s839 + $0x2a8] sm:$0x1] %v990
        %v992 = vld [vmem:[%s839 + $0x2cc] sm:$0x1]
        %v993 = vsel %vm940, 0, %v992
        %994 = vst [vmem:[%s839 + $0x2cc] sm:$0x1] %v993
        %v995 = vld [vmem:[%s839 + $0x2f0] sm:$0x1]
        %v996 = vsel %vm940, 0, %v995
        %997 = vst [vmem:[%s839 + $0x2f0] sm:$0x1] %v996
        %v998 = vld [vmem:[%s839 + $0x314] sm:$0x1]
        %v999 = vsel %vm940, 0, %v998
        %1000 = vst [vmem:[%s839 + $0x314] sm:$0x1] %v999
        %v1001 = vld [vmem:[%s839 + $0x338] sm:$0x1]
        %v1002 = vsel %vm940, 0, %v1001
        %1003 = vst [vmem:[%s839 + $0x338] sm:$0x1] %v1002
        %v1004 = vld [vmem:[%s839 + $0x35c] sm:$0x1]
        %v1005 = vsel %vm940, 0, %v1004
        %1006 = vst [vmem:[%s839 + $0x35c] sm:$0x1] %v1005
        %v1007 = vld [vmem:[%s839 + $0x380] sm:$0x1]
        %v1008 = vsel %vm940, 0, %v1007
        %1009 = vst [vmem:[%s839 + $0x380] sm:$0x1] %v1008
        %v1010 = vld [vmem:[%s839 + $0x3a4] sm:$0x1]
        %v1011 = vsel %vm940, 0, %v1010
        %1012 = vst [vmem:[%s839 + $0x3a4] sm:$0x1] %v1011
        %v1013 = vld [vmem:[%s839 + $0x3c8] sm:$0x1]
        %v1014 = vsel %vm940, 0, %v1013
        %1015 = vst [vmem:[%s839 + $0x3c8] sm:$0x1] %v1014
        %v1016 = vld [vmem:[%s839 + $0x3ec] sm:$0x1]
        %v1017 = vsel %vm940, 0, %v1016
        %1018 = vst [vmem:[%s839 + $0x3ec] sm:$0x1] %v1017
        %v1019 = vld [vmem:[%s839 + $0x410] sm:$0x1]
        %v1020 = vsel %vm940, 0, %v1019
        %1021 = vst [vmem:[%s839 + $0x410] sm:$0x1] %v1020
        %v1022 = vld [vmem:[%s839 + $0x434] sm:$0x1]
        %v1023 = vsel %vm940, 0, %v1022
        %1024 = vst [vmem:[%s839 + $0x434] sm:$0x1] %v1023
        %v1025 = vld [vmem:[%s839 + $0x458] sm:$0x1]
        %v1026 = vsel %vm940, 0, %v1025
        %1027 = vst [vmem:[%s839 + $0x458] sm:$0x1] %v1026
        %v1028 = vld [vmem:[%s839 + $0x47c] sm:$0x1]
        %v1029 = vsel %vm940, 0, %v1028
        %1030 = vst [vmem:[%s839 + $0x47c] sm:$0x1] %v1029
        %v1031 = vld [vmem:[%s839 + $0x4a0] sm:$0x1]
        %v1032 = vsel %vm940, 0, %v1031
        %1033 = vst [vmem:[%s839 + $0x4a0] sm:$0x1] %v1032
        %v1034 = vld [vmem:[%s839 + $0x4c4] sm:$0x1]
        %v1035 = vsel %vm940, 0, %v1034
        %1036 = vst [vmem:[%s839 + $0x4c4] sm:$0x1] %v1035
        %vm1101 = vcmask 1044484
        %vm1102 = vmor %vm840, %vm1101
        %v1103 = vrot.slane %v750, 7
        %v1104 = vrot.slane %v1103, 4
        %v1105 = vrot.slane %v751, 7
        %v1106 = vsel %vm1102, %v1104, %v1105
        %v1107 = vrot.slane %v1105, 4
        %v1108 = vrot.slane %v752, 7
        %v1109 = vrot.slane %v1108, 4
        %v1110 = vrot.slane %v753, 7
        %v1111 = vsel %vm1102, %v1109, %v1110
        %v1112 = vrot.slane %v1110, 4
        %v1113 = vrot.slane %v754, 7
        %v1114 = vrot.slane %v1113, 4
        %v1115 = vrot.slane %v755, 7
        %v1116 = vsel %vm1102, %v1114, %v1115
        %v1117 = vrot.slane %v1115, 4
        %v1118 = vrot.slane %v756, 7
        %v1119 = vrot.slane %v1118, 4
        %v1120 = vrot.slane %v757, 7
        %v1121 = vsel %vm1102, %v1119, %v1120
        %v1122 = vrot.slane %v1120, 4
        %v1123 = vrot.slane %v758, 7
        %v1124 = vrot.slane %v1123, 4
        %v1125 = vrot.slane %v759, 7
        %v1126 = vsel %vm1102, %v1124, %v1125
        %v1127 = vrot.slane %v1125, 4
        %v1128 = vrot.slane %v760, 7
        %v1129 = vrot.slane %v1128, 4
        %v1130 = vrot.slane %v761, 7
        %v1131 = vsel %vm1102, %v1129, %v1130
        %v1132 = vrot.slane %v1130, 4
        %v1133 = vrot.slane %v762, 7
        %v1134 = vrot.slane %v1133, 4
        %v1135 = vrot.slane %v763, 7
        %v1136 = vsel %vm1102, %v1134, %v1135
        %v1137 = vrot.slane %v1135, 4
        %v1138 = vrot.slane %v764, 7
        %v1139 = vrot.slane %v1138, 4
        %v1140 = vrot.slane %v765, 7
        %v1141 = vsel %vm1102, %v1139, %v1140
        %v1142 = vrot.slane %v1140, 4
        %v1143 = vrot.slane %v766, 7
        %v1144 = vrot.slane %v1143, 4
        %v1145 = vrot.slane %v767, 7
        %v1146 = vsel %vm1102, %v1144, %v1145
        %v1147 = vrot.slane %v1145, 4
        %v1148 = vrot.slane %v768, 7
        %v1149 = vrot.slane %v1148, 4
        %v1150 = vrot.slane %v769, 7
        %v1151 = vsel %vm1102, %v1149, %v1150
        %v1152 = vrot.slane %v1150, 4
        %v1153 = vrot.slane %v770, 7
        %v1154 = vrot.slane %v1153, 4
        %v1155 = vrot.slane %v771, 7
        %v1156 = vsel %vm1102, %v1154, %v1155
        %v1157 = vrot.slane %v1155, 4
        %v1158 = vrot.slane %v772, 7
        %v1159 = vrot.slane %v1158, 4
        %v1160 = vrot.slane %v773, 7
        %v1161 = vsel %vm1102, %v1159, %v1160
        %v1162 = vrot.slane %v1160, 4
        %v1163 = vrot.slane %v774, 7
        %v1164 = vrot.slane %v1163, 4
        %v1165 = vrot.slane %v775, 7
        %v1166 = vsel %vm1102, %v1164, %v1165
        %v1167 = vrot.slane %v1165, 4
        %v1168 = vrot.slane %v776, 7
        %v1169 = vrot.slane %v1168, 4
        %v1170 = vrot.slane %v777, 7
        %v1171 = vsel %vm1102, %v1169, %v1170
        %v1172 = vrot.slane %v1170, 4
        %v1173 = vrot.slane %v778, 7
        %v1174 = vrot.slane %v1173, 4
        %v1175 = vrot.slane %v779, 7
        %v1176 = vsel %vm1102, %v1174, %v1175
        %v1177 = vrot.slane %v1175, 4
        %v1178 = vrot.slane %v780, 7
        %v1179 = vrot.slane %v1178, 4
        %v1180 = vrot.slane %v781, 7
        %v1181 = vsel %vm1102, %v1179, %v1180
        %v1182 = vrot.slane %v1180, 4
        %v1183 = vrot.slane %v782, 7
        %v1184 = vrot.slane %v1183, 4
        %v1185 = vrot.slane %v783, 7
        %v1186 = vsel %vm1102, %v1184, %v1185
        %v1187 = vrot.slane %v1185, 4
        %v1188 = vrot.slane %v784, 7
        %v1189 = vrot.slane %v1188, 4
        %v1190 = vrot.slane %v785, 7
        %v1191 = vsel %vm1102, %v1189, %v1190
        %v1192 = vrot.slane %v1190, 4
        %v1193 = vrot.slane %v786, 7
        %v1194 = vrot.slane %v1193, 4
        %v1195 = vrot.slane %v787, 7
        %v1196 = vsel %vm1102, %v1194, %v1195
        %v1197 = vrot.slane %v1195, 4
        %v1198 = vrot.slane %v788, 7
        %v1199 = vrot.slane %v1198, 4
        %v1200 = vrot.slane %v789, 7
        %v1201 = vsel %vm1102, %v1199, %v1200
        %v1202 = vrot.slane %v1200, 4
        %v1203 = vrot.slane %v790, 7
        %v1204 = vrot.slane %v1203, 4
        %v1205 = vrot.slane %v791, 7
        %v1206 = vsel %vm1102, %v1204, %v1205
        %v1207 = vrot.slane %v1205, 4
        %v1208 = vrot.slane %v792, 7
        %v1209 = vrot.slane %v1208, 4
        %v1210 = vrot.slane %v793, 7
        %v1211 = vsel %vm1102, %v1209, %v1210
        %v1212 = vrot.slane %v1210, 4
        %v1213 = vrot.slane %v794, 7
        %v1214 = vrot.slane %v1213, 4
        %v1215 = vrot.slane %v795, 7
        %v1216 = vsel %vm1102, %v1214, %v1215
        %v1217 = vrot.slane %v1215, 4
        %v1218 = vrot.slane %v796, 7
        %v1219 = vrot.slane %v1218, 4
        %v1220 = vrot.slane %v797, 7
        %v1221 = vsel %vm1102, %v1219, %v1220
        %v1222 = vrot.slane %v1220, 4
        %v1223 = vrot.slane %v798, 7
        %v1224 = vrot.slane %v1223, 4
        %v1225 = vrot.slane %v799, 7
        %v1226 = vsel %vm1102, %v1224, %v1225
        %v1227 = vrot.slane %v1225, 4
        %v1228 = vrot.slane %v800, 7
        %v1229 = vrot.slane %v1228, 4
        %v1230 = vrot.slane %v801, 7
        %v1231 = vsel %vm1102, %v1229, %v1230
        %v1232 = vrot.slane %v1230, 4
        %v1233 = vrot.slane %v802, 7
        %v1234 = vrot.slane %v1233, 4
        %v1235 = vrot.slane %v803, 7
        %v1236 = vsel %vm1102, %v1234, %v1235
        %v1237 = vrot.slane %v1235, 4
        %v1238 = vrot.slane %v804, 7
        %v1239 = vrot.slane %v1238, 4
        %v1240 = vrot.slane %v805, 7
        %v1241 = vsel %vm1102, %v1239, %v1240
        %v1242 = vrot.slane %v1240, 4
        %v1243 = vrot.slane %v806, 7
        %v1244 = vrot.slane %v1243, 4
        %v1245 = vrot.slane %v807, 7
        %v1246 = vsel %vm1102, %v1244, %v1245
        %v1247 = vrot.slane %v1245, 4
        %v1248 = vrot.slane %v808, 7
        %v1249 = vrot.slane %v1248, 4
        %v1250 = vrot.slane %v809, 7
        %v1251 = vsel %vm1102, %v1249, %v1250
        %v1252 = vrot.slane %v1250, 4
        %v1253 = vrot.slane %v810, 7
        %v1254 = vrot.slane %v1253, 4
        %v1255 = vrot.slane %v811, 7
        %v1256 = vsel %vm1102, %v1254, %v1255
        %v1257 = vrot.slane %v1255, 4
        %v1258 = vrot.slane %v812, 7
        %v1259 = vrot.slane %v1258, 4
        %v1260 = vrot.slane %v813, 7
        %v1261 = vsel %vm1102, %v1259, %v1260
        %v1262 = vrot.slane %v1260, 4
        %1359 = vst [vmem:[%s839] sm:$0xe] %v1103
        %1360 = vst [vmem:[%s839 + $0xc] sm:$0xf] %v1106
        %1361 = vst [vmem:[%s839 + $0x18] sm:$0x1] %v1107
        %1362 = vst [vmem:[%s839 + $0x24] sm:$0xe] %v1108
        %1363 = vst [vmem:[%s839 + $0x30] sm:$0xf] %v1111
        %1364 = vst [vmem:[%s839 + $0x3c] sm:$0x1] %v1112
        %1365 = vst [vmem:[%s839 + $0x48] sm:$0xe] %v1113
        %1366 = vst [vmem:[%s839 + $0x54] sm:$0xf] %v1116
        %1367 = vst [vmem:[%s839 + $0x60] sm:$0x1] %v1117
        %1368 = vst [vmem:[%s839 + $0x6c] sm:$0xe] %v1118
        %1369 = vst [vmem:[%s839 + $0x78] sm:$0xf] %v1121
        %1370 = vst [vmem:[%s839 + $0x84] sm:$0x1] %v1122
        %1371 = vst [vmem:[%s839 + $0x90] sm:$0xe] %v1123
        %1372 = vst [vmem:[%s839 + $0x9c] sm:$0xf] %v1126
        %1373 = vst [vmem:[%s839 + $0xa8] sm:$0x1] %v1127
        %1374 = vst [vmem:[%s839 + $0xb4] sm:$0xe] %v1128
        %1375 = vst [vmem:[%s839 + $0xc0] sm:$0xf] %v1131
        %1376 = vst [vmem:[%s839 + $0xcc] sm:$0x1] %v1132
        %1377 = vst [vmem:[%s839 + $0xd8] sm:$0xe] %v1133
        %1378 = vst [vmem:[%s839 + $0xe4] sm:$0xf] %v1136
        %1379 = vst [vmem:[%s839 + $0xf0] sm:$0x1] %v1137
        %1380 = vst [vmem:[%s839 + $0xfc] sm:$0xe] %v1138
        %1381 = vst [vmem:[%s839 + $0x108] sm:$0xf] %v1141
        %1382 = vst [vmem:[%s839 + $0x114] sm:$0x1] %v1142
        %1383 = vst [vmem:[%s839 + $0x120] sm:$0xe] %v1143
        %1384 = vst [vmem:[%s839 + $0x12c] sm:$0xf] %v1146
        %1385 = vst [vmem:[%s839 + $0x138] sm:$0x1] %v1147
        %1386 = vst [vmem:[%s839 + $0x144] sm:$0xe] %v1148
        %1387 = vst [vmem:[%s839 + $0x150] sm:$0xf] %v1151
        %1388 = vst [vmem:[%s839 + $0x15c] sm:$0x1] %v1152
        %1389 = vst [vmem:[%s839 + $0x168] sm:$0xe] %v1153
        %1390 = vst [vmem:[%s839 + $0x174] sm:$0xf] %v1156
        %1391 = vst [vmem:[%s839 + $0x180] sm:$0x1] %v1157
        %1392 = vst [vmem:[%s839 + $0x18c] sm:$0xe] %v1158
        %1393 = vst [vmem:[%s839 + $0x198] sm:$0xf] %v1161
        %1394 = vst [vmem:[%s839 + $0x1a4] sm:$0x1] %v1162
        %1395 = vst [vmem:[%s839 + $0x1b0] sm:$0xe] %v1163
        %1396 = vst [vmem:[%s839 + $0x1bc] sm:$0xf] %v1166
        %1397 = vst [vmem:[%s839 + $0x1c8] sm:$0x1] %v1167
        %1398 = vst [vmem:[%s839 + $0x1d4] sm:$0xe] %v1168
        %1399 = vst [vmem:[%s839 + $0x1e0] sm:$0xf] %v1171
        %1400 = vst [vmem:[%s839 + $0x1ec] sm:$0x1] %v1172
        %1401 = vst [vmem:[%s839 + $0x1f8] sm:$0xe] %v1173
        %1402 = vst [vmem:[%s839 + $0x204] sm:$0xf] %v1176
        %1403 = vst [vmem:[%s839 + $0x210] sm:$0x1] %v1177
        %1404 = vst [vmem:[%s839 + $0x21c] sm:$0xe] %v1178
        %1405 = vst [vmem:[%s839 + $0x228] sm:$0xf] %v1181
        %1406 = vst [vmem:[%s839 + $0x234] sm:$0x1] %v1182
        %1407 = vst [vmem:[%s839 + $0x288] sm:$0xe] %v1183
        %1408 = vst [vmem:[%s839 + $0x294] sm:$0xf] %v1186
        %1409 = vst [vmem:[%s839 + $0x2a0] sm:$0x1] %v1187
        %1410 = vst [vmem:[%s839 + $0x2ac] sm:$0xe] %v1188
        %1411 = vst [vmem:[%s839 + $0x2b8] sm:$0xf] %v1191
        %1412 = vst [vmem:[%s839 + $0x2c4] sm:$0x1] %v1192
        %1413 = vst [vmem:[%s839 + $0x2d0] sm:$0xe] %v1193
        %1414 = vst [vmem:[%s839 + $0x2dc] sm:$0xf] %v1196
        %1415 = vst [vmem:[%s839 + $0x2e8] sm:$0x1] %v1197
        %1416 = vst [vmem:[%s839 + $0x2f4] sm:$0xe] %v1198
        %1417 = vst [vmem:[%s839 + $0x300] sm:$0xf] %v1201
        %1418 = vst [vmem:[%s839 + $0x30c] sm:$0x1] %v1202
        %1419 = vst [vmem:[%s839 + $0x318] sm:$0xe] %v1203
        %1420 = vst [vmem:[%s839 + $0x324] sm:$0xf] %v1206
        %1421 = vst [vmem:[%s839 + $0x330] sm:$0x1] %v1207
        %1422 = vst [vmem:[%s839 + $0x33c] sm:$0xe] %v1208
        %1423 = vst [vmem:[%s839 + $0x348] sm:$0xf] %v1211
        %1424 = vst [vmem:[%s839 + $0x354] sm:$0x1] %v1212
        %1425 = vst [vmem:[%s839 + $0x360] sm:$0xe] %v1213
        %1426 = vst [vmem:[%s839 + $0x36c] sm:$0xf] %v1216
        %1427 = vst [vmem:[%s839 + $0x378] sm:$0x1] %v1217
        %1428 = vst [vmem:[%s839 + $0x384] sm:$0xe] %v1218
        %1429 = vst [vmem:[%s839 + $0x390] sm:$0xf] %v1221
        %1430 = vst [vmem:[%s839 + $0x39c] sm:$0x1] %v1222
        %1431 = vst [vmem:[%s839 + $0x3a8] sm:$0xe] %v1223
        %1432 = vst [vmem:[%s839 + $0x3b4] sm:$0xf] %v1226
        %1433 = vst [vmem:[%s839 + $0x3c0] sm:$0x1] %v1227
        %1434 = vst [vmem:[%s839 + $0x3cc] sm:$0xe] %v1228
        %1435 = vst [vmem:[%s839 + $0x3d8] sm:$0xf] %v1231
        %1436 = vst [vmem:[%s839 + $0x3e4] sm:$0x1] %v1232
        %1437 = vst [vmem:[%s839 + $0x3f0] sm:$0xe] %v1233
        %1438 = vst [vmem:[%s839 + $0x3fc] sm:$0xf] %v1236
        %1439 = vst [vmem:[%s839 + $0x408] sm:$0x1] %v1237
        %1440 = vst [vmem:[%s839 + $0x414] sm:$0xe] %v1238
        %1441 = vst [vmem:[%s839 + $0x420] sm:$0xf] %v1241
        %1442 = vst [vmem:[%s839 + $0x42c] sm:$0x1] %v1242
        %1443 = vst [vmem:[%s839 + $0x438] sm:$0xe] %v1243
        %1444 = vst [vmem:[%s839 + $0x444] sm:$0xf] %v1246
        %1445 = vst [vmem:[%s839 + $0x450] sm:$0x1] %v1247
        %1446 = vst [vmem:[%s839 + $0x45c] sm:$0xe] %v1248
        %1447 = vst [vmem:[%s839 + $0x468] sm:$0xf] %v1251
        %1448 = vst [vmem:[%s839 + $0x474] sm:$0x1] %v1252
        %1449 = vst [vmem:[%s839 + $0x480] sm:$0xe] %v1253
        %1450 = vst [vmem:[%s839 + $0x48c] sm:$0xf] %v1256
        %1451 = vst [vmem:[%s839 + $0x498] sm:$0x1] %v1257
        %1452 = vst [vmem:[%s839 + $0x4a4] sm:$0xe] %v1258
        %1453 = vst [vmem:[%s839 + $0x4b0] sm:$0xf] %v1261
        %1454 = vst [vmem:[%s839 + $0x4bc] sm:$0x1] %v1262
        %vm1455 = vsmask.f32 4368
        %vm1456 = vmor %vm939, %vm1455
        %v1458 = vshrl.u32 %v750, 16
        %v1460 = vrot.slane %v1458, 7
        %v1461 = vshll.u32 %v750, 16
        %v1463 = vor.u32 %v1460, %v1461
        %v1464 = vrot.slane %v1460, 4
        %v1466 = vshrl.u32 %v751, 16
        %v1468 = vrot.slane %v1466, 7
        %v1469 = vshll.u32 %v751, 16
        %v1471 = vor.u32 %v1468, %v1469
        %v1472 = vsel %vm1456, %v1464, %v1471
        %v1473 = vrot.slane %v1468, 4
        %v1475 = vshrl.u32 %v752, 16
        %v1477 = vrot.slane %v1475, 7
        %v1478 = vshll.u32 %v752, 16
        %v1480 = vor.u32 %v1477, %v1478
        %v1481 = vrot.slane %v1477, 4
        %v1483 = vshrl.u32 %v753, 16
        %v1485 = vrot.slane %v1483, 7
        %v1486 = vshll.u32 %v753, 16
        %v1488 = vor.u32 %v1485, %v1486
        %v1489 = vsel %vm1456, %v1481, %v1488
        %v1490 = vrot.slane %v1485, 4
        %v1492 = vshrl.u32 %v754, 16
        %v1494 = vrot.slane %v1492, 7
        %v1495 = vshll.u32 %v754, 16
        %v1497 = vor.u32 %v1494, %v1495
        %v1498 = vrot.slane %v1494, 4
        %v1500 = vshrl.u32 %v755, 16
        %v1502 = vrot.slane %v1500, 7
        %v1503 = vshll.u32 %v755, 16
        %v1505 = vor.u32 %v1502, %v1503
        %v1506 = vsel %vm1456, %v1498, %v1505
        %v1507 = vrot.slane %v1502, 4
        %v1509 = vshrl.u32 %v756, 16
        %v1511 = vrot.slane %v1509, 7
        %v1512 = vshll.u32 %v756, 16
        %v1514 = vor.u32 %v1511, %v1512
        %v1515 = vrot.slane %v1511, 4
        %v1517 = vshrl.u32 %v757, 16
        %v1519 = vrot.slane %v1517, 7
        %v1520 = vshll.u32 %v757, 16
        %v1522 = vor.u32 %v1519, %v1520
        %v1523 = vsel %vm1456, %v1515, %v1522
        %v1524 = vrot.slane %v1519, 4
        %v1526 = vshrl.u32 %v758, 16
        %v1528 = vrot.slane %v1526, 7
        %v1529 = vshll.u32 %v758, 16
        %v1531 = vor.u32 %v1528, %v1529
        %v1532 = vrot.slane %v1528, 4
        %v1534 = vshrl.u32 %v759, 16
        %v1536 = vrot.slane %v1534, 7
        %v1537 = vshll.u32 %v759, 16
        %v1539 = vor.u32 %v1536, %v1537
        %v1540 = vsel %vm1456, %v1532, %v1539
        %v1541 = vrot.slane %v1536, 4
        %v1543 = vshrl.u32 %v760, 16
        %v1545 = vrot.slane %v1543, 7
        %v1546 = vshll.u32 %v760, 16
        %v1548 = vor.u32 %v1545, %v1546
        %v1549 = vrot.slane %v1545, 4
        %v1551 = vshrl.u32 %v761, 16
        %v1553 = vrot.slane %v1551, 7
        %v1554 = vshll.u32 %v761, 16
        %v1556 = vor.u32 %v1553, %v1554
        %v1557 = vsel %vm1456, %v1549, %v1556
        %v1558 = vrot.slane %v1553, 4
        %v1560 = vshrl.u32 %v762, 16
        %v1562 = vrot.slane %v1560, 7
        %v1563 = vshll.u32 %v762, 16
        %v1565 = vor.u32 %v1562, %v1563
        %v1566 = vrot.slane %v1562, 4
        %v1568 = vshrl.u32 %v763, 16
        %v1570 = vrot.slane %v1568, 7
        %v1571 = vshll.u32 %v763, 16
        %v1573 = vor.u32 %v1570, %v1571
        %v1574 = vsel %vm1456, %v1566, %v1573
        %v1575 = vrot.slane %v1570, 4
        %v1577 = vshrl.u32 %v764, 16
        %v1579 = vrot.slane %v1577, 7
        %v1580 = vshll.u32 %v764, 16
        %v1582 = vor.u32 %v1579, %v1580
        %v1583 = vrot.slane %v1579, 4
        %v1585 = vshrl.u32 %v765, 16
        %v1587 = vrot.slane %v1585, 7
        %v1588 = vshll.u32 %v765, 16
        %v1590 = vor.u32 %v1587, %v1588
        %v1591 = vsel %vm1456, %v1583, %v1590
        %v1592 = vrot.slane %v1587, 4
        %v1594 = vshrl.u32 %v766, 16
        %v1596 = vrot.slane %v1594, 7
        %v1597 = vshll.u32 %v766, 16
        %v1599 = vor.u32 %v1596, %v1597
        %v1600 = vrot.slane %v1596, 4
        %v1602 = vshrl.u32 %v767, 16
        %v1604 = vrot.slane %v1602, 7
        %v1605 = vshll.u32 %v767, 16
        %v1607 = vor.u32 %v1604, %v1605
        %v1608 = vsel %vm1456, %v1600, %v1607
        %v1609 = vrot.slane %v1604, 4
        %v1611 = vshrl.u32 %v768, 16
        %v1613 = vrot.slane %v1611, 7
        %v1614 = vshll.u32 %v768, 16
        %v1616 = vor.u32 %v1613, %v1614
        %v1617 = vrot.slane %v1613, 4
        %v1619 = vshrl.u32 %v769, 16
        %v1621 = vrot.slane %v1619, 7
        %v1622 = vshll.u32 %v769, 16
        %v1624 = vor.u32 %v1621, %v1622
        %v1625 = vsel %vm1456, %v1617, %v1624
        %v1626 = vrot.slane %v1621, 4
        %v1628 = vshrl.u32 %v770, 16
        %v1630 = vrot.slane %v1628, 7
        %v1631 = vshll.u32 %v770, 16
        %v1633 = vor.u32 %v1630, %v1631
        %v1634 = vrot.slane %v1630, 4
        %v1636 = vshrl.u32 %v771, 16
        %v1638 = vrot.slane %v1636, 7
        %v1639 = vshll.u32 %v771, 16
        %v1641 = vor.u32 %v1638, %v1639
        %v1642 = vsel %vm1456, %v1634, %v1641
        %v1643 = vrot.slane %v1638, 4
        %v1645 = vshrl.u32 %v772, 16
        %v1647 = vrot.slane %v1645, 7
        %v1648 = vshll.u32 %v772, 16
        %v1650 = vor.u32 %v1647, %v1648
        %v1651 = vrot.slane %v1647, 4
        %v1653 = vshrl.u32 %v773, 16
        %v1655 = vrot.slane %v1653, 7
        %v1656 = vshll.u32 %v773, 16
        %v1658 = vor.u32 %v1655, %v1656
        %v1659 = vsel %vm1456, %v1651, %v1658
        %v1660 = vrot.slane %v1655, 4
        %v1662 = vshrl.u32 %v774, 16
        %v1664 = vrot.slane %v1662, 7
        %v1665 = vshll.u32 %v774, 16
        %v1667 = vor.u32 %v1664, %v1665
        %v1668 = vrot.slane %v1664, 4
        %v1670 = vshrl.u32 %v775, 16
        %v1672 = vrot.slane %v1670, 7
        %v1673 = vshll.u32 %v775, 16
        %v1675 = vor.u32 %v1672, %v1673
        %v1676 = vsel %vm1456, %v1668, %v1675
        %v1677 = vrot.slane %v1672, 4
        %v1679 = vshrl.u32 %v776, 16
        %v1681 = vrot.slane %v1679, 7
        %v1682 = vshll.u32 %v776, 16
        %v1684 = vor.u32 %v1681, %v1682
        %v1685 = vrot.slane %v1681, 4
        %v1687 = vshrl.u32 %v777, 16
        %v1689 = vrot.slane %v1687, 7
        %v1690 = vshll.u32 %v777, 16
        %v1692 = vor.u32 %v1689, %v1690
        %v1693 = vsel %vm1456, %v1685, %v1692
        %v1694 = vrot.slane %v1689, 4
        %v1696 = vshrl.u32 %v778, 16
        %v1698 = vrot.slane %v1696, 7
        %v1699 = vshll.u32 %v778, 16
        %v1701 = vor.u32 %v1698, %v1699
        %v1702 = vrot.slane %v1698, 4
        %v1704 = vshrl.u32 %v779, 16
        %v1706 = vrot.slane %v1704, 7
        %v1707 = vshll.u32 %v779, 16
        %v1709 = vor.u32 %v1706, %v1707
        %v1710 = vsel %vm1456, %v1702, %v1709
        %v1711 = vrot.slane %v1706, 4
        %v1713 = vshrl.u32 %v780, 16
        %v1715 = vrot.slane %v1713, 7
        %v1716 = vshll.u32 %v780, 16
        %v1718 = vor.u32 %v1715, %v1716
        %v1719 = vrot.slane %v1715, 4
        %v1721 = vshrl.u32 %v781, 16
        %v1723 = vrot.slane %v1721, 7
        %v1724 = vshll.u32 %v781, 16
        %v1726 = vor.u32 %v1723, %v1724
        %v1727 = vsel %vm1456, %v1719, %v1726
        %v1728 = vrot.slane %v1723, 4
        %v1730 = vshrl.u32 %v782, 16
        %v1732 = vrot.slane %v1730, 7
        %v1733 = vshll.u32 %v782, 16
        %v1735 = vor.u32 %v1732, %v1733
        %v1736 = vrot.slane %v1732, 4
        %v1738 = vshrl.u32 %v783, 16
        %v1740 = vrot.slane %v1738, 7
        %v1741 = vshll.u32 %v783, 16
        %v1743 = vor.u32 %v1740, %v1741
        %v1744 = vsel %vm1456, %v1736, %v1743
        %v1745 = vrot.slane %v1740, 4
        %v1747 = vshrl.u32 %v784, 16
        %v1749 = vrot.slane %v1747, 7
        %v1750 = vshll.u32 %v784, 16
        %v1752 = vor.u32 %v1749, %v1750
        %v1753 = vrot.slane %v1749, 4
        %v1755 = vshrl.u32 %v785, 16
        %v1757 = vrot.slane %v1755, 7
        %v1758 = vshll.u32 %v785, 16
        %v1760 = vor.u32 %v1757, %v1758
        %v1761 = vsel %vm1456, %v1753, %v1760
        %v1762 = vrot.slane %v1757, 4
        %v1764 = vshrl.u32 %v786, 16
        %v1766 = vrot.slane %v1764, 7
        %v1767 = vshll.u32 %v786, 16
        %v1769 = vor.u32 %v1766, %v1767
        %v1770 = vrot.slane %v1766, 4
        %v1772 = vshrl.u32 %v787, 16
        %v1774 = vrot.slane %v1772, 7
        %v1775 = vshll.u32 %v787, 16
        %v1777 = vor.u32 %v1774, %v1775
        %v1778 = vsel %vm1456, %v1770, %v1777
        %v1779 = vrot.slane %v1774, 4
        %v1781 = vshrl.u32 %v788, 16
        %v1783 = vrot.slane %v1781, 7
        %v1784 = vshll.u32 %v788, 16
        %v1786 = vor.u32 %v1783, %v1784
        %v1787 = vrot.slane %v1783, 4
        %v1789 = vshrl.u32 %v789, 16
        %v1791 = vrot.slane %v1789, 7
        %v1792 = vshll.u32 %v789, 16
        %v1794 = vor.u32 %v1791, %v1792
        %v1795 = vsel %vm1456, %v1787, %v1794
        %v1796 = vrot.slane %v1791, 4
        %v1798 = vshrl.u32 %v790, 16
        %v1800 = vrot.slane %v1798, 7
        %v1801 = vshll.u32 %v790, 16
        %v1803 = vor.u32 %v1800, %v1801
        %v1804 = vrot.slane %v1800, 4
        %v1806 = vshrl.u32 %v791, 16
        %v1808 = vrot.slane %v1806, 7
        %v1809 = vshll.u32 %v791, 16
        %v1811 = vor.u32 %v1808, %v1809
        %v1812 = vsel %vm1456, %v1804, %v1811
        %v1813 = vrot.slane %v1808, 4
        %v1815 = vshrl.u32 %v792, 16
        %v1817 = vrot.slane %v1815, 7
        %v1818 = vshll.u32 %v792, 16
        %v1820 = vor.u32 %v1817, %v1818
        %v1821 = vrot.slane %v1817, 4
        %v1823 = vshrl.u32 %v793, 16
        %v1825 = vrot.slane %v1823, 7
        %v1826 = vshll.u32 %v793, 16
        %v1828 = vor.u32 %v1825, %v1826
        %v1829 = vsel %vm1456, %v1821, %v1828
        %v1830 = vrot.slane %v1825, 4
        %v1832 = vshrl.u32 %v794, 16
        %v1834 = vrot.slane %v1832, 7
        %v1835 = vshll.u32 %v794, 16
        %v1837 = vor.u32 %v1834, %v1835
        %v1838 = vrot.slane %v1834, 4
        %v1840 = vshrl.u32 %v795, 16
        %v1842 = vrot.slane %v1840, 7
        %v1843 = vshll.u32 %v795, 16
        %v1845 = vor.u32 %v1842, %v1843
        %v1846 = vsel %vm1456, %v1838, %v1845
        %v1847 = vrot.slane %v1842, 4
        %v1849 = vshrl.u32 %v796, 16
        %v1851 = vrot.slane %v1849, 7
        %v1852 = vshll.u32 %v796, 16
        %v1854 = vor.u32 %v1851, %v1852
        %v1855 = vrot.slane %v1851, 4
        %v1857 = vshrl.u32 %v797, 16
        %v1859 = vrot.slane %v1857, 7
        %v1860 = vshll.u32 %v797, 16
        %v1862 = vor.u32 %v1859, %v1860
        %v1863 = vsel %vm1456, %v1855, %v1862
        %v1864 = vrot.slane %v1859, 4
        %v1866 = vshrl.u32 %v798, 16
        %v1868 = vrot.slane %v1866, 7
        %v1869 = vshll.u32 %v798, 16
        %v1871 = vor.u32 %v1868, %v1869
        %v1872 = vrot.slane %v1868, 4
        %v1874 = vshrl.u32 %v799, 16
        %v1876 = vrot.slane %v1874, 7
        %v1877 = vshll.u32 %v799, 16
        %v1879 = vor.u32 %v1876, %v1877
        %v1880 = vsel %vm1456, %v1872, %v1879
        %v1881 = vrot.slane %v1876, 4
        %v1883 = vshrl.u32 %v800, 16
        %v1885 = vrot.slane %v1883, 7
        %v1886 = vshll.u32 %v800, 16
        %v1888 = vor.u32 %v1885, %v1886
        %v1889 = vrot.slane %v1885, 4
        %v1891 = vshrl.u32 %v801, 16
        %v1893 = vrot.slane %v1891, 7
        %v1894 = vshll.u32 %v801, 16
        %v1896 = vor.u32 %v1893, %v1894
        %v1897 = vsel %vm1456, %v1889, %v1896
        %v1898 = vrot.slane %v1893, 4
        %v1900 = vshrl.u32 %v802, 16
        %v1902 = vrot.slane %v1900, 7
        %v1903 = vshll.u32 %v802, 16
        %v1905 = vor.u32 %v1902, %v1903
        %v1906 = vrot.slane %v1902, 4
        %v1908 = vshrl.u32 %v803, 16
        %v1910 = vrot.slane %v1908, 7
        %v1911 = vshll.u32 %v803, 16
        %v1913 = vor.u32 %v1910, %v1911
        %v1914 = vsel %vm1456, %v1906, %v1913
        %v1915 = vrot.slane %v1910, 4
        %v1917 = vshrl.u32 %v804, 16
        %v1919 = vrot.slane %v1917, 7
        %v1920 = vshll.u32 %v804, 16
        %v1922 = vor.u32 %v1919, %v1920
        %v1923 = vrot.slane %v1919, 4
        %v1925 = vshrl.u32 %v805, 16
        %v1927 = vrot.slane %v1925, 7
        %v1928 = vshll.u32 %v805, 16
        %v1930 = vor.u32 %v1927, %v1928
        %v1931 = vsel %vm1456, %v1923, %v1930
        %v1932 = vrot.slane %v1927, 4
        %v1934 = vshrl.u32 %v806, 16
        %v1936 = vrot.slane %v1934, 7
        %v1937 = vshll.u32 %v806, 16
        %v1939 = vor.u32 %v1936, %v1937
        %v1940 = vrot.slane %v1936, 4
        %v1942 = vshrl.u32 %v807, 16
        %v1944 = vrot.slane %v1942, 7
        %v1945 = vshll.u32 %v807, 16
        %v1947 = vor.u32 %v1944, %v1945
        %v1948 = vsel %vm1456, %v1940, %v1947
        %v1949 = vrot.slane %v1944, 4
        %v1951 = vshrl.u32 %v808, 16
        %v1953 = vrot.slane %v1951, 7
        %v1954 = vshll.u32 %v808, 16
        %v1956 = vor.u32 %v1953, %v1954
        %v1957 = vrot.slane %v1953, 4
        %v1959 = vshrl.u32 %v809, 16
        %v1961 = vrot.slane %v1959, 7
        %v1962 = vshll.u32 %v809, 16
        %v1964 = vor.u32 %v1961, %v1962
        %v1965 = vsel %vm1456, %v1957, %v1964
        %v1966 = vrot.slane %v1961, 4
        %v1968 = vshrl.u32 %v810, 16
        %v1970 = vrot.slane %v1968, 7
        %v1971 = vshll.u32 %v810, 16
        %v1973 = vor.u32 %v1970, %v1971
        %v1974 = vrot.slane %v1970, 4
        %v1976 = vshrl.u32 %v811, 16
        %v1978 = vrot.slane %v1976, 7
        %v1979 = vshll.u32 %v811, 16
        %v1981 = vor.u32 %v1978, %v1979
        %v1982 = vsel %vm1456, %v1974, %v1981
        %v1983 = vrot.slane %v1978, 4
        %v1985 = vshrl.u32 %v812, 16
        %v1987 = vrot.slane %v1985, 7
        %v1988 = vshll.u32 %v812, 16
        %v1990 = vor.u32 %v1987, %v1988
        %v1991 = vrot.slane %v1987, 4
        %v1993 = vshrl.u32 %v813, 16
        %v1995 = vrot.slane %v1993, 7
        %v1996 = vshll.u32 %v813, 16
        %v1998 = vor.u32 %v1995, %v1996
        %v1999 = vsel %vm1456, %v1991, %v1998
        %v2000 = vrot.slane %v1995, 4
        %vm2097 = vcmask 1043456
        %vm2098 = vmand %vm2097, %vm841
        %v2099 = vld [vmem:[%s839 + $0x4] sm:$0xf]
        %v2100 = vsel %vm2098, %v1463, %v2099
        %2101 = vst [vmem:[%s839 + $0x4] sm:$0xf] %v2100
        %2102 = vst [vmem:[%s839 + $0x10] sm:$0xf] %v1472
        %v2103 = vld [vmem:[%s839 + $0x1c] sm:$0x1]
        %v2104 = vsel %vm940, %v1473, %v2103
        %2105 = vst [vmem:[%s839 + $0x1c] sm:$0x1] %v2104
        %v2106 = vld [vmem:[%s839 + $0x28] sm:$0xf]
        %v2107 = vsel %vm2098, %v1480, %v2106
        %2108 = vst [vmem:[%s839 + $0x28] sm:$0xf] %v2107
        %2109 = vst [vmem:[%s839 + $0x34] sm:$0xf] %v1489
        %v2110 = vld [vmem:[%s839 + $0x40] sm:$0x1]
        %v2111 = vsel %vm940, %v1490, %v2110
        %2112 = vst [vmem:[%s839 + $0x40] sm:$0x1] %v2111
        %v2113 = vld [vmem:[%s839 + $0x4c] sm:$0xf]
        %v2114 = vsel %vm2098, %v1497, %v2113
        %2115 = vst [vmem:[%s839 + $0x4c] sm:$0xf] %v2114
        %2116 = vst [vmem:[%s839 + $0x58] sm:$0xf] %v1506
        %v2117 = vld [vmem:[%s839 + $0x64] sm:$0x1]
        %v2118 = vsel %vm940, %v1507, %v2117
        %2119 = vst [vmem:[%s839 + $0x64] sm:$0x1] %v2118
        %v2120 = vld [vmem:[%s839 + $0x70] sm:$0xf]
        %v2121 = vsel %vm2098, %v1514, %v2120
        %2122 = vst [vmem:[%s839 + $0x70] sm:$0xf] %v2121
        %2123 = vst [vmem:[%s839 + $0x7c] sm:$0xf] %v1523
        %v2124 = vld [vmem:[%s839 + $0x88] sm:$0x1]
        %v2125 = vsel %vm940, %v1524, %v2124
        %2126 = vst [vmem:[%s839 + $0x88] sm:$0x1] %v2125
        %v2127 = vld [vmem:[%s839 + $0x94] sm:$0xf]
        %v2128 = vsel %vm2098, %v1531, %v2127
        %2129 = vst [vmem:[%s839 + $0x94] sm:$0xf] %v2128
        %2130 = vst [vmem:[%s839 + $0xa0] sm:$0xf] %v1540
        %v2131 = vld [vmem:[%s839 + $0xac] sm:$0x1]
        %v2132 = vsel %vm940, %v1541, %v2131
        %2133 = vst [vmem:[%s839 + $0xac] sm:$0x1] %v2132
        %v2134 = vld [vmem:[%s839 + $0xb8] sm:$0xf]
        %v2135 = vsel %vm2098, %v1548, %v2134
        %2136 = vst [vmem:[%s839 + $0xb8] sm:$0xf] %v2135
        %2137 = vst [vmem:[%s839 + $0xc4] sm:$0xf] %v1557
        %v2138 = vld [vmem:[%s839 + $0xd0] sm:$0x1]
        %v2139 = vsel %vm940, %v1558, %v2138
        %2140 = vst [vmem:[%s839 + $0xd0] sm:$0x1] %v2139
        %v2141 = vld [vmem:[%s839 + $0xdc] sm:$0xf]
        %v2142 = vsel %vm2098, %v1565, %v2141
        %2143 = vst [vmem:[%s839 + $0xdc] sm:$0xf] %v2142
        %2144 = vst [vmem:[%s839 + $0xe8] sm:$0xf] %v1574
        %v2145 = vld [vmem:[%s839 + $0xf4] sm:$0x1]
        %v2146 = vsel %vm940, %v1575, %v2145
        %2147 = vst [vmem:[%s839 + $0xf4] sm:$0x1] %v2146
        %v2148 = vld [vmem:[%s839 + $0x100] sm:$0xf]
        %v2149 = vsel %vm2098, %v1582, %v2148
        %2150 = vst [vmem:[%s839 + $0x100] sm:$0xf] %v2149
        %2151 = vst [vmem:[%s839 + $0x10c] sm:$0xf] %v1591
        %v2152 = vld [vmem:[%s839 + $0x118] sm:$0x1]
        %v2153 = vsel %vm940, %v1592, %v2152
        %2154 = vst [vmem:[%s839 + $0x118] sm:$0x1] %v2153
        %v2155 = vld [vmem:[%s839 + $0x124] sm:$0xf]
        %v2156 = vsel %vm2098, %v1599, %v2155
        %2157 = vst [vmem:[%s839 + $0x124] sm:$0xf] %v2156
        %2158 = vst [vmem:[%s839 + $0x130] sm:$0xf] %v1608
        %v2159 = vld [vmem:[%s839 + $0x13c] sm:$0x1]
        %v2160 = vsel %vm940, %v1609, %v2159
        %2161 = vst [vmem:[%s839 + $0x13c] sm:$0x1] %v2160
        %v2162 = vld [vmem:[%s839 + $0x148] sm:$0xf]
        %v2163 = vsel %vm2098, %v1616, %v2162
        %2164 = vst [vmem:[%s839 + $0x148] sm:$0xf] %v2163
        %2165 = vst [vmem:[%s839 + $0x154] sm:$0xf] %v1625
        %v2166 = vld [vmem:[%s839 + $0x160] sm:$0x1]
        %v2167 = vsel %vm940, %v1626, %v2166
        %2168 = vst [vmem:[%s839 + $0x160] sm:$0x1] %v2167
        %v2169 = vld [vmem:[%s839 + $0x16c] sm:$0xf]
        %v2170 = vsel %vm2098, %v1633, %v2169
        %2171 = vst [vmem:[%s839 + $0x16c] sm:$0xf] %v2170
        %2172 = vst [vmem:[%s839 + $0x178] sm:$0xf] %v1642
        %v2173 = vld [vmem:[%s839 + $0x184] sm:$0x1]
        %v2174 = vsel %vm940, %v1643, %v2173
        %2175 = vst [vmem:[%s839 + $0x184] sm:$0x1] %v2174
        %v2176 = vld [vmem:[%s839 + $0x190] sm:$0xf]
        %v2177 = vsel %vm2098, %v1650, %v2176
        %2178 = vst [vmem:[%s839 + $0x190] sm:$0xf] %v2177
        %2179 = vst [vmem:[%s839 + $0x19c] sm:$0xf] %v1659
        %v2180 = vld [vmem:[%s839 + $0x1a8] sm:$0x1]
        %v2181 = vsel %vm940, %v1660, %v2180
        %2182 = vst [vmem:[%s839 + $0x1a8] sm:$0x1] %v2181
        %v2183 = vld [vmem:[%s839 + $0x1b4] sm:$0xf]
        %v2184 = vsel %vm2098, %v1667, %v2183
        %2185 = vst [vmem:[%s839 + $0x1b4] sm:$0xf] %v2184
        %2186 = vst [vmem:[%s839 + $0x1c0] sm:$0xf] %v1676
        %v2187 = vld [vmem:[%s839 + $0x1cc] sm:$0x1]
        %v2188 = vsel %vm940, %v1677, %v2187
        %2189 = vst [vmem:[%s839 + $0x1cc] sm:$0x1] %v2188
        %v2190 = vld [vmem:[%s839 + $0x1d8] sm:$0xf]
        %v2191 = vsel %vm2098, %v1684, %v2190
        %2192 = vst [vmem:[%s839 + $0x1d8] sm:$0xf] %v2191
        %2193 = vst [vmem:[%s839 + $0x1e4] sm:$0xf] %v1693
        %v2194 = vld [vmem:[%s839 + $0x1f0] sm:$0x1]
        %v2195 = vsel %vm940, %v1694, %v2194
        %2196 = vst [vmem:[%s839 + $0x1f0] sm:$0x1] %v2195
        %v2197 = vld [vmem:[%s839 + $0x1fc] sm:$0xf]
        %v2198 = vsel %vm2098, %v1701, %v2197
        %2199 = vst [vmem:[%s839 + $0x1fc] sm:$0xf] %v2198
        %2200 = vst [vmem:[%s839 + $0x208] sm:$0xf] %v1710
        %v2201 = vld [vmem:[%s839 + $0x214] sm:$0x1]
        %v2202 = vsel %vm940, %v1711, %v2201
        %2203 = vst [vmem:[%s839 + $0x214] sm:$0x1] %v2202
        %v2204 = vld [vmem:[%s839 + $0x220] sm:$0xf]
        %v2205 = vsel %vm2098, %v1718, %v2204
        %2206 = vst [vmem:[%s839 + $0x220] sm:$0xf] %v2205
        %2207 = vst [vmem:[%s839 + $0x22c] sm:$0xf] %v1727
        %v2208 = vld [vmem:[%s839 + $0x238] sm:$0x1]
        %v2209 = vsel %vm940, %v1728, %v2208
        %2210 = vst [vmem:[%s839 + $0x238] sm:$0x1] %v2209
        %v2211 = vld [vmem:[%s839 + $0x28c] sm:$0xf]
        %v2212 = vsel %vm2098, %v1735, %v2211
        %2213 = vst [vmem:[%s839 + $0x28c] sm:$0xf] %v2212
        %2214 = vst [vmem:[%s839 + $0x298] sm:$0xf] %v1744
        %v2215 = vld [vmem:[%s839 + $0x2a4] sm:$0x1]
        %v2216 = vsel %vm940, %v1745, %v2215
        %2217 = vst [vmem:[%s839 + $0x2a4] sm:$0x1] %v2216
        %v2218 = vld [vmem:[%s839 + $0x2b0] sm:$0xf]
        %v2219 = vsel %vm2098, %v1752, %v2218
        %2220 = vst [vmem:[%s839 + $0x2b0] sm:$0xf] %v2219
        %2221 = vst [vmem:[%s839 + $0x2bc] sm:$0xf] %v1761
        %v2222 = vld [vmem:[%s839 + $0x2c8] sm:$0x1]
        %v2223 = vsel %vm940, %v1762, %v2222
        %2224 = vst [vmem:[%s839 + $0x2c8] sm:$0x1] %v2223
        %v2225 = vld [vmem:[%s839 + $0x2d4] sm:$0xf]
        %v2226 = vsel %vm2098, %v1769, %v2225
        %2227 = vst [vmem:[%s839 + $0x2d4] sm:$0xf] %v2226
        %2228 = vst [vmem:[%s839 + $0x2e0] sm:$0xf] %v1778
        %v2229 = vld [vmem:[%s839 + $0x2ec] sm:$0x1]
        %v2230 = vsel %vm940, %v1779, %v2229
        %2231 = vst [vmem:[%s839 + $0x2ec] sm:$0x1] %v2230
        %v2232 = vld [vmem:[%s839 + $0x2f8] sm:$0xf]
        %v2233 = vsel %vm2098, %v1786, %v2232
        %2234 = vst [vmem:[%s839 + $0x2f8] sm:$0xf] %v2233
        %2235 = vst [vmem:[%s839 + $0x304] sm:$0xf] %v1795
        %v2236 = vld [vmem:[%s839 + $0x310] sm:$0x1]
        %v2237 = vsel %vm940, %v1796, %v2236
        %2238 = vst [vmem:[%s839 + $0x310] sm:$0x1] %v2237
        %v2239 = vld [vmem:[%s839 + $0x31c] sm:$0xf]
        %v2240 = vsel %vm2098, %v1803, %v2239
        %2241 = vst [vmem:[%s839 + $0x31c] sm:$0xf] %v2240
        %2242 = vst [vmem:[%s839 + $0x328] sm:$0xf] %v1812
        %v2243 = vld [vmem:[%s839 + $0x334] sm:$0x1]
        %v2244 = vsel %vm940, %v1813, %v2243
        %2245 = vst [vmem:[%s839 + $0x334] sm:$0x1] %v2244
        %v2246 = vld [vmem:[%s839 + $0x340] sm:$0xf]
        %v2247 = vsel %vm2098, %v1820, %v2246
        %2248 = vst [vmem:[%s839 + $0x340] sm:$0xf] %v2247
        %2249 = vst [vmem:[%s839 + $0x34c] sm:$0xf] %v1829
        %v2250 = vld [vmem:[%s839 + $0x358] sm:$0x1]
        %v2251 = vsel %vm940, %v1830, %v2250
        %2252 = vst [vmem:[%s839 + $0x358] sm:$0x1] %v2251
        %v2253 = vld [vmem:[%s839 + $0x364] sm:$0xf]
        %v2254 = vsel %vm2098, %v1837, %v2253
        %2255 = vst [vmem:[%s839 + $0x364] sm:$0xf] %v2254
        %2256 = vst [vmem:[%s839 + $0x370] sm:$0xf] %v1846
        %v2257 = vld [vmem:[%s839 + $0x37c] sm:$0x1]
        %v2258 = vsel %vm940, %v1847, %v2257
        %2259 = vst [vmem:[%s839 + $0x37c] sm:$0x1] %v2258
        %v2260 = vld [vmem:[%s839 + $0x388] sm:$0xf]
        %v2261 = vsel %vm2098, %v1854, %v2260
        %2262 = vst [vmem:[%s839 + $0x388] sm:$0xf] %v2261
        %2263 = vst [vmem:[%s839 + $0x394] sm:$0xf] %v1863
        %v2264 = vld [vmem:[%s839 + $0x3a0] sm:$0x1]
        %v2265 = vsel %vm940, %v1864, %v2264
        %2266 = vst [vmem:[%s839 + $0x3a0] sm:$0x1] %v2265
        %v2267 = vld [vmem:[%s839 + $0x3ac] sm:$0xf]
        %v2268 = vsel %vm2098, %v1871, %v2267
        %2269 = vst [vmem:[%s839 + $0x3ac] sm:$0xf] %v2268
        %2270 = vst [vmem:[%s839 + $0x3b8] sm:$0xf] %v1880
        %v2271 = vld [vmem:[%s839 + $0x3c4] sm:$0x1]
        %v2272 = vsel %vm940, %v1881, %v2271
        %2273 = vst [vmem:[%s839 + $0x3c4] sm:$0x1] %v2272
        %v2274 = vld [vmem:[%s839 + $0x3d0] sm:$0xf]
        %v2275 = vsel %vm2098, %v1888, %v2274
        %2276 = vst [vmem:[%s839 + $0x3d0] sm:$0xf] %v2275
        %2277 = vst [vmem:[%s839 + $0x3dc] sm:$0xf] %v1897
        %v2278 = vld [vmem:[%s839 + $0x3e8] sm:$0x1]
        %v2279 = vsel %vm940, %v1898, %v2278
        %2280 = vst [vmem:[%s839 + $0x3e8] sm:$0x1] %v2279
        %v2281 = vld [vmem:[%s839 + $0x3f4] sm:$0xf]
        %v2282 = vsel %vm2098, %v1905, %v2281
        %2283 = vst [vmem:[%s839 + $0x3f4] sm:$0xf] %v2282
        %2284 = vst [vmem:[%s839 + $0x400] sm:$0xf] %v1914
        %v2285 = vld [vmem:[%s839 + $0x40c] sm:$0x1]
        %v2286 = vsel %vm940, %v1915, %v2285
        %2287 = vst [vmem:[%s839 + $0x40c] sm:$0x1] %v2286
        %v2288 = vld [vmem:[%s839 + $0x418] sm:$0xf]
        %v2289 = vsel %vm2098, %v1922, %v2288
        %2290 = vst [vmem:[%s839 + $0x418] sm:$0xf] %v2289
        %2291 = vst [vmem:[%s839 + $0x424] sm:$0xf] %v1931
        %v2292 = vld [vmem:[%s839 + $0x430] sm:$0x1]
        %v2293 = vsel %vm940, %v1932, %v2292
        %2294 = vst [vmem:[%s839 + $0x430] sm:$0x1] %v2293
        %v2295 = vld [vmem:[%s839 + $0x43c] sm:$0xf]
        %v2296 = vsel %vm2098, %v1939, %v2295
        %2297 = vst [vmem:[%s839 + $0x43c] sm:$0xf] %v2296
        %2298 = vst [vmem:[%s839 + $0x448] sm:$0xf] %v1948
        %v2299 = vld [vmem:[%s839 + $0x454] sm:$0x1]
        %v2300 = vsel %vm940, %v1949, %v2299
        %2301 = vst [vmem:[%s839 + $0x454] sm:$0x1] %v2300
        %v2302 = vld [vmem:[%s839 + $0x460] sm:$0xf]
        %v2303 = vsel %vm2098, %v1956, %v2302
        %2304 = vst [vmem:[%s839 + $0x460] sm:$0xf] %v2303
        %2305 = vst [vmem:[%s839 + $0x46c] sm:$0xf] %v1965
        %v2306 = vld [vmem:[%s839 + $0x478] sm:$0x1]
        %v2307 = vsel %vm940, %v1966, %v2306
        %2308 = vst [vmem:[%s839 + $0x478] sm:$0x1] %v2307
        %v2309 = vld [vmem:[%s839 + $0x484] sm:$0xf]
        %v2310 = vsel %vm2098, %v1973, %v2309
        %2311 = vst [vmem:[%s839 + $0x484] sm:$0xf] %v2310
        %2312 = vst [vmem:[%s839 + $0x490] sm:$0xf] %v1982
        %v2313 = vld [vmem:[%s839 + $0x49c] sm:$0x1]
        %v2314 = vsel %vm940, %v1983, %v2313
        %2315 = vst [vmem:[%s839 + $0x49c] sm:$0x1] %v2314
        %v2316 = vld [vmem:[%s839 + $0x4a8] sm:$0xf]
        %v2317 = vsel %vm2098, %v1990, %v2316
        %2318 = vst [vmem:[%s839 + $0x4a8] sm:$0xf] %v2317
        %2319 = vst [vmem:[%s839 + $0x4b4] sm:$0xf] %v1999
        %v2320 = vld [vmem:[%s839 + $0x4c0] sm:$0x1]
        %v2321 = vsel %vm940, %v2000, %v2320
        %2322 = vst [vmem:[%s839 + $0x4c0] sm:$0x1] %v2321
        %2323 = vst [vmem:[%s839 + $0x8] sm:$0xf] %v750
        %2324 = vst [vmem:[%s839 + $0x14] sm:$0xf] %v751
        %2325 = vst [vmem:[%s839 + $0x2c] sm:$0xf] %v752
        %2326 = vst [vmem:[%s839 + $0x38] sm:$0xf] %v753
        %2327 = vst [vmem:[%s839 + $0x50] sm:$0xf] %v754
        %2328 = vst [vmem:[%s839 + $0x5c] sm:$0xf] %v755
        %2329 = vst [vmem:[%s839 + $0x74] sm:$0xf] %v756
        %2330 = vst [vmem:[%s839 + $0x80] sm:$0xf] %v757
        %2331 = vst [vmem:[%s839 + $0x98] sm:$0xf] %v758
        %2332 = vst [vmem:[%s839 + $0xa4] sm:$0xf] %v759
        %2333 = vst [vmem:[%s839 + $0xbc] sm:$0xf] %v760
        %2334 = vst [vmem:[%s839 + $0xc8] sm:$0xf] %v761
        %2335 = vst [vmem:[%s839 + $0xe0] sm:$0xf] %v762
        %2336 = vst [vmem:[%s839 + $0xec] sm:$0xf] %v763
        %2337 = vst [vmem:[%s839 + $0x104] sm:$0xf] %v764
        %2338 = vst [vmem:[%s839 + $0x110] sm:$0xf] %v765
        %2339 = vst [vmem:[%s839 + $0x128] sm:$0xf] %v766
        %2340 = vst [vmem:[%s839 + $0x134] sm:$0xf] %v767
        %2341 = vst [vmem:[%s839 + $0x14c] sm:$0xf] %v768
        %2342 = vst [vmem:[%s839 + $0x158] sm:$0xf] %v769
        %2343 = vst [vmem:[%s839 + $0x170] sm:$0xf] %v770
        %2344 = vst [vmem:[%s839 + $0x17c] sm:$0xf] %v771
        %2345 = vst [vmem:[%s839 + $0x194] sm:$0xf] %v772
        %2346 = vst [vmem:[%s839 + $0x1a0] sm:$0xf] %v773
        %2347 = vst [vmem:[%s839 + $0x1b8] sm:$0xf] %v774
        %2348 = vst [vmem:[%s839 + $0x1c4] sm:$0xf] %v775
        %2349 = vst [vmem:[%s839 + $0x1dc] sm:$0xf] %v776
        %2350 = vst [vmem:[%s839 + $0x1e8] sm:$0xf] %v777
        %2351 = vst [vmem:[%s839 + $0x200] sm:$0xf] %v778
        %2352 = vst [vmem:[%s839 + $0x20c] sm:$0xf] %v779
        %2353 = vst [vmem:[%s839 + $0x224] sm:$0xf] %v780
        %2354 = vst [vmem:[%s839 + $0x230] sm:$0xf] %v781
        %2355 = vst [vmem:[%s839 + $0x290] sm:$0xf] %v782
        %2356 = vst [vmem:[%s839 + $0x29c] sm:$0xf] %v783
        %2357 = vst [vmem:[%s839 + $0x2b4] sm:$0xf] %v784
        %2358 = vst [vmem:[%s839 + $0x2c0] sm:$0xf] %v785
        %2359 = vst [vmem:[%s839 + $0x2d8] sm:$0xf] %v786
        %2360 = vst [vmem:[%s839 + $0x2e4] sm:$0xf] %v787
        %2361 = vst [vmem:[%s839 + $0x2fc] sm:$0xf] %v788
        %2362 = vst [vmem:[%s839 + $0x308] sm:$0xf] %v789
        %2363 = vst [vmem:[%s839 + $0x320] sm:$0xf] %v790
        %2364 = vst [vmem:[%s839 + $0x32c] sm:$0xf] %v791
        %2365 = vst [vmem:[%s839 + $0x344] sm:$0xf] %v792
        %2366 = vst [vmem:[%s839 + $0x350] sm:$0xf] %v793
        %2367 = vst [vmem:[%s839 + $0x368] sm:$0xf] %v794
        %2368 = vst [vmem:[%s839 + $0x374] sm:$0xf] %v795
        %2369 = vst [vmem:[%s839 + $0x38c] sm:$0xf] %v796
        %2370 = vst [vmem:[%s839 + $0x398] sm:$0xf] %v797
        %2371 = vst [vmem:[%s839 + $0x3b0] sm:$0xf] %v798
        %2372 = vst [vmem:[%s839 + $0x3bc] sm:$0xf] %v799
        %2373 = vst [vmem:[%s839 + $0x3d4] sm:$0xf] %v800
        %2374 = vst [vmem:[%s839 + $0x3e0] sm:$0xf] %v801
        %2375 = vst [vmem:[%s839 + $0x3f8] sm:$0xf] %v802
        %2376 = vst [vmem:[%s839 + $0x404] sm:$0xf] %v803
        %2377 = vst [vmem:[%s839 + $0x41c] sm:$0xf] %v804
        %2378 = vst [vmem:[%s839 + $0x428] sm:$0xf] %v805
        %2379 = vst [vmem:[%s839 + $0x440] sm:$0xf] %v806
        %2380 = vst [vmem:[%s839 + $0x44c] sm:$0xf] %v807
        %2381 = vst [vmem:[%s839 + $0x464] sm:$0xf] %v808
        %2382 = vst [vmem:[%s839 + $0x470] sm:$0xf] %v809
        %2383 = vst [vmem:[%s839 + $0x488] sm:$0xf] %v810
        %2384 = vst [vmem:[%s839 + $0x494] sm:$0xf] %v811
        %2385 = vst [vmem:[%s839 + $0x4ac] sm:$0xf] %v812
        %2386 = vst [vmem:[%s839 + $0x4b8] sm:$0xf] %v813
        %v2387 = vld [vmem:[#allocation2] sm:$0xff]
        %v2388 = vld [vmem:[#allocation2 + $0x8] sm:$0xf]
        %v2389 = vld [vmem:[#allocation2 + $0xc] sm:$0xff]
        %v2390 = vld [vmem:[#allocation2 + $0x14] sm:$0xf]
        %v2391 = vld [vmem:[#allocation2 + $0x18] sm:$0x11]
        %v2392 = vld [vmem:[#allocation2 + $0x20] sm:$0x1]
        %v2393 = vld [vmem:[#allocation2 + $0x24] sm:$0xff]
        %v2394 = vld [vmem:[#allocation2 + $0x2c] sm:$0xf]
        %v2395 = vld [vmem:[#allocation2 + $0x30] sm:$0xff]
        %v2396 = vld [vmem:[#allocation2 + $0x38] sm:$0xf]
        %v2397 = vld [vmem:[#allocation2 + $0x3c] sm:$0x11]
        %v2398 = vld [vmem:[#allocation2 + $0x44] sm:$0x1]
        %v2399 = vld [vmem:[#allocation2 + $0x48] sm:$0xff]
        %v2400 = vld [vmem:[#allocation2 + $0x50] sm:$0xf]
        %v2401 = vld [vmem:[#allocation2 + $0x54] sm:$0xff]
        %v2402 = vld [vmem:[#allocation2 + $0x5c] sm:$0xf]
        %v2403 = vld [vmem:[#allocation2 + $0x60] sm:$0x11]
        %v2404 = vld [vmem:[#allocation2 + $0x68] sm:$0x1]
        %v2405 = vld [vmem:[#allocation2 + $0x6c] sm:$0xff]
        %v2406 = vld [vmem:[#allocation2 + $0x74] sm:$0xf]
        %v2407 = vld [vmem:[#allocation2 + $0x78] sm:$0xff]
        %v2408 = vld [vmem:[#allocation2 + $0x80] sm:$0xf]
        %v2409 = vld [vmem:[#allocation2 + $0x84] sm:$0x11]
        %v2410 = vld [vmem:[#allocation2 + $0x8c] sm:$0x1]
        %v2411 = vld [vmem:[#allocation2 + $0x90] sm:$0xff]
        %v2412 = vld [vmem:[#allocation2 + $0x98] sm:$0xf]
        %v2413 = vld [vmem:[#allocation2 + $0x9c] sm:$0xff]
        %v2414 = vld [vmem:[#allocation2 + $0xa4] sm:$0xf]
        %v2415 = vld [vmem:[#allocation2 + $0xa8] sm:$0x11]
        %v2416 = vld [vmem:[#allocation2 + $0xb0] sm:$0x1]
        %v2417 = vld [vmem:[#allocation2 + $0xb4] sm:$0xff]
        %v2418 = vld [vmem:[#allocation2 + $0xbc] sm:$0xf]
        %v2419 = vld [vmem:[#allocation2 + $0xc0] sm:$0xff]
        %v2420 = vld [vmem:[#allocation2 + $0xc8] sm:$0xf]
        %v2421 = vld [vmem:[#allocation2 + $0xcc] sm:$0x11]
        %v2422 = vld [vmem:[#allocation2 + $0xd4] sm:$0x1]
        %v2423 = vld [vmem:[#allocation2 + $0xd8] sm:$0xff]
        %v2424 = vld [vmem:[#allocation2 + $0xe0] sm:$0xf]
        %v2425 = vld [vmem:[#allocation2 + $0xe4] sm:$0xff]
        %v2426 = vld [vmem:[#allocation2 + $0xec] sm:$0xf]
        %v2427 = vld [vmem:[#allocation2 + $0xf0] sm:$0x11]
        %v2428 = vld [vmem:[#allocation2 + $0xf8] sm:$0x1]
        %v2429 = vld [vmem:[#allocation2 + $0xfc] sm:$0xff]
        %v2430 = vld [vmem:[#allocation2 + $0x104] sm:$0xf]
        %v2431 = vld [vmem:[#allocation2 + $0x108] sm:$0xff]
        %v2432 = vld [vmem:[#allocation2 + $0x110] sm:$0xf]
        %v2433 = vld [vmem:[#allocation2 + $0x114] sm:$0x11]
        %v2434 = vld [vmem:[#allocation2 + $0x11c] sm:$0x1]
        %v2435 = vld [vmem:[#allocation2 + $0x120] sm:$0xff]
        %v2436 = vld [vmem:[#allocation2 + $0x128] sm:$0xf]
        %v2437 = vld [vmem:[#allocation2 + $0x12c] sm:$0xff]
        %v2438 = vld [vmem:[#allocation2 + $0x134] sm:$0xf]
        %v2439 = vld [vmem:[#allocation2 + $0x138] sm:$0x11]
        %v2440 = vld [vmem:[#allocation2 + $0x140] sm:$0x1]
        %v2441 = vld [vmem:[#allocation2 + $0x144] sm:$0xff]
        %v2442 = vld [vmem:[#allocation2 + $0x14c] sm:$0xf]
        %v2443 = vld [vmem:[#allocation2 + $0x150] sm:$0xff]
        %v2444 = vld [vmem:[#allocation2 + $0x158] sm:$0xf]
        %v2445 = vld [vmem:[#allocation2 + $0x15c] sm:$0x11]
        %v2446 = vld [vmem:[#allocation2 + $0x164] sm:$0x1]
        %v2447 = vld [vmem:[#allocation2 + $0x168] sm:$0xff]
        %v2448 = vld [vmem:[#allocation2 + $0x170] sm:$0xf]
        %v2449 = vld [vmem:[#allocation2 + $0x174] sm:$0xff]
        %v2450 = vld [vmem:[#allocation2 + $0x17c] sm:$0xf]
        %v2451 = vld [vmem:[#allocation2 + $0x180] sm:$0x11]
        %v2452 = vld [vmem:[#allocation2 + $0x188] sm:$0x1]
        %v2453 = vld [vmem:[#allocation2 + $0x18c] sm:$0xff]
        %v2454 = vld [vmem:[#allocation2 + $0x194] sm:$0xf]
        %v2455 = vld [vmem:[#allocation2 + $0x198] sm:$0xff]
        %v2456 = vld [vmem:[#allocation2 + $0x1a0] sm:$0xf]
        %v2457 = vld [vmem:[#allocation2 + $0x1a4] sm:$0x11]
        %v2458 = vld [vmem:[#allocation2 + $0x1ac] sm:$0x1]
        %v2459 = vld [vmem:[#allocation2 + $0x1b0] sm:$0xff]
        %v2460 = vld [vmem:[#allocation2 + $0x1b8] sm:$0xf]
        %v2461 = vld [vmem:[#allocation2 + $0x1bc] sm:$0xff]
        %v2462 = vld [vmem:[#allocation2 + $0x1c4] sm:$0xf]
        %v2463 = vld [vmem:[#allocation2 + $0x1c8] sm:$0x11]
        %v2464 = vld [vmem:[#allocation2 + $0x1d0] sm:$0x1]
        %v2465 = vld [vmem:[#allocation2 + $0x1d4] sm:$0xff]
        %v2466 = vld [vmem:[#allocation2 + $0x1dc] sm:$0xf]
        %v2467 = vld [vmem:[#allocation2 + $0x1e0] sm:$0xff]
        %v2468 = vld [vmem:[#allocation2 + $0x1e8] sm:$0xf]
        %v2469 = vld [vmem:[#allocation2 + $0x1ec] sm:$0x11]
        %v2470 = vld [vmem:[#allocation2 + $0x1f4] sm:$0x1]
        %v2471 = vld [vmem:[#allocation2 + $0x1f8] sm:$0xff]
        %v2472 = vld [vmem:[#allocation2 + $0x200] sm:$0xf]
        %v2473 = vld [vmem:[#allocation2 + $0x204] sm:$0xff]
        %v2474 = vld [vmem:[#allocation2 + $0x20c] sm:$0xf]
        %v2475 = vld [vmem:[#allocation2 + $0x210] sm:$0x11]
        %v2476 = vld [vmem:[#allocation2 + $0x218] sm:$0x1]
        %v2477 = vld [vmem:[#allocation2 + $0x21c] sm:$0xff]
        %v2478 = vld [vmem:[#allocation2 + $0x224] sm:$0xf]
        %v2479 = vld [vmem:[#allocation2 + $0x228] sm:$0xff]
        %v2480 = vld [vmem:[#allocation2 + $0x230] sm:$0xf]
        %v2481 = vld [vmem:[#allocation2 + $0x234] sm:$0x11]
        %v2482 = vld [vmem:[#allocation2 + $0x23c] sm:$0x1]
        %v2483 = vld [vmem:[#allocation2 + $0x288] sm:$0xff]
        %v2484 = vld [vmem:[#allocation2 + $0x290] sm:$0xf]
        %v2485 = vld [vmem:[#allocation2 + $0x294] sm:$0xff]
        %v2486 = vld [vmem:[#allocation2 + $0x29c] sm:$0xf]
        %v2487 = vld [vmem:[#allocation2 + $0x2a0] sm:$0x11]
        %v2488 = vld [vmem:[#allocation2 + $0x2a8] sm:$0x1]
        %v2489 = vld [vmem:[#allocation2 + $0x2ac] sm:$0xff]
        %v2490 = vld [vmem:[#allocation2 + $0x2b4] sm:$0xf]
        %v2491 = vld [vmem:[#allocation2 + $0x2b8] sm:$0xff]
        %v2492 = vld [vmem:[#allocation2 + $0x2c0] sm:$0xf]
        %v2493 = vld [vmem:[#allocation2 + $0x2c4] sm:$0x11]
        %v2494 = vld [vmem:[#allocation2 + $0x2cc] sm:$0x1]
        %v2495 = vld [vmem:[#allocation2 + $0x2d0] sm:$0xff]
        %v2496 = vld [vmem:[#allocation2 + $0x2d8] sm:$0xf]
        %v2497 = vld [vmem:[#allocation2 + $0x2dc] sm:$0xff]
        %v2498 = vld [vmem:[#allocation2 + $0x2e4] sm:$0xf]
        %v2499 = vld [vmem:[#allocation2 + $0x2e8] sm:$0x11]
        %v2500 = vld [vmem:[#allocation2 + $0x2f0] sm:$0x1]
        %v2501 = vld [vmem:[#allocation2 + $0x2f4] sm:$0xff]
        %v2502 = vld [vmem:[#allocation2 + $0x2fc] sm:$0xf]
        %v2503 = vld [vmem:[#allocation2 + $0x300] sm:$0xff]
        %v2504 = vld [vmem:[#allocation2 + $0x308] sm:$0xf]
        %v2505 = vld [vmem:[#allocation2 + $0x30c] sm:$0x11]
        %v2506 = vld [vmem:[#allocation2 + $0x314] sm:$0x1]
        %v2507 = vld [vmem:[#allocation2 + $0x318] sm:$0xff]
        %v2508 = vld [vmem:[#allocation2 + $0x320] sm:$0xf]
        %v2509 = vld [vmem:[#allocation2 + $0x324] sm:$0xff]
        %v2510 = vld [vmem:[#allocation2 + $0x32c] sm:$0xf]
        %v2511 = vld [vmem:[#allocation2 + $0x330] sm:$0x11]
        %v2512 = vld [vmem:[#allocation2 + $0x338] sm:$0x1]
        %v2513 = vld [vmem:[#allocation2 + $0x33c] sm:$0xff]
        %v2514 = vld [vmem:[#allocation2 + $0x344] sm:$0xf]
        %v2515 = vld [vmem:[#allocation2 + $0x348] sm:$0xff]
        %v2516 = vld [vmem:[#allocation2 + $0x350] sm:$0xf]
        %v2517 = vld [vmem:[#allocation2 + $0x354] sm:$0x11]
        %v2518 = vld [vmem:[#allocation2 + $0x35c] sm:$0x1]
        %v2519 = vld [vmem:[#allocation2 + $0x360] sm:$0xff]
        %v2520 = vld [vmem:[#allocation2 + $0x368] sm:$0xf]
        %v2521 = vld [vmem:[#allocation2 + $0x36c] sm:$0xff]
        %v2522 = vld [vmem:[#allocation2 + $0x374] sm:$0xf]
        %v2523 = vld [vmem:[#allocation2 + $0x378] sm:$0x11]
        %v2524 = vld [vmem:[#allocation2 + $0x380] sm:$0x1]
        %v2525 = vld [vmem:[#allocation2 + $0x384] sm:$0xff]
        %v2526 = vld [vmem:[#allocation2 + $0x38c] sm:$0xf]
        %v2527 = vld [vmem:[#allocation2 + $0x390] sm:$0xff]
        %v2528 = vld [vmem:[#allocation2 + $0x398] sm:$0xf]
        %v2529 = vld [vmem:[#allocation2 + $0x39c] sm:$0x11]
        %v2530 = vld [vmem:[#allocation2 + $0x3a4] sm:$0x1]
        %v2531 = vld [vmem:[#allocation2 + $0x3a8] sm:$0xff]
        %v2532 = vld [vmem:[#allocation2 + $0x3b0] sm:$0xf]
        %v2533 = vld [vmem:[#allocation2 + $0x3b4] sm:$0xff]
        %v2534 = vld [vmem:[#allocation2 + $0x3bc] sm:$0xf]
        %v2535 = vld [vmem:[#allocation2 + $0x3c0] sm:$0x11]
        %v2536 = vld [vmem:[#allocation2 + $0x3c8] sm:$0x1]
        %v2537 = vld [vmem:[#allocation2 + $0x3cc] sm:$0xff]
        %v2538 = vld [vmem:[#allocation2 + $0x3d4] sm:$0xf]
        %v2539 = vld [vmem:[#allocation2 + $0x3d8] sm:$0xff]
        %v2540 = vld [vmem:[#allocation2 + $0x3e0] sm:$0xf]
        %v2541 = vld [vmem:[#allocation2 + $0x3e4] sm:$0x11]
        %v2542 = vld [vmem:[#allocation2 + $0x3ec] sm:$0x1]
        %v2543 = vld [vmem:[#allocation2 + $0x3f0] sm:$0xff]
        %v2544 = vld [vmem:[#allocation2 + $0x3f8] sm:$0xf]
        %v2545 = vld [vmem:[#allocation2 + $0x3fc] sm:$0xff]
        %v2546 = vld [vmem:[#allocation2 + $0x404] sm:$0xf]
        %v2547 = vld [vmem:[#allocation2 + $0x408] sm:$0x11]
        %v2548 = vld [vmem:[#allocation2 + $0x410] sm:$0x1]
        %v2549 = vld [vmem:[#allocation2 + $0x414] sm:$0xff]
        %v2550 = vld [vmem:[#allocation2 + $0x41c] sm:$0xf]
        %v2551 = vld [vmem:[#allocation2 + $0x420] sm:$0xff]
        %v2552 = vld [vmem:[#allocation2 + $0x428] sm:$0xf]
        %v2553 = vld [vmem:[#allocation2 + $0x42c] sm:$0x11]
        %v2554 = vld [vmem:[#allocation2 + $0x434] sm:$0x1]
        %v2555 = vld [vmem:[#allocation2 + $0x438] sm:$0xff]
        %v2556 = vld [vmem:[#allocation2 + $0x440] sm:$0xf]
        %v2557 = vld [vmem:[#allocation2 + $0x444] sm:$0xff]
        %v2558 = vld [vmem:[#allocation2 + $0x44c] sm:$0xf]
        %v2559 = vld [vmem:[#allocation2 + $0x450] sm:$0x11]
        %v2560 = vld [vmem:[#allocation2 + $0x458] sm:$0x1]
        %v2561 = vld [vmem:[#allocation2 + $0x45c] sm:$0xff]
        %v2562 = vld [vmem:[#allocation2 + $0x464] sm:$0xf]
        %v2563 = vld [vmem:[#allocation2 + $0x468] sm:$0xff]
        %v2564 = vld [vmem:[#allocation2 + $0x470] sm:$0xf]
        %v2565 = vld [vmem:[#allocation2 + $0x474] sm:$0x11]
        %v2566 = vld [vmem:[#allocation2 + $0x47c] sm:$0x1]
        %v2567 = vld [vmem:[#allocation2 + $0x480] sm:$0xff]
        %v2568 = vld [vmem:[#allocation2 + $0x488] sm:$0xf]
        %v2569 = vld [vmem:[#allocation2 + $0x48c] sm:$0xff]
        %v2570 = vld [vmem:[#allocation2 + $0x494] sm:$0xf]
        %v2571 = vld [vmem:[#allocation2 + $0x498] sm:$0x11]
        %v2572 = vld [vmem:[#allocation2 + $0x4a0] sm:$0x1]
        %v2573 = vld [vmem:[#allocation2 + $0x4a4] sm:$0xff]
        %v2574 = vld [vmem:[#allocation2 + $0x4ac] sm:$0xf]
        %v2575 = vld [vmem:[#allocation2 + $0x4b0] sm:$0xff]
        %v2576 = vld [vmem:[#allocation2 + $0x4b8] sm:$0xf]
        %v2577 = vld [vmem:[#allocation2 + $0x4bc] sm:$0x11]
        %v2578 = vld [vmem:[#allocation2 + $0x4c4] sm:$0x1]
        %vm2579 = vsmask.f32 3328
        %vm2580 = vsmask.f32 7440
        %vm2581 = vmor %vm2579, %vm2580
        %v2583 = vshrl.u32 %v2387, 16
        %v2585 = vrot.slane %v2583, 4
        %v2586 = vshll.u32 %v2387, 16
        %v2588 = vrot.slane %v2586, 5
        %v2589 = vor.u32 %v2585, %v2588
        %v2590 = vrot.slane %v2589, 4
        %v2592 = vshll.u32 %v2389, 16
        %v2594 = vrot.slane %v2592, 5
        %v2595 = vsel %vm2581, %v2590, %v2594
        %v2597 = vshrl.u32 %v2388, 16
        %v2599 = vrot.slane %v2597, 4
        %v2600 = vshll.u32 %v2388, 16
        %v2602 = vrot.slane %v2600, 5
        %v2603 = vor.u32 %v2599, %v2602
        %v2604 = vrot.slane %v2603, 4
        %v2606 = vshll.u32 %v2390, 16
        %v2608 = vrot.slane %v2606, 5
        %v2609 = vsel %vm2581, %v2604, %v2608
        %v2610 = vshrl.u32 %v2389, 16
        %v2612 = vrot.slane %v2610, 4
        %v2613 = vor.u32 %v2612, %v2594
        %v2614 = vrot.slane %v2613, 4
        %v2616 = vshll.u32 %v2391, 16
        %v2618 = vrot.slane %v2616, 5
        %v2619 = vsel %vm2581, %v2614, %v2618
        %v2620 = vshrl.u32 %v2390, 16
        %v2622 = vrot.slane %v2620, 4
        %v2623 = vor.u32 %v2622, %v2608
        %v2624 = vrot.slane %v2623, 4
        %v2626 = vshll.u32 %v2392, 16
        %v2628 = vrot.slane %v2626, 5
        %v2629 = vsel %vm2581, %v2624, %v2628
        %v2631 = vshrl.u32 %v2393, 16
        %v2633 = vrot.slane %v2631, 4
        %v2634 = vshll.u32 %v2393, 16
        %v2636 = vrot.slane %v2634, 5
        %v2637 = vor.u32 %v2633, %v2636
        %v2638 = vrot.slane %v2637, 4
        %v2640 = vshll.u32 %v2395, 16
        %v2642 = vrot.slane %v2640, 5
        %v2643 = vsel %vm2581, %v2638, %v2642
        %v2645 = vshrl.u32 %v2394, 16
        %v2647 = vrot.slane %v2645, 4
        %v2648 = vshll.u32 %v2394, 16
        %v2650 = vrot.slane %v2648, 5
        %v2651 = vor.u32 %v2647, %v2650
        %v2652 = vrot.slane %v2651, 4
        %v2654 = vshll.u32 %v2396, 16
        %v2656 = vrot.slane %v2654, 5
        %v2657 = vsel %vm2581, %v2652, %v2656
        %v2658 = vshrl.u32 %v2395, 16
        %v2660 = vrot.slane %v2658, 4
        %v2661 = vor.u32 %v2660, %v2642
        %v2662 = vrot.slane %v2661, 4
        %v2664 = vshll.u32 %v2397, 16
        %v2666 = vrot.slane %v2664, 5
        %v2667 = vsel %vm2581, %v2662, %v2666
        %v2668 = vshrl.u32 %v2396, 16
        %v2670 = vrot.slane %v2668, 4
        %v2671 = vor.u32 %v2670, %v2656
        %v2672 = vrot.slane %v2671, 4
        %v2674 = vshll.u32 %v2398, 16
        %v2676 = vrot.slane %v2674, 5
        %v2677 = vsel %vm2581, %v2672, %v2676
        %v2679 = vshrl.u32 %v2399, 16
        %v2681 = vrot.slane %v2679, 4
        %v2682 = vshll.u32 %v2399, 16
        %v2684 = vrot.slane %v2682, 5
        %v2685 = vor.u32 %v2681, %v2684
        %v2686 = vrot.slane %v2685, 4
        %v2688 = vshll.u32 %v2401, 16
        %v2690 = vrot.slane %v2688, 5
        %v2691 = vsel %vm2581, %v2686, %v2690
        %v2693 = vshrl.u32 %v2400, 16
        %v2695 = vrot.slane %v2693, 4
        %v2696 = vshll.u32 %v2400, 16
        %v2698 = vrot.slane %v2696, 5
        %v2699 = vor.u32 %v2695, %v2698
        %v2700 = vrot.slane %v2699, 4
        %v2702 = vshll.u32 %v2402, 16
        %v2704 = vrot.slane %v2702, 5
        %v2705 = vsel %vm2581, %v2700, %v2704
        %v2706 = vshrl.u32 %v2401, 16
        %v2708 = vrot.slane %v2706, 4
        %v2709 = vor.u32 %v2708, %v2690
        %v2710 = vrot.slane %v2709, 4
        %v2712 = vshll.u32 %v2403, 16
        %v2714 = vrot.slane %v2712, 5
        %v2715 = vsel %vm2581, %v2710, %v2714
        %v2716 = vshrl.u32 %v2402, 16
        %v2718 = vrot.slane %v2716, 4
        %v2719 = vor.u32 %v2718, %v2704
        %v2720 = vrot.slane %v2719, 4
        %v2722 = vshll.u32 %v2404, 16
        %v2724 = vrot.slane %v2722, 5
        %v2725 = vsel %vm2581, %v2720, %v2724
        %v2727 = vshrl.u32 %v2405, 16
        %v2729 = vrot.slane %v2727, 4
        %v2730 = vshll.u32 %v2405, 16
        %v2732 = vrot.slane %v2730, 5
        %v2733 = vor.u32 %v2729, %v2732
        %v2734 = vrot.slane %v2733, 4
        %v2736 = vshll.u32 %v2407, 16
        %v2738 = vrot.slane %v2736, 5
        %v2739 = vsel %vm2581, %v2734, %v2738
        %v2741 = vshrl.u32 %v2406, 16
        %v2743 = vrot.slane %v2741, 4
        %v2744 = vshll.u32 %v2406, 16
        %v2746 = vrot.slane %v2744, 5
        %v2747 = vor.u32 %v2743, %v2746
        %v2748 = vrot.slane %v2747, 4
        %v2750 = vshll.u32 %v2408, 16
        %v2752 = vrot.slane %v2750, 5
        %v2753 = vsel %vm2581, %v2748, %v2752
        %v2754 = vshrl.u32 %v2407, 16
        %v2756 = vrot.slane %v2754, 4
        %v2757 = vor.u32 %v2756, %v2738
        %v2758 = vrot.slane %v2757, 4
        %v2760 = vshll.u32 %v2409, 16
        %v2762 = vrot.slane %v2760, 5
        %v2763 = vsel %vm2581, %v2758, %v2762
        %v2764 = vshrl.u32 %v2408, 16
        %v2766 = vrot.slane %v2764, 4
        %v2767 = vor.u32 %v2766, %v2752
        %v2768 = vrot.slane %v2767, 4
        %v2770 = vshll.u32 %v2410, 16
        %v2772 = vrot.slane %v2770, 5
        %v2773 = vsel %vm2581, %v2768, %v2772
        %v2775 = vshrl.u32 %v2411, 16
        %v2777 = vrot.slane %v2775, 4
        %v2778 = vshll.u32 %v2411, 16
        %v2780 = vrot.slane %v2778, 5
        %v2781 = vor.u32 %v2777, %v2780
        %v2782 = vrot.slane %v2781, 4
        %v2784 = vshll.u32 %v2413, 16
        %v2786 = vrot.slane %v2784, 5
        %v2787 = vsel %vm2581, %v2782, %v2786
        %v2789 = vshrl.u32 %v2412, 16
        %v2791 = vrot.slane %v2789, 4
        %v2792 = vshll.u32 %v2412, 16
        %v2794 = vrot.slane %v2792, 5
        %v2795 = vor.u32 %v2791, %v2794
        %v2796 = vrot.slane %v2795, 4
        %v2798 = vshll.u32 %v2414, 16
        %v2800 = vrot.slane %v2798, 5
        %v2801 = vsel %vm2581, %v2796, %v2800
        %v2802 = vshrl.u32 %v2413, 16
        %v2804 = vrot.slane %v2802, 4
        %v2805 = vor.u32 %v2804, %v2786
        %v2806 = vrot.slane %v2805, 4
        %v2808 = vshll.u32 %v2415, 16
        %v2810 = vrot.slane %v2808, 5
        %v2811 = vsel %vm2581, %v2806, %v2810
        %v2812 = vshrl.u32 %v2414, 16
        %v2814 = vrot.slane %v2812, 4
        %v2815 = vor.u32 %v2814, %v2800
        %v2816 = vrot.slane %v2815, 4
        %v2818 = vshll.u32 %v2416, 16
        %v2820 = vrot.slane %v2818, 5
        %v2821 = vsel %vm2581, %v2816, %v2820
        %v2823 = vshrl.u32 %v2417, 16
        %v2825 = vrot.slane %v2823, 4
        %v2826 = vshll.u32 %v2417, 16
        %v2828 = vrot.slane %v2826, 5
        %v2829 = vor.u32 %v2825, %v2828
        %v2830 = vrot.slane %v2829, 4
        %v2832 = vshll.u32 %v2419, 16
        %v2834 = vrot.slane %v2832, 5
        %v2835 = vsel %vm2581, %v2830, %v2834
        %v2837 = vshrl.u32 %v2418, 16
        %v2839 = vrot.slane %v2837, 4
        %v2840 = vshll.u32 %v2418, 16
        %v2842 = vrot.slane %v2840, 5
        %v2843 = vor.u32 %v2839, %v2842
        %v2844 = vrot.slane %v2843, 4
        %v2846 = vshll.u32 %v2420, 16
        %v2848 = vrot.slane %v2846, 5
        %v2849 = vsel %vm2581, %v2844, %v2848
        %v2850 = vshrl.u32 %v2419, 16
        %v2852 = vrot.slane %v2850, 4
        %v2853 = vor.u32 %v2852, %v2834
        %v2854 = vrot.slane %v2853, 4
        %v2856 = vshll.u32 %v2421, 16
        %v2858 = vrot.slane %v2856, 5
        %v2859 = vsel %vm2581, %v2854, %v2858
        %v2860 = vshrl.u32 %v2420, 16
        %v2862 = vrot.slane %v2860, 4
        %v2863 = vor.u32 %v2862, %v2848
        %v2864 = vrot.slane %v2863, 4
        %v2866 = vshll.u32 %v2422, 16
        %v2868 = vrot.slane %v2866, 5
        %v2869 = vsel %vm2581, %v2864, %v2868
        %v2871 = vshrl.u32 %v2423, 16
        %v2873 = vrot.slane %v2871, 4
        %v2874 = vshll.u32 %v2423, 16
        %v2876 = vrot.slane %v2874, 5
        %v2877 = vor.u32 %v2873, %v2876
        %v2878 = vrot.slane %v2877, 4
        %v2880 = vshll.u32 %v2425, 16
        %v2882 = vrot.slane %v2880, 5
        %v2883 = vsel %vm2581, %v2878, %v2882
        %v2885 = vshrl.u32 %v2424, 16
        %v2887 = vrot.slane %v2885, 4
        %v2888 = vshll.u32 %v2424, 16
        %v2890 = vrot.slane %v2888, 5
        %v2891 = vor.u32 %v2887, %v2890
        %v2892 = vrot.slane %v2891, 4
        %v2894 = vshll.u32 %v2426, 16
        %v2896 = vrot.slane %v2894, 5
        %v2897 = vsel %vm2581, %v2892, %v2896
        %v2898 = vshrl.u32 %v2425, 16
        %v2900 = vrot.slane %v2898, 4
        %v2901 = vor.u32 %v2900, %v2882
        %v2902 = vrot.slane %v2901, 4
        %v2904 = vshll.u32 %v2427, 16
        %v2906 = vrot.slane %v2904, 5
        %v2907 = vsel %vm2581, %v2902, %v2906
        %v2908 = vshrl.u32 %v2426, 16
        %v2910 = vrot.slane %v2908, 4
        %v2911 = vor.u32 %v2910, %v2896
        %v2912 = vrot.slane %v2911, 4
        %v2914 = vshll.u32 %v2428, 16
        %v2916 = vrot.slane %v2914, 5
        %v2917 = vsel %vm2581, %v2912, %v2916
        %v2919 = vshrl.u32 %v2429, 16
        %v2921 = vrot.slane %v2919, 4
        %v2922 = vshll.u32 %v2429, 16
        %v2924 = vrot.slane %v2922, 5
        %v2925 = vor.u32 %v2921, %v2924
        %v2926 = vrot.slane %v2925, 4
        %v2928 = vshll.u32 %v2431, 16
        %v2930 = vrot.slane %v2928, 5
        %v2931 = vsel %vm2581, %v2926, %v2930
        %v2933 = vshrl.u32 %v2430, 16
        %v2935 = vrot.slane %v2933, 4
        %v2936 = vshll.u32 %v2430, 16
        %v2938 = vrot.slane %v2936, 5
        %v2939 = vor.u32 %v2935, %v2938
        %v2940 = vrot.slane %v2939, 4
        %v2942 = vshll.u32 %v2432, 16
        %v2944 = vrot.slane %v2942, 5
        %v2945 = vsel %vm2581, %v2940, %v2944
        %v2946 = vshrl.u32 %v2431, 16
        %v2948 = vrot.slane %v2946, 4
        %v2949 = vor.u32 %v2948, %v2930
        %v2950 = vrot.slane %v2949, 4
        %v2952 = vshll.u32 %v2433, 16
        %v2954 = vrot.slane %v2952, 5
        %v2955 = vsel %vm2581, %v2950, %v2954
        %v2956 = vshrl.u32 %v2432, 16
        %v2958 = vrot.slane %v2956, 4
        %v2959 = vor.u32 %v2958, %v2944
        %v2960 = vrot.slane %v2959, 4
        %v2962 = vshll.u32 %v2434, 16
        %v2964 = vrot.slane %v2962, 5
        %v2965 = vsel %vm2581, %v2960, %v2964
        %v2967 = vshrl.u32 %v2435, 16
        %v2969 = vrot.slane %v2967, 4
        %v2970 = vshll.u32 %v2435, 16
        %v2972 = vrot.slane %v2970, 5
        %v2973 = vor.u32 %v2969, %v2972
        %v2974 = vrot.slane %v2973, 4
        %v2976 = vshll.u32 %v2437, 16
        %v2978 = vrot.slane %v2976, 5
        %v2979 = vsel %vm2581, %v2974, %v2978
        %v2981 = vshrl.u32 %v2436, 16
        %v2983 = vrot.slane %v2981, 4
        %v2984 = vshll.u32 %v2436, 16
        %v2986 = vrot.slane %v2984, 5
        %v2987 = vor.u32 %v2983, %v2986
        %v2988 = vrot.slane %v2987, 4
        %v2990 = vshll.u32 %v2438, 16
        %v2992 = vrot.slane %v2990, 5
        %v2993 = vsel %vm2581, %v2988, %v2992
        %v2994 = vshrl.u32 %v2437, 16
        %v2996 = vrot.slane %v2994, 4
        %v2997 = vor.u32 %v2996, %v2978
        %v2998 = vrot.slane %v2997, 4
        %v3000 = vshll.u32 %v2439, 16
        %v3002 = vrot.slane %v3000, 5
        %v3003 = vsel %vm2581, %v2998, %v3002
        %v3004 = vshrl.u32 %v2438, 16
        %v3006 = vrot.slane %v3004, 4
        %v3007 = vor.u32 %v3006, %v2992
        %v3008 = vrot.slane %v3007, 4
        %v3010 = vshll.u32 %v2440, 16
        %v3012 = vrot.slane %v3010, 5
        %v3013 = vsel %vm2581, %v3008, %v3012
        %v3015 = vshrl.u32 %v2441, 16
        %v3017 = vrot.slane %v3015, 4
        %v3018 = vshll.u32 %v2441, 16
        %v3020 = vrot.slane %v3018, 5
        %v3021 = vor.u32 %v3017, %v3020
        %v3022 = vrot.slane %v3021, 4
        %v3024 = vshll.u32 %v2443, 16
        %v3026 = vrot.slane %v3024, 5
        %v3027 = vsel %vm2581, %v3022, %v3026
        %v3029 = vshrl.u32 %v2442, 16
        %v3031 = vrot.slane %v3029, 4
        %v3032 = vshll.u32 %v2442, 16
        %v3034 = vrot.slane %v3032, 5
        %v3035 = vor.u32 %v3031, %v3034
        %v3036 = vrot.slane %v3035, 4
        %v3038 = vshll.u32 %v2444, 16
        %v3040 = vrot.slane %v3038, 5
        %v3041 = vsel %vm2581, %v3036, %v3040
        %v3042 = vshrl.u32 %v2443, 16
        %v3044 = vrot.slane %v3042, 4
        %v3045 = vor.u32 %v3044, %v3026
        %v3046 = vrot.slane %v3045, 4
        %v3048 = vshll.u32 %v2445, 16
        %v3050 = vrot.slane %v3048, 5
        %v3051 = vsel %vm2581, %v3046, %v3050
        %v3052 = vshrl.u32 %v2444, 16
        %v3054 = vrot.slane %v3052, 4
        %v3055 = vor.u32 %v3054, %v3040
        %v3056 = vrot.slane %v3055, 4
        %v3058 = vshll.u32 %v2446, 16
        %v3060 = vrot.slane %v3058, 5
        %v3061 = vsel %vm2581, %v3056, %v3060
        %v3063 = vshrl.u32 %v2447, 16
        %v3065 = vrot.slane %v3063, 4
        %v3066 = vshll.u32 %v2447, 16
        %v3068 = vrot.slane %v3066, 5
        %v3069 = vor.u32 %v3065, %v3068
        %v3070 = vrot.slane %v3069, 4
        %v3072 = vshll.u32 %v2449, 16
        %v3074 = vrot.slane %v3072, 5
        %v3075 = vsel %vm2581, %v3070, %v3074
        %v3077 = vshrl.u32 %v2448, 16
        %v3079 = vrot.slane %v3077, 4
        %v3080 = vshll.u32 %v2448, 16
        %v3082 = vrot.slane %v3080, 5
        %v3083 = vor.u32 %v3079, %v3082
        %v3084 = vrot.slane %v3083, 4
        %v3086 = vshll.u32 %v2450, 16
        %v3088 = vrot.slane %v3086, 5
        %v3089 = vsel %vm2581, %v3084, %v3088
        %v3090 = vshrl.u32 %v2449, 16
        %v3092 = vrot.slane %v3090, 4
        %v3093 = vor.u32 %v3092, %v3074
        %v3094 = vrot.slane %v3093, 4
        %v3096 = vshll.u32 %v2451, 16
        %v3098 = vrot.slane %v3096, 5
        %v3099 = vsel %vm2581, %v3094, %v3098
        %v3100 = vshrl.u32 %v2450, 16
        %v3102 = vrot.slane %v3100, 4
        %v3103 = vor.u32 %v3102, %v3088
        %v3104 = vrot.slane %v3103, 4
        %v3106 = vshll.u32 %v2452, 16
        %v3108 = vrot.slane %v3106, 5
        %v3109 = vsel %vm2581, %v3104, %v3108
        %v3111 = vshrl.u32 %v2453, 16
        %v3113 = vrot.slane %v3111, 4
        %v3114 = vshll.u32 %v2453, 16
        %v3116 = vrot.slane %v3114, 5
        %v3117 = vor.u32 %v3113, %v3116
        %v3118 = vrot.slane %v3117, 4
        %v3120 = vshll.u32 %v2455, 16
        %v3122 = vrot.slane %v3120, 5
        %v3123 = vsel %vm2581, %v3118, %v3122
        %v3125 = vshrl.u32 %v2454, 16
        %v3127 = vrot.slane %v3125, 4
        %v3128 = vshll.u32 %v2454, 16
        %v3130 = vrot.slane %v3128, 5
        %v3131 = vor.u32 %v3127, %v3130
        %v3132 = vrot.slane %v3131, 4
        %v3134 = vshll.u32 %v2456, 16
        %v3136 = vrot.slane %v3134, 5
        %v3137 = vsel %vm2581, %v3132, %v3136
        %v3138 = vshrl.u32 %v2455, 16
        %v3140 = vrot.slane %v3138, 4
        %v3141 = vor.u32 %v3140, %v3122
        %v3142 = vrot.slane %v3141, 4
        %v3144 = vshll.u32 %v2457, 16
        %v3146 = vrot.slane %v3144, 5
        %v3147 = vsel %vm2581, %v3142, %v3146
        %v3148 = vshrl.u32 %v2456, 16
        %v3150 = vrot.slane %v3148, 4
        %v3151 = vor.u32 %v3150, %v3136
        %v3152 = vrot.slane %v3151, 4
        %v3154 = vshll.u32 %v2458, 16
        %v3156 = vrot.slane %v3154, 5
        %v3157 = vsel %vm2581, %v3152, %v3156
        %v3159 = vshrl.u32 %v2459, 16
        %v3161 = vrot.slane %v3159, 4
        %v3162 = vshll.u32 %v2459, 16
        %v3164 = vrot.slane %v3162, 5
        %v3165 = vor.u32 %v3161, %v3164
        %v3166 = vrot.slane %v3165, 4
        %v3168 = vshll.u32 %v2461, 16
        %v3170 = vrot.slane %v3168, 5
        %v3171 = vsel %vm2581, %v3166, %v3170
        %v3173 = vshrl.u32 %v2460, 16
        %v3175 = vrot.slane %v3173, 4
        %v3176 = vshll.u32 %v2460, 16
        %v3178 = vrot.slane %v3176, 5
        %v3179 = vor.u32 %v3175, %v3178
        %v3180 = vrot.slane %v3179, 4
        %v3182 = vshll.u32 %v2462, 16
        %v3184 = vrot.slane %v3182, 5
        %v3185 = vsel %vm2581, %v3180, %v3184
        %v3186 = vshrl.u32 %v2461, 16
        %v3188 = vrot.slane %v3186, 4
        %v3189 = vor.u32 %v3188, %v3170
        %v3190 = vrot.slane %v3189, 4
        %v3192 = vshll.u32 %v2463, 16
        %v3194 = vrot.slane %v3192, 5
        %v3195 = vsel %vm2581, %v3190, %v3194
        %v3196 = vshrl.u32 %v2462, 16
        %v3198 = vrot.slane %v3196, 4
        %v3199 = vor.u32 %v3198, %v3184
        %v3200 = vrot.slane %v3199, 4
        %v3202 = vshll.u32 %v2464, 16
        %v3204 = vrot.slane %v3202, 5
        %v3205 = vsel %vm2581, %v3200, %v3204
        %v3207 = vshrl.u32 %v2465, 16
        %v3209 = vrot.slane %v3207, 4
        %v3210 = vshll.u32 %v2465, 16
        %v3212 = vrot.slane %v3210, 5
        %v3213 = vor.u32 %v3209, %v3212
        %v3214 = vrot.slane %v3213, 4
        %v3216 = vshll.u32 %v2467, 16
        %v3218 = vrot.slane %v3216, 5
        %v3219 = vsel %vm2581, %v3214, %v3218
        %v3221 = vshrl.u32 %v2466, 16
        %v3223 = vrot.slane %v3221, 4
        %v3224 = vshll.u32 %v2466, 16
        %v3226 = vrot.slane %v3224, 5
        %v3227 = vor.u32 %v3223, %v3226
        %v3228 = vrot.slane %v3227, 4
        %v3230 = vshll.u32 %v2468, 16
        %v3232 = vrot.slane %v3230, 5
        %v3233 = vsel %vm2581, %v3228, %v3232
        %v3234 = vshrl.u32 %v2467, 16
        %v3236 = vrot.slane %v3234, 4
        %v3237 = vor.u32 %v3236, %v3218
        %v3238 = vrot.slane %v3237, 4
        %v3240 = vshll.u32 %v2469, 16
        %v3242 = vrot.slane %v3240, 5
        %v3243 = vsel %vm2581, %v3238, %v3242
        %v3244 = vshrl.u32 %v2468, 16
        %v3246 = vrot.slane %v3244, 4
        %v3247 = vor.u32 %v3246, %v3232
        %v3248 = vrot.slane %v3247, 4
        %v3250 = vshll.u32 %v2470, 16
        %v3252 = vrot.slane %v3250, 5
        %v3253 = vsel %vm2581, %v3248, %v3252
        %v3255 = vshrl.u32 %v2471, 16
        %v3257 = vrot.slane %v3255, 4
        %v3258 = vshll.u32 %v2471, 16
        %v3260 = vrot.slane %v3258, 5
        %v3261 = vor.u32 %v3257, %v3260
        %v3262 = vrot.slane %v3261, 4
        %v3264 = vshll.u32 %v2473, 16
        %v3266 = vrot.slane %v3264, 5
        %v3267 = vsel %vm2581, %v3262, %v3266
        %v3269 = vshrl.u32 %v2472, 16
        %v3271 = vrot.slane %v3269, 4
        %v3272 = vshll.u32 %v2472, 16
        %v3274 = vrot.slane %v3272, 5
        %v3275 = vor.u32 %v3271, %v3274
        %v3276 = vrot.slane %v3275, 4
        %v3278 = vshll.u32 %v2474, 16
        %v3280 = vrot.slane %v3278, 5
        %v3281 = vsel %vm2581, %v3276, %v3280
        %v3282 = vshrl.u32 %v2473, 16
        %v3284 = vrot.slane %v3282, 4
        %v3285 = vor.u32 %v3284, %v3266
        %v3286 = vrot.slane %v3285, 4
        %v3288 = vshll.u32 %v2475, 16
        %v3290 = vrot.slane %v3288, 5
        %v3291 = vsel %vm2581, %v3286, %v3290
        %v3292 = vshrl.u32 %v2474, 16
        %v3294 = vrot.slane %v3292, 4
        %v3295 = vor.u32 %v3294, %v3280
        %v3296 = vrot.slane %v3295, 4
        %v3298 = vshll.u32 %v2476, 16
        %v3300 = vrot.slane %v3298, 5
        %v3301 = vsel %vm2581, %v3296, %v3300
        %v3303 = vshrl.u32 %v2477, 16
        %v3305 = vrot.slane %v3303, 4
        %v3306 = vshll.u32 %v2477, 16
        %v3308 = vrot.slane %v3306, 5
        %v3309 = vor.u32 %v3305, %v3308
        %v3310 = vrot.slane %v3309, 4
        %v3312 = vshll.u32 %v2479, 16
        %v3314 = vrot.slane %v3312, 5
        %v3315 = vsel %vm2581, %v3310, %v3314
        %v3317 = vshrl.u32 %v2478, 16
        %v3319 = vrot.slane %v3317, 4
        %v3320 = vshll.u32 %v2478, 16
        %v3322 = vrot.slane %v3320, 5
        %v3323 = vor.u32 %v3319, %v3322
        %v3324 = vrot.slane %v3323, 4
        %v3326 = vshll.u32 %v2480, 16
        %v3328 = vrot.slane %v3326, 5
        %v3329 = vsel %vm2581, %v3324, %v3328
        %v3330 = vshrl.u32 %v2479, 16
        %v3332 = vrot.slane %v3330, 4
        %v3333 = vor.u32 %v3332, %v3314
        %v3334 = vrot.slane %v3333, 4
        %v3336 = vshll.u32 %v2481, 16
        %v3338 = vrot.slane %v3336, 5
        %v3339 = vsel %vm2581, %v3334, %v3338
        %v3340 = vshrl.u32 %v2480, 16
        %v3342 = vrot.slane %v3340, 4
        %v3343 = vor.u32 %v3342, %v3328
        %v3344 = vrot.slane %v3343, 4
        %v3346 = vshll.u32 %v2482, 16
        %v3348 = vrot.slane %v3346, 5
        %v3349 = vsel %vm2581, %v3344, %v3348
        %v3351 = vshrl.u32 %v2483, 16
        %v3353 = vrot.slane %v3351, 4
        %v3354 = vshll.u32 %v2483, 16
        %v3356 = vrot.slane %v3354, 5
        %v3357 = vor.u32 %v3353, %v3356
        %v3358 = vrot.slane %v3357, 4
        %v3360 = vshll.u32 %v2485, 16
        %v3362 = vrot.slane %v3360, 5
        %v3363 = vsel %vm2581, %v3358, %v3362
        %v3365 = vshrl.u32 %v2484, 16
        %v3367 = vrot.slane %v3365, 4
        %v3368 = vshll.u32 %v2484, 16
        %v3370 = vrot.slane %v3368, 5
        %v3371 = vor.u32 %v3367, %v3370
        %v3372 = vrot.slane %v3371, 4
        %v3374 = vshll.u32 %v2486, 16
        %v3376 = vrot.slane %v3374, 5
        %v3377 = vsel %vm2581, %v3372, %v3376
        %v3378 = vshrl.u32 %v2485, 16
        %v3380 = vrot.slane %v3378, 4
        %v3381 = vor.u32 %v3380, %v3362
        %v3382 = vrot.slane %v3381, 4
        %v3384 = vshll.u32 %v2487, 16
        %v3386 = vrot.slane %v3384, 5
        %v3387 = vsel %vm2581, %v3382, %v3386
        %v3388 = vshrl.u32 %v2486, 16
        %v3390 = vrot.slane %v3388, 4
        %v3391 = vor.u32 %v3390, %v3376
        %v3392 = vrot.slane %v3391, 4
        %v3394 = vshll.u32 %v2488, 16
        %v3396 = vrot.slane %v3394, 5
        %v3397 = vsel %vm2581, %v3392, %v3396
        %v3399 = vshrl.u32 %v2489, 16
        %v3401 = vrot.slane %v3399, 4
        %v3402 = vshll.u32 %v2489, 16
        %v3404 = vrot.slane %v3402, 5
        %v3405 = vor.u32 %v3401, %v3404
        %v3406 = vrot.slane %v3405, 4
        %v3408 = vshll.u32 %v2491, 16
        %v3410 = vrot.slane %v3408, 5
        %v3411 = vsel %vm2581, %v3406, %v3410
        %v3413 = vshrl.u32 %v2490, 16
        %v3415 = vrot.slane %v3413, 4
        %v3416 = vshll.u32 %v2490, 16
        %v3418 = vrot.slane %v3416, 5
        %v3419 = vor.u32 %v3415, %v3418
        %v3420 = vrot.slane %v3419, 4
        %v3422 = vshll.u32 %v2492, 16
        %v3424 = vrot.slane %v3422, 5
        %v3425 = vsel %vm2581, %v3420, %v3424
        %v3426 = vshrl.u32 %v2491, 16
        %v3428 = vrot.slane %v3426, 4
        %v3429 = vor.u32 %v3428, %v3410
        %v3430 = vrot.slane %v3429, 4
        %v3432 = vshll.u32 %v2493, 16
        %v3434 = vrot.slane %v3432, 5
        %v3435 = vsel %vm2581, %v3430, %v3434
        %v3436 = vshrl.u32 %v2492, 16
        %v3438 = vrot.slane %v3436, 4
        %v3439 = vor.u32 %v3438, %v3424
        %v3440 = vrot.slane %v3439, 4
        %v3442 = vshll.u32 %v2494, 16
        %v3444 = vrot.slane %v3442, 5
        %v3445 = vsel %vm2581, %v3440, %v3444
        %v3447 = vshrl.u32 %v2495, 16
        %v3449 = vrot.slane %v3447, 4
        %v3450 = vshll.u32 %v2495, 16
        %v3452 = vrot.slane %v3450, 5
        %v3453 = vor.u32 %v3449, %v3452
        %v3454 = vrot.slane %v3453, 4
        %v3456 = vshll.u32 %v2497, 16
        %v3458 = vrot.slane %v3456, 5
        %v3459 = vsel %vm2581, %v3454, %v3458
        %v3461 = vshrl.u32 %v2496, 16
        %v3463 = vrot.slane %v3461, 4
        %v3464 = vshll.u32 %v2496, 16
        %v3466 = vrot.slane %v3464, 5
        %v3467 = vor.u32 %v3463, %v3466
        %v3468 = vrot.slane %v3467, 4
        %v3470 = vshll.u32 %v2498, 16
        %v3472 = vrot.slane %v3470, 5
        %v3473 = vsel %vm2581, %v3468, %v3472
        %v3474 = vshrl.u32 %v2497, 16
        %v3476 = vrot.slane %v3474, 4
        %v3477 = vor.u32 %v3476, %v3458
        %v3478 = vrot.slane %v3477, 4
        %v3480 = vshll.u32 %v2499, 16
        %v3482 = vrot.slane %v3480, 5
        %v3483 = vsel %vm2581, %v3478, %v3482
        %v3484 = vshrl.u32 %v2498, 16
        %v3486 = vrot.slane %v3484, 4
        %v3487 = vor.u32 %v3486, %v3472
        %v3488 = vrot.slane %v3487, 4
        %v3490 = vshll.u32 %v2500, 16
        %v3492 = vrot.slane %v3490, 5
        %v3493 = vsel %vm2581, %v3488, %v3492
        %v3495 = vshrl.u32 %v2501, 16
        %v3497 = vrot.slane %v3495, 4
        %v3498 = vshll.u32 %v2501, 16
        %v3500 = vrot.slane %v3498, 5
        %v3501 = vor.u32 %v3497, %v3500
        %v3502 = vrot.slane %v3501, 4
        %v3504 = vshll.u32 %v2503, 16
        %v3506 = vrot.slane %v3504, 5
        %v3507 = vsel %vm2581, %v3502, %v3506
        %v3509 = vshrl.u32 %v2502, 16
        %v3511 = vrot.slane %v3509, 4
        %v3512 = vshll.u32 %v2502, 16
        %v3514 = vrot.slane %v3512, 5
        %v3515 = vor.u32 %v3511, %v3514
        %v3516 = vrot.slane %v3515, 4
        %v3518 = vshll.u32 %v2504, 16
        %v3520 = vrot.slane %v3518, 5
        %v3521 = vsel %vm2581, %v3516, %v3520
        %v3522 = vshrl.u32 %v2503, 16
        %v3524 = vrot.slane %v3522, 4
        %v3525 = vor.u32 %v3524, %v3506
        %v3526 = vrot.slane %v3525, 4
        %v3528 = vshll.u32 %v2505, 16
        %v3530 = vrot.slane %v3528, 5
        %v3531 = vsel %vm2581, %v3526, %v3530
        %v3532 = vshrl.u32 %v2504, 16
        %v3534 = vrot.slane %v3532, 4
        %v3535 = vor.u32 %v3534, %v3520
        %v3536 = vrot.slane %v3535, 4
        %v3538 = vshll.u32 %v2506, 16
        %v3540 = vrot.slane %v3538, 5
        %v3541 = vsel %vm2581, %v3536, %v3540
        %v3543 = vshrl.u32 %v2507, 16
        %v3545 = vrot.slane %v3543, 4
        %v3546 = vshll.u32 %v2507, 16
        %v3548 = vrot.slane %v3546, 5
        %v3549 = vor.u32 %v3545, %v3548
        %v3550 = vrot.slane %v3549, 4
        %v3552 = vshll.u32 %v2509, 16
        %v3554 = vrot.slane %v3552, 5
        %v3555 = vsel %vm2581, %v3550, %v3554
        %v3557 = vshrl.u32 %v2508, 16
        %v3559 = vrot.slane %v3557, 4
        %v3560 = vshll.u32 %v2508, 16
        %v3562 = vrot.slane %v3560, 5
        %v3563 = vor.u32 %v3559, %v3562
        %v3564 = vrot.slane %v3563, 4
        %v3566 = vshll.u32 %v2510, 16
        %v3568 = vrot.slane %v3566, 5
        %v3569 = vsel %vm2581, %v3564, %v3568
        %v3570 = vshrl.u32 %v2509, 16
        %v3572 = vrot.slane %v3570, 4
        %v3573 = vor.u32 %v3572, %v3554
        %v3574 = vrot.slane %v3573, 4
        %v3576 = vshll.u32 %v2511, 16
        %v3578 = vrot.slane %v3576, 5
        %v3579 = vsel %vm2581, %v3574, %v3578
        %v3580 = vshrl.u32 %v2510, 16
        %v3582 = vrot.slane %v3580, 4
        %v3583 = vor.u32 %v3582, %v3568
        %v3584 = vrot.slane %v3583, 4
        %v3586 = vshll.u32 %v2512, 16
        %v3588 = vrot.slane %v3586, 5
        %v3589 = vsel %vm2581, %v3584, %v3588
        %v3591 = vshrl.u32 %v2513, 16
        %v3593 = vrot.slane %v3591, 4
        %v3594 = vshll.u32 %v2513, 16
        %v3596 = vrot.slane %v3594, 5
        %v3597 = vor.u32 %v3593, %v3596
        %v3598 = vrot.slane %v3597, 4
        %v3600 = vshll.u32 %v2515, 16
        %v3602 = vrot.slane %v3600, 5
        %v3603 = vsel %vm2581, %v3598, %v3602
        %v3605 = vshrl.u32 %v2514, 16
        %v3607 = vrot.slane %v3605, 4
        %v3608 = vshll.u32 %v2514, 16
        %v3610 = vrot.slane %v3608, 5
        %v3611 = vor.u32 %v3607, %v3610
        %v3612 = vrot.slane %v3611, 4
        %v3614 = vshll.u32 %v2516, 16
        %v3616 = vrot.slane %v3614, 5
        %v3617 = vsel %vm2581, %v3612, %v3616
        %v3618 = vshrl.u32 %v2515, 16
        %v3620 = vrot.slane %v3618, 4
        %v3621 = vor.u32 %v3620, %v3602
        %v3622 = vrot.slane %v3621, 4
        %v3624 = vshll.u32 %v2517, 16
        %v3626 = vrot.slane %v3624, 5
        %v3627 = vsel %vm2581, %v3622, %v3626
        %v3628 = vshrl.u32 %v2516, 16
        %v3630 = vrot.slane %v3628, 4
        %v3631 = vor.u32 %v3630, %v3616
        %v3632 = vrot.slane %v3631, 4
        %v3634 = vshll.u32 %v2518, 16
        %v3636 = vrot.slane %v3634, 5
        %v3637 = vsel %vm2581, %v3632, %v3636
        %v3639 = vshrl.u32 %v2519, 16
        %v3641 = vrot.slane %v3639, 4
        %v3642 = vshll.u32 %v2519, 16
        %v3644 = vrot.slane %v3642, 5
        %v3645 = vor.u32 %v3641, %v3644
        %v3646 = vrot.slane %v3645, 4
        %v3648 = vshll.u32 %v2521, 16
        %v3650 = vrot.slane %v3648, 5
        %v3651 = vsel %vm2581, %v3646, %v3650
        %v3653 = vshrl.u32 %v2520, 16
        %v3655 = vrot.slane %v3653, 4
        %v3656 = vshll.u32 %v2520, 16
        %v3658 = vrot.slane %v3656, 5
        %v3659 = vor.u32 %v3655, %v3658
        %v3660 = vrot.slane %v3659, 4
        %v3662 = vshll.u32 %v2522, 16
        %v3664 = vrot.slane %v3662, 5
        %v3665 = vsel %vm2581, %v3660, %v3664
        %v3666 = vshrl.u32 %v2521, 16
        %v3668 = vrot.slane %v3666, 4
        %v3669 = vor.u32 %v3668, %v3650
        %v3670 = vrot.slane %v3669, 4
        %v3672 = vshll.u32 %v2523, 16
        %v3674 = vrot.slane %v3672, 5
        %v3675 = vsel %vm2581, %v3670, %v3674
        %v3676 = vshrl.u32 %v2522, 16
        %v3678 = vrot.slane %v3676, 4
        %v3679 = vor.u32 %v3678, %v3664
        %v3680 = vrot.slane %v3679, 4
        %v3682 = vshll.u32 %v2524, 16
        %v3684 = vrot.slane %v3682, 5
        %v3685 = vsel %vm2581, %v3680, %v3684
        %v3687 = vshrl.u32 %v2525, 16
        %v3689 = vrot.slane %v3687, 4
        %v3690 = vshll.u32 %v2525, 16
        %v3692 = vrot.slane %v3690, 5
        %v3693 = vor.u32 %v3689, %v3692
        %v3694 = vrot.slane %v3693, 4
        %v3696 = vshll.u32 %v2527, 16
        %v3698 = vrot.slane %v3696, 5
        %v3699 = vsel %vm2581, %v3694, %v3698
        %v3701 = vshrl.u32 %v2526, 16
        %v3703 = vrot.slane %v3701, 4
        %v3704 = vshll.u32 %v2526, 16
        %v3706 = vrot.slane %v3704, 5
        %v3707 = vor.u32 %v3703, %v3706
        %v3708 = vrot.slane %v3707, 4
        %v3710 = vshll.u32 %v2528, 16
        %v3712 = vrot.slane %v3710, 5
        %v3713 = vsel %vm2581, %v3708, %v3712
        %v3714 = vshrl.u32 %v2527, 16
        %v3716 = vrot.slane %v3714, 4
        %v3717 = vor.u32 %v3716, %v3698
        %v3718 = vrot.slane %v3717, 4
        %v3720 = vshll.u32 %v2529, 16
        %v3722 = vrot.slane %v3720, 5
        %v3723 = vsel %vm2581, %v3718, %v3722
        %v3724 = vshrl.u32 %v2528, 16
        %v3726 = vrot.slane %v3724, 4
        %v3727 = vor.u32 %v3726, %v3712
        %v3728 = vrot.slane %v3727, 4
        %v3730 = vshll.u32 %v2530, 16
        %v3732 = vrot.slane %v3730, 5
        %v3733 = vsel %vm2581, %v3728, %v3732
        %v3735 = vshrl.u32 %v2531, 16
        %v3737 = vrot.slane %v3735, 4
        %v3738 = vshll.u32 %v2531, 16
        %v3740 = vrot.slane %v3738, 5
        %v3741 = vor.u32 %v3737, %v3740
        %v3742 = vrot.slane %v3741, 4
        %v3744 = vshll.u32 %v2533, 16
        %v3746 = vrot.slane %v3744, 5
        %v3747 = vsel %vm2581, %v3742, %v3746
        %v3749 = vshrl.u32 %v2532, 16
        %v3751 = vrot.slane %v3749, 4
        %v3752 = vshll.u32 %v2532, 16
        %v3754 = vrot.slane %v3752, 5
        %v3755 = vor.u32 %v3751, %v3754
        %v3756 = vrot.slane %v3755, 4
        %v3758 = vshll.u32 %v2534, 16
        %v3760 = vrot.slane %v3758, 5
        %v3761 = vsel %vm2581, %v3756, %v3760
        %v3762 = vshrl.u32 %v2533, 16
        %v3764 = vrot.slane %v3762, 4
        %v3765 = vor.u32 %v3764, %v3746
        %v3766 = vrot.slane %v3765, 4
        %v3768 = vshll.u32 %v2535, 16
        %v3770 = vrot.slane %v3768, 5
        %v3771 = vsel %vm2581, %v3766, %v3770
        %v3772 = vshrl.u32 %v2534, 16
        %v3774 = vrot.slane %v3772, 4
        %v3775 = vor.u32 %v3774, %v3760
        %v3776 = vrot.slane %v3775, 4
        %v3778 = vshll.u32 %v2536, 16
        %v3780 = vrot.slane %v3778, 5
        %v3781 = vsel %vm2581, %v3776, %v3780
        %v3783 = vshrl.u32 %v2537, 16
        %v3785 = vrot.slane %v3783, 4
        %v3786 = vshll.u32 %v2537, 16
        %v3788 = vrot.slane %v3786, 5
        %v3789 = vor.u32 %v3785, %v3788
        %v3790 = vrot.slane %v3789, 4
        %v3792 = vshll.u32 %v2539, 16
        %v3794 = vrot.slane %v3792, 5
        %v3795 = vsel %vm2581, %v3790, %v3794
        %v3797 = vshrl.u32 %v2538, 16
        %v3799 = vrot.slane %v3797, 4
        %v3800 = vshll.u32 %v2538, 16
        %v3802 = vrot.slane %v3800, 5
        %v3803 = vor.u32 %v3799, %v3802
        %v3804 = vrot.slane %v3803, 4
        %v3806 = vshll.u32 %v2540, 16
        %v3808 = vrot.slane %v3806, 5
        %v3809 = vsel %vm2581, %v3804, %v3808
        %v3810 = vshrl.u32 %v2539, 16
        %v3812 = vrot.slane %v3810, 4
        %v3813 = vor.u32 %v3812, %v3794
        %v3814 = vrot.slane %v3813, 4
        %v3816 = vshll.u32 %v2541, 16
        %v3818 = vrot.slane %v3816, 5
        %v3819 = vsel %vm2581, %v3814, %v3818
        %v3820 = vshrl.u32 %v2540, 16
        %v3822 = vrot.slane %v3820, 4
        %v3823 = vor.u32 %v3822, %v3808
        %v3824 = vrot.slane %v3823, 4
        %v3826 = vshll.u32 %v2542, 16
        %v3828 = vrot.slane %v3826, 5
        %v3829 = vsel %vm2581, %v3824, %v3828
        %v3831 = vshrl.u32 %v2543, 16
        %v3833 = vrot.slane %v3831, 4
        %v3834 = vshll.u32 %v2543, 16
        %v3836 = vrot.slane %v3834, 5
        %v3837 = vor.u32 %v3833, %v3836
        %v3838 = vrot.slane %v3837, 4
        %v3840 = vshll.u32 %v2545, 16
        %v3842 = vrot.slane %v3840, 5
        %v3843 = vsel %vm2581, %v3838, %v3842
        %v3845 = vshrl.u32 %v2544, 16
        %v3847 = vrot.slane %v3845, 4
        %v3848 = vshll.u32 %v2544, 16
        %v3850 = vrot.slane %v3848, 5
        %v3851 = vor.u32 %v3847, %v3850
        %v3852 = vrot.slane %v3851, 4
        %v3854 = vshll.u32 %v2546, 16
        %v3856 = vrot.slane %v3854, 5
        %v3857 = vsel %vm2581, %v3852, %v3856
        %v3858 = vshrl.u32 %v2545, 16
        %v3860 = vrot.slane %v3858, 4
        %v3861 = vor.u32 %v3860, %v3842
        %v3862 = vrot.slane %v3861, 4
        %v3864 = vshll.u32 %v2547, 16
        %v3866 = vrot.slane %v3864, 5
        %v3867 = vsel %vm2581, %v3862, %v3866
        %v3868 = vshrl.u32 %v2546, 16
        %v3870 = vrot.slane %v3868, 4
        %v3871 = vor.u32 %v3870, %v3856
        %v3872 = vrot.slane %v3871, 4
        %v3874 = vshll.u32 %v2548, 16
        %v3876 = vrot.slane %v3874, 5
        %v3877 = vsel %vm2581, %v3872, %v3876
        %v3879 = vshrl.u32 %v2549, 16
        %v3881 = vrot.slane %v3879, 4
        %v3882 = vshll.u32 %v2549, 16
        %v3884 = vrot.slane %v3882, 5
        %v3885 = vor.u32 %v3881, %v3884
        %v3886 = vrot.slane %v3885, 4
        %v3888 = vshll.u32 %v2551, 16
        %v3890 = vrot.slane %v3888, 5
        %v3891 = vsel %vm2581, %v3886, %v3890
        %v3893 = vshrl.u32 %v2550, 16
        %v3895 = vrot.slane %v3893, 4
        %v3896 = vshll.u32 %v2550, 16
        %v3898 = vrot.slane %v3896, 5
        %v3899 = vor.u32 %v3895, %v3898
        %v3900 = vrot.slane %v3899, 4
        %v3902 = vshll.u32 %v2552, 16
        %v3904 = vrot.slane %v3902, 5
        %v3905 = vsel %vm2581, %v3900, %v3904
        %v3906 = vshrl.u32 %v2551, 16
        %v3908 = vrot.slane %v3906, 4
        %v3909 = vor.u32 %v3908, %v3890
        %v3910 = vrot.slane %v3909, 4
        %v3912 = vshll.u32 %v2553, 16
        %v3914 = vrot.slane %v3912, 5
        %v3915 = vsel %vm2581, %v3910, %v3914
        %v3916 = vshrl.u32 %v2552, 16
        %v3918 = vrot.slane %v3916, 4
        %v3919 = vor.u32 %v3918, %v3904
        %v3920 = vrot.slane %v3919, 4
        %v3922 = vshll.u32 %v2554, 16
        %v3924 = vrot.slane %v3922, 5
        %v3925 = vsel %vm2581, %v3920, %v3924
        %v3927 = vshrl.u32 %v2555, 16
        %v3929 = vrot.slane %v3927, 4
        %v3930 = vshll.u32 %v2555, 16
        %v3932 = vrot.slane %v3930, 5
        %v3933 = vor.u32 %v3929, %v3932
        %v3934 = vrot.slane %v3933, 4
        %v3936 = vshll.u32 %v2557, 16
        %v3938 = vrot.slane %v3936, 5
        %v3939 = vsel %vm2581, %v3934, %v3938
        %v3941 = vshrl.u32 %v2556, 16
        %v3943 = vrot.slane %v3941, 4
        %v3944 = vshll.u32 %v2556, 16
        %v3946 = vrot.slane %v3944, 5
        %v3947 = vor.u32 %v3943, %v3946
        %v3948 = vrot.slane %v3947, 4
        %v3950 = vshll.u32 %v2558, 16
        %v3952 = vrot.slane %v3950, 5
        %v3953 = vsel %vm2581, %v3948, %v3952
        %v3954 = vshrl.u32 %v2557, 16
        %v3956 = vrot.slane %v3954, 4
        %v3957 = vor.u32 %v3956, %v3938
        %v3958 = vrot.slane %v3957, 4
        %v3960 = vshll.u32 %v2559, 16
        %v3962 = vrot.slane %v3960, 5
        %v3963 = vsel %vm2581, %v3958, %v3962
        %v3964 = vshrl.u32 %v2558, 16
        %v3966 = vrot.slane %v3964, 4
        %v3967 = vor.u32 %v3966, %v3952
        %v3968 = vrot.slane %v3967, 4
        %v3970 = vshll.u32 %v2560, 16
        %v3972 = vrot.slane %v3970, 5
        %v3973 = vsel %vm2581, %v3968, %v3972
        %v3975 = vshrl.u32 %v2561, 16
        %v3977 = vrot.slane %v3975, 4
        %v3978 = vshll.u32 %v2561, 16
        %v3980 = vrot.slane %v3978, 5
        %v3981 = vor.u32 %v3977, %v3980
        %v3982 = vrot.slane %v3981, 4
        %v3984 = vshll.u32 %v2563, 16
        %v3986 = vrot.slane %v3984, 5
        %v3987 = vsel %vm2581, %v3982, %v3986
        %v3989 = vshrl.u32 %v2562, 16
        %v3991 = vrot.slane %v3989, 4
        %v3992 = vshll.u32 %v2562, 16
        %v3994 = vrot.slane %v3992, 5
        %v3995 = vor.u32 %v3991, %v3994
        %v3996 = vrot.slane %v3995, 4
        %v3998 = vshll.u32 %v2564, 16
        %v4000 = vrot.slane %v3998, 5
        %v4001 = vsel %vm2581, %v3996, %v4000
        %v4002 = vshrl.u32 %v2563, 16
        %v4004 = vrot.slane %v4002, 4
        %v4005 = vor.u32 %v4004, %v3986
        %v4006 = vrot.slane %v4005, 4
        %v4008 = vshll.u32 %v2565, 16
        %v4010 = vrot.slane %v4008, 5
        %v4011 = vsel %vm2581, %v4006, %v4010
        %v4012 = vshrl.u32 %v2564, 16
        %v4014 = vrot.slane %v4012, 4
        %v4015 = vor.u32 %v4014, %v4000
        %v4016 = vrot.slane %v4015, 4
        %v4018 = vshll.u32 %v2566, 16
        %v4020 = vrot.slane %v4018, 5
        %v4021 = vsel %vm2581, %v4016, %v4020
        %v4023 = vshrl.u32 %v2567, 16
        %v4025 = vrot.slane %v4023, 4
        %v4026 = vshll.u32 %v2567, 16
        %v4028 = vrot.slane %v4026, 5
        %v4029 = vor.u32 %v4025, %v4028
        %v4030 = vrot.slane %v4029, 4
        %v4032 = vshll.u32 %v2569, 16
        %v4034 = vrot.slane %v4032, 5
        %v4035 = vsel %vm2581, %v4030, %v4034
        %v4037 = vshrl.u32 %v2568, 16
        %v4039 = vrot.slane %v4037, 4
        %v4040 = vshll.u32 %v2568, 16
        %v4042 = vrot.slane %v4040, 5
        %v4043 = vor.u32 %v4039, %v4042
        %v4044 = vrot.slane %v4043, 4
        %v4046 = vshll.u32 %v2570, 16
        %v4048 = vrot.slane %v4046, 5
        %v4049 = vsel %vm2581, %v4044, %v4048
        %v4050 = vshrl.u32 %v2569, 16
        %v4052 = vrot.slane %v4050, 4
        %v4053 = vor.u32 %v4052, %v4034
        %v4054 = vrot.slane %v4053, 4
        %v4056 = vshll.u32 %v2571, 16
        %v4058 = vrot.slane %v4056, 5
        %v4059 = vsel %vm2581, %v4054, %v4058
        %v4060 = vshrl.u32 %v2570, 16
        %v4062 = vrot.slane %v4060, 4
        %v4063 = vor.u32 %v4062, %v4048
        %v4064 = vrot.slane %v4063, 4
        %v4066 = vshll.u32 %v2572, 16
        %v4068 = vrot.slane %v4066, 5
        %v4069 = vsel %vm2581, %v4064, %v4068
        %v4071 = vshrl.u32 %v2573, 16
        %v4073 = vrot.slane %v4071, 4
        %v4074 = vshll.u32 %v2573, 16
        %v4076 = vrot.slane %v4074, 5
        %v4077 = vor.u32 %v4073, %v4076
        %v4078 = vrot.slane %v4077, 4
        %v4080 = vshll.u32 %v2575, 16
        %v4082 = vrot.slane %v4080, 5
        %v4083 = vsel %vm2581, %v4078, %v4082
        %v4085 = vshrl.u32 %v2574, 16
        %v4087 = vrot.slane %v4085, 4
        %v4088 = vshll.u32 %v2574, 16
        %v4090 = vrot.slane %v4088, 5
        %v4091 = vor.u32 %v4087, %v4090
        %v4092 = vrot.slane %v4091, 4
        %v4094 = vshll.u32 %v2576, 16
        %v4096 = vrot.slane %v4094, 5
        %v4097 = vsel %vm2581, %v4092, %v4096
        %v4098 = vshrl.u32 %v2575, 16
        %v4100 = vrot.slane %v4098, 4
        %v4101 = vor.u32 %v4100, %v4082
        %v4102 = vrot.slane %v4101, 4
        %v4104 = vshll.u32 %v2577, 16
        %v4106 = vrot.slane %v4104, 5
        %v4107 = vsel %vm2581, %v4102, %v4106
        %v4108 = vshrl.u32 %v2576, 16
        %v4110 = vrot.slane %v4108, 4
        %v4111 = vor.u32 %v4110, %v4096
        %v4112 = vrot.slane %v4111, 4
        %v4114 = vshll.u32 %v2578, 16
        %v4116 = vrot.slane %v4114, 5
        %v4117 = vsel %vm2581, %v4112, %v4116
        %v4118 = vld [vmem:[#allocation8] sm:$0xf]
        %v4119 = vld [vmem:[#allocation8 + $0x4] sm:$0xf]
        %v4120 = vld [vmem:[#allocation8 + $0x8] sm:$0xf]
        %v4121 = vld [vmem:[#allocation8 + $0xc] sm:$0xf]
        %v4122 = vld [vmem:[#allocation8 + $0x10] sm:$0xf]
        %v4123 = vld [vmem:[#allocation8 + $0x14] sm:$0xf]
        %v4124 = vld [vmem:[#allocation8 + $0x18] sm:$0xf]
        %v4125 = vld [vmem:[#allocation8 + $0x1c] sm:$0xf]
        %v4126 = vld [vmem:[#allocation8 + $0x20] sm:$0xf]
        %v4127 = vld [vmem:[#allocation8 + $0x24] sm:$0xf]
        %v4128 = vld [vmem:[#allocation8 + $0x28] sm:$0xf]
        %v4129 = vld [vmem:[#allocation8 + $0x2c] sm:$0xf]
        %v4130 = vld [vmem:[#allocation8 + $0x30] sm:$0xf]
        %v4131 = vld [vmem:[#allocation8 + $0x34] sm:$0xf]
        %v4132 = vld [vmem:[#allocation8 + $0x38] sm:$0xf]
        %v4133 = vld [vmem:[#allocation8 + $0x3c] sm:$0xf]
        %v4134 = vld [vmem:[#allocation8 + $0x40] sm:$0xf]
        %v4135 = vld [vmem:[#allocation8 + $0x44] sm:$0xf]
        %v4136 = vld [vmem:[#allocation8 + $0x48] sm:$0xf]
        %v4137 = vld [vmem:[#allocation8 + $0x4c] sm:$0xf]
        %v4138 = vld [vmem:[#allocation8 + $0x50] sm:$0xf]
        %v4139 = vld [vmem:[#allocation8 + $0x54] sm:$0xf]
        %v4140 = vld [vmem:[#allocation8 + $0x58] sm:$0xf]
        %v4141 = vld [vmem:[#allocation8 + $0x5c] sm:$0xf]
        %v4142 = vld [vmem:[#allocation8 + $0x60] sm:$0xf]
        %v4143 = vld [vmem:[#allocation8 + $0x64] sm:$0xf]
        %v4144 = vld [vmem:[#allocation8 + $0x68] sm:$0xf]
        %v4145 = vld [vmem:[#allocation8 + $0x6c] sm:$0xf]
        %v4146 = vld [vmem:[#allocation8 + $0x70] sm:$0xf]
        %v4147 = vld [vmem:[#allocation8 + $0x74] sm:$0xf]
        %v4148 = vld [vmem:[#allocation8 + $0x78] sm:$0xf]
        %v4149 = vld [vmem:[#allocation8 + $0x7c] sm:$0xf]
        %v4150 = vld [vmem:[#allocation8 + $0x80] sm:$0xf]
        %v4151 = vld [vmem:[#allocation8 + $0x84] sm:$0xf]
        %v4152 = vld [vmem:[#allocation8 + $0x88] sm:$0xf]
        %v4153 = vld [vmem:[#allocation8 + $0x8c] sm:$0xf]
        %v4154 = vld [vmem:[#allocation8 + $0x90] sm:$0xf]
        %v4155 = vld [vmem:[#allocation8 + $0x94] sm:$0xf]
        %v4156 = vld [vmem:[#allocation8 + $0x98] sm:$0xf]
        %v4157 = vld [vmem:[#allocation8 + $0x9c] sm:$0xf]
        %v4158 = vld [vmem:[#allocation8 + $0xa0] sm:$0xf]
        %v4159 = vld [vmem:[#allocation8 + $0xa4] sm:$0xf]
        %v4160 = vld [vmem:[#allocation8 + $0xa8] sm:$0xf]
        %v4161 = vld [vmem:[#allocation8 + $0xac] sm:$0xf]
        %v4162 = vld [vmem:[#allocation8 + $0xb0] sm:$0xf]
        %v4163 = vld [vmem:[#allocation8 + $0xb4] sm:$0xf]
        %v4164 = vld [vmem:[#allocation8 + $0xb8] sm:$0xf]
        %v4165 = vld [vmem:[#allocation8 + $0xbc] sm:$0xf]
        %v4166 = vld [vmem:[%s839] sm:$0xff]
        %v4167 = vld [vmem:[%s839 + $0x8] sm:$0xf]
        %v4168 = vld [vmem:[%s839 + $0xc] sm:$0xff]
        %v4169 = vld [vmem:[%s839 + $0x14] sm:$0xf]
        %v4170 = vld [vmem:[%s839 + $0x18] sm:$0x11]
        %v4171 = vld [vmem:[%s839 + $0x20] sm:$0x1]
        %v4172 = vld [vmem:[%s839 + $0x24] sm:$0xff]
        %v4173 = vld [vmem:[%s839 + $0x2c] sm:$0xf]
        %v4174 = vld [vmem:[%s839 + $0x30] sm:$0xff]
        %v4175 = vld [vmem:[%s839 + $0x38] sm:$0xf]
        %v4176 = vld [vmem:[%s839 + $0x3c] sm:$0x11]
        %v4177 = vld [vmem:[%s839 + $0x44] sm:$0x1]
        %v4178 = vld [vmem:[%s839 + $0x48] sm:$0xff]
        %v4179 = vld [vmem:[%s839 + $0x50] sm:$0xf]
        %v4180 = vld [vmem:[%s839 + $0x54] sm:$0xff]
        %v4181 = vld [vmem:[%s839 + $0x5c] sm:$0xf]
        %v4182 = vld [vmem:[%s839 + $0x60] sm:$0x11]
        %v4183 = vld [vmem:[%s839 + $0x68] sm:$0x1]
        %v4184 = vld [vmem:[%s839 + $0x6c] sm:$0xff]
        %v4185 = vld [vmem:[%s839 + $0x74] sm:$0xf]
        %v4186 = vld [vmem:[%s839 + $0x78] sm:$0xff]
        %v4187 = vld [vmem:[%s839 + $0x80] sm:$0xf]
        %v4188 = vld [vmem:[%s839 + $0x84] sm:$0x11]
        %v4189 = vld [vmem:[%s839 + $0x8c] sm:$0x1]
        %v4190 = vld [vmem:[%s839 + $0x90] sm:$0xff]
        %v4191 = vld [vmem:[%s839 + $0x98] sm:$0xf]
        %v4192 = vld [vmem:[%s839 + $0x9c] sm:$0xff]
        %v4193 = vld [vmem:[%s839 + $0xa4] sm:$0xf]
        %v4194 = vld [vmem:[%s839 + $0xa8] sm:$0x11]
        %v4195 = vld [vmem:[%s839 + $0xb0] sm:$0x1]
        %v4196 = vld [vmem:[%s839 + $0xb4] sm:$0xff]
        %v4197 = vld [vmem:[%s839 + $0xbc] sm:$0xf]
        %v4198 = vld [vmem:[%s839 + $0xc0] sm:$0xff]
        %v4199 = vld [vmem:[%s839 + $0xc8] sm:$0xf]
        %v4200 = vld [vmem:[%s839 + $0xcc] sm:$0x11]
        %v4201 = vld [vmem:[%s839 + $0xd4] sm:$0x1]
        %v4202 = vld [vmem:[%s839 + $0xd8] sm:$0xff]
        %v4203 = vld [vmem:[%s839 + $0xe0] sm:$0xf]
        %v4204 = vld [vmem:[%s839 + $0xe4] sm:$0xff]
        %v4205 = vld [vmem:[%s839 + $0xec] sm:$0xf]
        %v4206 = vld [vmem:[%s839 + $0xf0] sm:$0x11]
        %v4207 = vld [vmem:[%s839 + $0xf8] sm:$0x1]
        %v4208 = vld [vmem:[%s839 + $0xfc] sm:$0xff]
        %v4209 = vld [vmem:[%s839 + $0x104] sm:$0xf]
        %v4210 = vld [vmem:[%s839 + $0x108] sm:$0xff]
        %v4211 = vld [vmem:[%s839 + $0x110] sm:$0xf]
        %v4212 = vld [vmem:[%s839 + $0x114] sm:$0x11]
        %v4213 = vld [vmem:[%s839 + $0x11c] sm:$0x1]
        %v4214 = vld [vmem:[%s839 + $0x120] sm:$0xff]
        %v4215 = vld [vmem:[%s839 + $0x128] sm:$0xf]
        %v4216 = vld [vmem:[%s839 + $0x12c] sm:$0xff]
        %v4217 = vld [vmem:[%s839 + $0x134] sm:$0xf]
        %v4218 = vld [vmem:[%s839 + $0x138] sm:$0x11]
        %v4219 = vld [vmem:[%s839 + $0x140] sm:$0x1]
        %v4220 = vld [vmem:[%s839 + $0x144] sm:$0xff]
        %v4221 = vld [vmem:[%s839 + $0x14c] sm:$0xf]
        %v4222 = vld [vmem:[%s839 + $0x150] sm:$0xff]
        %v4223 = vld [vmem:[%s839 + $0x158] sm:$0xf]
        %v4224 = vld [vmem:[%s839 + $0x15c] sm:$0x11]
        %v4225 = vld [vmem:[%s839 + $0x164] sm:$0x1]
        %v4226 = vld [vmem:[%s839 + $0x168] sm:$0xff]
        %v4227 = vld [vmem:[%s839 + $0x170] sm:$0xf]
        %v4228 = vld [vmem:[%s839 + $0x174] sm:$0xff]
        %v4229 = vld [vmem:[%s839 + $0x17c] sm:$0xf]
        %v4230 = vld [vmem:[%s839 + $0x180] sm:$0x11]
        %v4231 = vld [vmem:[%s839 + $0x188] sm:$0x1]
        %v4232 = vld [vmem:[%s839 + $0x18c] sm:$0xff]
        %v4233 = vld [vmem:[%s839 + $0x194] sm:$0xf]
        %v4234 = vld [vmem:[%s839 + $0x198] sm:$0xff]
        %v4235 = vld [vmem:[%s839 + $0x1a0] sm:$0xf]
        %v4236 = vld [vmem:[%s839 + $0x1a4] sm:$0x11]
        %v4237 = vld [vmem:[%s839 + $0x1ac] sm:$0x1]
        %v4238 = vld [vmem:[%s839 + $0x1b0] sm:$0xff]
        %v4239 = vld [vmem:[%s839 + $0x1b8] sm:$0xf]
        %v4240 = vld [vmem:[%s839 + $0x1bc] sm:$0xff]
        %v4241 = vld [vmem:[%s839 + $0x1c4] sm:$0xf]
        %v4242 = vld [vmem:[%s839 + $0x1c8] sm:$0x11]
        %v4243 = vld [vmem:[%s839 + $0x1d0] sm:$0x1]
        %v4244 = vld [vmem:[%s839 + $0x1d4] sm:$0xff]
        %v4245 = vld [vmem:[%s839 + $0x1dc] sm:$0xf]
        %v4246 = vld [vmem:[%s839 + $0x1e0] sm:$0xff]
        %v4247 = vld [vmem:[%s839 + $0x1e8] sm:$0xf]
        %v4248 = vld [vmem:[%s839 + $0x1ec] sm:$0x11]
        %v4249 = vld [vmem:[%s839 + $0x1f4] sm:$0x1]
        %v4250 = vld [vmem:[%s839 + $0x1f8] sm:$0xff]
        %v4251 = vld [vmem:[%s839 + $0x200] sm:$0xf]
        %v4252 = vld [vmem:[%s839 + $0x204] sm:$0xff]
        %v4253 = vld [vmem:[%s839 + $0x20c] sm:$0xf]
        %v4254 = vld [vmem:[%s839 + $0x210] sm:$0x11]
        %v4255 = vld [vmem:[%s839 + $0x218] sm:$0x1]
        %v4256 = vld [vmem:[%s839 + $0x21c] sm:$0xff]
        %v4257 = vld [vmem:[%s839 + $0x224] sm:$0xf]
        %v4258 = vld [vmem:[%s839 + $0x228] sm:$0xff]
        %v4259 = vld [vmem:[%s839 + $0x230] sm:$0xf]
        %v4260 = vld [vmem:[%s839 + $0x234] sm:$0x11]
        %v4261 = vld [vmem:[%s839 + $0x23c] sm:$0x1]
        %v4262 = vld [vmem:[%s839 + $0x288] sm:$0xff]
        %v4263 = vld [vmem:[%s839 + $0x290] sm:$0xf]
        %v4264 = vld [vmem:[%s839 + $0x294] sm:$0xff]
        %v4265 = vld [vmem:[%s839 + $0x29c] sm:$0xf]
        %v4266 = vld [vmem:[%s839 + $0x2a0] sm:$0x11]
        %v4267 = vld [vmem:[%s839 + $0x2a8] sm:$0x1]
        %v4268 = vld [vmem:[%s839 + $0x2ac] sm:$0xff]
        %v4269 = vld [vmem:[%s839 + $0x2b4] sm:$0xf]
        %v4270 = vld [vmem:[%s839 + $0x2b8] sm:$0xff]
        %v4271 = vld [vmem:[%s839 + $0x2c0] sm:$0xf]
        %v4272 = vld [vmem:[%s839 + $0x2c4] sm:$0x11]
        %v4273 = vld [vmem:[%s839 + $0x2cc] sm:$0x1]
        %v4274 = vld [vmem:[%s839 + $0x2d0] sm:$0xff]
        %v4275 = vld [vmem:[%s839 + $0x2d8] sm:$0xf]
        %v4276 = vld [vmem:[%s839 + $0x2dc] sm:$0xff]
        %v4277 = vld [vmem:[%s839 + $0x2e4] sm:$0xf]
        %v4278 = vld [vmem:[%s839 + $0x2e8] sm:$0x11]
        %v4279 = vld [vmem:[%s839 + $0x2f0] sm:$0x1]
        %v4280 = vld [vmem:[%s839 + $0x2f4] sm:$0xff]
        %v4281 = vld [vmem:[%s839 + $0x2fc] sm:$0xf]
        %v4282 = vld [vmem:[%s839 + $0x300] sm:$0xff]
        %v4283 = vld [vmem:[%s839 + $0x308] sm:$0xf]
        %v4284 = vld [vmem:[%s839 + $0x30c] sm:$0x11]
        %v4285 = vld [vmem:[%s839 + $0x314] sm:$0x1]
        %v4286 = vld [vmem:[%s839 + $0x318] sm:$0xff]
        %v4287 = vld [vmem:[%s839 + $0x320] sm:$0xf]
        %v4288 = vld [vmem:[%s839 + $0x324] sm:$0xff]
        %v4289 = vld [vmem:[%s839 + $0x32c] sm:$0xf]
        %v4290 = vld [vmem:[%s839 + $0x330] sm:$0x11]
        %v4291 = vld [vmem:[%s839 + $0x338] sm:$0x1]
        %v4292 = vld [vmem:[%s839 + $0x33c] sm:$0xff]
        %v4293 = vld [vmem:[%s839 + $0x344] sm:$0xf]
        %v4294 = vld [vmem:[%s839 + $0x348] sm:$0xff]
        %v4295 = vld [vmem:[%s839 + $0x350] sm:$0xf]
        %v4296 = vld [vmem:[%s839 + $0x354] sm:$0x11]
        %v4297 = vld [vmem:[%s839 + $0x35c] sm:$0x1]
        %v4298 = vld [vmem:[%s839 + $0x360] sm:$0xff]
        %v4299 = vld [vmem:[%s839 + $0x368] sm:$0xf]
        %v4300 = vld [vmem:[%s839 + $0x36c] sm:$0xff]
        %v4301 = vld [vmem:[%s839 + $0x374] sm:$0xf]
        %v4302 = vld [vmem:[%s839 + $0x378] sm:$0x11]
        %v4303 = vld [vmem:[%s839 + $0x380] sm:$0x1]
        %v4304 = vld [vmem:[%s839 + $0x384] sm:$0xff]
        %v4305 = vld [vmem:[%s839 + $0x38c] sm:$0xf]
        %v4306 = vld [vmem:[%s839 + $0x390] sm:$0xff]
        %v4307 = vld [vmem:[%s839 + $0x398] sm:$0xf]
        %v4308 = vld [vmem:[%s839 + $0x39c] sm:$0x11]
        %v4309 = vld [vmem:[%s839 + $0x3a4] sm:$0x1]
        %v4310 = vld [vmem:[%s839 + $0x3a8] sm:$0xff]
        %v4311 = vld [vmem:[%s839 + $0x3b0] sm:$0xf]
        %v4312 = vld [vmem:[%s839 + $0x3b4] sm:$0xff]
        %v4313 = vld [vmem:[%s839 + $0x3bc] sm:$0xf]
        %v4314 = vld [vmem:[%s839 + $0x3c0] sm:$0x11]
        %v4315 = vld [vmem:[%s839 + $0x3c8] sm:$0x1]
        %v4316 = vld [vmem:[%s839 + $0x3cc] sm:$0xff]
        %v4317 = vld [vmem:[%s839 + $0x3d4] sm:$0xf]
        %v4318 = vld [vmem:[%s839 + $0x3d8] sm:$0xff]
        %v4319 = vld [vmem:[%s839 + $0x3e0] sm:$0xf]
        %v4320 = vld [vmem:[%s839 + $0x3e4] sm:$0x11]
        %v4321 = vld [vmem:[%s839 + $0x3ec] sm:$0x1]
        %v4322 = vld [vmem:[%s839 + $0x3f0] sm:$0xff]
        %v4323 = vld [vmem:[%s839 + $0x3f8] sm:$0xf]
        %v4324 = vld [vmem:[%s839 + $0x3fc] sm:$0xff]
        %v4325 = vld [vmem:[%s839 + $0x404] sm:$0xf]
        %v4326 = vld [vmem:[%s839 + $0x408] sm:$0x11]
        %v4327 = vld [vmem:[%s839 + $0x410] sm:$0x1]
        %v4328 = vld [vmem:[%s839 + $0x414] sm:$0xff]
        %v4329 = vld [vmem:[%s839 + $0x41c] sm:$0xf]
        %v4330 = vld [vmem:[%s839 + $0x420] sm:$0xff]
        %v4331 = vld [vmem:[%s839 + $0x428] sm:$0xf]
        %v4332 = vld [vmem:[%s839 + $0x42c] sm:$0x11]
        %v4333 = vld [vmem:[%s839 + $0x434] sm:$0x1]
        %v4334 = vld [vmem:[%s839 + $0x438] sm:$0xff]
        %v4335 = vld [vmem:[%s839 + $0x440] sm:$0xf]
        %v4336 = vld [vmem:[%s839 + $0x444] sm:$0xff]
        %v4337 = vld [vmem:[%s839 + $0x44c] sm:$0xf]
        %v4338 = vld [vmem:[%s839 + $0x450] sm:$0x11]
        %v4339 = vld [vmem:[%s839 + $0x458] sm:$0x1]
        %v4340 = vld [vmem:[%s839 + $0x45c] sm:$0xff]
        %v4341 = vld [vmem:[%s839 + $0x464] sm:$0xf]
        %v4342 = vld [vmem:[%s839 + $0x468] sm:$0xff]
        %v4343 = vld [vmem:[%s839 + $0x470] sm:$0xf]
        %v4344 = vld [vmem:[%s839 + $0x474] sm:$0x11]
        %v4345 = vld [vmem:[%s839 + $0x47c] sm:$0x1]
        %v4346 = vld [vmem:[%s839 + $0x480] sm:$0xff]
        %v4347 = vld [vmem:[%s839 + $0x488] sm:$0xf]
        %v4348 = vld [vmem:[%s839 + $0x48c] sm:$0xff]
        %v4349 = vld [vmem:[%s839 + $0x494] sm:$0xf]
        %v4350 = vld [vmem:[%s839 + $0x498] sm:$0x11]
        %v4351 = vld [vmem:[%s839 + $0x4a0] sm:$0x1]
        %v4352 = vld [vmem:[%s839 + $0x4a4] sm:$0xff]
        %v4353 = vld [vmem:[%s839 + $0x4ac] sm:$0xf]
        %v4354 = vld [vmem:[%s839 + $0x4b0] sm:$0xff]
        %v4355 = vld [vmem:[%s839 + $0x4b8] sm:$0xf]
        %v4356 = vld [vmem:[%s839 + $0x4bc] sm:$0x11]
        %v4357 = vld [vmem:[%s839 + $0x4c4] sm:$0x1]
        %v4359 = vshrl.u32 %v4166, 16
        %v4361 = vrot.slane %v4359, 4
        %v4362 = vshll.u32 %v4166, 16
        %v4364 = vrot.slane %v4362, 5
        %v4365 = vor.u32 %v4361, %v4364
        %v4366 = vrot.slane %v4365, 4
        %v4368 = vshll.u32 %v4168, 16
        %v4370 = vrot.slane %v4368, 5
        %v4371 = vsel %vm2581, %v4366, %v4370
        %v4373 = vshrl.u32 %v4167, 16
        %v4375 = vrot.slane %v4373, 4
        %v4376 = vshll.u32 %v4167, 16
        %v4378 = vrot.slane %v4376, 5
        %v4379 = vor.u32 %v4375, %v4378
        %v4380 = vrot.slane %v4379, 4
        %v4382 = vshll.u32 %v4169, 16
        %v4384 = vrot.slane %v4382, 5
        %v4385 = vsel %vm2581, %v4380, %v4384
        %v4386 = vshrl.u32 %v4168, 16
        %v4388 = vrot.slane %v4386, 4
        %v4389 = vor.u32 %v4388, %v4370
        %v4390 = vrot.slane %v4389, 4
        %v4392 = vshll.u32 %v4170, 16
        %v4394 = vrot.slane %v4392, 5
        %v4395 = vsel %vm2581, %v4390, %v4394
        %v4396 = vshrl.u32 %v4169, 16
        %v4398 = vrot.slane %v4396, 4
        %v4399 = vor.u32 %v4398, %v4384
        %v4400 = vrot.slane %v4399, 4
        %v4402 = vshll.u32 %v4171, 16
        %v4404 = vrot.slane %v4402, 5
        %v4405 = vsel %vm2581, %v4400, %v4404
        %v4407 = vshrl.u32 %v4172, 16
        %v4409 = vrot.slane %v4407, 4
        %v4410 = vshll.u32 %v4172, 16
        %v4412 = vrot.slane %v4410, 5
        %v4413 = vor.u32 %v4409, %v4412
        %v4414 = vrot.slane %v4413, 4
        %v4416 = vshll.u32 %v4174, 16
        %v4418 = vrot.slane %v4416, 5
        %v4419 = vsel %vm2581, %v4414, %v4418
        %v4421 = vshrl.u32 %v4173, 16
        %v4423 = vrot.slane %v4421, 4
        %v4424 = vshll.u32 %v4173, 16
        %v4426 = vrot.slane %v4424, 5
        %v4427 = vor.u32 %v4423, %v4426
        %v4428 = vrot.slane %v4427, 4
        %v4430 = vshll.u32 %v4175, 16
        %v4432 = vrot.slane %v4430, 5
        %v4433 = vsel %vm2581, %v4428, %v4432
        %v4434 = vshrl.u32 %v4174, 16
        %v4436 = vrot.slane %v4434, 4
        %v4437 = vor.u32 %v4436, %v4418
        %v4438 = vrot.slane %v4437, 4
        %v4440 = vshll.u32 %v4176, 16
        %v4442 = vrot.slane %v4440, 5
        %v4443 = vsel %vm2581, %v4438, %v4442
        %v4444 = vshrl.u32 %v4175, 16
        %v4446 = vrot.slane %v4444, 4
        %v4447 = vor.u32 %v4446, %v4432
        %v4448 = vrot.slane %v4447, 4
        %v4450 = vshll.u32 %v4177, 16
        %v4452 = vrot.slane %v4450, 5
        %v4453 = vsel %vm2581, %v4448, %v4452
        %v4455 = vshrl.u32 %v4178, 16
        %v4457 = vrot.slane %v4455, 4
        %v4458 = vshll.u32 %v4178, 16
        %v4460 = vrot.slane %v4458, 5
        %v4461 = vor.u32 %v4457, %v4460
        %v4462 = vrot.slane %v4461, 4
        %v4464 = vshll.u32 %v4180, 16
        %v4466 = vrot.slane %v4464, 5
        %v4467 = vsel %vm2581, %v4462, %v4466
        %v4469 = vshrl.u32 %v4179, 16
        %v4471 = vrot.slane %v4469, 4
        %v4472 = vshll.u32 %v4179, 16
        %v4474 = vrot.slane %v4472, 5
        %v4475 = vor.u32 %v4471, %v4474
        %v4476 = vrot.slane %v4475, 4
        %v4478 = vshll.u32 %v4181, 16
        %v4480 = vrot.slane %v4478, 5
        %v4481 = vsel %vm2581, %v4476, %v4480
        %v4482 = vshrl.u32 %v4180, 16
        %v4484 = vrot.slane %v4482, 4
        %v4485 = vor.u32 %v4484, %v4466
        %v4486 = vrot.slane %v4485, 4
        %v4488 = vshll.u32 %v4182, 16
        %v4490 = vrot.slane %v4488, 5
        %v4491 = vsel %vm2581, %v4486, %v4490
        %v4492 = vshrl.u32 %v4181, 16
        %v4494 = vrot.slane %v4492, 4
        %v4495 = vor.u32 %v4494, %v4480
        %v4496 = vrot.slane %v4495, 4
        %v4498 = vshll.u32 %v4183, 16
        %v4500 = vrot.slane %v4498, 5
        %v4501 = vsel %vm2581, %v4496, %v4500
        %v4503 = vshrl.u32 %v4184, 16
        %v4505 = vrot.slane %v4503, 4
        %v4506 = vshll.u32 %v4184, 16
        %v4508 = vrot.slane %v4506, 5
        %v4509 = vor.u32 %v4505, %v4508
        %v4510 = vrot.slane %v4509, 4
        %v4512 = vshll.u32 %v4186, 16
        %v4514 = vrot.slane %v4512, 5
        %v4515 = vsel %vm2581, %v4510, %v4514
        %v4517 = vshrl.u32 %v4185, 16
        %v4519 = vrot.slane %v4517, 4
        %v4520 = vshll.u32 %v4185, 16
        %v4522 = vrot.slane %v4520, 5
        %v4523 = vor.u32 %v4519, %v4522
        %v4524 = vrot.slane %v4523, 4
        %v4526 = vshll.u32 %v4187, 16
        %v4528 = vrot.slane %v4526, 5
        %v4529 = vsel %vm2581, %v4524, %v4528
        %v4530 = vshrl.u32 %v4186, 16
        %v4532 = vrot.slane %v4530, 4
        %v4533 = vor.u32 %v4532, %v4514
        %v4534 = vrot.slane %v4533, 4
        %v4536 = vshll.u32 %v4188, 16
        %v4538 = vrot.slane %v4536, 5
        %v4539 = vsel %vm2581, %v4534, %v4538
        %v4540 = vshrl.u32 %v4187, 16
        %v4542 = vrot.slane %v4540, 4
        %v4543 = vor.u32 %v4542, %v4528
        %v4544 = vrot.slane %v4543, 4
        %v4546 = vshll.u32 %v4189, 16
        %v4548 = vrot.slane %v4546, 5
        %v4549 = vsel %vm2581, %v4544, %v4548
        %v4551 = vshrl.u32 %v4190, 16
        %v4553 = vrot.slane %v4551, 4
        %v4554 = vshll.u32 %v4190, 16
        %v4556 = vrot.slane %v4554, 5
        %v4557 = vor.u32 %v4553, %v4556
        %v4558 = vrot.slane %v4557, 4
        %v4560 = vshll.u32 %v4192, 16
        %v4562 = vrot.slane %v4560, 5
        %v4563 = vsel %vm2581, %v4558, %v4562
        %v4565 = vshrl.u32 %v4191, 16
        %v4567 = vrot.slane %v4565, 4
        %v4568 = vshll.u32 %v4191, 16
        %v4570 = vrot.slane %v4568, 5
        %v4571 = vor.u32 %v4567, %v4570
        %v4572 = vrot.slane %v4571, 4
        %v4574 = vshll.u32 %v4193, 16
        %v4576 = vrot.slane %v4574, 5
        %v4577 = vsel %vm2581, %v4572, %v4576
        %v4578 = vshrl.u32 %v4192, 16
        %v4580 = vrot.slane %v4578, 4
        %v4581 = vor.u32 %v4580, %v4562
        %v4582 = vrot.slane %v4581, 4
        %v4584 = vshll.u32 %v4194, 16
        %v4586 = vrot.slane %v4584, 5
        %v4587 = vsel %vm2581, %v4582, %v4586
        %v4588 = vshrl.u32 %v4193, 16
        %v4590 = vrot.slane %v4588, 4
        %v4591 = vor.u32 %v4590, %v4576
        %v4592 = vrot.slane %v4591, 4
        %v4594 = vshll.u32 %v4195, 16
        %v4596 = vrot.slane %v4594, 5
        %v4597 = vsel %vm2581, %v4592, %v4596
        %v4599 = vshrl.u32 %v4196, 16
        %v4601 = vrot.slane %v4599, 4
        %v4602 = vshll.u32 %v4196, 16
        %v4604 = vrot.slane %v4602, 5
        %v4605 = vor.u32 %v4601, %v4604
        %v4606 = vrot.slane %v4605, 4
        %v4608 = vshll.u32 %v4198, 16
        %v4610 = vrot.slane %v4608, 5
        %v4611 = vsel %vm2581, %v4606, %v4610
        %v4613 = vshrl.u32 %v4197, 16
        %v4615 = vrot.slane %v4613, 4
        %v4616 = vshll.u32 %v4197, 16
        %v4618 = vrot.slane %v4616, 5
        %v4619 = vor.u32 %v4615, %v4618
        %v4620 = vrot.slane %v4619, 4
        %v4622 = vshll.u32 %v4199, 16
        %v4624 = vrot.slane %v4622, 5
        %v4625 = vsel %vm2581, %v4620, %v4624
        %v4626 = vshrl.u32 %v4198, 16
        %v4628 = vrot.slane %v4626, 4
        %v4629 = vor.u32 %v4628, %v4610
        %v4630 = vrot.slane %v4629, 4
        %v4632 = vshll.u32 %v4200, 16
        %v4634 = vrot.slane %v4632, 5
        %v4635 = vsel %vm2581, %v4630, %v4634
        %v4636 = vshrl.u32 %v4199, 16
        %v4638 = vrot.slane %v4636, 4
        %v4639 = vor.u32 %v4638, %v4624
        %v4640 = vrot.slane %v4639, 4
        %v4642 = vshll.u32 %v4201, 16
        %v4644 = vrot.slane %v4642, 5
        %v4645 = vsel %vm2581, %v4640, %v4644
        %v4647 = vshrl.u32 %v4202, 16
        %v4649 = vrot.slane %v4647, 4
        %v4650 = vshll.u32 %v4202, 16
        %v4652 = vrot.slane %v4650, 5
        %v4653 = vor.u32 %v4649, %v4652
        %v4654 = vrot.slane %v4653, 4
        %v4656 = vshll.u32 %v4204, 16
        %v4658 = vrot.slane %v4656, 5
        %v4659 = vsel %vm2581, %v4654, %v4658
        %v4661 = vshrl.u32 %v4203, 16
        %v4663 = vrot.slane %v4661, 4
        %v4664 = vshll.u32 %v4203, 16
        %v4666 = vrot.slane %v4664, 5
        %v4667 = vor.u32 %v4663, %v4666
        %v4668 = vrot.slane %v4667, 4
        %v4670 = vshll.u32 %v4205, 16
        %v4672 = vrot.slane %v4670, 5
        %v4673 = vsel %vm2581, %v4668, %v4672
        %v4674 = vshrl.u32 %v4204, 16
        %v4676 = vrot.slane %v4674, 4
        %v4677 = vor.u32 %v4676, %v4658
        %v4678 = vrot.slane %v4677, 4
        %v4680 = vshll.u32 %v4206, 16
        %v4682 = vrot.slane %v4680, 5
        %v4683 = vsel %vm2581, %v4678, %v4682
        %v4684 = vshrl.u32 %v4205, 16
        %v4686 = vrot.slane %v4684, 4
        %v4687 = vor.u32 %v4686, %v4672
        %v4688 = vrot.slane %v4687, 4
        %v4690 = vshll.u32 %v4207, 16
        %v4692 = vrot.slane %v4690, 5
        %v4693 = vsel %vm2581, %v4688, %v4692
        %v4695 = vshrl.u32 %v4208, 16
        %v4697 = vrot.slane %v4695, 4
        %v4698 = vshll.u32 %v4208, 16
        %v4700 = vrot.slane %v4698, 5
        %v4701 = vor.u32 %v4697, %v4700
        %v4702 = vrot.slane %v4701, 4
        %v4704 = vshll.u32 %v4210, 16
        %v4706 = vrot.slane %v4704, 5
        %v4707 = vsel %vm2581, %v4702, %v4706
        %v4709 = vshrl.u32 %v4209, 16
        %v4711 = vrot.slane %v4709, 4
        %v4712 = vshll.u32 %v4209, 16
        %v4714 = vrot.slane %v4712, 5
        %v4715 = vor.u32 %v4711, %v4714
        %v4716 = vrot.slane %v4715, 4
        %v4718 = vshll.u32 %v4211, 16
        %v4720 = vrot.slane %v4718, 5
        %v4721 = vsel %vm2581, %v4716, %v4720
        %v4722 = vshrl.u32 %v4210, 16
        %v4724 = vrot.slane %v4722, 4
        %v4725 = vor.u32 %v4724, %v4706
        %v4726 = vrot.slane %v4725, 4
        %v4728 = vshll.u32 %v4212, 16
        %v4730 = vrot.slane %v4728, 5
        %v4731 = vsel %vm2581, %v4726, %v4730
        %v4732 = vshrl.u32 %v4211, 16
        %v4734 = vrot.slane %v4732, 4
        %v4735 = vor.u32 %v4734, %v4720
        %v4736 = vrot.slane %v4735, 4
        %v4738 = vshll.u32 %v4213, 16
        %v4740 = vrot.slane %v4738, 5
        %v4741 = vsel %vm2581, %v4736, %v4740
        %v4743 = vshrl.u32 %v4214, 16
        %v4745 = vrot.slane %v4743, 4
        %v4746 = vshll.u32 %v4214, 16
        %v4748 = vrot.slane %v4746, 5
        %v4749 = vor.u32 %v4745, %v4748
        %v4750 = vrot.slane %v4749, 4
        %v4752 = vshll.u32 %v4216, 16
        %v4754 = vrot.slane %v4752, 5
        %v4755 = vsel %vm2581, %v4750, %v4754
        %v4757 = vshrl.u32 %v4215, 16
        %v4759 = vrot.slane %v4757, 4
        %v4760 = vshll.u32 %v4215, 16
        %v4762 = vrot.slane %v4760, 5
        %v4763 = vor.u32 %v4759, %v4762
        %v4764 = vrot.slane %v4763, 4
        %v4766 = vshll.u32 %v4217, 16
        %v4768 = vrot.slane %v4766, 5
        %v4769 = vsel %vm2581, %v4764, %v4768
        %v4770 = vshrl.u32 %v4216, 16
        %v4772 = vrot.slane %v4770, 4
        %v4773 = vor.u32 %v4772, %v4754
        %v4774 = vrot.slane %v4773, 4
        %v4776 = vshll.u32 %v4218, 16
        %v4778 = vrot.slane %v4776, 5
        %v4779 = vsel %vm2581, %v4774, %v4778
        %v4780 = vshrl.u32 %v4217, 16
        %v4782 = vrot.slane %v4780, 4
        %v4783 = vor.u32 %v4782, %v4768
        %v4784 = vrot.slane %v4783, 4
        %v4786 = vshll.u32 %v4219, 16
        %v4788 = vrot.slane %v4786, 5
        %v4789 = vsel %vm2581, %v4784, %v4788
        %v4791 = vshrl.u32 %v4220, 16
        %v4793 = vrot.slane %v4791, 4
        %v4794 = vshll.u32 %v4220, 16
        %v4796 = vrot.slane %v4794, 5
        %v4797 = vor.u32 %v4793, %v4796
        %v4798 = vrot.slane %v4797, 4
        %v4800 = vshll.u32 %v4222, 16
        %v4802 = vrot.slane %v4800, 5
        %v4803 = vsel %vm2581, %v4798, %v4802
        %v4805 = vshrl.u32 %v4221, 16
        %v4807 = vrot.slane %v4805, 4
        %v4808 = vshll.u32 %v4221, 16
        %v4810 = vrot.slane %v4808, 5
        %v4811 = vor.u32 %v4807, %v4810
        %v4812 = vrot.slane %v4811, 4
        %v4814 = vshll.u32 %v4223, 16
        %v4816 = vrot.slane %v4814, 5
        %v4817 = vsel %vm2581, %v4812, %v4816
        %v4818 = vshrl.u32 %v4222, 16
        %v4820 = vrot.slane %v4818, 4
        %v4821 = vor.u32 %v4820, %v4802
        %v4822 = vrot.slane %v4821, 4
        %v4824 = vshll.u32 %v4224, 16
        %v4826 = vrot.slane %v4824, 5
        %v4827 = vsel %vm2581, %v4822, %v4826
        %v4828 = vshrl.u32 %v4223, 16
        %v4830 = vrot.slane %v4828, 4
        %v4831 = vor.u32 %v4830, %v4816
        %v4832 = vrot.slane %v4831, 4
        %v4834 = vshll.u32 %v4225, 16
        %v4836 = vrot.slane %v4834, 5
        %v4837 = vsel %vm2581, %v4832, %v4836
        %v4839 = vshrl.u32 %v4226, 16
        %v4841 = vrot.slane %v4839, 4
        %v4842 = vshll.u32 %v4226, 16
        %v4844 = vrot.slane %v4842, 5
        %v4845 = vor.u32 %v4841, %v4844
        %v4846 = vrot.slane %v4845, 4
        %v4848 = vshll.u32 %v4228, 16
        %v4850 = vrot.slane %v4848, 5
        %v4851 = vsel %vm2581, %v4846, %v4850
        %v4853 = vshrl.u32 %v4227, 16
        %v4855 = vrot.slane %v4853, 4
        %v4856 = vshll.u32 %v4227, 16
        %v4858 = vrot.slane %v4856, 5
        %v4859 = vor.u32 %v4855, %v4858
        %v4860 = vrot.slane %v4859, 4
        %v4862 = vshll.u32 %v4229, 16
        %v4864 = vrot.slane %v4862, 5
        %v4865 = vsel %vm2581, %v4860, %v4864
        %v4866 = vshrl.u32 %v4228, 16
        %v4868 = vrot.slane %v4866, 4
        %v4869 = vor.u32 %v4868, %v4850
        %v4870 = vrot.slane %v4869, 4
        %v4872 = vshll.u32 %v4230, 16
        %v4874 = vrot.slane %v4872, 5
        %v4875 = vsel %vm2581, %v4870, %v4874
        %v4876 = vshrl.u32 %v4229, 16
        %v4878 = vrot.slane %v4876, 4
        %v4879 = vor.u32 %v4878, %v4864
        %v4880 = vrot.slane %v4879, 4
        %v4882 = vshll.u32 %v4231, 16
        %v4884 = vrot.slane %v4882, 5
        %v4885 = vsel %vm2581, %v4880, %v4884
        %v4887 = vshrl.u32 %v4232, 16
        %v4889 = vrot.slane %v4887, 4
        %v4890 = vshll.u32 %v4232, 16
        %v4892 = vrot.slane %v4890, 5
        %v4893 = vor.u32 %v4889, %v4892
        %v4894 = vrot.slane %v4893, 4
        %v4896 = vshll.u32 %v4234, 16
        %v4898 = vrot.slane %v4896, 5
        %v4899 = vsel %vm2581, %v4894, %v4898
        %v4901 = vshrl.u32 %v4233, 16
        %v4903 = vrot.slane %v4901, 4
        %v4904 = vshll.u32 %v4233, 16
        %v4906 = vrot.slane %v4904, 5
        %v4907 = vor.u32 %v4903, %v4906
        %v4908 = vrot.slane %v4907, 4
        %v4910 = vshll.u32 %v4235, 16
        %v4912 = vrot.slane %v4910, 5
        %v4913 = vsel %vm2581, %v4908, %v4912
        %v4914 = vshrl.u32 %v4234, 16
        %v4916 = vrot.slane %v4914, 4
        %v4917 = vor.u32 %v4916, %v4898
        %v4918 = vrot.slane %v4917, 4
        %v4920 = vshll.u32 %v4236, 16
        %v4922 = vrot.slane %v4920, 5
        %v4923 = vsel %vm2581, %v4918, %v4922
        %v4924 = vshrl.u32 %v4235, 16
        %v4926 = vrot.slane %v4924, 4
        %v4927 = vor.u32 %v4926, %v4912
        %v4928 = vrot.slane %v4927, 4
        %v4930 = vshll.u32 %v4237, 16
        %v4932 = vrot.slane %v4930, 5
        %v4933 = vsel %vm2581, %v4928, %v4932
        %v4935 = vshrl.u32 %v4238, 16
        %v4937 = vrot.slane %v4935, 4
        %v4938 = vshll.u32 %v4238, 16
        %v4940 = vrot.slane %v4938, 5
        %v4941 = vor.u32 %v4937, %v4940
        %v4942 = vrot.slane %v4941, 4
        %v4944 = vshll.u32 %v4240, 16
        %v4946 = vrot.slane %v4944, 5
        %v4947 = vsel %vm2581, %v4942, %v4946
        %v4949 = vshrl.u32 %v4239, 16
        %v4951 = vrot.slane %v4949, 4
        %v4952 = vshll.u32 %v4239, 16
        %v4954 = vrot.slane %v4952, 5
        %v4955 = vor.u32 %v4951, %v4954
        %v4956 = vrot.slane %v4955, 4
        %v4958 = vshll.u32 %v4241, 16
        %v4960 = vrot.slane %v4958, 5
        %v4961 = vsel %vm2581, %v4956, %v4960
        %v4962 = vshrl.u32 %v4240, 16
        %v4964 = vrot.slane %v4962, 4
        %v4965 = vor.u32 %v4964, %v4946
        %v4966 = vrot.slane %v4965, 4
        %v4968 = vshll.u32 %v4242, 16
        %v4970 = vrot.slane %v4968, 5
        %v4971 = vsel %vm2581, %v4966, %v4970
        %v4972 = vshrl.u32 %v4241, 16
        %v4974 = vrot.slane %v4972, 4
        %v4975 = vor.u32 %v4974, %v4960
        %v4976 = vrot.slane %v4975, 4
        %v4978 = vshll.u32 %v4243, 16
        %v4980 = vrot.slane %v4978, 5
        %v4981 = vsel %vm2581, %v4976, %v4980
        %v4983 = vshrl.u32 %v4244, 16
        %v4985 = vrot.slane %v4983, 4
        %v4986 = vshll.u32 %v4244, 16
        %v4988 = vrot.slane %v4986, 5
        %v4989 = vor.u32 %v4985, %v4988
        %v4990 = vrot.slane %v4989, 4
        %v4992 = vshll.u32 %v4246, 16
        %v4994 = vrot.slane %v4992, 5
        %v4995 = vsel %vm2581, %v4990, %v4994
        %v4997 = vshrl.u32 %v4245, 16
        %v4999 = vrot.slane %v4997, 4
        %v5000 = vshll.u32 %v4245, 16
        %v5002 = vrot.slane %v5000, 5
        %v5003 = vor.u32 %v4999, %v5002
        %v5004 = vrot.slane %v5003, 4
        %v5006 = vshll.u32 %v4247, 16
        %v5008 = vrot.slane %v5006, 5
        %v5009 = vsel %vm2581, %v5004, %v5008
        %v5010 = vshrl.u32 %v4246, 16
        %v5012 = vrot.slane %v5010, 4
        %v5013 = vor.u32 %v5012, %v4994
        %v5014 = vrot.slane %v5013, 4
        %v5016 = vshll.u32 %v4248, 16
        %v5018 = vrot.slane %v5016, 5
        %v5019 = vsel %vm2581, %v5014, %v5018
        %v5020 = vshrl.u32 %v4247, 16
        %v5022 = vrot.slane %v5020, 4
        %v5023 = vor.u32 %v5022, %v5008
        %v5024 = vrot.slane %v5023, 4
        %v5026 = vshll.u32 %v4249, 16
        %v5028 = vrot.slane %v5026, 5
        %v5029 = vsel %vm2581, %v5024, %v5028
        %v5031 = vshrl.u32 %v4250, 16
        %v5033 = vrot.slane %v5031, 4
        %v5034 = vshll.u32 %v4250, 16
        %v5036 = vrot.slane %v5034, 5
        %v5037 = vor.u32 %v5033, %v5036
        %v5038 = vrot.slane %v5037, 4
        %v5040 = vshll.u32 %v4252, 16
        %v5042 = vrot.slane %v5040, 5
        %v5043 = vsel %vm2581, %v5038, %v5042
        %v5045 = vshrl.u32 %v4251, 16
        %v5047 = vrot.slane %v5045, 4
        %v5048 = vshll.u32 %v4251, 16
        %v5050 = vrot.slane %v5048, 5
        %v5051 = vor.u32 %v5047, %v5050
        %v5052 = vrot.slane %v5051, 4
        %v5054 = vshll.u32 %v4253, 16
        %v5056 = vrot.slane %v5054, 5
        %v5057 = vsel %vm2581, %v5052, %v5056
        %v5058 = vshrl.u32 %v4252, 16
        %v5060 = vrot.slane %v5058, 4
        %v5061 = vor.u32 %v5060, %v5042
        %v5062 = vrot.slane %v5061, 4
        %v5064 = vshll.u32 %v4254, 16
        %v5066 = vrot.slane %v5064, 5
        %v5067 = vsel %vm2581, %v5062, %v5066
        %v5068 = vshrl.u32 %v4253, 16
        %v5070 = vrot.slane %v5068, 4
        %v5071 = vor.u32 %v5070, %v5056
        %v5072 = vrot.slane %v5071, 4
        %v5074 = vshll.u32 %v4255, 16
        %v5076 = vrot.slane %v5074, 5
        %v5077 = vsel %vm2581, %v5072, %v5076
        %v5079 = vshrl.u32 %v4256, 16
        %v5081 = vrot.slane %v5079, 4
        %v5082 = vshll.u32 %v4256, 16
        %v5084 = vrot.slane %v5082, 5
        %v5085 = vor.u32 %v5081, %v5084
        %v5086 = vrot.slane %v5085, 4
        %v5088 = vshll.u32 %v4258, 16
        %v5090 = vrot.slane %v5088, 5
        %v5091 = vsel %vm2581, %v5086, %v5090
        %v5093 = vshrl.u32 %v4257, 16
        %v5095 = vrot.slane %v5093, 4
        %v5096 = vshll.u32 %v4257, 16
        %v5098 = vrot.slane %v5096, 5
        %v5099 = vor.u32 %v5095, %v5098
        %v5100 = vrot.slane %v5099, 4
        %v5102 = vshll.u32 %v4259, 16
        %v5104 = vrot.slane %v5102, 5
        %v5105 = vsel %vm2581, %v5100, %v5104
        %v5106 = vshrl.u32 %v4258, 16
        %v5108 = vrot.slane %v5106, 4
        %v5109 = vor.u32 %v5108, %v5090
        %v5110 = vrot.slane %v5109, 4
        %v5112 = vshll.u32 %v4260, 16
        %v5114 = vrot.slane %v5112, 5
        %v5115 = vsel %vm2581, %v5110, %v5114
        %v5116 = vshrl.u32 %v4259, 16
        %v5118 = vrot.slane %v5116, 4
        %v5119 = vor.u32 %v5118, %v5104
        %v5120 = vrot.slane %v5119, 4
        %v5122 = vshll.u32 %v4261, 16
        %v5124 = vrot.slane %v5122, 5
        %v5125 = vsel %vm2581, %v5120, %v5124
        %v5127 = vshrl.u32 %v4262, 16
        %v5129 = vrot.slane %v5127, 4
        %v5130 = vshll.u32 %v4262, 16
        %v5132 = vrot.slane %v5130, 5
        %v5133 = vor.u32 %v5129, %v5132
        %v5134 = vrot.slane %v5133, 4
        %v5136 = vshll.u32 %v4264, 16
        %v5138 = vrot.slane %v5136, 5
        %v5139 = vsel %vm2581, %v5134, %v5138
        %v5141 = vshrl.u32 %v4263, 16
        %v5143 = vrot.slane %v5141, 4
        %v5144 = vshll.u32 %v4263, 16
        %v5146 = vrot.slane %v5144, 5
        %v5147 = vor.u32 %v5143, %v5146
        %v5148 = vrot.slane %v5147, 4
        %v5150 = vshll.u32 %v4265, 16
        %v5152 = vrot.slane %v5150, 5
        %v5153 = vsel %vm2581, %v5148, %v5152
        %v5154 = vshrl.u32 %v4264, 16
        %v5156 = vrot.slane %v5154, 4
        %v5157 = vor.u32 %v5156, %v5138
        %v5158 = vrot.slane %v5157, 4
        %v5160 = vshll.u32 %v4266, 16
        %v5162 = vrot.slane %v5160, 5
        %v5163 = vsel %vm2581, %v5158, %v5162
        %v5164 = vshrl.u32 %v4265, 16
        %v5166 = vrot.slane %v5164, 4
        %v5167 = vor.u32 %v5166, %v5152
        %v5168 = vrot.slane %v5167, 4
        %v5170 = vshll.u32 %v4267, 16
        %v5172 = vrot.slane %v5170, 5
        %v5173 = vsel %vm2581, %v5168, %v5172
        %v5175 = vshrl.u32 %v4268, 16
        %v5177 = vrot.slane %v5175, 4
        %v5178 = vshll.u32 %v4268, 16
        %v5180 = vrot.slane %v5178, 5
        %v5181 = vor.u32 %v5177, %v5180
        %v5182 = vrot.slane %v5181, 4
        %v5184 = vshll.u32 %v4270, 16
        %v5186 = vrot.slane %v5184, 5
        %v5187 = vsel %vm2581, %v5182, %v5186
        %v5189 = vshrl.u32 %v4269, 16
        %v5191 = vrot.slane %v5189, 4
        %v5192 = vshll.u32 %v4269, 16
        %v5194 = vrot.slane %v5192, 5
        %v5195 = vor.u32 %v5191, %v5194
        %v5196 = vrot.slane %v5195, 4
        %v5198 = vshll.u32 %v4271, 16
        %v5200 = vrot.slane %v5198, 5
        %v5201 = vsel %vm2581, %v5196, %v5200
        %v5202 = vshrl.u32 %v4270, 16
        %v5204 = vrot.slane %v5202, 4
        %v5205 = vor.u32 %v5204, %v5186
        %v5206 = vrot.slane %v5205, 4
        %v5208 = vshll.u32 %v4272, 16
        %v5210 = vrot.slane %v5208, 5
        %v5211 = vsel %vm2581, %v5206, %v5210
        %v5212 = vshrl.u32 %v4271, 16
        %v5214 = vrot.slane %v5212, 4
        %v5215 = vor.u32 %v5214, %v5200
        %v5216 = vrot.slane %v5215, 4
        %v5218 = vshll.u32 %v4273, 16
        %v5220 = vrot.slane %v5218, 5
        %v5221 = vsel %vm2581, %v5216, %v5220
        %v5223 = vshrl.u32 %v4274, 16
        %v5225 = vrot.slane %v5223, 4
        %v5226 = vshll.u32 %v4274, 16
        %v5228 = vrot.slane %v5226, 5
        %v5229 = vor.u32 %v5225, %v5228
        %v5230 = vrot.slane %v5229, 4
        %v5232 = vshll.u32 %v4276, 16
        %v5234 = vrot.slane %v5232, 5
        %v5235 = vsel %vm2581, %v5230, %v5234
        %v5237 = vshrl.u32 %v4275, 16
        %v5239 = vrot.slane %v5237, 4
        %v5240 = vshll.u32 %v4275, 16
        %v5242 = vrot.slane %v5240, 5
        %v5243 = vor.u32 %v5239, %v5242
        %v5244 = vrot.slane %v5243, 4
        %v5246 = vshll.u32 %v4277, 16
        %v5248 = vrot.slane %v5246, 5
        %v5249 = vsel %vm2581, %v5244, %v5248
        %v5250 = vshrl.u32 %v4276, 16
        %v5252 = vrot.slane %v5250, 4
        %v5253 = vor.u32 %v5252, %v5234
        %v5254 = vrot.slane %v5253, 4
        %v5256 = vshll.u32 %v4278, 16
        %v5258 = vrot.slane %v5256, 5
        %v5259 = vsel %vm2581, %v5254, %v5258
        %v5260 = vshrl.u32 %v4277, 16
        %v5262 = vrot.slane %v5260, 4
        %v5263 = vor.u32 %v5262, %v5248
        %v5264 = vrot.slane %v5263, 4
        %v5266 = vshll.u32 %v4279, 16
        %v5268 = vrot.slane %v5266, 5
        %v5269 = vsel %vm2581, %v5264, %v5268
        %v5271 = vshrl.u32 %v4280, 16
        %v5273 = vrot.slane %v5271, 4
        %v5274 = vshll.u32 %v4280, 16
        %v5276 = vrot.slane %v5274, 5
        %v5277 = vor.u32 %v5273, %v5276
        %v5278 = vrot.slane %v5277, 4
        %v5280 = vshll.u32 %v4282, 16
        %v5282 = vrot.slane %v5280, 5
        %v5283 = vsel %vm2581, %v5278, %v5282
        %v5285 = vshrl.u32 %v4281, 16
        %v5287 = vrot.slane %v5285, 4
        %v5288 = vshll.u32 %v4281, 16
        %v5290 = vrot.slane %v5288, 5
        %v5291 = vor.u32 %v5287, %v5290
        %v5292 = vrot.slane %v5291, 4
        %v5294 = vshll.u32 %v4283, 16
        %v5296 = vrot.slane %v5294, 5
        %v5297 = vsel %vm2581, %v5292, %v5296
        %v5298 = vshrl.u32 %v4282, 16
        %v5300 = vrot.slane %v5298, 4
        %v5301 = vor.u32 %v5300, %v5282
        %v5302 = vrot.slane %v5301, 4
        %v5304 = vshll.u32 %v4284, 16
        %v5306 = vrot.slane %v5304, 5
        %v5307 = vsel %vm2581, %v5302, %v5306
        %v5308 = vshrl.u32 %v4283, 16
        %v5310 = vrot.slane %v5308, 4
        %v5311 = vor.u32 %v5310, %v5296
        %v5312 = vrot.slane %v5311, 4
        %v5314 = vshll.u32 %v4285, 16
        %v5316 = vrot.slane %v5314, 5
        %v5317 = vsel %vm2581, %v5312, %v5316
        %v5319 = vshrl.u32 %v4286, 16
        %v5321 = vrot.slane %v5319, 4
        %v5322 = vshll.u32 %v4286, 16
        %v5324 = vrot.slane %v5322, 5
        %v5325 = vor.u32 %v5321, %v5324
        %v5326 = vrot.slane %v5325, 4
        %v5328 = vshll.u32 %v4288, 16
        %v5330 = vrot.slane %v5328, 5
        %v5331 = vsel %vm2581, %v5326, %v5330
        %v5333 = vshrl.u32 %v4287, 16
        %v5335 = vrot.slane %v5333, 4
        %v5336 = vshll.u32 %v4287, 16
        %v5338 = vrot.slane %v5336, 5
        %v5339 = vor.u32 %v5335, %v5338
        %v5340 = vrot.slane %v5339, 4
        %v5342 = vshll.u32 %v4289, 16
        %v5344 = vrot.slane %v5342, 5
        %v5345 = vsel %vm2581, %v5340, %v5344
        %v5346 = vshrl.u32 %v4288, 16
        %v5348 = vrot.slane %v5346, 4
        %v5349 = vor.u32 %v5348, %v5330
        %v5350 = vrot.slane %v5349, 4
        %v5352 = vshll.u32 %v4290, 16
        %v5354 = vrot.slane %v5352, 5
        %v5355 = vsel %vm2581, %v5350, %v5354
        %v5356 = vshrl.u32 %v4289, 16
        %v5358 = vrot.slane %v5356, 4
        %v5359 = vor.u32 %v5358, %v5344
        %v5360 = vrot.slane %v5359, 4
        %v5362 = vshll.u32 %v4291, 16
        %v5364 = vrot.slane %v5362, 5
        %v5365 = vsel %vm2581, %v5360, %v5364
        %v5367 = vshrl.u32 %v4292, 16
        %v5369 = vrot.slane %v5367, 4
        %v5370 = vshll.u32 %v4292, 16
        %v5372 = vrot.slane %v5370, 5
        %v5373 = vor.u32 %v5369, %v5372
        %v5374 = vrot.slane %v5373, 4
        %v5376 = vshll.u32 %v4294, 16
        %v5378 = vrot.slane %v5376, 5
        %v5379 = vsel %vm2581, %v5374, %v5378
        %v5381 = vshrl.u32 %v4293, 16
        %v5383 = vrot.slane %v5381, 4
        %v5384 = vshll.u32 %v4293, 16
        %v5386 = vrot.slane %v5384, 5
        %v5387 = vor.u32 %v5383, %v5386
        %v5388 = vrot.slane %v5387, 4
        %v5390 = vshll.u32 %v4295, 16
        %v5392 = vrot.slane %v5390, 5
        %v5393 = vsel %vm2581, %v5388, %v5392
        %v5394 = vshrl.u32 %v4294, 16
        %v5396 = vrot.slane %v5394, 4
        %v5397 = vor.u32 %v5396, %v5378
        %v5398 = vrot.slane %v5397, 4
        %v5400 = vshll.u32 %v4296, 16
        %v5402 = vrot.slane %v5400, 5
        %v5403 = vsel %vm2581, %v5398, %v5402
        %v5404 = vshrl.u32 %v4295, 16
        %v5406 = vrot.slane %v5404, 4
        %v5407 = vor.u32 %v5406, %v5392
        %v5408 = vrot.slane %v5407, 4
        %v5410 = vshll.u32 %v4297, 16
        %v5412 = vrot.slane %v5410, 5
        %v5413 = vsel %vm2581, %v5408, %v5412
        %v5415 = vshrl.u32 %v4298, 16
        %v5417 = vrot.slane %v5415, 4
        %v5418 = vshll.u32 %v4298, 16
        %v5420 = vrot.slane %v5418, 5
        %v5421 = vor.u32 %v5417, %v5420
        %v5422 = vrot.slane %v5421, 4
        %v5424 = vshll.u32 %v4300, 16
        %v5426 = vrot.slane %v5424, 5
        %v5427 = vsel %vm2581, %v5422, %v5426
        %v5429 = vshrl.u32 %v4299, 16
        %v5431 = vrot.slane %v5429, 4
        %v5432 = vshll.u32 %v4299, 16
        %v5434 = vrot.slane %v5432, 5
        %v5435 = vor.u32 %v5431, %v5434
        %v5436 = vrot.slane %v5435, 4
        %v5438 = vshll.u32 %v4301, 16
        %v5440 = vrot.slane %v5438, 5
        %v5441 = vsel %vm2581, %v5436, %v5440
        %v5442 = vshrl.u32 %v4300, 16
        %v5444 = vrot.slane %v5442, 4
        %v5445 = vor.u32 %v5444, %v5426
        %v5446 = vrot.slane %v5445, 4
        %v5448 = vshll.u32 %v4302, 16
        %v5450 = vrot.slane %v5448, 5
        %v5451 = vsel %vm2581, %v5446, %v5450
        %v5452 = vshrl.u32 %v4301, 16
        %v5454 = vrot.slane %v5452, 4
        %v5455 = vor.u32 %v5454, %v5440
        %v5456 = vrot.slane %v5455, 4
        %v5458 = vshll.u32 %v4303, 16
        %v5460 = vrot.slane %v5458, 5
        %v5461 = vsel %vm2581, %v5456, %v5460
        %v5463 = vshrl.u32 %v4304, 16
        %v5465 = vrot.slane %v5463, 4
        %v5466 = vshll.u32 %v4304, 16
        %v5468 = vrot.slane %v5466, 5
        %v5469 = vor.u32 %v5465, %v5468
        %v5470 = vrot.slane %v5469, 4
        %v5472 = vshll.u32 %v4306, 16
        %v5474 = vrot.slane %v5472, 5
        %v5475 = vsel %vm2581, %v5470, %v5474
        %v5477 = vshrl.u32 %v4305, 16
        %v5479 = vrot.slane %v5477, 4
        %v5480 = vshll.u32 %v4305, 16
        %v5482 = vrot.slane %v5480, 5
        %v5483 = vor.u32 %v5479, %v5482
        %v5484 = vrot.slane %v5483, 4
        %v5486 = vshll.u32 %v4307, 16
        %v5488 = vrot.slane %v5486, 5
        %v5489 = vsel %vm2581, %v5484, %v5488
        %v5490 = vshrl.u32 %v4306, 16
        %v5492 = vrot.slane %v5490, 4
        %v5493 = vor.u32 %v5492, %v5474
        %v5494 = vrot.slane %v5493, 4
        %v5496 = vshll.u32 %v4308, 16
        %v5498 = vrot.slane %v5496, 5
        %v5499 = vsel %vm2581, %v5494, %v5498
        %v5500 = vshrl.u32 %v4307, 16
        %v5502 = vrot.slane %v5500, 4
        %v5503 = vor.u32 %v5502, %v5488
        %v5504 = vrot.slane %v5503, 4
        %v5506 = vshll.u32 %v4309, 16
        %v5508 = vrot.slane %v5506, 5
        %v5509 = vsel %vm2581, %v5504, %v5508
        %v5511 = vshrl.u32 %v4310, 16
        %v5513 = vrot.slane %v5511, 4
        %v5514 = vshll.u32 %v4310, 16
        %v5516 = vrot.slane %v5514, 5
        %v5517 = vor.u32 %v5513, %v5516
        %v5518 = vrot.slane %v5517, 4
        %v5520 = vshll.u32 %v4312, 16
        %v5522 = vrot.slane %v5520, 5
        %v5523 = vsel %vm2581, %v5518, %v5522
        %v5525 = vshrl.u32 %v4311, 16
        %v5527 = vrot.slane %v5525, 4
        %v5528 = vshll.u32 %v4311, 16
        %v5530 = vrot.slane %v5528, 5
        %v5531 = vor.u32 %v5527, %v5530
        %v5532 = vrot.slane %v5531, 4
        %v5534 = vshll.u32 %v4313, 16
        %v5536 = vrot.slane %v5534, 5
        %v5537 = vsel %vm2581, %v5532, %v5536
        %v5538 = vshrl.u32 %v4312, 16
        %v5540 = vrot.slane %v5538, 4
        %v5541 = vor.u32 %v5540, %v5522
        %v5542 = vrot.slane %v5541, 4
        %v5544 = vshll.u32 %v4314, 16
        %v5546 = vrot.slane %v5544, 5
        %v5547 = vsel %vm2581, %v5542, %v5546
        %v5548 = vshrl.u32 %v4313, 16
        %v5550 = vrot.slane %v5548, 4
        %v5551 = vor.u32 %v5550, %v5536
        %v5552 = vrot.slane %v5551, 4
        %v5554 = vshll.u32 %v4315, 16
        %v5556 = vrot.slane %v5554, 5
        %v5557 = vsel %vm2581, %v5552, %v5556
        %v5559 = vshrl.u32 %v4316, 16
        %v5561 = vrot.slane %v5559, 4
        %v5562 = vshll.u32 %v4316, 16
        %v5564 = vrot.slane %v5562, 5
        %v5565 = vor.u32 %v5561, %v5564
        %v5566 = vrot.slane %v5565, 4
        %v5568 = vshll.u32 %v4318, 16
        %v5570 = vrot.slane %v5568, 5
        %v5571 = vsel %vm2581, %v5566, %v5570
        %v5573 = vshrl.u32 %v4317, 16
        %v5575 = vrot.slane %v5573, 4
        %v5576 = vshll.u32 %v4317, 16
        %v5578 = vrot.slane %v5576, 5
        %v5579 = vor.u32 %v5575, %v5578
        %v5580 = vrot.slane %v5579, 4
        %v5582 = vshll.u32 %v4319, 16
        %v5584 = vrot.slane %v5582, 5
        %v5585 = vsel %vm2581, %v5580, %v5584
        %v5586 = vshrl.u32 %v4318, 16
        %v5588 = vrot.slane %v5586, 4
        %v5589 = vor.u32 %v5588, %v5570
        %v5590 = vrot.slane %v5589, 4
        %v5592 = vshll.u32 %v4320, 16
        %v5594 = vrot.slane %v5592, 5
        %v5595 = vsel %vm2581, %v5590, %v5594
        %v5596 = vshrl.u32 %v4319, 16
        %v5598 = vrot.slane %v5596, 4
        %v5599 = vor.u32 %v5598, %v5584
        %v5600 = vrot.slane %v5599, 4
        %v5602 = vshll.u32 %v4321, 16
        %v5604 = vrot.slane %v5602, 5
        %v5605 = vsel %vm2581, %v5600, %v5604
        %v5607 = vshrl.u32 %v4322, 16
        %v5609 = vrot.slane %v5607, 4
        %v5610 = vshll.u32 %v4322, 16
        %v5612 = vrot.slane %v5610, 5
        %v5613 = vor.u32 %v5609, %v5612
        %v5614 = vrot.slane %v5613, 4
        %v5616 = vshll.u32 %v4324, 16
        %v5618 = vrot.slane %v5616, 5
        %v5619 = vsel %vm2581, %v5614, %v5618
        %v5621 = vshrl.u32 %v4323, 16
        %v5623 = vrot.slane %v5621, 4
        %v5624 = vshll.u32 %v4323, 16
        %v5626 = vrot.slane %v5624, 5
        %v5627 = vor.u32 %v5623, %v5626
        %v5628 = vrot.slane %v5627, 4
        %v5630 = vshll.u32 %v4325, 16
        %v5632 = vrot.slane %v5630, 5
        %v5633 = vsel %vm2581, %v5628, %v5632
        %v5634 = vshrl.u32 %v4324, 16
        %v5636 = vrot.slane %v5634, 4
        %v5637 = vor.u32 %v5636, %v5618
        %v5638 = vrot.slane %v5637, 4
        %v5640 = vshll.u32 %v4326, 16
        %v5642 = vrot.slane %v5640, 5
        %v5643 = vsel %vm2581, %v5638, %v5642
        %v5644 = vshrl.u32 %v4325, 16
        %v5646 = vrot.slane %v5644, 4
        %v5647 = vor.u32 %v5646, %v5632
        %v5648 = vrot.slane %v5647, 4
        %v5650 = vshll.u32 %v4327, 16
        %v5652 = vrot.slane %v5650, 5
        %v5653 = vsel %vm2581, %v5648, %v5652
        %v5655 = vshrl.u32 %v4328, 16
        %v5657 = vrot.slane %v5655, 4
        %v5658 = vshll.u32 %v4328, 16
        %v5660 = vrot.slane %v5658, 5
        %v5661 = vor.u32 %v5657, %v5660
        %v5662 = vrot.slane %v5661, 4
        %v5664 = vshll.u32 %v4330, 16
        %v5666 = vrot.slane %v5664, 5
        %v5667 = vsel %vm2581, %v5662, %v5666
        %v5669 = vshrl.u32 %v4329, 16
        %v5671 = vrot.slane %v5669, 4
        %v5672 = vshll.u32 %v4329, 16
        %v5674 = vrot.slane %v5672, 5
        %v5675 = vor.u32 %v5671, %v5674
        %v5676 = vrot.slane %v5675, 4
        %v5678 = vshll.u32 %v4331, 16
        %v5680 = vrot.slane %v5678, 5
        %v5681 = vsel %vm2581, %v5676, %v5680
        %v5682 = vshrl.u32 %v4330, 16
        %v5684 = vrot.slane %v5682, 4
        %v5685 = vor.u32 %v5684, %v5666
        %v5686 = vrot.slane %v5685, 4
        %v5688 = vshll.u32 %v4332, 16
        %v5690 = vrot.slane %v5688, 5
        %v5691 = vsel %vm2581, %v5686, %v5690
        %v5692 = vshrl.u32 %v4331, 16
        %v5694 = vrot.slane %v5692, 4
        %v5695 = vor.u32 %v5694, %v5680
        %v5696 = vrot.slane %v5695, 4
        %v5698 = vshll.u32 %v4333, 16
        %v5700 = vrot.slane %v5698, 5
        %v5701 = vsel %vm2581, %v5696, %v5700
        %v5703 = vshrl.u32 %v4334, 16
        %v5705 = vrot.slane %v5703, 4
        %v5706 = vshll.u32 %v4334, 16
        %v5708 = vrot.slane %v5706, 5
        %v5709 = vor.u32 %v5705, %v5708
        %v5710 = vrot.slane %v5709, 4
        %v5712 = vshll.u32 %v4336, 16
        %v5714 = vrot.slane %v5712, 5
        %v5715 = vsel %vm2581, %v5710, %v5714
        %v5717 = vshrl.u32 %v4335, 16
        %v5719 = vrot.slane %v5717, 4
        %v5720 = vshll.u32 %v4335, 16
        %v5722 = vrot.slane %v5720, 5
        %v5723 = vor.u32 %v5719, %v5722
        %v5724 = vrot.slane %v5723, 4
        %v5726 = vshll.u32 %v4337, 16
        %v5728 = vrot.slane %v5726, 5
        %v5729 = vsel %vm2581, %v5724, %v5728
        %v5730 = vshrl.u32 %v4336, 16
        %v5732 = vrot.slane %v5730, 4
        %v5733 = vor.u32 %v5732, %v5714
        %v5734 = vrot.slane %v5733, 4
        %v5736 = vshll.u32 %v4338, 16
        %v5738 = vrot.slane %v5736, 5
        %v5739 = vsel %vm2581, %v5734, %v5738
        %v5740 = vshrl.u32 %v4337, 16
        %v5742 = vrot.slane %v5740, 4
        %v5743 = vor.u32 %v5742, %v5728
        %v5744 = vrot.slane %v5743, 4
        %v5746 = vshll.u32 %v4339, 16
        %v5748 = vrot.slane %v5746, 5
        %v5749 = vsel %vm2581, %v5744, %v5748
        %v5751 = vshrl.u32 %v4340, 16
        %v5753 = vrot.slane %v5751, 4
        %v5754 = vshll.u32 %v4340, 16
        %v5756 = vrot.slane %v5754, 5
        %v5757 = vor.u32 %v5753, %v5756
        %v5758 = vrot.slane %v5757, 4
        %v5760 = vshll.u32 %v4342, 16
        %v5762 = vrot.slane %v5760, 5
        %v5763 = vsel %vm2581, %v5758, %v5762
        %v5765 = vshrl.u32 %v4341, 16
        %v5767 = vrot.slane %v5765, 4
        %v5768 = vshll.u32 %v4341, 16
        %v5770 = vrot.slane %v5768, 5
        %v5771 = vor.u32 %v5767, %v5770
        %v5772 = vrot.slane %v5771, 4
        %v5774 = vshll.u32 %v4343, 16
        %v5776 = vrot.slane %v5774, 5
        %v5777 = vsel %vm2581, %v5772, %v5776
        %v5778 = vshrl.u32 %v4342, 16
        %v5780 = vrot.slane %v5778, 4
        %v5781 = vor.u32 %v5780, %v5762
        %v5782 = vrot.slane %v5781, 4
        %v5784 = vshll.u32 %v4344, 16
        %v5786 = vrot.slane %v5784, 5
        %v5787 = vsel %vm2581, %v5782, %v5786
        %v5788 = vshrl.u32 %v4343, 16
        %v5790 = vrot.slane %v5788, 4
        %v5791 = vor.u32 %v5790, %v5776
        %v5792 = vrot.slane %v5791, 4
        %v5794 = vshll.u32 %v4345, 16
        %v5796 = vrot.slane %v5794, 5
        %v5797 = vsel %vm2581, %v5792, %v5796
        %v5799 = vshrl.u32 %v4346, 16
        %v5801 = vrot.slane %v5799, 4
        %v5802 = vshll.u32 %v4346, 16
        %v5804 = vrot.slane %v5802, 5
        %v5805 = vor.u32 %v5801, %v5804
        %v5806 = vrot.slane %v5805, 4
        %v5808 = vshll.u32 %v4348, 16
        %v5810 = vrot.slane %v5808, 5
        %v5811 = vsel %vm2581, %v5806, %v5810
        %v5813 = vshrl.u32 %v4347, 16
        %v5815 = vrot.slane %v5813, 4
        %v5816 = vshll.u32 %v4347, 16
        %v5818 = vrot.slane %v5816, 5
        %v5819 = vor.u32 %v5815, %v5818
        %v5820 = vrot.slane %v5819, 4
        %v5822 = vshll.u32 %v4349, 16
        %v5824 = vrot.slane %v5822, 5
        %v5825 = vsel %vm2581, %v5820, %v5824
        %v5826 = vshrl.u32 %v4348, 16
        %v5828 = vrot.slane %v5826, 4
        %v5829 = vor.u32 %v5828, %v5810
        %v5830 = vrot.slane %v5829, 4
        %v5832 = vshll.u32 %v4350, 16
        %v5834 = vrot.slane %v5832, 5
        %v5835 = vsel %vm2581, %v5830, %v5834
        %v5836 = vshrl.u32 %v4349, 16
        %v5838 = vrot.slane %v5836, 4
        %v5839 = vor.u32 %v5838, %v5824
        %v5840 = vrot.slane %v5839, 4
        %v5842 = vshll.u32 %v4351, 16
        %v5844 = vrot.slane %v5842, 5
        %v5845 = vsel %vm2581, %v5840, %v5844
        %v5847 = vshrl.u32 %v4352, 16
        %v5849 = vrot.slane %v5847, 4
        %v5850 = vshll.u32 %v4352, 16
        %v5852 = vrot.slane %v5850, 5
        %v5853 = vor.u32 %v5849, %v5852
        %v5854 = vrot.slane %v5853, 4
        %v5856 = vshll.u32 %v4354, 16
        %v5858 = vrot.slane %v5856, 5
        %v5859 = vsel %vm2581, %v5854, %v5858
        %v5861 = vshrl.u32 %v4353, 16
        %v5863 = vrot.slane %v5861, 4
        %v5864 = vshll.u32 %v4353, 16
        %v5866 = vrot.slane %v5864, 5
        %v5867 = vor.u32 %v5863, %v5866
        %v5868 = vrot.slane %v5867, 4
        %v5870 = vshll.u32 %v4355, 16
        %v5872 = vrot.slane %v5870, 5
        %v5873 = vsel %vm2581, %v5868, %v5872
        %v5874 = vshrl.u32 %v4354, 16
        %v5876 = vrot.slane %v5874, 4
        %v5877 = vor.u32 %v5876, %v5858
        %v5878 = vrot.slane %v5877, 4
        %v5880 = vshll.u32 %v4356, 16
        %v5882 = vrot.slane %v5880, 5
        %v5883 = vsel %vm2581, %v5878, %v5882
        %v5884 = vshrl.u32 %v4355, 16
        %v5886 = vrot.slane %v5884, 4
        %v5887 = vor.u32 %v5886, %v5872
        %v5888 = vrot.slane %v5887, 4
        %v5890 = vshll.u32 %v4357, 16
        %v5892 = vrot.slane %v5890, 5
        %v5893 = vsel %vm2581, %v5888, %v5892
        %s5894 = scalar_lea.vmem [#allocation8], 192
        %v5895 = vld [vmem:[%s5894] sm:$0xf]
        %v5896 = vld [vmem:[%s5894 + $0x4] sm:$0xf]
        %v5897 = vld [vmem:[%s5894 + $0x8] sm:$0xf]
        %v5898 = vld [vmem:[%s5894 + $0xc] sm:$0xf]
        %v5899 = vld [vmem:[%s5894 + $0x10] sm:$0xf]
        %v5900 = vld [vmem:[%s5894 + $0x14] sm:$0xf]
        %v5901 = vld [vmem:[%s5894 + $0x18] sm:$0xf]
        %v5902 = vld [vmem:[%s5894 + $0x1c] sm:$0xf]
        %v5903 = vld [vmem:[%s5894 + $0x20] sm:$0xf]
        %v5904 = vld [vmem:[%s5894 + $0x24] sm:$0xf]
        %v5905 = vld [vmem:[%s5894 + $0x28] sm:$0xf]
        %v5906 = vld [vmem:[%s5894 + $0x2c] sm:$0xf]
        %v5907 = vld [vmem:[%s5894 + $0x30] sm:$0xf]
        %v5908 = vld [vmem:[%s5894 + $0x34] sm:$0xf]
        %v5909 = vld [vmem:[%s5894 + $0x38] sm:$0xf]
        %v5910 = vld [vmem:[%s5894 + $0x3c] sm:$0xf]
        %v5911 = vld [vmem:[%s5894 + $0x40] sm:$0xf]
        %v5912 = vld [vmem:[%s5894 + $0x44] sm:$0xf]
        %v5913 = vld [vmem:[%s5894 + $0x48] sm:$0xf]
        %v5914 = vld [vmem:[%s5894 + $0x4c] sm:$0xf]
        %v5915 = vld [vmem:[%s5894 + $0x50] sm:$0xf]
        %v5916 = vld [vmem:[%s5894 + $0x54] sm:$0xf]
        %v5917 = vld [vmem:[%s5894 + $0x58] sm:$0xf]
        %v5918 = vld [vmem:[%s5894 + $0x5c] sm:$0xf]
        %v5919 = vld [vmem:[%s5894 + $0x60] sm:$0xf]
        %v5920 = vld [vmem:[%s5894 + $0x64] sm:$0xf]
        %v5921 = vld [vmem:[%s5894 + $0x68] sm:$0xf]
        %v5922 = vld [vmem:[%s5894 + $0x6c] sm:$0xf]
        %v5923 = vld [vmem:[%s5894 + $0x70] sm:$0xf]
        %v5924 = vld [vmem:[%s5894 + $0x74] sm:$0xf]
        %v5925 = vld [vmem:[%s5894 + $0x78] sm:$0xf]
        %v5926 = vld [vmem:[%s5894 + $0x7c] sm:$0xf]
        %v5927 = vld [vmem:[%s5894 + $0x80] sm:$0xf]
        %v5928 = vld [vmem:[%s5894 + $0x84] sm:$0xf]
        %v5929 = vld [vmem:[%s5894 + $0x88] sm:$0xf]
        %v5930 = vld [vmem:[%s5894 + $0x8c] sm:$0xf]
        %v5931 = vld [vmem:[%s5894 + $0x90] sm:$0xf]
        %v5932 = vld [vmem:[%s5894 + $0x94] sm:$0xf]
        %v5933 = vld [vmem:[%s5894 + $0x98] sm:$0xf]
        %v5934 = vld [vmem:[%s5894 + $0x9c] sm:$0xf]
        %v5935 = vld [vmem:[%s5894 + $0xa0] sm:$0xf]
        %v5936 = vld [vmem:[%s5894 + $0xa4] sm:$0xf]
        %v5937 = vld [vmem:[%s5894 + $0xa8] sm:$0xf]
        %v5938 = vld [vmem:[%s5894 + $0xac] sm:$0xf]
        %v5939 = vld [vmem:[%s5894 + $0xb0] sm:$0xf]
        %v5940 = vld [vmem:[%s5894 + $0xb4] sm:$0xf]
        %v5941 = vld [vmem:[%s5894 + $0xb8] sm:$0xf]
        %v5942 = vld [vmem:[%s5894 + $0xbc] sm:$0xf]
        %v5943 = vunpack.c.l.b16 %v4371
        %v5944 = vunpack.c.h.b16 %v4371
        %v5945 = vunpack.c.l.b16 %v4385
        %v5946 = vunpack.c.l.b16 %v4395
        %v5947 = vunpack.c.h.b16 %v4395
        %v5948 = vunpack.c.l.b16 %v4405
        %v5949 = vunpack.c.l.b16 %v4419
        %v5950 = vunpack.c.h.b16 %v4419
        %v5951 = vunpack.c.l.b16 %v4433
        %v5952 = vunpack.c.l.b16 %v4443
        %v5953 = vunpack.c.h.b16 %v4443
        %v5954 = vunpack.c.l.b16 %v4453
        %v5955 = vunpack.c.l.b16 %v4467
        %v5956 = vunpack.c.h.b16 %v4467
        %v5957 = vunpack.c.l.b16 %v4481
        %v5958 = vunpack.c.l.b16 %v4491
        %v5959 = vunpack.c.h.b16 %v4491
        %v5960 = vunpack.c.l.b16 %v4501
        %v5961 = vunpack.c.l.b16 %v4515
        %v5962 = vunpack.c.h.b16 %v4515
        %v5963 = vunpack.c.l.b16 %v4529
        %v5964 = vunpack.c.l.b16 %v4539
        %v5965 = vunpack.c.h.b16 %v4539
        %v5966 = vunpack.c.l.b16 %v4549
        %v5967 = vunpack.c.l.b16 %v4563
        %v5968 = vunpack.c.h.b16 %v4563
        %v5969 = vunpack.c.l.b16 %v4577
        %v5970 = vunpack.c.l.b16 %v4587
        %v5971 = vunpack.c.h.b16 %v4587
        %v5972 = vunpack.c.l.b16 %v4597
        %v5973 = vunpack.c.l.b16 %v4611
        %v5974 = vunpack.c.h.b16 %v4611
        %v5975 = vunpack.c.l.b16 %v4625
        %v5976 = vunpack.c.l.b16 %v4635
        %v5977 = vunpack.c.h.b16 %v4635
        %v5978 = vunpack.c.l.b16 %v4645
        %v5979 = vunpack.c.l.b16 %v4659
        %v5980 = vunpack.c.h.b16 %v4659
        %v5981 = vunpack.c.l.b16 %v4673
        %v5982 = vunpack.c.l.b16 %v4683
        %v5983 = vunpack.c.h.b16 %v4683
        %v5984 = vunpack.c.l.b16 %v4693
        %v5985 = vunpack.c.l.b16 %v4707
        %v5986 = vunpack.c.h.b16 %v4707
        %v5987 = vunpack.c.l.b16 %v4721
        %v5988 = vunpack.c.l.b16 %v4731
        %v5989 = vunpack.c.h.b16 %v4731
        %v5990 = vunpack.c.l.b16 %v4741
        %v5991 = vunpack.c.l.b16 %v4755
        %v5992 = vunpack.c.h.b16 %v4755
        %v5993 = vunpack.c.l.b16 %v4769
        %v5994 = vunpack.c.l.b16 %v4779
        %v5995 = vunpack.c.h.b16 %v4779
        %v5996 = vunpack.c.l.b16 %v4789
        %v5997 = vunpack.c.l.b16 %v4803
        %v5998 = vunpack.c.h.b16 %v4803
        %v5999 = vunpack.c.l.b16 %v4817
        %v6000 = vunpack.c.l.b16 %v4827
        %v6001 = vunpack.c.h.b16 %v4827
        %v6002 = vunpack.c.l.b16 %v4837
        %v6003 = vunpack.c.l.b16 %v4851
        %v6004 = vunpack.c.h.b16 %v4851
        %v6005 = vunpack.c.l.b16 %v4865
        %v6006 = vunpack.c.l.b16 %v4875
        %v6007 = vunpack.c.h.b16 %v4875
        %v6008 = vunpack.c.l.b16 %v4885
        %v6009 = vunpack.c.l.b16 %v4899
        %v6010 = vunpack.c.h.b16 %v4899
        %v6011 = vunpack.c.l.b16 %v4913
        %v6012 = vunpack.c.l.b16 %v4923
        %v6013 = vunpack.c.h.b16 %v4923
        %v6014 = vunpack.c.l.b16 %v4933
        %v6015 = vunpack.c.l.b16 %v4947
        %v6016 = vunpack.c.h.b16 %v4947
        %v6017 = vunpack.c.l.b16 %v4961
        %v6018 = vunpack.c.l.b16 %v4971
        %v6019 = vunpack.c.h.b16 %v4971
        %v6020 = vunpack.c.l.b16 %v4981
        %v6021 = vunpack.c.l.b16 %v4995
        %v6022 = vunpack.c.h.b16 %v4995
        %v6023 = vunpack.c.l.b16 %v5009
        %v6024 = vunpack.c.l.b16 %v5019
        %v6025 = vunpack.c.h.b16 %v5019
        %v6026 = vunpack.c.l.b16 %v5029
        %v6027 = vunpack.c.l.b16 %v5043
        %v6028 = vunpack.c.h.b16 %v5043
        %v6029 = vunpack.c.l.b16 %v5057
        %v6030 = vunpack.c.l.b16 %v5067
        %v6031 = vunpack.c.h.b16 %v5067
        %v6032 = vunpack.c.l.b16 %v5077
        %v6033 = vunpack.c.l.b16 %v5091
        %v6034 = vunpack.c.h.b16 %v5091
        %v6035 = vunpack.c.l.b16 %v5105
        %v6036 = vunpack.c.l.b16 %v5115
        %v6037 = vunpack.c.h.b16 %v5115
        %v6038 = vunpack.c.l.b16 %v5125
        %v6039 = vunpack.c.l.b16 %v5139
        %v6040 = vunpack.c.h.b16 %v5139
        %v6041 = vunpack.c.l.b16 %v5153
        %v6042 = vunpack.c.l.b16 %v5163
        %v6043 = vunpack.c.h.b16 %v5163
        %v6044 = vunpack.c.l.b16 %v5173
        %v6045 = vunpack.c.l.b16 %v5187
        %v6046 = vunpack.c.h.b16 %v5187
        %v6047 = vunpack.c.l.b16 %v5201
        %v6048 = vunpack.c.l.b16 %v5211
        %v6049 = vunpack.c.h.b16 %v5211
        %v6050 = vunpack.c.l.b16 %v5221
        %v6051 = vunpack.c.l.b16 %v5235
        %v6052 = vunpack.c.h.b16 %v5235
        %v6053 = vunpack.c.l.b16 %v5249
        %v6054 = vunpack.c.l.b16 %v5259
        %v6055 = vunpack.c.h.b16 %v5259
        %v6056 = vunpack.c.l.b16 %v5269
        %v6057 = vunpack.c.l.b16 %v5283
        %v6058 = vunpack.c.h.b16 %v5283
        %v6059 = vunpack.c.l.b16 %v5297
        %v6060 = vunpack.c.l.b16 %v5307
        %v6061 = vunpack.c.h.b16 %v5307
        %v6062 = vunpack.c.l.b16 %v5317
        %v6063 = vunpack.c.l.b16 %v5331
        %v6064 = vunpack.c.h.b16 %v5331
        %v6065 = vunpack.c.l.b16 %v5345
        %v6066 = vunpack.c.l.b16 %v5355
        %v6067 = vunpack.c.h.b16 %v5355
        %v6068 = vunpack.c.l.b16 %v5365
        %v6069 = vunpack.c.l.b16 %v5379
        %v6070 = vunpack.c.h.b16 %v5379
        %v6071 = vunpack.c.l.b16 %v5393
        %v6072 = vunpack.c.l.b16 %v5403
        %v6073 = vunpack.c.h.b16 %v5403
        %v6074 = vunpack.c.l.b16 %v5413
        %v6075 = vunpack.c.l.b16 %v5427
        %v6076 = vunpack.c.h.b16 %v5427
        %v6077 = vunpack.c.l.b16 %v5441
        %v6078 = vunpack.c.l.b16 %v5451
        %v6079 = vunpack.c.h.b16 %v5451
        %v6080 = vunpack.c.l.b16 %v5461
        %v6081 = vunpack.c.l.b16 %v5475
        %v6082 = vunpack.c.h.b16 %v5475
        %v6083 = vunpack.c.l.b16 %v5489
        %v6084 = vunpack.c.l.b16 %v5499
        %v6085 = vunpack.c.h.b16 %v5499
        %v6086 = vunpack.c.l.b16 %v5509
        %v6087 = vunpack.c.l.b16 %v5523
        %v6088 = vunpack.c.h.b16 %v5523
        %v6089 = vunpack.c.l.b16 %v5537
        %v6090 = vunpack.c.l.b16 %v5547
        %v6091 = vunpack.c.h.b16 %v5547
        %v6092 = vunpack.c.l.b16 %v5557
        %v6093 = vunpack.c.l.b16 %v5571
        %v6094 = vunpack.c.h.b16 %v5571
        %v6095 = vunpack.c.l.b16 %v5585
        %v6096 = vunpack.c.l.b16 %v5595
        %v6097 = vunpack.c.h.b16 %v5595
        %v6098 = vunpack.c.l.b16 %v5605
        %v6099 = vunpack.c.l.b16 %v5619
        %v6100 = vunpack.c.h.b16 %v5619
        %v6101 = vunpack.c.l.b16 %v5633
        %v6102 = vunpack.c.l.b16 %v5643
        %v6103 = vunpack.c.h.b16 %v5643
        %v6104 = vunpack.c.l.b16 %v5653
        %v6105 = vunpack.c.l.b16 %v5667
        %v6106 = vunpack.c.h.b16 %v5667
        %v6107 = vunpack.c.l.b16 %v5681
        %v6108 = vunpack.c.l.b16 %v5691
        %v6109 = vunpack.c.h.b16 %v5691
        %v6110 = vunpack.c.l.b16 %v5701
        %v6111 = vunpack.c.l.b16 %v5715
        %v6112 = vunpack.c.h.b16 %v5715
        %v6113 = vunpack.c.l.b16 %v5729
        %v6114 = vunpack.c.l.b16 %v5739
        %v6115 = vunpack.c.h.b16 %v5739
        %v6116 = vunpack.c.l.b16 %v5749
        %v6117 = vunpack.c.l.b16 %v5763
        %v6118 = vunpack.c.h.b16 %v5763
        %v6119 = vunpack.c.l.b16 %v5777
        %v6120 = vunpack.c.l.b16 %v5787
        %v6121 = vunpack.c.h.b16 %v5787
        %v6122 = vunpack.c.l.b16 %v5797
        %v6123 = vunpack.c.l.b16 %v5811
        %v6124 = vunpack.c.h.b16 %v5811
        %v6125 = vunpack.c.l.b16 %v5825
        %v6126 = vunpack.c.l.b16 %v5835
        %v6127 = vunpack.c.h.b16 %v5835
        %v6128 = vunpack.c.l.b16 %v5845
        %v6129 = vunpack.c.l.b16 %v5859
        %v6130 = vunpack.c.h.b16 %v5859
        %v6131 = vunpack.c.l.b16 %v5873
        %v6132 = vunpack.c.l.b16 %v5883
        %v6133 = vunpack.c.h.b16 %v5883
        %v6134 = vunpack.c.l.b16 %v5893
        %v6135 = vpack.c.b16 %v5946, %v5943
        %v6136 = vpack.c.b16 %v5947, %v5944
        %v6137 = vpack.c.b16 %v5948, %v5945
        %v6138 = vpack.c.b16 %v5952, %v5949
        %v6139 = vpack.c.b16 %v5953, %v5950
        %v6140 = vpack.c.b16 %v5954, %v5951
        %v6141 = vpack.c.b16 %v5958, %v5955
        %v6142 = vpack.c.b16 %v5959, %v5956
        %v6143 = vpack.c.b16 %v5960, %v5957
        %v6144 = vpack.c.b16 %v5964, %v5961
        %v6145 = vpack.c.b16 %v5965, %v5962
        %v6146 = vpack.c.b16 %v5966, %v5963
        %v6147 = vpack.c.b16 %v5970, %v5967
        %v6148 = vpack.c.b16 %v5971, %v5968
        %v6149 = vpack.c.b16 %v5972, %v5969
        %v6150 = vpack.c.b16 %v5976, %v5973
        %v6151 = vpack.c.b16 %v5977, %v5974
        %v6152 = vpack.c.b16 %v5978, %v5975
        %v6153 = vpack.c.b16 %v5982, %v5979
        %v6154 = vpack.c.b16 %v5983, %v5980
        %v6155 = vpack.c.b16 %v5984, %v5981
        %v6156 = vpack.c.b16 %v5988, %v5985
        %v6157 = vpack.c.b16 %v5989, %v5986
        %v6158 = vpack.c.b16 %v5990, %v5987
        %v6159 = vpack.c.b16 %v5994, %v5991
        %v6160 = vpack.c.b16 %v5995, %v5992
        %v6161 = vpack.c.b16 %v5996, %v5993
        %v6162 = vpack.c.b16 %v6000, %v5997
        %v6163 = vpack.c.b16 %v6001, %v5998
        %v6164 = vpack.c.b16 %v6002, %v5999
        %v6165 = vpack.c.b16 %v6006, %v6003
        %v6166 = vpack.c.b16 %v6007, %v6004
        %v6167 = vpack.c.b16 %v6008, %v6005
        %v6168 = vpack.c.b16 %v6012, %v6009
        %v6169 = vpack.c.b16 %v6013, %v6010
        %v6170 = vpack.c.b16 %v6014, %v6011
        %v6171 = vpack.c.b16 %v6018, %v6015
        %v6172 = vpack.c.b16 %v6019, %v6016
        %v6173 = vpack.c.b16 %v6020, %v6017
        %v6174 = vpack.c.b16 %v6024, %v6021
        %v6175 = vpack.c.b16 %v6025, %v6022
        %v6176 = vpack.c.b16 %v6026, %v6023
        %v6177 = vpack.c.b16 %v6030, %v6027
        %v6178 = vpack.c.b16 %v6031, %v6028
        %v6179 = vpack.c.b16 %v6032, %v6029
        %v6180 = vpack.c.b16 %v6036, %v6033
        %v6181 = vpack.c.b16 %v6037, %v6034
        %v6182 = vpack.c.b16 %v6038, %v6035
        %v6183 = vpack.c.b16 %v6042, %v6039
        %v6184 = vpack.c.b16 %v6043, %v6040
        %v6185 = vpack.c.b16 %v6044, %v6041
        %v6186 = vpack.c.b16 %v6048, %v6045
        %v6187 = vpack.c.b16 %v6049, %v6046
        %v6188 = vpack.c.b16 %v6050, %v6047
        %v6189 = vpack.c.b16 %v6054, %v6051
        %v6190 = vpack.c.b16 %v6055, %v6052
        %v6191 = vpack.c.b16 %v6056, %v6053
        %v6192 = vpack.c.b16 %v6060, %v6057
        %v6193 = vpack.c.b16 %v6061, %v6058
        %v6194 = vpack.c.b16 %v6062, %v6059
        %v6195 = vpack.c.b16 %v6066, %v6063
        %v6196 = vpack.c.b16 %v6067, %v6064
        %v6197 = vpack.c.b16 %v6068, %v6065
        %v6198 = vpack.c.b16 %v6072, %v6069
        %v6199 = vpack.c.b16 %v6073, %v6070
        %v6200 = vpack.c.b16 %v6074, %v6071
        %v6201 = vpack.c.b16 %v6078, %v6075
        %v6202 = vpack.c.b16 %v6079, %v6076
        %v6203 = vpack.c.b16 %v6080, %v6077
        %v6204 = vpack.c.b16 %v6084, %v6081
        %v6205 = vpack.c.b16 %v6085, %v6082
        %v6206 = vpack.c.b16 %v6086, %v6083
        %v6207 = vpack.c.b16 %v6090, %v6087
        %v6208 = vpack.c.b16 %v6091, %v6088
        %v6209 = vpack.c.b16 %v6092, %v6089
        %v6210 = vpack.c.b16 %v6096, %v6093
        %v6211 = vpack.c.b16 %v6097, %v6094
        %v6212 = vpack.c.b16 %v6098, %v6095
        %v6213 = vpack.c.b16 %v6102, %v6099
        %v6214 = vpack.c.b16 %v6103, %v6100
        %v6215 = vpack.c.b16 %v6104, %v6101
        %v6216 = vpack.c.b16 %v6108, %v6105
        %v6217 = vpack.c.b16 %v6109, %v6106
        %v6218 = vpack.c.b16 %v6110, %v6107
        %v6219 = vpack.c.b16 %v6114, %v6111
        %v6220 = vpack.c.b16 %v6115, %v6112
        %v6221 = vpack.c.b16 %v6116, %v6113
        %v6222 = vpack.c.b16 %v6120, %v6117
        %v6223 = vpack.c.b16 %v6121, %v6118
        %v6224 = vpack.c.b16 %v6122, %v6119
        %v6225 = vpack.c.b16 %v6126, %v6123
        %v6226 = vpack.c.b16 %v6127, %v6124
        %v6227 = vpack.c.b16 %v6128, %v6125
        %v6228 = vpack.c.b16 %v6132, %v6129
        %v6229 = vpack.c.b16 %v6133, %v6130
        %v6230 = vpack.c.b16 %v6134, %v6131
        %v6375 = vunpack.c.l.b16 %v5895
        %v6376 = vunpack.c.l.b16 %v5896
        %v6377 = vunpack.c.l.b16 %v5897
        %v6378 = vunpack.c.l.b16 %v5898
        %v6379 = vunpack.c.l.b16 %v5899
        %v6380 = vunpack.c.l.b16 %v5900
        %v6381 = vunpack.c.l.b16 %v5901
        %v6382 = vunpack.c.l.b16 %v5902
        %v6383 = vunpack.c.l.b16 %v5903
        %v6384 = vunpack.c.l.b16 %v5904
        %v6385 = vunpack.c.l.b16 %v5905
        %v6386 = vunpack.c.l.b16 %v5906
        %v6387 = vunpack.c.l.b16 %v5907
        %v6388 = vunpack.c.l.b16 %v5908
        %v6389 = vunpack.c.l.b16 %v5909
        %v6390 = vunpack.c.l.b16 %v5910
        %v6391 = vunpack.c.l.b16 %v5911
        %v6392 = vunpack.c.l.b16 %v5912
        %v6393 = vunpack.c.l.b16 %v5913
        %v6394 = vunpack.c.l.b16 %v5914
        %v6395 = vunpack.c.l.b16 %v5915
        %v6396 = vunpack.c.l.b16 %v5916
        %v6397 = vunpack.c.l.b16 %v5917
        %v6398 = vunpack.c.l.b16 %v5918
        %v6399 = vunpack.c.l.b16 %v5919
        %v6400 = vunpack.c.l.b16 %v5920
        %v6401 = vunpack.c.l.b16 %v5921
        %v6402 = vunpack.c.l.b16 %v5922
        %v6403 = vunpack.c.l.b16 %v5923
        %v6404 = vunpack.c.l.b16 %v5924
        %v6405 = vunpack.c.l.b16 %v5925
        %v6406 = vunpack.c.l.b16 %v5926
        %v6407 = vunpack.c.l.b16 %v5927
        %v6408 = vunpack.c.l.b16 %v5928
        %v6409 = vunpack.c.l.b16 %v5929
        %v6410 = vunpack.c.l.b16 %v5930
        %v6411 = vunpack.c.l.b16 %v5931
        %v6412 = vunpack.c.l.b16 %v5932
        %v6413 = vunpack.c.l.b16 %v5933
        %v6414 = vunpack.c.l.b16 %v5934
        %v6415 = vunpack.c.l.b16 %v5935
        %v6416 = vunpack.c.l.b16 %v5936
        %v6417 = vunpack.c.l.b16 %v5937
        %v6418 = vunpack.c.l.b16 %v5938
        %v6419 = vunpack.c.l.b16 %v5939
        %v6420 = vunpack.c.l.b16 %v5940
        %v6421 = vunpack.c.l.b16 %v5941
        %v6422 = vunpack.c.l.b16 %v5942
        %v6423 = vpack.c.b16 %v6376, %v6375
        %v6424 = vpack.c.b16 %v6378, %v6377
        %v6425 = vpack.c.b16 %v6380, %v6379
        %v6426 = vpack.c.b16 %v6382, %v6381
        %v6427 = vpack.c.b16 %v6384, %v6383
        %v6428 = vpack.c.b16 %v6386, %v6385
        %v6429 = vpack.c.b16 %v6388, %v6387
        %v6430 = vpack.c.b16 %v6390, %v6389
        %v6431 = vpack.c.b16 %v6392, %v6391
        %v6432 = vpack.c.b16 %v6394, %v6393
        %v6433 = vpack.c.b16 %v6396, %v6395
        %v6434 = vpack.c.b16 %v6398, %v6397
        %v6435 = vpack.c.b16 %v6400, %v6399
        %v6436 = vpack.c.b16 %v6402, %v6401
        %v6437 = vpack.c.b16 %v6404, %v6403
        %v6438 = vpack.c.b16 %v6406, %v6405
        %v6439 = vpack.c.b16 %v6408, %v6407
        %v6440 = vpack.c.b16 %v6410, %v6409
        %v6441 = vpack.c.b16 %v6412, %v6411
        %v6442 = vpack.c.b16 %v6414, %v6413
        %v6443 = vpack.c.b16 %v6416, %v6415
        %v6444 = vpack.c.b16 %v6418, %v6417
        %v6445 = vpack.c.b16 %v6420, %v6419
        %v6446 = vpack.c.b16 %v6422, %v6421
        %6471 = vmatpush.bf16.msra.mxu0 %v6430
        %6472 = vmatpush.bf16.msra.mxu0 %v6429
        %6473 = vmatpush.bf16.msra.mxu0 %v6428
        %6474 = vmatpush.bf16.msra.mxu0 %v6427
        %6475 = vmatpush.bf16.msra.mxu0 %v6426
        %6476 = vmatpush.bf16.msra.mxu0 %v6425
        %6477 = vmatpush.bf16.msra.mxu0 %v6424
        %6478 = vmatpush.bf16.msra.mxu0 %v6423
        %6479 = vmatmul.bf16.gmra.mxu0 %v6135
        %v6480 = vpop.f32.mrf.mxu0
        %v6481 = vadd.f32 0.0, %v6480
        %v6482 = vpop.f32.mrf.mxu0
        %v6483 = vadd.f32 0.0, %v6482
        %6484 = vmatmul.bf16.gmra.mxu0 %v6138
        %v6485 = vpop.f32.mrf.mxu0
        %v6486 = vadd.f32 0.0, %v6485
        %v6487 = vpop.f32.mrf.mxu0
        %v6488 = vadd.f32 0.0, %v6487
        %6489 = vmatmul.bf16.gmra.mxu0 %v6141
        %v6490 = vpop.f32.mrf.mxu0
        %v6491 = vadd.f32 0.0, %v6490
        %v6492 = vpop.f32.mrf.mxu0
        %v6493 = vadd.f32 0.0, %v6492
        %6494 = vmatmul.bf16.gmra.mxu0 %v6144
        %v6495 = vpop.f32.mrf.mxu0
        %v6496 = vadd.f32 0.0, %v6495
        %v6497 = vpop.f32.mrf.mxu0
        %v6498 = vadd.f32 0.0, %v6497
        %6499 = vmatmul.bf16.gmra.mxu0 %v6147
        %v6500 = vpop.f32.mrf.mxu0
        %v6501 = vadd.f32 0.0, %v6500
        %v6502 = vpop.f32.mrf.mxu0
        %v6503 = vadd.f32 0.0, %v6502
        %6504 = vmatmul.bf16.gmra.mxu0 %v6150
        %v6505 = vpop.f32.mrf.mxu0
        %v6506 = vadd.f32 0.0, %v6505
        %v6507 = vpop.f32.mrf.mxu0
        %v6508 = vadd.f32 0.0, %v6507
        %6509 = vmatmul.bf16.gmra.mxu0 %v6153
        %v6510 = vpop.f32.mrf.mxu0
        %v6511 = vadd.f32 0.0, %v6510
        %v6512 = vpop.f32.mrf.mxu0
        %v6513 = vadd.f32 0.0, %v6512
        %6514 = vmatmul.bf16.gmra.mxu0 %v6156
        %v6515 = vpop.f32.mrf.mxu0
        %v6516 = vadd.f32 0.0, %v6515
        %v6517 = vpop.f32.mrf.mxu0
        %v6518 = vadd.f32 0.0, %v6517
        %6519 = vmatmul.bf16.gmra.mxu0 %v6159
        %v6520 = vpop.f32.mrf.mxu0
        %v6521 = vadd.f32 0.0, %v6520
        %v6522 = vpop.f32.mrf.mxu0
        %v6523 = vadd.f32 0.0, %v6522
        %6524 = vmatmul.bf16.gmra.mxu0 %v6162
        %v6525 = vpop.f32.mrf.mxu0
        %v6526 = vadd.f32 0.0, %v6525
        %v6527 = vpop.f32.mrf.mxu0
        %v6528 = vadd.f32 0.0, %v6527
        %6529 = vmatmul.bf16.gmra.mxu0 %v6165
        %v6530 = vpop.f32.mrf.mxu0
        %v6531 = vadd.f32 0.0, %v6530
        %v6532 = vpop.f32.mrf.mxu0
        %v6533 = vadd.f32 0.0, %v6532
        %6534 = vmatmul.bf16.gmra.mxu0 %v6168
        %v6535 = vpop.f32.mrf.mxu0
        %v6536 = vadd.f32 0.0, %v6535
        %v6537 = vpop.f32.mrf.mxu0
        %v6538 = vadd.f32 0.0, %v6537
        %6539 = vmatmul.bf16.gmra.mxu0 %v6171
        %v6540 = vpop.f32.mrf.mxu0
        %v6541 = vadd.f32 0.0, %v6540
        %v6542 = vpop.f32.mrf.mxu0
        %v6543 = vadd.f32 0.0, %v6542
        %6544 = vmatmul.bf16.gmra.mxu0 %v6174
        %v6545 = vpop.f32.mrf.mxu0
        %v6546 = vadd.f32 0.0, %v6545
        %v6547 = vpop.f32.mrf.mxu0
        %v6548 = vadd.f32 0.0, %v6547
        %6549 = vmatmul.bf16.gmra.mxu0 %v6177
        %v6550 = vpop.f32.mrf.mxu0
        %v6551 = vadd.f32 0.0, %v6550
        %v6552 = vpop.f32.mrf.mxu0
        %v6553 = vadd.f32 0.0, %v6552
        %6554 = vmatmul.bf16.gmra.mxu0 %v6180
        %v6555 = vpop.f32.mrf.mxu0
        %v6556 = vadd.f32 0.0, %v6555
        %v6557 = vpop.f32.mrf.mxu0
        %v6558 = vadd.f32 0.0, %v6557
        %6559 = vmatmul.bf16.gmra.mxu0 %v6183
        %v6560 = vpop.f32.mrf.mxu0
        %v6561 = vadd.f32 0.0, %v6560
        %v6562 = vpop.f32.mrf.mxu0
        %v6563 = vadd.f32 0.0, %v6562
        %6564 = vmatmul.bf16.gmra.mxu0 %v6186
        %v6565 = vpop.f32.mrf.mxu0
        %v6566 = vadd.f32 0.0, %v6565
        %v6567 = vpop.f32.mrf.mxu0
        %v6568 = vadd.f32 0.0, %v6567
        %6569 = vmatmul.bf16.gmra.mxu0 %v6189
        %v6570 = vpop.f32.mrf.mxu0
        %v6571 = vadd.f32 0.0, %v6570
        %v6572 = vpop.f32.mrf.mxu0
        %v6573 = vadd.f32 0.0, %v6572
        %6574 = vmatmul.bf16.gmra.mxu0 %v6192
        %v6575 = vpop.f32.mrf.mxu0
        %v6576 = vadd.f32 0.0, %v6575
        %v6577 = vpop.f32.mrf.mxu0
        %v6578 = vadd.f32 0.0, %v6577
        %6579 = vmatmul.bf16.gmra.mxu0 %v6195
        %v6580 = vpop.f32.mrf.mxu0
        %v6581 = vadd.f32 0.0, %v6580
        %v6582 = vpop.f32.mrf.mxu0
        %v6583 = vadd.f32 0.0, %v6582
        %6584 = vmatmul.bf16.gmra.mxu0 %v6198
        %v6585 = vpop.f32.mrf.mxu0
        %v6586 = vadd.f32 0.0, %v6585
        %v6587 = vpop.f32.mrf.mxu0
        %v6588 = vadd.f32 0.0, %v6587
        %6589 = vmatmul.bf16.gmra.mxu0 %v6201
        %v6590 = vpop.f32.mrf.mxu0
        %v6591 = vadd.f32 0.0, %v6590
        %v6592 = vpop.f32.mrf.mxu0
        %v6593 = vadd.f32 0.0, %v6592
        %6594 = vmatmul.bf16.gmra.mxu0 %v6204
        %v6595 = vpop.f32.mrf.mxu0
        %v6596 = vadd.f32 0.0, %v6595
        %v6597 = vpop.f32.mrf.mxu0
        %v6598 = vadd.f32 0.0, %v6597
        %6599 = vmatmul.bf16.gmra.mxu0 %v6207
        %v6600 = vpop.f32.mrf.mxu0
        %v6601 = vadd.f32 0.0, %v6600
        %v6602 = vpop.f32.mrf.mxu0
        %v6603 = vadd.f32 0.0, %v6602
        %6604 = vmatmul.bf16.gmra.mxu0 %v6210
        %v6605 = vpop.f32.mrf.mxu0
        %v6606 = vadd.f32 0.0, %v6605
        %v6607 = vpop.f32.mrf.mxu0
        %v6608 = vadd.f32 0.0, %v6607
        %6609 = vmatmul.bf16.gmra.mxu0 %v6213
        %v6610 = vpop.f32.mrf.mxu0
        %v6611 = vadd.f32 0.0, %v6610
        %v6612 = vpop.f32.mrf.mxu0
        %v6613 = vadd.f32 0.0, %v6612
        %6614 = vmatmul.bf16.gmra.mxu0 %v6216
        %v6615 = vpop.f32.mrf.mxu0
        %v6616 = vadd.f32 0.0, %v6615
        %v6617 = vpop.f32.mrf.mxu0
        %v6618 = vadd.f32 0.0, %v6617
        %6619 = vmatmul.bf16.gmra.mxu0 %v6219
        %v6620 = vpop.f32.mrf.mxu0
        %v6621 = vadd.f32 0.0, %v6620
        %v6622 = vpop.f32.mrf.mxu0
        %v6623 = vadd.f32 0.0, %v6622
        %6624 = vmatmul.bf16.gmra.mxu0 %v6222
        %v6625 = vpop.f32.mrf.mxu0
        %v6626 = vadd.f32 0.0, %v6625
        %v6627 = vpop.f32.mrf.mxu0
        %v6628 = vadd.f32 0.0, %v6627
        %6629 = vmatmul.bf16.gmra.mxu0 %v6225
        %v6630 = vpop.f32.mrf.mxu0
        %v6631 = vadd.f32 0.0, %v6630
        %v6632 = vpop.f32.mrf.mxu0
        %v6633 = vadd.f32 0.0, %v6632
        %6634 = vmatmul.bf16.gmra.mxu0 %v6228
        %v6635 = vpop.f32.mrf.mxu0
        %v6636 = vadd.f32 0.0, %v6635
        %v6637 = vpop.f32.mrf.mxu0
        %v6638 = vadd.f32 0.0, %v6637
        %6639 = vdwg.mxu0
        %6640 = vmatpush.bf16.msra.mxu0 %v6438
        %6641 = vmatpush.bf16.msra.mxu0 %v6437
        %6642 = vmatpush.bf16.msra.mxu0 %v6436
        %6643 = vmatpush.bf16.msra.mxu0 %v6435
        %6644 = vmatpush.bf16.msra.mxu0 %v6434
        %6645 = vmatpush.bf16.msra.mxu0 %v6433
        %6646 = vmatpush.bf16.msra.mxu0 %v6432
        %6647 = vmatpush.bf16.msra.mxu0 %v6431
        %6648 = vmatmul.bf16.gmra.mxu0 %v6136
        %v6649 = vpop.f32.mrf.mxu0
        %v6650 = vadd.f32 %v6481, %v6649
        %v6651 = vpop.f32.mrf.mxu0
        %v6652 = vadd.f32 %v6483, %v6651
        %6653 = vmatmul.bf16.gmra.mxu0 %v6139
        %v6654 = vpop.f32.mrf.mxu0
        %v6655 = vadd.f32 %v6486, %v6654
        %v6656 = vpop.f32.mrf.mxu0
        %v6657 = vadd.f32 %v6488, %v6656
        %6658 = vmatmul.bf16.gmra.mxu0 %v6142
        %v6659 = vpop.f32.mrf.mxu0
        %v6660 = vadd.f32 %v6491, %v6659
        %v6661 = vpop.f32.mrf.mxu0
        %v6662 = vadd.f32 %v6493, %v6661
        %6663 = vmatmul.bf16.gmra.mxu0 %v6145
        %v6664 = vpop.f32.mrf.mxu0
        %v6665 = vadd.f32 %v6496, %v6664
        %v6666 = vpop.f32.mrf.mxu0
        %v6667 = vadd.f32 %v6498, %v6666
        %6668 = vmatmul.bf16.gmra.mxu0 %v6148
        %v6669 = vpop.f32.mrf.mxu0
        %v6670 = vadd.f32 %v6501, %v6669
        %v6671 = vpop.f32.mrf.mxu0
        %v6672 = vadd.f32 %v6503, %v6671
        %6673 = vmatmul.bf16.gmra.mxu0 %v6151
        %v6674 = vpop.f32.mrf.mxu0
        %v6675 = vadd.f32 %v6506, %v6674
        %v6676 = vpop.f32.mrf.mxu0
        %v6677 = vadd.f32 %v6508, %v6676
        %6678 = vmatmul.bf16.gmra.mxu0 %v6154
        %v6679 = vpop.f32.mrf.mxu0
        %v6680 = vadd.f32 %v6511, %v6679
        %v6681 = vpop.f32.mrf.mxu0
        %v6682 = vadd.f32 %v6513, %v6681
        %6683 = vmatmul.bf16.gmra.mxu0 %v6157
        %v6684 = vpop.f32.mrf.mxu0
        %v6685 = vadd.f32 %v6516, %v6684
        %v6686 = vpop.f32.mrf.mxu0
        %v6687 = vadd.f32 %v6518, %v6686
        %6688 = vmatmul.bf16.gmra.mxu0 %v6160
        %v6689 = vpop.f32.mrf.mxu0
        %v6690 = vadd.f32 %v6521, %v6689
        %v6691 = vpop.f32.mrf.mxu0
        %v6692 = vadd.f32 %v6523, %v6691
        %6693 = vmatmul.bf16.gmra.mxu0 %v6163
        %v6694 = vpop.f32.mrf.mxu0
        %v6695 = vadd.f32 %v6526, %v6694
        %v6696 = vpop.f32.mrf.mxu0
        %v6697 = vadd.f32 %v6528, %v6696
        %6698 = vmatmul.bf16.gmra.mxu0 %v6166
        %v6699 = vpop.f32.mrf.mxu0
        %v6700 = vadd.f32 %v6531, %v6699
        %v6701 = vpop.f32.mrf.mxu0
        %v6702 = vadd.f32 %v6533, %v6701
        %6703 = vmatmul.bf16.gmra.mxu0 %v6169
        %v6704 = vpop.f32.mrf.mxu0
        %v6705 = vadd.f32 %v6536, %v6704
        %v6706 = vpop.f32.mrf.mxu0
        %v6707 = vadd.f32 %v6538, %v6706
        %6708 = vmatmul.bf16.gmra.mxu0 %v6172
        %v6709 = vpop.f32.mrf.mxu0
        %v6710 = vadd.f32 %v6541, %v6709
        %v6711 = vpop.f32.mrf.mxu0
        %v6712 = vadd.f32 %v6543, %v6711
        %6713 = vmatmul.bf16.gmra.mxu0 %v6175
        %v6714 = vpop.f32.mrf.mxu0
        %v6715 = vadd.f32 %v6546, %v6714
        %v6716 = vpop.f32.mrf.mxu0
        %v6717 = vadd.f32 %v6548, %v6716
        %6718 = vmatmul.bf16.gmra.mxu0 %v6178
        %v6719 = vpop.f32.mrf.mxu0
        %v6720 = vadd.f32 %v6551, %v6719
        %v6721 = vpop.f32.mrf.mxu0
        %v6722 = vadd.f32 %v6553, %v6721
        %6723 = vmatmul.bf16.gmra.mxu0 %v6181
        %v6724 = vpop.f32.mrf.mxu0
        %v6725 = vadd.f32 %v6556, %v6724
        %v6726 = vpop.f32.mrf.mxu0
        %v6727 = vadd.f32 %v6558, %v6726
        %6728 = vmatmul.bf16.gmra.mxu0 %v6184
        %v6729 = vpop.f32.mrf.mxu0
        %v6730 = vadd.f32 %v6561, %v6729
        %v6731 = vpop.f32.mrf.mxu0
        %v6732 = vadd.f32 %v6563, %v6731
        %6733 = vmatmul.bf16.gmra.mxu0 %v6187
        %v6734 = vpop.f32.mrf.mxu0
        %v6735 = vadd.f32 %v6566, %v6734
        %v6736 = vpop.f32.mrf.mxu0
        %v6737 = vadd.f32 %v6568, %v6736
        %6738 = vmatmul.bf16.gmra.mxu0 %v6190
        %v6739 = vpop.f32.mrf.mxu0
        %v6740 = vadd.f32 %v6571, %v6739
        %v6741 = vpop.f32.mrf.mxu0
        %v6742 = vadd.f32 %v6573, %v6741
        %6743 = vmatmul.bf16.gmra.mxu0 %v6193
        %v6744 = vpop.f32.mrf.mxu0
        %v6745 = vadd.f32 %v6576, %v6744
        %v6746 = vpop.f32.mrf.mxu0
        %v6747 = vadd.f32 %v6578, %v6746
        %6748 = vmatmul.bf16.gmra.mxu0 %v6196
        %v6749 = vpop.f32.mrf.mxu0
        %v6750 = vadd.f32 %v6581, %v6749
        %v6751 = vpop.f32.mrf.mxu0
        %v6752 = vadd.f32 %v6583, %v6751
        %6753 = vmatmul.bf16.gmra.mxu0 %v6199
        %v6754 = vpop.f32.mrf.mxu0
        %v6755 = vadd.f32 %v6586, %v6754
        %v6756 = vpop.f32.mrf.mxu0
        %v6757 = vadd.f32 %v6588, %v6756
        %6758 = vmatmul.bf16.gmra.mxu0 %v6202
        %v6759 = vpop.f32.mrf.mxu0
        %v6760 = vadd.f32 %v6591, %v6759
        %v6761 = vpop.f32.mrf.mxu0
        %v6762 = vadd.f32 %v6593, %v6761
        %6763 = vmatmul.bf16.gmra.mxu0 %v6205
        %v6764 = vpop.f32.mrf.mxu0
        %v6765 = vadd.f32 %v6596, %v6764
        %v6766 = vpop.f32.mrf.mxu0
        %v6767 = vadd.f32 %v6598, %v6766
        %6768 = vmatmul.bf16.gmra.mxu0 %v6208
        %v6769 = vpop.f32.mrf.mxu0
        %v6770 = vadd.f32 %v6601, %v6769
        %v6771 = vpop.f32.mrf.mxu0
        %v6772 = vadd.f32 %v6603, %v6771
        %6773 = vmatmul.bf16.gmra.mxu0 %v6211
        %v6774 = vpop.f32.mrf.mxu0
        %v6775 = vadd.f32 %v6606, %v6774
        %v6776 = vpop.f32.mrf.mxu0
        %v6777 = vadd.f32 %v6608, %v6776
        %6778 = vmatmul.bf16.gmra.mxu0 %v6214
        %v6779 = vpop.f32.mrf.mxu0
        %v6780 = vadd.f32 %v6611, %v6779
        %v6781 = vpop.f32.mrf.mxu0
        %v6782 = vadd.f32 %v6613, %v6781
        %6783 = vmatmul.bf16.gmra.mxu0 %v6217
        %v6784 = vpop.f32.mrf.mxu0
        %v6785 = vadd.f32 %v6616, %v6784
        %v6786 = vpop.f32.mrf.mxu0
        %v6787 = vadd.f32 %v6618, %v6786
        %6788 = vmatmul.bf16.gmra.mxu0 %v6220
        %v6789 = vpop.f32.mrf.mxu0
        %v6790 = vadd.f32 %v6621, %v6789
        %v6791 = vpop.f32.mrf.mxu0
        %v6792 = vadd.f32 %v6623, %v6791
        %6793 = vmatmul.bf16.gmra.mxu0 %v6223
        %v6794 = vpop.f32.mrf.mxu0
        %v6795 = vadd.f32 %v6626, %v6794
        %v6796 = vpop.f32.mrf.mxu0
        %v6797 = vadd.f32 %v6628, %v6796
        %6798 = vmatmul.bf16.gmra.mxu0 %v6226
        %v6799 = vpop.f32.mrf.mxu0
        %v6800 = vadd.f32 %v6631, %v6799
        %v6801 = vpop.f32.mrf.mxu0
        %v6802 = vadd.f32 %v6633, %v6801
        %6803 = vmatmul.bf16.gmra.mxu0 %v6229
        %v6804 = vpop.f32.mrf.mxu0
        %v6805 = vadd.f32 %v6636, %v6804
        %v6806 = vpop.f32.mrf.mxu0
        %v6807 = vadd.f32 %v6638, %v6806
        %6808 = vdwg.mxu0
        %6809 = vmatpush.bf16.msra.mxu0 %v6446
        %6810 = vmatpush.bf16.msra.mxu0 %v6445
        %6811 = vmatpush.bf16.msra.mxu0 %v6444
        %6812 = vmatpush.bf16.msra.mxu0 %v6443
        %6813 = vmatpush.bf16.msra.mxu0 %v6442
        %6814 = vmatpush.bf16.msra.mxu0 %v6441
        %6815 = vmatpush.bf16.msra.mxu0 %v6440
        %6816 = vmatpush.bf16.msra.mxu0 %v6439
        %6817 = vmatmul.bf16.gmra.mxu0 %v6137
        %v6818 = vpop.f32.mrf.mxu0
        %v6819 = vadd.f32 %v6650, %v6818
        %v6820 = vpop.f32.mrf.mxu0
        %v6821 = vadd.f32 %v6652, %v6820
        %6822 = vmatmul.bf16.gmra.mxu0 %v6140
        %v6823 = vpop.f32.mrf.mxu0
        %v6824 = vadd.f32 %v6655, %v6823
        %v6825 = vpop.f32.mrf.mxu0
        %v6826 = vadd.f32 %v6657, %v6825
        %6827 = vmatmul.bf16.gmra.mxu0 %v6143
        %v6828 = vpop.f32.mrf.mxu0
        %v6829 = vadd.f32 %v6660, %v6828
        %v6830 = vpop.f32.mrf.mxu0
        %v6831 = vadd.f32 %v6662, %v6830
        %6832 = vmatmul.bf16.gmra.mxu0 %v6146
        %v6833 = vpop.f32.mrf.mxu0
        %v6834 = vadd.f32 %v6665, %v6833
        %v6835 = vpop.f32.mrf.mxu0
        %v6836 = vadd.f32 %v6667, %v6835
        %6837 = vmatmul.bf16.gmra.mxu0 %v6149
        %v6838 = vpop.f32.mrf.mxu0
        %v6839 = vadd.f32 %v6670, %v6838
        %v6840 = vpop.f32.mrf.mxu0
        %v6841 = vadd.f32 %v6672, %v6840
        %6842 = vmatmul.bf16.gmra.mxu0 %v6152
        %v6843 = vpop.f32.mrf.mxu0
        %v6844 = vadd.f32 %v6675, %v6843
        %v6845 = vpop.f32.mrf.mxu0
        %v6846 = vadd.f32 %v6677, %v6845
        %6847 = vmatmul.bf16.gmra.mxu0 %v6155
        %v6848 = vpop.f32.mrf.mxu0
        %v6849 = vadd.f32 %v6680, %v6848
        %v6850 = vpop.f32.mrf.mxu0
        %v6851 = vadd.f32 %v6682, %v6850
        %6852 = vmatmul.bf16.gmra.mxu0 %v6158
        %v6853 = vpop.f32.mrf.mxu0
        %v6854 = vadd.f32 %v6685, %v6853
        %v6855 = vpop.f32.mrf.mxu0
        %v6856 = vadd.f32 %v6687, %v6855
        %6857 = vmatmul.bf16.gmra.mxu0 %v6161
        %v6858 = vpop.f32.mrf.mxu0
        %v6859 = vadd.f32 %v6690, %v6858
        %v6860 = vpop.f32.mrf.mxu0
        %v6861 = vadd.f32 %v6692, %v6860
        %6862 = vmatmul.bf16.gmra.mxu0 %v6164
        %v6863 = vpop.f32.mrf.mxu0
        %v6864 = vadd.f32 %v6695, %v6863
        %v6865 = vpop.f32.mrf.mxu0
        %v6866 = vadd.f32 %v6697, %v6865
        %6867 = vmatmul.bf16.gmra.mxu0 %v6167
        %v6868 = vpop.f32.mrf.mxu0
        %v6869 = vadd.f32 %v6700, %v6868
        %v6870 = vpop.f32.mrf.mxu0
        %v6871 = vadd.f32 %v6702, %v6870
        %6872 = vmatmul.bf16.gmra.mxu0 %v6170
        %v6873 = vpop.f32.mrf.mxu0
        %v6874 = vadd.f32 %v6705, %v6873
        %v6875 = vpop.f32.mrf.mxu0
        %v6876 = vadd.f32 %v6707, %v6875
        %6877 = vmatmul.bf16.gmra.mxu0 %v6173
        %v6878 = vpop.f32.mrf.mxu0
        %v6879 = vadd.f32 %v6710, %v6878
        %v6880 = vpop.f32.mrf.mxu0
        %v6881 = vadd.f32 %v6712, %v6880
        %6882 = vmatmul.bf16.gmra.mxu0 %v6176
        %v6883 = vpop.f32.mrf.mxu0
        %v6884 = vadd.f32 %v6715, %v6883
        %v6885 = vpop.f32.mrf.mxu0
        %v6886 = vadd.f32 %v6717, %v6885
        %6887 = vmatmul.bf16.gmra.mxu0 %v6179
        %v6888 = vpop.f32.mrf.mxu0
        %v6889 = vadd.f32 %v6720, %v6888
        %v6890 = vpop.f32.mrf.mxu0
        %v6891 = vadd.f32 %v6722, %v6890
        %6892 = vmatmul.bf16.gmra.mxu0 %v6182
        %v6893 = vpop.f32.mrf.mxu0
        %v6894 = vadd.f32 %v6725, %v6893
        %v6895 = vpop.f32.mrf.mxu0
        %v6896 = vadd.f32 %v6727, %v6895
        %6897 = vmatmul.bf16.gmra.mxu0 %v6185
        %v6898 = vpop.f32.mrf.mxu0
        %v6899 = vadd.f32 %v6730, %v6898
        %v6900 = vpop.f32.mrf.mxu0
        %v6901 = vadd.f32 %v6732, %v6900
        %6902 = vmatmul.bf16.gmra.mxu0 %v6188
        %v6903 = vpop.f32.mrf.mxu0
        %v6904 = vadd.f32 %v6735, %v6903
        %v6905 = vpop.f32.mrf.mxu0
        %v6906 = vadd.f32 %v6737, %v6905
        %6907 = vmatmul.bf16.gmra.mxu0 %v6191
        %v6908 = vpop.f32.mrf.mxu0
        %v6909 = vadd.f32 %v6740, %v6908
        %v6910 = vpop.f32.mrf.mxu0
        %v6911 = vadd.f32 %v6742, %v6910
        %6912 = vmatmul.bf16.gmra.mxu0 %v6194
        %v6913 = vpop.f32.mrf.mxu0
        %v6914 = vadd.f32 %v6745, %v6913
        %v6915 = vpop.f32.mrf.mxu0
        %v6916 = vadd.f32 %v6747, %v6915
        %6917 = vmatmul.bf16.gmra.mxu0 %v6197
        %v6918 = vpop.f32.mrf.mxu0
        %v6919 = vadd.f32 %v6750, %v6918
        %v6920 = vpop.f32.mrf.mxu0
        %v6921 = vadd.f32 %v6752, %v6920
        %6922 = vmatmul.bf16.gmra.mxu0 %v6200
        %v6923 = vpop.f32.mrf.mxu0
        %v6924 = vadd.f32 %v6755, %v6923
        %v6925 = vpop.f32.mrf.mxu0
        %v6926 = vadd.f32 %v6757, %v6925
        %6927 = vmatmul.bf16.gmra.mxu0 %v6203
        %v6928 = vpop.f32.mrf.mxu0
        %v6929 = vadd.f32 %v6760, %v6928
        %v6930 = vpop.f32.mrf.mxu0
        %v6931 = vadd.f32 %v6762, %v6930
        %6932 = vmatmul.bf16.gmra.mxu0 %v6206
        %v6933 = vpop.f32.mrf.mxu0
        %v6934 = vadd.f32 %v6765, %v6933
        %v6935 = vpop.f32.mrf.mxu0
        %v6936 = vadd.f32 %v6767, %v6935
        %6937 = vmatmul.bf16.gmra.mxu0 %v6209
        %v6938 = vpop.f32.mrf.mxu0
        %v6939 = vadd.f32 %v6770, %v6938
        %v6940 = vpop.f32.mrf.mxu0
        %v6941 = vadd.f32 %v6772, %v6940
        %6942 = vmatmul.bf16.gmra.mxu0 %v6212
        %v6943 = vpop.f32.mrf.mxu0
        %v6944 = vadd.f32 %v6775, %v6943
        %v6945 = vpop.f32.mrf.mxu0
        %v6946 = vadd.f32 %v6777, %v6945
        %6947 = vmatmul.bf16.gmra.mxu0 %v6215
        %v6948 = vpop.f32.mrf.mxu0
        %v6949 = vadd.f32 %v6780, %v6948
        %v6950 = vpop.f32.mrf.mxu0
        %v6951 = vadd.f32 %v6782, %v6950
        %6952 = vmatmul.bf16.gmra.mxu0 %v6218
        %v6953 = vpop.f32.mrf.mxu0
        %v6954 = vadd.f32 %v6785, %v6953
        %v6955 = vpop.f32.mrf.mxu0
        %v6956 = vadd.f32 %v6787, %v6955
        %6957 = vmatmul.bf16.gmra.mxu0 %v6221
        %v6958 = vpop.f32.mrf.mxu0
        %v6959 = vadd.f32 %v6790, %v6958
        %v6960 = vpop.f32.mrf.mxu0
        %v6961 = vadd.f32 %v6792, %v6960
        %6962 = vmatmul.bf16.gmra.mxu0 %v6224
        %v6963 = vpop.f32.mrf.mxu0
        %v6964 = vadd.f32 %v6795, %v6963
        %v6965 = vpop.f32.mrf.mxu0
        %v6966 = vadd.f32 %v6797, %v6965
        %6967 = vmatmul.bf16.gmra.mxu0 %v6227
        %v6968 = vpop.f32.mrf.mxu0
        %v6969 = vadd.f32 %v6800, %v6968
        %v6970 = vpop.f32.mrf.mxu0
        %v6971 = vadd.f32 %v6802, %v6970
        %6972 = vmatmul.bf16.gmra.mxu0 %v6230
        %v6973 = vpop.f32.mrf.mxu0
        %v6974 = vadd.f32 %v6805, %v6973
        %v6975 = vpop.f32.mrf.mxu0
        %v6976 = vadd.f32 %v6807, %v6975
        %6977 = vdwg.mxu0
        %v6978 = vunpack.c.l.b16 %v2595
        %v6979 = vunpack.c.h.b16 %v2595
        %v6980 = vunpack.c.l.b16 %v2609
        %v6981 = vunpack.c.l.b16 %v2619
        %v6982 = vunpack.c.h.b16 %v2619
        %v6983 = vunpack.c.l.b16 %v2629
        %v6984 = vunpack.c.l.b16 %v2643
        %v6985 = vunpack.c.h.b16 %v2643
        %v6986 = vunpack.c.l.b16 %v2657
        %v6987 = vunpack.c.l.b16 %v2667
        %v6988 = vunpack.c.h.b16 %v2667
        %v6989 = vunpack.c.l.b16 %v2677
        %v6990 = vunpack.c.l.b16 %v2691
        %v6991 = vunpack.c.h.b16 %v2691
        %v6992 = vunpack.c.l.b16 %v2705
        %v6993 = vunpack.c.l.b16 %v2715
        %v6994 = vunpack.c.h.b16 %v2715
        %v6995 = vunpack.c.l.b16 %v2725
        %v6996 = vunpack.c.l.b16 %v2739
        %v6997 = vunpack.c.h.b16 %v2739
        %v6998 = vunpack.c.l.b16 %v2753
        %v6999 = vunpack.c.l.b16 %v2763
        %v7000 = vunpack.c.h.b16 %v2763
        %v7001 = vunpack.c.l.b16 %v2773
        %v7002 = vunpack.c.l.b16 %v2787
        %v7003 = vunpack.c.h.b16 %v2787
        %v7004 = vunpack.c.l.b16 %v2801
        %v7005 = vunpack.c.l.b16 %v2811
        %v7006 = vunpack.c.h.b16 %v2811
        %v7007 = vunpack.c.l.b16 %v2821
        %v7008 = vunpack.c.l.b16 %v2835
        %v7009 = vunpack.c.h.b16 %v2835
        %v7010 = vunpack.c.l.b16 %v2849
        %v7011 = vunpack.c.l.b16 %v2859
        %v7012 = vunpack.c.h.b16 %v2859
        %v7013 = vunpack.c.l.b16 %v2869
        %v7014 = vunpack.c.l.b16 %v2883
        %v7015 = vunpack.c.h.b16 %v2883
        %v7016 = vunpack.c.l.b16 %v2897
        %v7017 = vunpack.c.l.b16 %v2907
        %v7018 = vunpack.c.h.b16 %v2907
        %v7019 = vunpack.c.l.b16 %v2917
        %v7020 = vunpack.c.l.b16 %v2931
        %v7021 = vunpack.c.h.b16 %v2931
        %v7022 = vunpack.c.l.b16 %v2945
        %v7023 = vunpack.c.l.b16 %v2955
        %v7024 = vunpack.c.h.b16 %v2955
        %v7025 = vunpack.c.l.b16 %v2965
        %v7026 = vunpack.c.l.b16 %v2979
        %v7027 = vunpack.c.h.b16 %v2979
        %v7028 = vunpack.c.l.b16 %v2993
        %v7029 = vunpack.c.l.b16 %v3003
        %v7030 = vunpack.c.h.b16 %v3003
        %v7031 = vunpack.c.l.b16 %v3013
        %v7032 = vunpack.c.l.b16 %v3027
        %v7033 = vunpack.c.h.b16 %v3027
        %v7034 = vunpack.c.l.b16 %v3041
        %v7035 = vunpack.c.l.b16 %v3051
        %v7036 = vunpack.c.h.b16 %v3051
        %v7037 = vunpack.c.l.b16 %v3061
        %v7038 = vunpack.c.l.b16 %v3075
        %v7039 = vunpack.c.h.b16 %v3075
        %v7040 = vunpack.c.l.b16 %v3089
        %v7041 = vunpack.c.l.b16 %v3099
        %v7042 = vunpack.c.h.b16 %v3099
        %v7043 = vunpack.c.l.b16 %v3109
        %v7044 = vunpack.c.l.b16 %v3123
        %v7045 = vunpack.c.h.b16 %v3123
        %v7046 = vunpack.c.l.b16 %v3137
        %v7047 = vunpack.c.l.b16 %v3147
        %v7048 = vunpack.c.h.b16 %v3147
        %v7049 = vunpack.c.l.b16 %v3157
        %v7050 = vunpack.c.l.b16 %v3171
        %v7051 = vunpack.c.h.b16 %v3171
        %v7052 = vunpack.c.l.b16 %v3185
        %v7053 = vunpack.c.l.b16 %v3195
        %v7054 = vunpack.c.h.b16 %v3195
        %v7055 = vunpack.c.l.b16 %v3205
        %v7056 = vunpack.c.l.b16 %v3219
        %v7057 = vunpack.c.h.b16 %v3219
        %v7058 = vunpack.c.l.b16 %v3233
        %v7059 = vunpack.c.l.b16 %v3243
        %v7060 = vunpack.c.h.b16 %v3243
        %v7061 = vunpack.c.l.b16 %v3253
        %v7062 = vunpack.c.l.b16 %v3267
        %v7063 = vunpack.c.h.b16 %v3267
        %v7064 = vunpack.c.l.b16 %v3281
        %v7065 = vunpack.c.l.b16 %v3291
        %v7066 = vunpack.c.h.b16 %v3291
        %v7067 = vunpack.c.l.b16 %v3301
        %v7068 = vunpack.c.l.b16 %v3315
        %v7069 = vunpack.c.h.b16 %v3315
        %v7070 = vunpack.c.l.b16 %v3329
        %v7071 = vunpack.c.l.b16 %v3339
        %v7072 = vunpack.c.h.b16 %v3339
        %v7073 = vunpack.c.l.b16 %v3349
        %v7074 = vunpack.c.l.b16 %v3363
        %v7075 = vunpack.c.h.b16 %v3363
        %v7076 = vunpack.c.l.b16 %v3377
        %v7077 = vunpack.c.l.b16 %v3387
        %v7078 = vunpack.c.h.b16 %v3387
        %v7079 = vunpack.c.l.b16 %v3397
        %v7080 = vunpack.c.l.b16 %v3411
        %v7081 = vunpack.c.h.b16 %v3411
        %v7082 = vunpack.c.l.b16 %v3425
        %v7083 = vunpack.c.l.b16 %v3435
        %v7084 = vunpack.c.h.b16 %v3435
        %v7085 = vunpack.c.l.b16 %v3445
        %v7086 = vunpack.c.l.b16 %v3459
        %v7087 = vunpack.c.h.b16 %v3459
        %v7088 = vunpack.c.l.b16 %v3473
        %v7089 = vunpack.c.l.b16 %v3483
        %v7090 = vunpack.c.h.b16 %v3483
        %v7091 = vunpack.c.l.b16 %v3493
        %v7092 = vunpack.c.l.b16 %v3507
        %v7093 = vunpack.c.h.b16 %v3507
        %v7094 = vunpack.c.l.b16 %v3521
        %v7095 = vunpack.c.l.b16 %v3531
        %v7096 = vunpack.c.h.b16 %v3531
        %v7097 = vunpack.c.l.b16 %v3541
        %v7098 = vunpack.c.l.b16 %v3555
        %v7099 = vunpack.c.h.b16 %v3555
        %v7100 = vunpack.c.l.b16 %v3569
        %v7101 = vunpack.c.l.b16 %v3579
        %v7102 = vunpack.c.h.b16 %v3579
        %v7103 = vunpack.c.l.b16 %v3589
        %v7104 = vunpack.c.l.b16 %v3603
        %v7105 = vunpack.c.h.b16 %v3603
        %v7106 = vunpack.c.l.b16 %v3617
        %v7107 = vunpack.c.l.b16 %v3627
        %v7108 = vunpack.c.h.b16 %v3627
        %v7109 = vunpack.c.l.b16 %v3637
        %v7110 = vunpack.c.l.b16 %v3651
        %v7111 = vunpack.c.h.b16 %v3651
        %v7112 = vunpack.c.l.b16 %v3665
        %v7113 = vunpack.c.l.b16 %v3675
        %v7114 = vunpack.c.h.b16 %v3675
        %v7115 = vunpack.c.l.b16 %v3685
        %v7116 = vunpack.c.l.b16 %v3699
        %v7117 = vunpack.c.h.b16 %v3699
        %v7118 = vunpack.c.l.b16 %v3713
        %v7119 = vunpack.c.l.b16 %v3723
        %v7120 = vunpack.c.h.b16 %v3723
        %v7121 = vunpack.c.l.b16 %v3733
        %v7122 = vunpack.c.l.b16 %v3747
        %v7123 = vunpack.c.h.b16 %v3747
        %v7124 = vunpack.c.l.b16 %v3761
        %v7125 = vunpack.c.l.b16 %v3771
        %v7126 = vunpack.c.h.b16 %v3771
        %v7127 = vunpack.c.l.b16 %v3781
        %v7128 = vunpack.c.l.b16 %v3795
        %v7129 = vunpack.c.h.b16 %v3795
        %v7130 = vunpack.c.l.b16 %v3809
        %v7131 = vunpack.c.l.b16 %v3819
        %v7132 = vunpack.c.h.b16 %v3819
        %v7133 = vunpack.c.l.b16 %v3829
        %v7134 = vunpack.c.l.b16 %v3843
        %v7135 = vunpack.c.h.b16 %v3843
        %v7136 = vunpack.c.l.b16 %v3857
        %v7137 = vunpack.c.l.b16 %v3867
        %v7138 = vunpack.c.h.b16 %v3867
        %v7139 = vunpack.c.l.b16 %v3877
        %v7140 = vunpack.c.l.b16 %v3891
        %v7141 = vunpack.c.h.b16 %v3891
        %v7142 = vunpack.c.l.b16 %v3905
        %v7143 = vunpack.c.l.b16 %v3915
        %v7144 = vunpack.c.h.b16 %v3915
        %v7145 = vunpack.c.l.b16 %v3925
        %v7146 = vunpack.c.l.b16 %v3939
        %v7147 = vunpack.c.h.b16 %v3939
        %v7148 = vunpack.c.l.b16 %v3953
        %v7149 = vunpack.c.l.b16 %v3963
        %v7150 = vunpack.c.h.b16 %v3963
        %v7151 = vunpack.c.l.b16 %v3973
        %v7152 = vunpack.c.l.b16 %v3987
        %v7153 = vunpack.c.h.b16 %v3987
        %v7154 = vunpack.c.l.b16 %v4001
        %v7155 = vunpack.c.l.b16 %v4011
        %v7156 = vunpack.c.h.b16 %v4011
        %v7157 = vunpack.c.l.b16 %v4021
        %v7158 = vunpack.c.l.b16 %v4035
        %v7159 = vunpack.c.h.b16 %v4035
        %v7160 = vunpack.c.l.b16 %v4049
        %v7161 = vunpack.c.l.b16 %v4059
        %v7162 = vunpack.c.h.b16 %v4059
        %v7163 = vunpack.c.l.b16 %v4069
        %v7164 = vunpack.c.l.b16 %v4083
        %v7165 = vunpack.c.h.b16 %v4083
        %v7166 = vunpack.c.l.b16 %v4097
        %v7167 = vunpack.c.l.b16 %v4107
        %v7168 = vunpack.c.h.b16 %v4107
        %v7169 = vunpack.c.l.b16 %v4117
        %v7170 = vpack.c.b16 %v6981, %v6978
        %v7171 = vpack.c.b16 %v6982, %v6979
        %v7172 = vpack.c.b16 %v6983, %v6980
        %v7173 = vpack.c.b16 %v6987, %v6984
        %v7174 = vpack.c.b16 %v6988, %v6985
        %v7175 = vpack.c.b16 %v6989, %v6986
        %v7176 = vpack.c.b16 %v6993, %v6990
        %v7177 = vpack.c.b16 %v6994, %v6991
        %v7178 = vpack.c.b16 %v6995, %v6992
        %v7179 = vpack.c.b16 %v6999, %v6996
        %v7180 = vpack.c.b16 %v7000, %v6997
        %v7181 = vpack.c.b16 %v7001, %v6998
        %v7182 = vpack.c.b16 %v7005, %v7002
        %v7183 = vpack.c.b16 %v7006, %v7003
        %v7184 = vpack.c.b16 %v7007, %v7004
        %v7185 = vpack.c.b16 %v7011, %v7008
        %v7186 = vpack.c.b16 %v7012, %v7009
        %v7187 = vpack.c.b16 %v7013, %v7010
        %v7188 = vpack.c.b16 %v7017, %v7014
        %v7189 = vpack.c.b16 %v7018, %v7015
        %v7190 = vpack.c.b16 %v7019, %v7016
        %v7191 = vpack.c.b16 %v7023, %v7020
        %v7192 = vpack.c.b16 %v7024, %v7021
        %v7193 = vpack.c.b16 %v7025, %v7022
        %v7194 = vpack.c.b16 %v7029, %v7026
        %v7195 = vpack.c.b16 %v7030, %v7027
        %v7196 = vpack.c.b16 %v7031, %v7028
        %v7197 = vpack.c.b16 %v7035, %v7032
        %v7198 = vpack.c.b16 %v7036, %v7033
        %v7199 = vpack.c.b16 %v7037, %v7034
        %v7200 = vpack.c.b16 %v7041, %v7038
        %v7201 = vpack.c.b16 %v7042, %v7039
        %v7202 = vpack.c.b16 %v7043, %v7040
        %v7203 = vpack.c.b16 %v7047, %v7044
        %v7204 = vpack.c.b16 %v7048, %v7045
        %v7205 = vpack.c.b16 %v7049, %v7046
        %v7206 = vpack.c.b16 %v7053, %v7050
        %v7207 = vpack.c.b16 %v7054, %v7051
        %v7208 = vpack.c.b16 %v7055, %v7052
        %v7209 = vpack.c.b16 %v7059, %v7056
        %v7210 = vpack.c.b16 %v7060, %v7057
        %v7211 = vpack.c.b16 %v7061, %v7058
        %v7212 = vpack.c.b16 %v7065, %v7062
        %v7213 = vpack.c.b16 %v7066, %v7063
        %v7214 = vpack.c.b16 %v7067, %v7064
        %v7215 = vpack.c.b16 %v7071, %v7068
        %v7216 = vpack.c.b16 %v7072, %v7069
        %v7217 = vpack.c.b16 %v7073, %v7070
        %v7218 = vpack.c.b16 %v7077, %v7074
        %v7219 = vpack.c.b16 %v7078, %v7075
        %v7220 = vpack.c.b16 %v7079, %v7076
        %v7221 = vpack.c.b16 %v7083, %v7080
        %v7222 = vpack.c.b16 %v7084, %v7081
        %v7223 = vpack.c.b16 %v7085, %v7082
        %v7224 = vpack.c.b16 %v7089, %v7086
        %v7225 = vpack.c.b16 %v7090, %v7087
        %v7226 = vpack.c.b16 %v7091, %v7088
        %v7227 = vpack.c.b16 %v7095, %v7092
        %v7228 = vpack.c.b16 %v7096, %v7093
        %v7229 = vpack.c.b16 %v7097, %v7094
        %v7230 = vpack.c.b16 %v7101, %v7098
        %v7231 = vpack.c.b16 %v7102, %v7099
        %v7232 = vpack.c.b16 %v7103, %v7100
        %v7233 = vpack.c.b16 %v7107, %v7104
        %v7234 = vpack.c.b16 %v7108, %v7105
        %v7235 = vpack.c.b16 %v7109, %v7106
        %v7236 = vpack.c.b16 %v7113, %v7110
        %v7237 = vpack.c.b16 %v7114, %v7111
        %v7238 = vpack.c.b16 %v7115, %v7112
        %v7239 = vpack.c.b16 %v7119, %v7116
        %v7240 = vpack.c.b16 %v7120, %v7117
        %v7241 = vpack.c.b16 %v7121, %v7118
        %v7242 = vpack.c.b16 %v7125, %v7122
        %v7243 = vpack.c.b16 %v7126, %v7123
        %v7244 = vpack.c.b16 %v7127, %v7124
        %v7245 = vpack.c.b16 %v7131, %v7128
        %v7246 = vpack.c.b16 %v7132, %v7129
        %v7247 = vpack.c.b16 %v7133, %v7130
        %v7248 = vpack.c.b16 %v7137, %v7134
        %v7249 = vpack.c.b16 %v7138, %v7135
        %v7250 = vpack.c.b16 %v7139, %v7136
        %v7251 = vpack.c.b16 %v7143, %v7140
        %v7252 = vpack.c.b16 %v7144, %v7141
        %v7253 = vpack.c.b16 %v7145, %v7142
        %v7254 = vpack.c.b16 %v7149, %v7146
        %v7255 = vpack.c.b16 %v7150, %v7147
        %v7256 = vpack.c.b16 %v7151, %v7148
        %v7257 = vpack.c.b16 %v7155, %v7152
        %v7258 = vpack.c.b16 %v7156, %v7153
        %v7259 = vpack.c.b16 %v7157, %v7154
        %v7260 = vpack.c.b16 %v7161, %v7158
        %v7261 = vpack.c.b16 %v7162, %v7159
        %v7262 = vpack.c.b16 %v7163, %v7160
        %v7263 = vpack.c.b16 %v7167, %v7164
        %v7264 = vpack.c.b16 %v7168, %v7165
        %v7265 = vpack.c.b16 %v7169, %v7166
        %v7410 = vunpack.c.l.b16 %v4118
        %v7411 = vunpack.c.l.b16 %v4119
        %v7412 = vunpack.c.l.b16 %v4120
        %v7413 = vunpack.c.l.b16 %v4121
        %v7414 = vunpack.c.l.b16 %v4122
        %v7415 = vunpack.c.l.b16 %v4123
        %v7416 = vunpack.c.l.b16 %v4124
        %v7417 = vunpack.c.l.b16 %v4125
        %v7418 = vunpack.c.l.b16 %v4126
        %v7419 = vunpack.c.l.b16 %v4127
        %v7420 = vunpack.c.l.b16 %v4128
        %v7421 = vunpack.c.l.b16 %v4129
        %v7422 = vunpack.c.l.b16 %v4130
        %v7423 = vunpack.c.l.b16 %v4131
        %v7424 = vunpack.c.l.b16 %v4132
        %v7425 = vunpack.c.l.b16 %v4133
        %v7426 = vunpack.c.l.b16 %v4134
        %v7427 = vunpack.c.l.b16 %v4135
        %v7428 = vunpack.c.l.b16 %v4136
        %v7429 = vunpack.c.l.b16 %v4137
        %v7430 = vunpack.c.l.b16 %v4138
        %v7431 = vunpack.c.l.b16 %v4139
        %v7432 = vunpack.c.l.b16 %v4140
        %v7433 = vunpack.c.l.b16 %v4141
        %v7434 = vunpack.c.l.b16 %v4142
        %v7435 = vunpack.c.l.b16 %v4143
        %v7436 = vunpack.c.l.b16 %v4144
        %v7437 = vunpack.c.l.b16 %v4145
        %v7438 = vunpack.c.l.b16 %v4146
        %v7439 = vunpack.c.l.b16 %v4147
        %v7440 = vunpack.c.l.b16 %v4148
        %v7441 = vunpack.c.l.b16 %v4149
        %v7442 = vunpack.c.l.b16 %v4150
        %v7443 = vunpack.c.l.b16 %v4151
        %v7444 = vunpack.c.l.b16 %v4152
        %v7445 = vunpack.c.l.b16 %v4153
        %v7446 = vunpack.c.l.b16 %v4154
        %v7447 = vunpack.c.l.b16 %v4155
        %v7448 = vunpack.c.l.b16 %v4156
        %v7449 = vunpack.c.l.b16 %v4157
        %v7450 = vunpack.c.l.b16 %v4158
        %v7451 = vunpack.c.l.b16 %v4159
        %v7452 = vunpack.c.l.b16 %v4160
        %v7453 = vunpack.c.l.b16 %v4161
        %v7454 = vunpack.c.l.b16 %v4162
        %v7455 = vunpack.c.l.b16 %v4163
        %v7456 = vunpack.c.l.b16 %v4164
        %v7457 = vunpack.c.l.b16 %v4165
        %v7458 = vpack.c.b16 %v7411, %v7410
        %v7459 = vpack.c.b16 %v7413, %v7412
        %v7460 = vpack.c.b16 %v7415, %v7414
        %v7461 = vpack.c.b16 %v7417, %v7416
        %v7462 = vpack.c.b16 %v7419, %v7418
        %v7463 = vpack.c.b16 %v7421, %v7420
        %v7464 = vpack.c.b16 %v7423, %v7422
        %v7465 = vpack.c.b16 %v7425, %v7424
        %v7466 = vpack.c.b16 %v7427, %v7426
        %v7467 = vpack.c.b16 %v7429, %v7428
        %v7468 = vpack.c.b16 %v7431, %v7430
        %v7469 = vpack.c.b16 %v7433, %v7432
        %v7470 = vpack.c.b16 %v7435, %v7434
        %v7471 = vpack.c.b16 %v7437, %v7436
        %v7472 = vpack.c.b16 %v7439, %v7438
        %v7473 = vpack.c.b16 %v7441, %v7440
        %v7474 = vpack.c.b16 %v7443, %v7442
        %v7475 = vpack.c.b16 %v7445, %v7444
        %v7476 = vpack.c.b16 %v7447, %v7446
        %v7477 = vpack.c.b16 %v7449, %v7448
        %v7478 = vpack.c.b16 %v7451, %v7450
        %v7479 = vpack.c.b16 %v7453, %v7452
        %v7480 = vpack.c.b16 %v7455, %v7454
        %v7481 = vpack.c.b16 %v7457, %v7456
        %7506 = vmatpush.bf16.msra.mxu0 %v7465
        %7507 = vmatpush.bf16.msra.mxu0 %v7464
        %7508 = vmatpush.bf16.msra.mxu0 %v7463
        %7509 = vmatpush.bf16.msra.mxu0 %v7462
        %7510 = vmatpush.bf16.msra.mxu0 %v7461
        %7511 = vmatpush.bf16.msra.mxu0 %v7460
        %7512 = vmatpush.bf16.msra.mxu0 %v7459
        %7513 = vmatpush.bf16.msra.mxu0 %v7458
        %7514 = vmatmul.bf16.gmra.mxu0 %v7170
        %v7515 = vpop.f32.mrf.mxu0
        %v7516 = vadd.f32 %v6819, %v7515
        %v7517 = vpop.f32.mrf.mxu0
        %v7518 = vadd.f32 %v6821, %v7517
        %7519 = vmatmul.bf16.gmra.mxu0 %v7173
        %v7520 = vpop.f32.mrf.mxu0
        %v7521 = vadd.f32 %v6824, %v7520
        %v7522 = vpop.f32.mrf.mxu0
        %v7523 = vadd.f32 %v6826, %v7522
        %7524 = vmatmul.bf16.gmra.mxu0 %v7176
        %v7525 = vpop.f32.mrf.mxu0
        %v7526 = vadd.f32 %v6829, %v7525
        %v7527 = vpop.f32.mrf.mxu0
        %v7528 = vadd.f32 %v6831, %v7527
        %7529 = vmatmul.bf16.gmra.mxu0 %v7179
        %v7530 = vpop.f32.mrf.mxu0
        %v7531 = vadd.f32 %v6834, %v7530
        %v7532 = vpop.f32.mrf.mxu0
        %v7533 = vadd.f32 %v6836, %v7532
        %7534 = vmatmul.bf16.gmra.mxu0 %v7182
        %v7535 = vpop.f32.mrf.mxu0
        %v7536 = vadd.f32 %v6839, %v7535
        %v7537 = vpop.f32.mrf.mxu0
        %v7538 = vadd.f32 %v6841, %v7537
        %7539 = vmatmul.bf16.gmra.mxu0 %v7185
        %v7540 = vpop.f32.mrf.mxu0
        %v7541 = vadd.f32 %v6844, %v7540
        %v7542 = vpop.f32.mrf.mxu0
        %v7543 = vadd.f32 %v6846, %v7542
        %7544 = vmatmul.bf16.gmra.mxu0 %v7188
        %v7545 = vpop.f32.mrf.mxu0
        %v7546 = vadd.f32 %v6849, %v7545
        %v7547 = vpop.f32.mrf.mxu0
        %v7548 = vadd.f32 %v6851, %v7547
        %7549 = vmatmul.bf16.gmra.mxu0 %v7191
        %v7550 = vpop.f32.mrf.mxu0
        %v7551 = vadd.f32 %v6854, %v7550
        %v7552 = vpop.f32.mrf.mxu0
        %v7553 = vadd.f32 %v6856, %v7552
        %7554 = vmatmul.bf16.gmra.mxu0 %v7194
        %v7555 = vpop.f32.mrf.mxu0
        %v7556 = vadd.f32 %v6859, %v7555
        %v7557 = vpop.f32.mrf.mxu0
        %v7558 = vadd.f32 %v6861, %v7557
        %7559 = vmatmul.bf16.gmra.mxu0 %v7197
        %v7560 = vpop.f32.mrf.mxu0
        %v7561 = vadd.f32 %v6864, %v7560
        %v7562 = vpop.f32.mrf.mxu0
        %v7563 = vadd.f32 %v6866, %v7562
        %7564 = vmatmul.bf16.gmra.mxu0 %v7200
        %v7565 = vpop.f32.mrf.mxu0
        %v7566 = vadd.f32 %v6869, %v7565
        %v7567 = vpop.f32.mrf.mxu0
        %v7568 = vadd.f32 %v6871, %v7567
        %7569 = vmatmul.bf16.gmra.mxu0 %v7203
        %v7570 = vpop.f32.mrf.mxu0
        %v7571 = vadd.f32 %v6874, %v7570
        %v7572 = vpop.f32.mrf.mxu0
        %v7573 = vadd.f32 %v6876, %v7572
        %7574 = vmatmul.bf16.gmra.mxu0 %v7206
        %v7575 = vpop.f32.mrf.mxu0
        %v7576 = vadd.f32 %v6879, %v7575
        %v7577 = vpop.f32.mrf.mxu0
        %v7578 = vadd.f32 %v6881, %v7577
        %7579 = vmatmul.bf16.gmra.mxu0 %v7209
        %v7580 = vpop.f32.mrf.mxu0
        %v7581 = vadd.f32 %v6884, %v7580
        %v7582 = vpop.f32.mrf.mxu0
        %v7583 = vadd.f32 %v6886, %v7582
        %7584 = vmatmul.bf16.gmra.mxu0 %v7212
        %v7585 = vpop.f32.mrf.mxu0
        %v7586 = vadd.f32 %v6889, %v7585
        %v7587 = vpop.f32.mrf.mxu0
        %v7588 = vadd.f32 %v6891, %v7587
        %7589 = vmatmul.bf16.gmra.mxu0 %v7215
        %v7590 = vpop.f32.mrf.mxu0
        %v7591 = vadd.f32 %v6894, %v7590
        %v7592 = vpop.f32.mrf.mxu0
        %v7593 = vadd.f32 %v6896, %v7592
        %7594 = vmatmul.bf16.gmra.mxu0 %v7218
        %v7595 = vpop.f32.mrf.mxu0
        %v7596 = vadd.f32 %v6899, %v7595
        %v7597 = vpop.f32.mrf.mxu0
        %v7598 = vadd.f32 %v6901, %v7597
        %7599 = vmatmul.bf16.gmra.mxu0 %v7221
        %v7600 = vpop.f32.mrf.mxu0
        %v7601 = vadd.f32 %v6904, %v7600
        %v7602 = vpop.f32.mrf.mxu0
        %v7603 = vadd.f32 %v6906, %v7602
        %7604 = vmatmul.bf16.gmra.mxu0 %v7224
        %v7605 = vpop.f32.mrf.mxu0
        %v7606 = vadd.f32 %v6909, %v7605
        %v7607 = vpop.f32.mrf.mxu0
        %v7608 = vadd.f32 %v6911, %v7607
        %7609 = vmatmul.bf16.gmra.mxu0 %v7227
        %v7610 = vpop.f32.mrf.mxu0
        %v7611 = vadd.f32 %v6914, %v7610
        %v7612 = vpop.f32.mrf.mxu0
        %v7613 = vadd.f32 %v6916, %v7612
        %7614 = vmatmul.bf16.gmra.mxu0 %v7230
        %v7615 = vpop.f32.mrf.mxu0
        %v7616 = vadd.f32 %v6919, %v7615
        %v7617 = vpop.f32.mrf.mxu0
        %v7618 = vadd.f32 %v6921, %v7617
        %7619 = vmatmul.bf16.gmra.mxu0 %v7233
        %v7620 = vpop.f32.mrf.mxu0
        %v7621 = vadd.f32 %v6924, %v7620
        %v7622 = vpop.f32.mrf.mxu0
        %v7623 = vadd.f32 %v6926, %v7622
        %7624 = vmatmul.bf16.gmra.mxu0 %v7236
        %v7625 = vpop.f32.mrf.mxu0
        %v7626 = vadd.f32 %v6929, %v7625
        %v7627 = vpop.f32.mrf.mxu0
        %v7628 = vadd.f32 %v6931, %v7627
        %7629 = vmatmul.bf16.gmra.mxu0 %v7239
        %v7630 = vpop.f32.mrf.mxu0
        %v7631 = vadd.f32 %v6934, %v7630
        %v7632 = vpop.f32.mrf.mxu0
        %v7633 = vadd.f32 %v6936, %v7632
        %7634 = vmatmul.bf16.gmra.mxu0 %v7242
        %v7635 = vpop.f32.mrf.mxu0
        %v7636 = vadd.f32 %v6939, %v7635
        %v7637 = vpop.f32.mrf.mxu0
        %v7638 = vadd.f32 %v6941, %v7637
        %7639 = vmatmul.bf16.gmra.mxu0 %v7245
        %v7640 = vpop.f32.mrf.mxu0
        %v7641 = vadd.f32 %v6944, %v7640
        %v7642 = vpop.f32.mrf.mxu0
        %v7643 = vadd.f32 %v6946, %v7642
        %7644 = vmatmul.bf16.gmra.mxu0 %v7248
        %v7645 = vpop.f32.mrf.mxu0
        %v7646 = vadd.f32 %v6949, %v7645
        %v7647 = vpop.f32.mrf.mxu0
        %v7648 = vadd.f32 %v6951, %v7647
        %7649 = vmatmul.bf16.gmra.mxu0 %v7251
        %v7650 = vpop.f32.mrf.mxu0
        %v7651 = vadd.f32 %v6954, %v7650
        %v7652 = vpop.f32.mrf.mxu0
        %v7653 = vadd.f32 %v6956, %v7652
        %7654 = vmatmul.bf16.gmra.mxu0 %v7254
        %v7655 = vpop.f32.mrf.mxu0
        %v7656 = vadd.f32 %v6959, %v7655
        %v7657 = vpop.f32.mrf.mxu0
        %v7658 = vadd.f32 %v6961, %v7657
        %7659 = vmatmul.bf16.gmra.mxu0 %v7257
        %v7660 = vpop.f32.mrf.mxu0
        %v7661 = vadd.f32 %v6964, %v7660
        %v7662 = vpop.f32.mrf.mxu0
        %v7663 = vadd.f32 %v6966, %v7662
        %7664 = vmatmul.bf16.gmra.mxu0 %v7260
        %v7665 = vpop.f32.mrf.mxu0
        %v7666 = vadd.f32 %v6969, %v7665
        %v7667 = vpop.f32.mrf.mxu0
        %v7668 = vadd.f32 %v6971, %v7667
        %7669 = vmatmul.bf16.gmra.mxu0 %v7263
        %v7670 = vpop.f32.mrf.mxu0
        %v7671 = vadd.f32 %v6974, %v7670
        %v7672 = vpop.f32.mrf.mxu0
        %v7673 = vadd.f32 %v6976, %v7672
        %7674 = vdwg.mxu0
        %7675 = vmatpush.bf16.msra.mxu0 %v7473
        %7676 = vmatpush.bf16.msra.mxu0 %v7472
        %7677 = vmatpush.bf16.msra.mxu0 %v7471
        %7678 = vmatpush.bf16.msra.mxu0 %v7470
        %7679 = vmatpush.bf16.msra.mxu0 %v7469
        %7680 = vmatpush.bf16.msra.mxu0 %v7468
        %7681 = vmatpush.bf16.msra.mxu0 %v7467
        %7682 = vmatpush.bf16.msra.mxu0 %v7466
        %7683 = vmatmul.bf16.gmra.mxu0 %v7171
        %v7684 = vpop.f32.mrf.mxu0
        %v7685 = vadd.f32 %v7516, %v7684
        %v7686 = vpop.f32.mrf.mxu0
        %v7687 = vadd.f32 %v7518, %v7686
        %7688 = vmatmul.bf16.gmra.mxu0 %v7174
        %v7689 = vpop.f32.mrf.mxu0
        %v7690 = vadd.f32 %v7521, %v7689
        %v7691 = vpop.f32.mrf.mxu0
        %v7692 = vadd.f32 %v7523, %v7691
        %7693 = vmatmul.bf16.gmra.mxu0 %v7177
        %v7694 = vpop.f32.mrf.mxu0
        %v7695 = vadd.f32 %v7526, %v7694
        %v7696 = vpop.f32.mrf.mxu0
        %v7697 = vadd.f32 %v7528, %v7696
        %7698 = vmatmul.bf16.gmra.mxu0 %v7180
        %v7699 = vpop.f32.mrf.mxu0
        %v7700 = vadd.f32 %v7531, %v7699
        %v7701 = vpop.f32.mrf.mxu0
        %v7702 = vadd.f32 %v7533, %v7701
        %7703 = vmatmul.bf16.gmra.mxu0 %v7183
        %v7704 = vpop.f32.mrf.mxu0
        %v7705 = vadd.f32 %v7536, %v7704
        %v7706 = vpop.f32.mrf.mxu0
        %v7707 = vadd.f32 %v7538, %v7706
        %7708 = vmatmul.bf16.gmra.mxu0 %v7186
        %v7709 = vpop.f32.mrf.mxu0
        %v7710 = vadd.f32 %v7541, %v7709
        %v7711 = vpop.f32.mrf.mxu0
        %v7712 = vadd.f32 %v7543, %v7711
        %7713 = vmatmul.bf16.gmra.mxu0 %v7189
        %v7714 = vpop.f32.mrf.mxu0
        %v7715 = vadd.f32 %v7546, %v7714
        %v7716 = vpop.f32.mrf.mxu0
        %v7717 = vadd.f32 %v7548, %v7716
        %7718 = vmatmul.bf16.gmra.mxu0 %v7192
        %v7719 = vpop.f32.mrf.mxu0
        %v7720 = vadd.f32 %v7551, %v7719
        %v7721 = vpop.f32.mrf.mxu0
        %v7722 = vadd.f32 %v7553, %v7721
        %7723 = vmatmul.bf16.gmra.mxu0 %v7195
        %v7724 = vpop.f32.mrf.mxu0
        %v7725 = vadd.f32 %v7556, %v7724
        %v7726 = vpop.f32.mrf.mxu0
        %v7727 = vadd.f32 %v7558, %v7726
        %7728 = vmatmul.bf16.gmra.mxu0 %v7198
        %v7729 = vpop.f32.mrf.mxu0
        %v7730 = vadd.f32 %v7561, %v7729
        %v7731 = vpop.f32.mrf.mxu0
        %v7732 = vadd.f32 %v7563, %v7731
        %7733 = vmatmul.bf16.gmra.mxu0 %v7201
        %v7734 = vpop.f32.mrf.mxu0
        %v7735 = vadd.f32 %v7566, %v7734
        %v7736 = vpop.f32.mrf.mxu0
        %v7737 = vadd.f32 %v7568, %v7736
        %7738 = vmatmul.bf16.gmra.mxu0 %v7204
        %v7739 = vpop.f32.mrf.mxu0
        %v7740 = vadd.f32 %v7571, %v7739
        %v7741 = vpop.f32.mrf.mxu0
        %v7742 = vadd.f32 %v7573, %v7741
        %7743 = vmatmul.bf16.gmra.mxu0 %v7207
        %v7744 = vpop.f32.mrf.mxu0
        %v7745 = vadd.f32 %v7576, %v7744
        %v7746 = vpop.f32.mrf.mxu0
        %v7747 = vadd.f32 %v7578, %v7746
        %7748 = vmatmul.bf16.gmra.mxu0 %v7210
        %v7749 = vpop.f32.mrf.mxu0
        %v7750 = vadd.f32 %v7581, %v7749
        %v7751 = vpop.f32.mrf.mxu0
        %v7752 = vadd.f32 %v7583, %v7751
        %7753 = vmatmul.bf16.gmra.mxu0 %v7213
        %v7754 = vpop.f32.mrf.mxu0
        %v7755 = vadd.f32 %v7586, %v7754
        %v7756 = vpop.f32.mrf.mxu0
        %v7757 = vadd.f32 %v7588, %v7756
        %7758 = vmatmul.bf16.gmra.mxu0 %v7216
        %v7759 = vpop.f32.mrf.mxu0
        %v7760 = vadd.f32 %v7591, %v7759
        %v7761 = vpop.f32.mrf.mxu0
        %v7762 = vadd.f32 %v7593, %v7761
        %7763 = vmatmul.bf16.gmra.mxu0 %v7219
        %v7764 = vpop.f32.mrf.mxu0
        %v7765 = vadd.f32 %v7596, %v7764
        %v7766 = vpop.f32.mrf.mxu0
        %v7767 = vadd.f32 %v7598, %v7766
        %7768 = vmatmul.bf16.gmra.mxu0 %v7222
        %v7769 = vpop.f32.mrf.mxu0
        %v7770 = vadd.f32 %v7601, %v7769
        %v7771 = vpop.f32.mrf.mxu0
        %v7772 = vadd.f32 %v7603, %v7771
        %7773 = vmatmul.bf16.gmra.mxu0 %v7225
        %v7774 = vpop.f32.mrf.mxu0
        %v7775 = vadd.f32 %v7606, %v7774
        %v7776 = vpop.f32.mrf.mxu0
        %v7777 = vadd.f32 %v7608, %v7776
        %7778 = vmatmul.bf16.gmra.mxu0 %v7228
        %v7779 = vpop.f32.mrf.mxu0
        %v7780 = vadd.f32 %v7611, %v7779
        %v7781 = vpop.f32.mrf.mxu0
        %v7782 = vadd.f32 %v7613, %v7781
        %7783 = vmatmul.bf16.gmra.mxu0 %v7231
        %v7784 = vpop.f32.mrf.mxu0
        %v7785 = vadd.f32 %v7616, %v7784
        %v7786 = vpop.f32.mrf.mxu0
        %v7787 = vadd.f32 %v7618, %v7786
        %7788 = vmatmul.bf16.gmra.mxu0 %v7234
        %v7789 = vpop.f32.mrf.mxu0
        %v7790 = vadd.f32 %v7621, %v7789
        %v7791 = vpop.f32.mrf.mxu0
        %v7792 = vadd.f32 %v7623, %v7791
        %7793 = vmatmul.bf16.gmra.mxu0 %v7237
        %v7794 = vpop.f32.mrf.mxu0
        %v7795 = vadd.f32 %v7626, %v7794
        %v7796 = vpop.f32.mrf.mxu0
        %v7797 = vadd.f32 %v7628, %v7796
        %7798 = vmatmul.bf16.gmra.mxu0 %v7240
        %v7799 = vpop.f32.mrf.mxu0
        %v7800 = vadd.f32 %v7631, %v7799
        %v7801 = vpop.f32.mrf.mxu0
        %v7802 = vadd.f32 %v7633, %v7801
        %7803 = vmatmul.bf16.gmra.mxu0 %v7243
        %v7804 = vpop.f32.mrf.mxu0
        %v7805 = vadd.f32 %v7636, %v7804
        %v7806 = vpop.f32.mrf.mxu0
        %v7807 = vadd.f32 %v7638, %v7806
        %7808 = vmatmul.bf16.gmra.mxu0 %v7246
        %v7809 = vpop.f32.mrf.mxu0
        %v7810 = vadd.f32 %v7641, %v7809
        %v7811 = vpop.f32.mrf.mxu0
        %v7812 = vadd.f32 %v7643, %v7811
        %7813 = vmatmul.bf16.gmra.mxu0 %v7249
        %v7814 = vpop.f32.mrf.mxu0
        %v7815 = vadd.f32 %v7646, %v7814
        %v7816 = vpop.f32.mrf.mxu0
        %v7817 = vadd.f32 %v7648, %v7816
        %7818 = vmatmul.bf16.gmra.mxu0 %v7252
        %v7819 = vpop.f32.mrf.mxu0
        %v7820 = vadd.f32 %v7651, %v7819
        %v7821 = vpop.f32.mrf.mxu0
        %v7822 = vadd.f32 %v7653, %v7821
        %7823 = vmatmul.bf16.gmra.mxu0 %v7255
        %v7824 = vpop.f32.mrf.mxu0
        %v7825 = vadd.f32 %v7656, %v7824
        %v7826 = vpop.f32.mrf.mxu0
        %v7827 = vadd.f32 %v7658, %v7826
        %7828 = vmatmul.bf16.gmra.mxu0 %v7258
        %v7829 = vpop.f32.mrf.mxu0
        %v7830 = vadd.f32 %v7661, %v7829
        %v7831 = vpop.f32.mrf.mxu0
        %v7832 = vadd.f32 %v7663, %v7831
        %7833 = vmatmul.bf16.gmra.mxu0 %v7261
        %v7834 = vpop.f32.mrf.mxu0
        %v7835 = vadd.f32 %v7666, %v7834
        %v7836 = vpop.f32.mrf.mxu0
        %v7837 = vadd.f32 %v7668, %v7836
        %7838 = vmatmul.bf16.gmra.mxu0 %v7264
        %v7839 = vpop.f32.mrf.mxu0
        %v7840 = vadd.f32 %v7671, %v7839
        %v7841 = vpop.f32.mrf.mxu0
        %v7842 = vadd.f32 %v7673, %v7841
        %7843 = vdwg.mxu0
        %7844 = vmatpush.bf16.msra.mxu0 %v7481
        %7845 = vmatpush.bf16.msra.mxu0 %v7480
        %7846 = vmatpush.bf16.msra.mxu0 %v7479
        %7847 = vmatpush.bf16.msra.mxu0 %v7478
        %7848 = vmatpush.bf16.msra.mxu0 %v7477
        %7849 = vmatpush.bf16.msra.mxu0 %v7476
        %7850 = vmatpush.bf16.msra.mxu0 %v7475
        %7851 = vmatpush.bf16.msra.mxu0 %v7474
        %7852 = vmatmul.bf16.gmra.mxu0 %v7172
        %v7853 = vpop.f32.mrf.mxu0
        %v7854 = vadd.f32 %v7685, %v7853
        %v7855 = vpop.f32.mrf.mxu0
        %v7856 = vadd.f32 %v7687, %v7855
        %7857 = vmatmul.bf16.gmra.mxu0 %v7175
        %v7858 = vpop.f32.mrf.mxu0
        %v7859 = vadd.f32 %v7690, %v7858
        %v7860 = vpop.f32.mrf.mxu0
        %v7861 = vadd.f32 %v7692, %v7860
        %7862 = vmatmul.bf16.gmra.mxu0 %v7178
        %v7863 = vpop.f32.mrf.mxu0
        %v7864 = vadd.f32 %v7695, %v7863
        %v7865 = vpop.f32.mrf.mxu0
        %v7866 = vadd.f32 %v7697, %v7865
        %7867 = vmatmul.bf16.gmra.mxu0 %v7181
        %v7868 = vpop.f32.mrf.mxu0
        %v7869 = vadd.f32 %v7700, %v7868
        %v7870 = vpop.f32.mrf.mxu0
        %v7871 = vadd.f32 %v7702, %v7870
        %7872 = vmatmul.bf16.gmra.mxu0 %v7184
        %v7873 = vpop.f32.mrf.mxu0
        %v7874 = vadd.f32 %v7705, %v7873
        %v7875 = vpop.f32.mrf.mxu0
        %v7876 = vadd.f32 %v7707, %v7875
        %7877 = vmatmul.bf16.gmra.mxu0 %v7187
        %v7878 = vpop.f32.mrf.mxu0
        %v7879 = vadd.f32 %v7710, %v7878
        %v7880 = vpop.f32.mrf.mxu0
        %v7881 = vadd.f32 %v7712, %v7880
        %7882 = vmatmul.bf16.gmra.mxu0 %v7190
        %v7883 = vpop.f32.mrf.mxu0
        %v7884 = vadd.f32 %v7715, %v7883
        %v7885 = vpop.f32.mrf.mxu0
        %v7886 = vadd.f32 %v7717, %v7885
        %7887 = vmatmul.bf16.gmra.mxu0 %v7193
        %v7888 = vpop.f32.mrf.mxu0
        %v7889 = vadd.f32 %v7720, %v7888
        %v7890 = vpop.f32.mrf.mxu0
        %v7891 = vadd.f32 %v7722, %v7890
        %7892 = vmatmul.bf16.gmra.mxu0 %v7196
        %v7893 = vpop.f32.mrf.mxu0
        %v7894 = vadd.f32 %v7725, %v7893
        %v7895 = vpop.f32.mrf.mxu0
        %v7896 = vadd.f32 %v7727, %v7895
        %7897 = vmatmul.bf16.gmra.mxu0 %v7199
        %v7898 = vpop.f32.mrf.mxu0
        %v7899 = vadd.f32 %v7730, %v7898
        %v7900 = vpop.f32.mrf.mxu0
        %v7901 = vadd.f32 %v7732, %v7900
        %7902 = vmatmul.bf16.gmra.mxu0 %v7202
        %v7903 = vpop.f32.mrf.mxu0
        %v7904 = vadd.f32 %v7735, %v7903
        %v7905 = vpop.f32.mrf.mxu0
        %v7906 = vadd.f32 %v7737, %v7905
        %7907 = vmatmul.bf16.gmra.mxu0 %v7205
        %v7908 = vpop.f32.mrf.mxu0
        %v7909 = vadd.f32 %v7740, %v7908
        %v7910 = vpop.f32.mrf.mxu0
        %v7911 = vadd.f32 %v7742, %v7910
        %7912 = vmatmul.bf16.gmra.mxu0 %v7208
        %v7913 = vpop.f32.mrf.mxu0
        %v7914 = vadd.f32 %v7745, %v7913
        %v7915 = vpop.f32.mrf.mxu0
        %v7916 = vadd.f32 %v7747, %v7915
        %7917 = vmatmul.bf16.gmra.mxu0 %v7211
        %v7918 = vpop.f32.mrf.mxu0
        %v7919 = vadd.f32 %v7750, %v7918
        %v7920 = vpop.f32.mrf.mxu0
        %v7921 = vadd.f32 %v7752, %v7920
        %7922 = vmatmul.bf16.gmra.mxu0 %v7214
        %v7923 = vpop.f32.mrf.mxu0
        %v7924 = vadd.f32 %v7755, %v7923
        %v7925 = vpop.f32.mrf.mxu0
        %v7926 = vadd.f32 %v7757, %v7925
        %7927 = vmatmul.bf16.gmra.mxu0 %v7217
        %v7928 = vpop.f32.mrf.mxu0
        %v7929 = vadd.f32 %v7760, %v7928
        %v7930 = vpop.f32.mrf.mxu0
        %v7931 = vadd.f32 %v7762, %v7930
        %7932 = vmatmul.bf16.gmra.mxu0 %v7220
        %v7933 = vpop.f32.mrf.mxu0
        %v7934 = vadd.f32 %v7765, %v7933
        %v7935 = vpop.f32.mrf.mxu0
        %v7936 = vadd.f32 %v7767, %v7935
        %7937 = vmatmul.bf16.gmra.mxu0 %v7223
        %v7938 = vpop.f32.mrf.mxu0
        %v7939 = vadd.f32 %v7770, %v7938
        %v7940 = vpop.f32.mrf.mxu0
        %v7941 = vadd.f32 %v7772, %v7940
        %7942 = vmatmul.bf16.gmra.mxu0 %v7226
        %v7943 = vpop.f32.mrf.mxu0
        %v7944 = vadd.f32 %v7775, %v7943
        %v7945 = vpop.f32.mrf.mxu0
        %v7946 = vadd.f32 %v7777, %v7945
        %7947 = vmatmul.bf16.gmra.mxu0 %v7229
        %v7948 = vpop.f32.mrf.mxu0
        %v7949 = vadd.f32 %v7780, %v7948
        %v7950 = vpop.f32.mrf.mxu0
        %v7951 = vadd.f32 %v7782, %v7950
        %7952 = vmatmul.bf16.gmra.mxu0 %v7232
        %v7953 = vpop.f32.mrf.mxu0
        %v7954 = vadd.f32 %v7785, %v7953
        %v7955 = vpop.f32.mrf.mxu0
        %v7956 = vadd.f32 %v7787, %v7955
        %7957 = vmatmul.bf16.gmra.mxu0 %v7235
        %v7958 = vpop.f32.mrf.mxu0
        %v7959 = vadd.f32 %v7790, %v7958
        %v7960 = vpop.f32.mrf.mxu0
        %v7961 = vadd.f32 %v7792, %v7960
        %7962 = vmatmul.bf16.gmra.mxu0 %v7238
        %v7963 = vpop.f32.mrf.mxu0
        %v7964 = vadd.f32 %v7795, %v7963
        %v7965 = vpop.f32.mrf.mxu0
        %v7966 = vadd.f32 %v7797, %v7965
        %7967 = vmatmul.bf16.gmra.mxu0 %v7241
        %v7968 = vpop.f32.mrf.mxu0
        %v7969 = vadd.f32 %v7800, %v7968
        %v7970 = vpop.f32.mrf.mxu0
        %v7971 = vadd.f32 %v7802, %v7970
        %7972 = vmatmul.bf16.gmra.mxu0 %v7244
        %v7973 = vpop.f32.mrf.mxu0
        %v7974 = vadd.f32 %v7805, %v7973
        %v7975 = vpop.f32.mrf.mxu0
        %v7976 = vadd.f32 %v7807, %v7975
        %7977 = vmatmul.bf16.gmra.mxu0 %v7247
        %v7978 = vpop.f32.mrf.mxu0
        %v7979 = vadd.f32 %v7810, %v7978
        %v7980 = vpop.f32.mrf.mxu0
        %v7981 = vadd.f32 %v7812, %v7980
        %7982 = vmatmul.bf16.gmra.mxu0 %v7250
        %v7983 = vpop.f32.mrf.mxu0
        %v7984 = vadd.f32 %v7815, %v7983
        %v7985 = vpop.f32.mrf.mxu0
        %v7986 = vadd.f32 %v7817, %v7985
        %7987 = vmatmul.bf16.gmra.mxu0 %v7253
        %v7988 = vpop.f32.mrf.mxu0
        %v7989 = vadd.f32 %v7820, %v7988
        %v7990 = vpop.f32.mrf.mxu0
        %v7991 = vadd.f32 %v7822, %v7990
        %7992 = vmatmul.bf16.gmra.mxu0 %v7256
        %v7993 = vpop.f32.mrf.mxu0
        %v7994 = vadd.f32 %v7825, %v7993
        %v7995 = vpop.f32.mrf.mxu0
        %v7996 = vadd.f32 %v7827, %v7995
        %7997 = vmatmul.bf16.gmra.mxu0 %v7259
        %v7998 = vpop.f32.mrf.mxu0
        %v7999 = vadd.f32 %v7830, %v7998
        %v8000 = vpop.f32.mrf.mxu0
        %v8001 = vadd.f32 %v7832, %v8000
        %8002 = vmatmul.bf16.gmra.mxu0 %v7262
        %v8003 = vpop.f32.mrf.mxu0
        %v8004 = vadd.f32 %v7835, %v8003
        %v8005 = vpop.f32.mrf.mxu0
        %v8006 = vadd.f32 %v7837, %v8005
        %8007 = vmatmul.bf16.gmra.mxu0 %v7265
        %v8008 = vpop.f32.mrf.mxu0
        %v8009 = vadd.f32 %v7840, %v8008
        %v8010 = vpop.f32.mrf.mxu0
        %v8011 = vadd.f32 %v7842, %v8010
        %8012 = vdwg.mxu0
        %s8013 = scalar_lea.vmem [#allocation2], 72
        %v8014 = vld [vmem:[%s8013] sm:$0xff]
        %v8015 = vld [vmem:[%s8013 + $0x8] sm:$0xf]
        %v8016 = vld [vmem:[%s8013 + $0xc] sm:$0xff]
        %v8017 = vld [vmem:[%s8013 + $0x14] sm:$0xf]
        %v8018 = vld [vmem:[%s8013 + $0x18] sm:$0x11]
        %v8019 = vld [vmem:[%s8013 + $0x20] sm:$0x1]
        %v8020 = vld [vmem:[%s8013 + $0x24] sm:$0xff]
        %v8021 = vld [vmem:[%s8013 + $0x2c] sm:$0xf]
        %v8022 = vld [vmem:[%s8013 + $0x30] sm:$0xff]
        %v8023 = vld [vmem:[%s8013 + $0x38] sm:$0xf]
        %v8024 = vld [vmem:[%s8013 + $0x3c] sm:$0x11]
        %v8025 = vld [vmem:[%s8013 + $0x44] sm:$0x1]
        %v8026 = vld [vmem:[%s8013 + $0x48] sm:$0xff]
        %v8027 = vld [vmem:[%s8013 + $0x50] sm:$0xf]
        %v8028 = vld [vmem:[%s8013 + $0x54] sm:$0xff]
        %v8029 = vld [vmem:[%s8013 + $0x5c] sm:$0xf]
        %v8030 = vld [vmem:[%s8013 + $0x60] sm:$0x11]
        %v8031 = vld [vmem:[%s8013 + $0x68] sm:$0x1]
        %v8032 = vld [vmem:[%s8013 + $0x6c] sm:$0xff]
        %v8033 = vld [vmem:[%s8013 + $0x74] sm:$0xf]
        %v8034 = vld [vmem:[%s8013 + $0x78] sm:$0xff]
        %v8035 = vld [vmem:[%s8013 + $0x80] sm:$0xf]
        %v8036 = vld [vmem:[%s8013 + $0x84] sm:$0x11]
        %v8037 = vld [vmem:[%s8013 + $0x8c] sm:$0x1]
        %v8038 = vld [vmem:[%s8013 + $0x90] sm:$0xff]
        %v8039 = vld [vmem:[%s8013 + $0x98] sm:$0xf]
        %v8040 = vld [vmem:[%s8013 + $0x9c] sm:$0xff]
        %v8041 = vld [vmem:[%s8013 + $0xa4] sm:$0xf]
        %v8042 = vld [vmem:[%s8013 + $0xa8] sm:$0x11]
        %v8043 = vld [vmem:[%s8013 + $0xb0] sm:$0x1]
        %v8044 = vld [vmem:[%s8013 + $0xb4] sm:$0xff]
        %v8045 = vld [vmem:[%s8013 + $0xbc] sm:$0xf]
        %v8046 = vld [vmem:[%s8013 + $0xc0] sm:$0xff]
        %v8047 = vld [vmem:[%s8013 + $0xc8] sm:$0xf]
        %v8048 = vld [vmem:[%s8013 + $0xcc] sm:$0x11]
        %v8049 = vld [vmem:[%s8013 + $0xd4] sm:$0x1]
        %v8050 = vld [vmem:[%s8013 + $0xd8] sm:$0xff]
        %v8051 = vld [vmem:[%s8013 + $0xe0] sm:$0xf]
        %v8052 = vld [vmem:[%s8013 + $0xe4] sm:$0xff]
        %v8053 = vld [vmem:[%s8013 + $0xec] sm:$0xf]
        %v8054 = vld [vmem:[%s8013 + $0xf0] sm:$0x11]
        %v8055 = vld [vmem:[%s8013 + $0xf8] sm:$0x1]
        %v8056 = vld [vmem:[%s8013 + $0xfc] sm:$0xff]
        %v8057 = vld [vmem:[%s8013 + $0x104] sm:$0xf]
        %v8058 = vld [vmem:[%s8013 + $0x108] sm:$0xff]
        %v8059 = vld [vmem:[%s8013 + $0x110] sm:$0xf]
        %v8060 = vld [vmem:[%s8013 + $0x114] sm:$0x11]
        %v8061 = vld [vmem:[%s8013 + $0x11c] sm:$0x1]
        %v8062 = vld [vmem:[%s8013 + $0x120] sm:$0xff]
        %v8063 = vld [vmem:[%s8013 + $0x128] sm:$0xf]
        %v8064 = vld [vmem:[%s8013 + $0x12c] sm:$0xff]
        %v8065 = vld [vmem:[%s8013 + $0x134] sm:$0xf]
        %v8066 = vld [vmem:[%s8013 + $0x138] sm:$0x11]
        %v8067 = vld [vmem:[%s8013 + $0x140] sm:$0x1]
        %v8068 = vld [vmem:[%s8013 + $0x144] sm:$0xff]
        %v8069 = vld [vmem:[%s8013 + $0x14c] sm:$0xf]
        %v8070 = vld [vmem:[%s8013 + $0x150] sm:$0xff]
        %v8071 = vld [vmem:[%s8013 + $0x158] sm:$0xf]
        %v8072 = vld [vmem:[%s8013 + $0x15c] sm:$0x11]
        %v8073 = vld [vmem:[%s8013 + $0x164] sm:$0x1]
        %v8074 = vld [vmem:[%s8013 + $0x168] sm:$0xff]
        %v8075 = vld [vmem:[%s8013 + $0x170] sm:$0xf]
        %v8076 = vld [vmem:[%s8013 + $0x174] sm:$0xff]
        %v8077 = vld [vmem:[%s8013 + $0x17c] sm:$0xf]
        %v8078 = vld [vmem:[%s8013 + $0x180] sm:$0x11]
        %v8079 = vld [vmem:[%s8013 + $0x188] sm:$0x1]
        %v8080 = vld [vmem:[%s8013 + $0x18c] sm:$0xff]
        %v8081 = vld [vmem:[%s8013 + $0x194] sm:$0xf]
        %v8082 = vld [vmem:[%s8013 + $0x198] sm:$0xff]
        %v8083 = vld [vmem:[%s8013 + $0x1a0] sm:$0xf]
        %v8084 = vld [vmem:[%s8013 + $0x1a4] sm:$0x11]
        %v8085 = vld [vmem:[%s8013 + $0x1ac] sm:$0x1]
        %v8086 = vld [vmem:[%s8013 + $0x1b0] sm:$0xff]
        %v8087 = vld [vmem:[%s8013 + $0x1b8] sm:$0xf]
        %v8088 = vld [vmem:[%s8013 + $0x1bc] sm:$0xff]
        %v8089 = vld [vmem:[%s8013 + $0x1c4] sm:$0xf]
        %v8090 = vld [vmem:[%s8013 + $0x1c8] sm:$0x11]
        %v8091 = vld [vmem:[%s8013 + $0x1d0] sm:$0x1]
        %v8092 = vld [vmem:[%s8013 + $0x1d4] sm:$0xff]
        %v8093 = vld [vmem:[%s8013 + $0x1dc] sm:$0xf]
        %v8094 = vld [vmem:[%s8013 + $0x1e0] sm:$0xff]
        %v8095 = vld [vmem:[%s8013 + $0x1e8] sm:$0xf]
        %v8096 = vld [vmem:[%s8013 + $0x1ec] sm:$0x11]
        %v8097 = vld [vmem:[%s8013 + $0x1f4] sm:$0x1]
        %v8098 = vld [vmem:[%s8013 + $0x1f8] sm:$0xff]
        %v8099 = vld [vmem:[%s8013 + $0x200] sm:$0xf]
        %v8100 = vld [vmem:[%s8013 + $0x204] sm:$0xff]
        %v8101 = vld [vmem:[%s8013 + $0x20c] sm:$0xf]
        %v8102 = vld [vmem:[%s8013 + $0x210] sm:$0x11]
        %v8103 = vld [vmem:[%s8013 + $0x218] sm:$0x1]
        %v8104 = vld [vmem:[%s8013 + $0x21c] sm:$0xff]
        %v8105 = vld [vmem:[%s8013 + $0x224] sm:$0xf]
        %v8106 = vld [vmem:[%s8013 + $0x228] sm:$0xff]
        %v8107 = vld [vmem:[%s8013 + $0x230] sm:$0xf]
        %v8108 = vld [vmem:[%s8013 + $0x234] sm:$0x11]
        %v8109 = vld [vmem:[%s8013 + $0x23c] sm:$0x1]
        %v8110 = vld [vmem:[%s8013 + $0x288] sm:$0xff]
        %v8111 = vld [vmem:[%s8013 + $0x290] sm:$0xf]
        %v8112 = vld [vmem:[%s8013 + $0x294] sm:$0xff]
        %v8113 = vld [vmem:[%s8013 + $0x29c] sm:$0xf]
        %v8114 = vld [vmem:[%s8013 + $0x2a0] sm:$0x11]
        %v8115 = vld [vmem:[%s8013 + $0x2a8] sm:$0x1]
        %v8116 = vld [vmem:[%s8013 + $0x2ac] sm:$0xff]
        %v8117 = vld [vmem:[%s8013 + $0x2b4] sm:$0xf]
        %v8118 = vld [vmem:[%s8013 + $0x2b8] sm:$0xff]
        %v8119 = vld [vmem:[%s8013 + $0x2c0] sm:$0xf]
        %v8120 = vld [vmem:[%s8013 + $0x2c4] sm:$0x11]
        %v8121 = vld [vmem:[%s8013 + $0x2cc] sm:$0x1]
        %v8122 = vld [vmem:[%s8013 + $0x2d0] sm:$0xff]
        %v8123 = vld [vmem:[%s8013 + $0x2d8] sm:$0xf]
        %v8124 = vld [vmem:[%s8013 + $0x2dc] sm:$0xff]
        %v8125 = vld [vmem:[%s8013 + $0x2e4] sm:$0xf]
        %v8126 = vld [vmem:[%s8013 + $0x2e8] sm:$0x11]
        %v8127 = vld [vmem:[%s8013 + $0x2f0] sm:$0x1]
        %v8128 = vld [vmem:[%s8013 + $0x2f4] sm:$0xff]
        %v8129 = vld [vmem:[%s8013 + $0x2fc] sm:$0xf]
        %v8130 = vld [vmem:[%s8013 + $0x300] sm:$0xff]
        %v8131 = vld [vmem:[%s8013 + $0x308] sm:$0xf]
        %v8132 = vld [vmem:[%s8013 + $0x30c] sm:$0x11]
        %v8133 = vld [vmem:[%s8013 + $0x314] sm:$0x1]
        %v8134 = vld [vmem:[%s8013 + $0x318] sm:$0xff]
        %v8135 = vld [vmem:[%s8013 + $0x320] sm:$0xf]
        %v8136 = vld [vmem:[%s8013 + $0x324] sm:$0xff]
        %v8137 = vld [vmem:[%s8013 + $0x32c] sm:$0xf]
        %v8138 = vld [vmem:[%s8013 + $0x330] sm:$0x11]
        %v8139 = vld [vmem:[%s8013 + $0x338] sm:$0x1]
        %v8140 = vld [vmem:[%s8013 + $0x33c] sm:$0xff]
        %v8141 = vld [vmem:[%s8013 + $0x344] sm:$0xf]
        %v8142 = vld [vmem:[%s8013 + $0x348] sm:$0xff]
        %v8143 = vld [vmem:[%s8013 + $0x350] sm:$0xf]
        %v8144 = vld [vmem:[%s8013 + $0x354] sm:$0x11]
        %v8145 = vld [vmem:[%s8013 + $0x35c] sm:$0x1]
        %v8146 = vld [vmem:[%s8013 + $0x360] sm:$0xff]
        %v8147 = vld [vmem:[%s8013 + $0x368] sm:$0xf]
        %v8148 = vld [vmem:[%s8013 + $0x36c] sm:$0xff]
        %v8149 = vld [vmem:[%s8013 + $0x374] sm:$0xf]
        %v8150 = vld [vmem:[%s8013 + $0x378] sm:$0x11]
        %v8151 = vld [vmem:[%s8013 + $0x380] sm:$0x1]
        %v8152 = vld [vmem:[%s8013 + $0x384] sm:$0xff]
        %v8153 = vld [vmem:[%s8013 + $0x38c] sm:$0xf]
        %v8154 = vld [vmem:[%s8013 + $0x390] sm:$0xff]
        %v8155 = vld [vmem:[%s8013 + $0x398] sm:$0xf]
        %v8156 = vld [vmem:[%s8013 + $0x39c] sm:$0x11]
        %v8157 = vld [vmem:[%s8013 + $0x3a4] sm:$0x1]
        %v8158 = vld [vmem:[%s8013 + $0x3a8] sm:$0xff]
        %v8159 = vld [vmem:[%s8013 + $0x3b0] sm:$0xf]
        %v8160 = vld [vmem:[%s8013 + $0x3b4] sm:$0xff]
        %v8161 = vld [vmem:[%s8013 + $0x3bc] sm:$0xf]
        %v8162 = vld [vmem:[%s8013 + $0x3c0] sm:$0x11]
        %v8163 = vld [vmem:[%s8013 + $0x3c8] sm:$0x1]
        %v8164 = vld [vmem:[%s8013 + $0x3cc] sm:$0xff]
        %v8165 = vld [vmem:[%s8013 + $0x3d4] sm:$0xf]
        %v8166 = vld [vmem:[%s8013 + $0x3d8] sm:$0xff]
        %v8167 = vld [vmem:[%s8013 + $0x3e0] sm:$0xf]
        %v8168 = vld [vmem:[%s8013 + $0x3e4] sm:$0x11]
        %v8169 = vld [vmem:[%s8013 + $0x3ec] sm:$0x1]
        %v8170 = vld [vmem:[%s8013 + $0x3f0] sm:$0xff]
        %v8171 = vld [vmem:[%s8013 + $0x3f8] sm:$0xf]
        %v8172 = vld [vmem:[%s8013 + $0x3fc] sm:$0xff]
        %v8173 = vld [vmem:[%s8013 + $0x404] sm:$0xf]
        %v8174 = vld [vmem:[%s8013 + $0x408] sm:$0x11]
        %v8175 = vld [vmem:[%s8013 + $0x410] sm:$0x1]
        %v8176 = vld [vmem:[%s8013 + $0x414] sm:$0xff]
        %v8177 = vld [vmem:[%s8013 + $0x41c] sm:$0xf]
        %v8178 = vld [vmem:[%s8013 + $0x420] sm:$0xff]
        %v8179 = vld [vmem:[%s8013 + $0x428] sm:$0xf]
        %v8180 = vld [vmem:[%s8013 + $0x42c] sm:$0x11]
        %v8181 = vld [vmem:[%s8013 + $0x434] sm:$0x1]
        %v8182 = vld [vmem:[%s8013 + $0x438] sm:$0xff]
        %v8183 = vld [vmem:[%s8013 + $0x440] sm:$0xf]
        %v8184 = vld [vmem:[%s8013 + $0x444] sm:$0xff]
        %v8185 = vld [vmem:[%s8013 + $0x44c] sm:$0xf]
        %v8186 = vld [vmem:[%s8013 + $0x450] sm:$0x11]
        %v8187 = vld [vmem:[%s8013 + $0x458] sm:$0x1]
        %v8188 = vld [vmem:[%s8013 + $0x45c] sm:$0xff]
        %v8189 = vld [vmem:[%s8013 + $0x464] sm:$0xf]
        %v8190 = vld [vmem:[%s8013 + $0x468] sm:$0xff]
        %v8191 = vld [vmem:[%s8013 + $0x470] sm:$0xf]
        %v8192 = vld [vmem:[%s8013 + $0x474] sm:$0x11]
        %v8193 = vld [vmem:[%s8013 + $0x47c] sm:$0x1]
        %v8194 = vld [vmem:[%s8013 + $0x480] sm:$0xff]
        %v8195 = vld [vmem:[%s8013 + $0x488] sm:$0xf]
        %v8196 = vld [vmem:[%s8013 + $0x48c] sm:$0xff]
        %v8197 = vld [vmem:[%s8013 + $0x494] sm:$0xf]
        %v8198 = vld [vmem:[%s8013 + $0x498] sm:$0x11]
        %v8199 = vld [vmem:[%s8013 + $0x4a0] sm:$0x1]
        %v8200 = vld [vmem:[%s8013 + $0x4a4] sm:$0xff]
        %v8201 = vld [vmem:[%s8013 + $0x4ac] sm:$0xf]
        %v8202 = vld [vmem:[%s8013 + $0x4b0] sm:$0xff]
        %v8203 = vld [vmem:[%s8013 + $0x4b8] sm:$0xf]
        %v8204 = vld [vmem:[%s8013 + $0x4bc] sm:$0x11]
        %v8205 = vld [vmem:[%s8013 + $0x4c4] sm:$0x1]
        %v8207 = vshrl.u32 %v8014, 16
        %v8209 = vrot.slane %v8207, 4
        %v8210 = vshll.u32 %v8014, 16
        %v8212 = vrot.slane %v8210, 5
        %v8213 = vor.u32 %v8209, %v8212
        %v8214 = vrot.slane %v8213, 4
        %v8216 = vshll.u32 %v8016, 16
        %v8218 = vrot.slane %v8216, 5
        %v8219 = vsel %vm2581, %v8214, %v8218
        %v8221 = vshrl.u32 %v8015, 16
        %v8223 = vrot.slane %v8221, 4
        %v8224 = vshll.u32 %v8015, 16
        %v8226 = vrot.slane %v8224, 5
        %v8227 = vor.u32 %v8223, %v8226
        %v8228 = vrot.slane %v8227, 4
        %v8230 = vshll.u32 %v8017, 16
        %v8232 = vrot.slane %v8230, 5
        %v8233 = vsel %vm2581, %v8228, %v8232
        %v8234 = vshrl.u32 %v8016, 16
        %v8236 = vrot.slane %v8234, 4
        %v8237 = vor.u32 %v8236, %v8218
        %v8238 = vrot.slane %v8237, 4
        %v8240 = vshll.u32 %v8018, 16
        %v8242 = vrot.slane %v8240, 5
        %v8243 = vsel %vm2581, %v8238, %v8242
        %v8244 = vshrl.u32 %v8017, 16
        %v8246 = vrot.slane %v8244, 4
        %v8247 = vor.u32 %v8246, %v8232
        %v8248 = vrot.slane %v8247, 4
        %v8250 = vshll.u32 %v8019, 16
        %v8252 = vrot.slane %v8250, 5
        %v8253 = vsel %vm2581, %v8248, %v8252
        %v8255 = vshrl.u32 %v8020, 16
        %v8257 = vrot.slane %v8255, 4
        %v8258 = vshll.u32 %v8020, 16
        %v8260 = vrot.slane %v8258, 5
        %v8261 = vor.u32 %v8257, %v8260
        %v8262 = vrot.slane %v8261, 4
        %v8264 = vshll.u32 %v8022, 16
        %v8266 = vrot.slane %v8264, 5
        %v8267 = vsel %vm2581, %v8262, %v8266
        %v8269 = vshrl.u32 %v8021, 16
        %v8271 = vrot.slane %v8269, 4
        %v8272 = vshll.u32 %v8021, 16
        %v8274 = vrot.slane %v8272, 5
        %v8275 = vor.u32 %v8271, %v8274
        %v8276 = vrot.slane %v8275, 4
        %v8278 = vshll.u32 %v8023, 16
        %v8280 = vrot.slane %v8278, 5
        %v8281 = vsel %vm2581, %v8276, %v8280
        %v8282 = vshrl.u32 %v8022, 16
        %v8284 = vrot.slane %v8282, 4
        %v8285 = vor.u32 %v8284, %v8266
        %v8286 = vrot.slane %v8285, 4
        %v8288 = vshll.u32 %v8024, 16
        %v8290 = vrot.slane %v8288, 5
        %v8291 = vsel %vm2581, %v8286, %v8290
        %v8292 = vshrl.u32 %v8023, 16
        %v8294 = vrot.slane %v8292, 4
        %v8295 = vor.u32 %v8294, %v8280
        %v8296 = vrot.slane %v8295, 4
        %v8298 = vshll.u32 %v8025, 16
        %v8300 = vrot.slane %v8298, 5
        %v8301 = vsel %vm2581, %v8296, %v8300
        %v8303 = vshrl.u32 %v8026, 16
        %v8305 = vrot.slane %v8303, 4
        %v8306 = vshll.u32 %v8026, 16
        %v8308 = vrot.slane %v8306, 5
        %v8309 = vor.u32 %v8305, %v8308
        %v8310 = vrot.slane %v8309, 4
        %v8312 = vshll.u32 %v8028, 16
        %v8314 = vrot.slane %v8312, 5
        %v8315 = vsel %vm2581, %v8310, %v8314
        %v8317 = vshrl.u32 %v8027, 16
        %v8319 = vrot.slane %v8317, 4
        %v8320 = vshll.u32 %v8027, 16
        %v8322 = vrot.slane %v8320, 5
        %v8323 = vor.u32 %v8319, %v8322
        %v8324 = vrot.slane %v8323, 4
        %v8326 = vshll.u32 %v8029, 16
        %v8328 = vrot.slane %v8326, 5
        %v8329 = vsel %vm2581, %v8324, %v8328
        %v8330 = vshrl.u32 %v8028, 16
        %v8332 = vrot.slane %v8330, 4
        %v8333 = vor.u32 %v8332, %v8314
        %v8334 = vrot.slane %v8333, 4
        %v8336 = vshll.u32 %v8030, 16
        %v8338 = vrot.slane %v8336, 5
        %v8339 = vsel %vm2581, %v8334, %v8338
        %v8340 = vshrl.u32 %v8029, 16
        %v8342 = vrot.slane %v8340, 4
        %v8343 = vor.u32 %v8342, %v8328
        %v8344 = vrot.slane %v8343, 4
        %v8346 = vshll.u32 %v8031, 16
        %v8348 = vrot.slane %v8346, 5
        %v8349 = vsel %vm2581, %v8344, %v8348
        %v8351 = vshrl.u32 %v8032, 16
        %v8353 = vrot.slane %v8351, 4
        %v8354 = vshll.u32 %v8032, 16
        %v8356 = vrot.slane %v8354, 5
        %v8357 = vor.u32 %v8353, %v8356
        %v8358 = vrot.slane %v8357, 4
        %v8360 = vshll.u32 %v8034, 16
        %v8362 = vrot.slane %v8360, 5
        %v8363 = vsel %vm2581, %v8358, %v8362
        %v8365 = vshrl.u32 %v8033, 16
        %v8367 = vrot.slane %v8365, 4
        %v8368 = vshll.u32 %v8033, 16
        %v8370 = vrot.slane %v8368, 5
        %v8371 = vor.u32 %v8367, %v8370
        %v8372 = vrot.slane %v8371, 4
        %v8374 = vshll.u32 %v8035, 16
        %v8376 = vrot.slane %v8374, 5
        %v8377 = vsel %vm2581, %v8372, %v8376
        %v8378 = vshrl.u32 %v8034, 16
        %v8380 = vrot.slane %v8378, 4
        %v8381 = vor.u32 %v8380, %v8362
        %v8382 = vrot.slane %v8381, 4
        %v8384 = vshll.u32 %v8036, 16
        %v8386 = vrot.slane %v8384, 5
        %v8387 = vsel %vm2581, %v8382, %v8386
        %v8388 = vshrl.u32 %v8035, 16
        %v8390 = vrot.slane %v8388, 4
        %v8391 = vor.u32 %v8390, %v8376
        %v8392 = vrot.slane %v8391, 4
        %v8394 = vshll.u32 %v8037, 16
        %v8396 = vrot.slane %v8394, 5
        %v8397 = vsel %vm2581, %v8392, %v8396
        %v8399 = vshrl.u32 %v8038, 16
        %v8401 = vrot.slane %v8399, 4
        %v8402 = vshll.u32 %v8038, 16
        %v8404 = vrot.slane %v8402, 5
        %v8405 = vor.u32 %v8401, %v8404
        %v8406 = vrot.slane %v8405, 4
        %v8408 = vshll.u32 %v8040, 16
        %v8410 = vrot.slane %v8408, 5
        %v8411 = vsel %vm2581, %v8406, %v8410
        %v8413 = vshrl.u32 %v8039, 16
        %v8415 = vrot.slane %v8413, 4
        %v8416 = vshll.u32 %v8039, 16
        %v8418 = vrot.slane %v8416, 5
        %v8419 = vor.u32 %v8415, %v8418
        %v8420 = vrot.slane %v8419, 4
        %v8422 = vshll.u32 %v8041, 16
        %v8424 = vrot.slane %v8422, 5
        %v8425 = vsel %vm2581, %v8420, %v8424
        %v8426 = vshrl.u32 %v8040, 16
        %v8428 = vrot.slane %v8426, 4
        %v8429 = vor.u32 %v8428, %v8410
        %v8430 = vrot.slane %v8429, 4
        %v8432 = vshll.u32 %v8042, 16
        %v8434 = vrot.slane %v8432, 5
        %v8435 = vsel %vm2581, %v8430, %v8434
        %v8436 = vshrl.u32 %v8041, 16
        %v8438 = vrot.slane %v8436, 4
        %v8439 = vor.u32 %v8438, %v8424
        %v8440 = vrot.slane %v8439, 4
        %v8442 = vshll.u32 %v8043, 16
        %v8444 = vrot.slane %v8442, 5
        %v8445 = vsel %vm2581, %v8440, %v8444
        %v8447 = vshrl.u32 %v8044, 16
        %v8449 = vrot.slane %v8447, 4
        %v8450 = vshll.u32 %v8044, 16
        %v8452 = vrot.slane %v8450, 5
        %v8453 = vor.u32 %v8449, %v8452
        %v8454 = vrot.slane %v8453, 4
        %v8456 = vshll.u32 %v8046, 16
        %v8458 = vrot.slane %v8456, 5
        %v8459 = vsel %vm2581, %v8454, %v8458
        %v8461 = vshrl.u32 %v8045, 16
        %v8463 = vrot.slane %v8461, 4
        %v8464 = vshll.u32 %v8045, 16
        %v8466 = vrot.slane %v8464, 5
        %v8467 = vor.u32 %v8463, %v8466
        %v8468 = vrot.slane %v8467, 4
        %v8470 = vshll.u32 %v8047, 16
        %v8472 = vrot.slane %v8470, 5
        %v8473 = vsel %vm2581, %v8468, %v8472
        %v8474 = vshrl.u32 %v8046, 16
        %v8476 = vrot.slane %v8474, 4
        %v8477 = vor.u32 %v8476, %v8458
        %v8478 = vrot.slane %v8477, 4
        %v8480 = vshll.u32 %v8048, 16
        %v8482 = vrot.slane %v8480, 5
        %v8483 = vsel %vm2581, %v8478, %v8482
        %v8484 = vshrl.u32 %v8047, 16
        %v8486 = vrot.slane %v8484, 4
        %v8487 = vor.u32 %v8486, %v8472
        %v8488 = vrot.slane %v8487, 4
        %v8490 = vshll.u32 %v8049, 16
        %v8492 = vrot.slane %v8490, 5
        %v8493 = vsel %vm2581, %v8488, %v8492
        %v8495 = vshrl.u32 %v8050, 16
        %v8497 = vrot.slane %v8495, 4
        %v8498 = vshll.u32 %v8050, 16
        %v8500 = vrot.slane %v8498, 5
        %v8501 = vor.u32 %v8497, %v8500
        %v8502 = vrot.slane %v8501, 4
        %v8504 = vshll.u32 %v8052, 16
        %v8506 = vrot.slane %v8504, 5
        %v8507 = vsel %vm2581, %v8502, %v8506
        %v8509 = vshrl.u32 %v8051, 16
        %v8511 = vrot.slane %v8509, 4
        %v8512 = vshll.u32 %v8051, 16
        %v8514 = vrot.slane %v8512, 5
        %v8515 = vor.u32 %v8511, %v8514
        %v8516 = vrot.slane %v8515, 4
        %v8518 = vshll.u32 %v8053, 16
        %v8520 = vrot.slane %v8518, 5
        %v8521 = vsel %vm2581, %v8516, %v8520
        %v8522 = vshrl.u32 %v8052, 16
        %v8524 = vrot.slane %v8522, 4
        %v8525 = vor.u32 %v8524, %v8506
        %v8526 = vrot.slane %v8525, 4
        %v8528 = vshll.u32 %v8054, 16
        %v8530 = vrot.slane %v8528, 5
        %v8531 = vsel %vm2581, %v8526, %v8530
        %v8532 = vshrl.u32 %v8053, 16
        %v8534 = vrot.slane %v8532, 4
        %v8535 = vor.u32 %v8534, %v8520
        %v8536 = vrot.slane %v8535, 4
        %v8538 = vshll.u32 %v8055, 16
        %v8540 = vrot.slane %v8538, 5
        %v8541 = vsel %vm2581, %v8536, %v8540
        %v8543 = vshrl.u32 %v8056, 16
        %v8545 = vrot.slane %v8543, 4
        %v8546 = vshll.u32 %v8056, 16
        %v8548 = vrot.slane %v8546, 5
        %v8549 = vor.u32 %v8545, %v8548
        %v8550 = vrot.slane %v8549, 4
        %v8552 = vshll.u32 %v8058, 16
        %v8554 = vrot.slane %v8552, 5
        %v8555 = vsel %vm2581, %v8550, %v8554
        %v8557 = vshrl.u32 %v8057, 16
        %v8559 = vrot.slane %v8557, 4
        %v8560 = vshll.u32 %v8057, 16
        %v8562 = vrot.slane %v8560, 5
        %v8563 = vor.u32 %v8559, %v8562
        %v8564 = vrot.slane %v8563, 4
        %v8566 = vshll.u32 %v8059, 16
        %v8568 = vrot.slane %v8566, 5
        %v8569 = vsel %vm2581, %v8564, %v8568
        %v8570 = vshrl.u32 %v8058, 16
        %v8572 = vrot.slane %v8570, 4
        %v8573 = vor.u32 %v8572, %v8554
        %v8574 = vrot.slane %v8573, 4
        %v8576 = vshll.u32 %v8060, 16
        %v8578 = vrot.slane %v8576, 5
        %v8579 = vsel %vm2581, %v8574, %v8578
        %v8580 = vshrl.u32 %v8059, 16
        %v8582 = vrot.slane %v8580, 4
        %v8583 = vor.u32 %v8582, %v8568
        %v8584 = vrot.slane %v8583, 4
        %v8586 = vshll.u32 %v8061, 16
        %v8588 = vrot.slane %v8586, 5
        %v8589 = vsel %vm2581, %v8584, %v8588
        %v8591 = vshrl.u32 %v8062, 16
        %v8593 = vrot.slane %v8591, 4
        %v8594 = vshll.u32 %v8062, 16
        %v8596 = vrot.slane %v8594, 5
        %v8597 = vor.u32 %v8593, %v8596
        %v8598 = vrot.slane %v8597, 4
        %v8600 = vshll.u32 %v8064, 16
        %v8602 = vrot.slane %v8600, 5
        %v8603 = vsel %vm2581, %v8598, %v8602
        %v8605 = vshrl.u32 %v8063, 16
        %v8607 = vrot.slane %v8605, 4
        %v8608 = vshll.u32 %v8063, 16
        %v8610 = vrot.slane %v8608, 5
        %v8611 = vor.u32 %v8607, %v8610
        %v8612 = vrot.slane %v8611, 4
        %v8614 = vshll.u32 %v8065, 16
        %v8616 = vrot.slane %v8614, 5
        %v8617 = vsel %vm2581, %v8612, %v8616
        %v8618 = vshrl.u32 %v8064, 16
        %v8620 = vrot.slane %v8618, 4
        %v8621 = vor.u32 %v8620, %v8602
        %v8622 = vrot.slane %v8621, 4
        %v8624 = vshll.u32 %v8066, 16
        %v8626 = vrot.slane %v8624, 5
        %v8627 = vsel %vm2581, %v8622, %v8626
        %v8628 = vshrl.u32 %v8065, 16
        %v8630 = vrot.slane %v8628, 4
        %v8631 = vor.u32 %v8630, %v8616
        %v8632 = vrot.slane %v8631, 4
        %v8634 = vshll.u32 %v8067, 16
        %v8636 = vrot.slane %v8634, 5
        %v8637 = vsel %vm2581, %v8632, %v8636
        %v8639 = vshrl.u32 %v8068, 16
        %v8641 = vrot.slane %v8639, 4
        %v8642 = vshll.u32 %v8068, 16
        %v8644 = vrot.slane %v8642, 5
        %v8645 = vor.u32 %v8641, %v8644
        %v8646 = vrot.slane %v8645, 4
        %v8648 = vshll.u32 %v8070, 16
        %v8650 = vrot.slane %v8648, 5
        %v8651 = vsel %vm2581, %v8646, %v8650
        %v8653 = vshrl.u32 %v8069, 16
        %v8655 = vrot.slane %v8653, 4
        %v8656 = vshll.u32 %v8069, 16
        %v8658 = vrot.slane %v8656, 5
        %v8659 = vor.u32 %v8655, %v8658
        %v8660 = vrot.slane %v8659, 4
        %v8662 = vshll.u32 %v8071, 16
        %v8664 = vrot.slane %v8662, 5
        %v8665 = vsel %vm2581, %v8660, %v8664
        %v8666 = vshrl.u32 %v8070, 16
        %v8668 = vrot.slane %v8666, 4
        %v8669 = vor.u32 %v8668, %v8650
        %v8670 = vrot.slane %v8669, 4
        %v8672 = vshll.u32 %v8072, 16
        %v8674 = vrot.slane %v8672, 5
        %v8675 = vsel %vm2581, %v8670, %v8674
        %v8676 = vshrl.u32 %v8071, 16
        %v8678 = vrot.slane %v8676, 4
        %v8679 = vor.u32 %v8678, %v8664
        %v8680 = vrot.slane %v8679, 4
        %v8682 = vshll.u32 %v8073, 16
        %v8684 = vrot.slane %v8682, 5
        %v8685 = vsel %vm2581, %v8680, %v8684
        %v8687 = vshrl.u32 %v8074, 16
        %v8689 = vrot.slane %v8687, 4
        %v8690 = vshll.u32 %v8074, 16
        %v8692 = vrot.slane %v8690, 5
        %v8693 = vor.u32 %v8689, %v8692
        %v8694 = vrot.slane %v8693, 4
        %v8696 = vshll.u32 %v8076, 16
        %v8698 = vrot.slane %v8696, 5
        %v8699 = vsel %vm2581, %v8694, %v8698
        %v8701 = vshrl.u32 %v8075, 16
        %v8703 = vrot.slane %v8701, 4
        %v8704 = vshll.u32 %v8075, 16
        %v8706 = vrot.slane %v8704, 5
        %v8707 = vor.u32 %v8703, %v8706
        %v8708 = vrot.slane %v8707, 4
        %v8710 = vshll.u32 %v8077, 16
        %v8712 = vrot.slane %v8710, 5
        %v8713 = vsel %vm2581, %v8708, %v8712
        %v8714 = vshrl.u32 %v8076, 16
        %v8716 = vrot.slane %v8714, 4
        %v8717 = vor.u32 %v8716, %v8698
        %v8718 = vrot.slane %v8717, 4
        %v8720 = vshll.u32 %v8078, 16
        %v8722 = vrot.slane %v8720, 5
        %v8723 = vsel %vm2581, %v8718, %v8722
        %v8724 = vshrl.u32 %v8077, 16
        %v8726 = vrot.slane %v8724, 4
        %v8727 = vor.u32 %v8726, %v8712
        %v8728 = vrot.slane %v8727, 4
        %v8730 = vshll.u32 %v8079, 16
        %v8732 = vrot.slane %v8730, 5
        %v8733 = vsel %vm2581, %v8728, %v8732
        %v8735 = vshrl.u32 %v8080, 16
        %v8737 = vrot.slane %v8735, 4
        %v8738 = vshll.u32 %v8080, 16
        %v8740 = vrot.slane %v8738, 5
        %v8741 = vor.u32 %v8737, %v8740
        %v8742 = vrot.slane %v8741, 4
        %v8744 = vshll.u32 %v8082, 16
        %v8746 = vrot.slane %v8744, 5
        %v8747 = vsel %vm2581, %v8742, %v8746
        %v8749 = vshrl.u32 %v8081, 16
        %v8751 = vrot.slane %v8749, 4
        %v8752 = vshll.u32 %v8081, 16
        %v8754 = vrot.slane %v8752, 5
        %v8755 = vor.u32 %v8751, %v8754
        %v8756 = vrot.slane %v8755, 4
        %v8758 = vshll.u32 %v8083, 16
        %v8760 = vrot.slane %v8758, 5
        %v8761 = vsel %vm2581, %v8756, %v8760
        %v8762 = vshrl.u32 %v8082, 16
        %v8764 = vrot.slane %v8762, 4
        %v8765 = vor.u32 %v8764, %v8746
        %v8766 = vrot.slane %v8765, 4
        %v8768 = vshll.u32 %v8084, 16
        %v8770 = vrot.slane %v8768, 5
        %v8771 = vsel %vm2581, %v8766, %v8770
        %v8772 = vshrl.u32 %v8083, 16
        %v8774 = vrot.slane %v8772, 4
        %v8775 = vor.u32 %v8774, %v8760
        %v8776 = vrot.slane %v8775, 4
        %v8778 = vshll.u32 %v8085, 16
        %v8780 = vrot.slane %v8778, 5
        %v8781 = vsel %vm2581, %v8776, %v8780
        %v8783 = vshrl.u32 %v8086, 16
        %v8785 = vrot.slane %v8783, 4
        %v8786 = vshll.u32 %v8086, 16
        %v8788 = vrot.slane %v8786, 5
        %v8789 = vor.u32 %v8785, %v8788
        %v8790 = vrot.slane %v8789, 4
        %v8792 = vshll.u32 %v8088, 16
        %v8794 = vrot.slane %v8792, 5
        %v8795 = vsel %vm2581, %v8790, %v8794
        %v8797 = vshrl.u32 %v8087, 16
        %v8799 = vrot.slane %v8797, 4
        %v8800 = vshll.u32 %v8087, 16
        %v8802 = vrot.slane %v8800, 5
        %v8803 = vor.u32 %v8799, %v8802
        %v8804 = vrot.slane %v8803, 4
        %v8806 = vshll.u32 %v8089, 16
        %v8808 = vrot.slane %v8806, 5
        %v8809 = vsel %vm2581, %v8804, %v8808
        %v8810 = vshrl.u32 %v8088, 16
        %v8812 = vrot.slane %v8810, 4
        %v8813 = vor.u32 %v8812, %v8794
        %v8814 = vrot.slane %v8813, 4
        %v8816 = vshll.u32 %v8090, 16
        %v8818 = vrot.slane %v8816, 5
        %v8819 = vsel %vm2581, %v8814, %v8818
        %v8820 = vshrl.u32 %v8089, 16
        %v8822 = vrot.slane %v8820, 4
        %v8823 = vor.u32 %v8822, %v8808
        %v8824 = vrot.slane %v8823, 4
        %v8826 = vshll.u32 %v8091, 16
        %v8828 = vrot.slane %v8826, 5
        %v8829 = vsel %vm2581, %v8824, %v8828
        %v8831 = vshrl.u32 %v8092, 16
        %v8833 = vrot.slane %v8831, 4
        %v8834 = vshll.u32 %v8092, 16
        %v8836 = vrot.slane %v8834, 5
        %v8837 = vor.u32 %v8833, %v8836
        %v8838 = vrot.slane %v8837, 4
        %v8840 = vshll.u32 %v8094, 16
        %v8842 = vrot.slane %v8840, 5
        %v8843 = vsel %vm2581, %v8838, %v8842
        %v8845 = vshrl.u32 %v8093, 16
        %v8847 = vrot.slane %v8845, 4
        %v8848 = vshll.u32 %v8093, 16
        %v8850 = vrot.slane %v8848, 5
        %v8851 = vor.u32 %v8847, %v8850
        %v8852 = vrot.slane %v8851, 4
        %v8854 = vshll.u32 %v8095, 16
        %v8856 = vrot.slane %v8854, 5
        %v8857 = vsel %vm2581, %v8852, %v8856
        %v8858 = vshrl.u32 %v8094, 16
        %v8860 = vrot.slane %v8858, 4
        %v8861 = vor.u32 %v8860, %v8842
        %v8862 = vrot.slane %v8861, 4
        %v8864 = vshll.u32 %v8096, 16
        %v8866 = vrot.slane %v8864, 5
        %v8867 = vsel %vm2581, %v8862, %v8866
        %v8868 = vshrl.u32 %v8095, 16
        %v8870 = vrot.slane %v8868, 4
        %v8871 = vor.u32 %v8870, %v8856
        %v8872 = vrot.slane %v8871, 4
        %v8874 = vshll.u32 %v8097, 16
        %v8876 = vrot.slane %v8874, 5
        %v8877 = vsel %vm2581, %v8872, %v8876
        %v8879 = vshrl.u32 %v8098, 16
        %v8881 = vrot.slane %v8879, 4
        %v8882 = vshll.u32 %v8098, 16
        %v8884 = vrot.slane %v8882, 5
        %v8885 = vor.u32 %v8881, %v8884
        %v8886 = vrot.slane %v8885, 4
        %v8888 = vshll.u32 %v8100, 16
        %v8890 = vrot.slane %v8888, 5
        %v8891 = vsel %vm2581, %v8886, %v8890
        %v8893 = vshrl.u32 %v8099, 16
        %v8895 = vrot.slane %v8893, 4
        %v8896 = vshll.u32 %v8099, 16
        %v8898 = vrot.slane %v8896, 5
        %v8899 = vor.u32 %v8895, %v8898
        %v8900 = vrot.slane %v8899, 4
        %v8902 = vshll.u32 %v8101, 16
        %v8904 = vrot.slane %v8902, 5
        %v8905 = vsel %vm2581, %v8900, %v8904
        %v8906 = vshrl.u32 %v8100, 16
        %v8908 = vrot.slane %v8906, 4
        %v8909 = vor.u32 %v8908, %v8890
        %v8910 = vrot.slane %v8909, 4
        %v8912 = vshll.u32 %v8102, 16
        %v8914 = vrot.slane %v8912, 5
        %v8915 = vsel %vm2581, %v8910, %v8914
        %v8916 = vshrl.u32 %v8101, 16
        %v8918 = vrot.slane %v8916, 4
        %v8919 = vor.u32 %v8918, %v8904
        %v8920 = vrot.slane %v8919, 4
        %v8922 = vshll.u32 %v8103, 16
        %v8924 = vrot.slane %v8922, 5
        %v8925 = vsel %vm2581, %v8920, %v8924
        %v8927 = vshrl.u32 %v8104, 16
        %v8929 = vrot.slane %v8927, 4
        %v8930 = vshll.u32 %v8104, 16
        %v8932 = vrot.slane %v8930, 5
        %v8933 = vor.u32 %v8929, %v8932
        %v8934 = vrot.slane %v8933, 4
        %v8936 = vshll.u32 %v8106, 16
        %v8938 = vrot.slane %v8936, 5
        %v8939 = vsel %vm2581, %v8934, %v8938
        %v8941 = vshrl.u32 %v8105, 16
        %v8943 = vrot.slane %v8941, 4
        %v8944 = vshll.u32 %v8105, 16
        %v8946 = vrot.slane %v8944, 5
        %v8947 = vor.u32 %v8943, %v8946
        %v8948 = vrot.slane %v8947, 4
        %v8950 = vshll.u32 %v8107, 16
        %v8952 = vrot.slane %v8950, 5
        %v8953 = vsel %vm2581, %v8948, %v8952
        %v8954 = vshrl.u32 %v8106, 16
        %v8956 = vrot.slane %v8954, 4
        %v8957 = vor.u32 %v8956, %v8938
        %v8958 = vrot.slane %v8957, 4
        %v8960 = vshll.u32 %v8108, 16
        %v8962 = vrot.slane %v8960, 5
        %v8963 = vsel %vm2581, %v8958, %v8962
        %v8964 = vshrl.u32 %v8107, 16
        %v8966 = vrot.slane %v8964, 4
        %v8967 = vor.u32 %v8966, %v8952
        %v8968 = vrot.slane %v8967, 4
        %v8970 = vshll.u32 %v8109, 16
        %v8972 = vrot.slane %v8970, 5
        %v8973 = vsel %vm2581, %v8968, %v8972
        %v8975 = vshrl.u32 %v8110, 16
        %v8977 = vrot.slane %v8975, 4
        %v8978 = vshll.u32 %v8110, 16
        %v8980 = vrot.slane %v8978, 5
        %v8981 = vor.u32 %v8977, %v8980
        %v8982 = vrot.slane %v8981, 4
        %v8984 = vshll.u32 %v8112, 16
        %v8986 = vrot.slane %v8984, 5
        %v8987 = vsel %vm2581, %v8982, %v8986
        %v8989 = vshrl.u32 %v8111, 16
        %v8991 = vrot.slane %v8989, 4
        %v8992 = vshll.u32 %v8111, 16
        %v8994 = vrot.slane %v8992, 5
        %v8995 = vor.u32 %v8991, %v8994
        %v8996 = vrot.slane %v8995, 4
        %v8998 = vshll.u32 %v8113, 16
        %v9000 = vrot.slane %v8998, 5
        %v9001 = vsel %vm2581, %v8996, %v9000
        %v9002 = vshrl.u32 %v8112, 16
        %v9004 = vrot.slane %v9002, 4
        %v9005 = vor.u32 %v9004, %v8986
        %v9006 = vrot.slane %v9005, 4
        %v9008 = vshll.u32 %v8114, 16
        %v9010 = vrot.slane %v9008, 5
        %v9011 = vsel %vm2581, %v9006, %v9010
        %v9012 = vshrl.u32 %v8113, 16
        %v9014 = vrot.slane %v9012, 4
        %v9015 = vor.u32 %v9014, %v9000
        %v9016 = vrot.slane %v9015, 4
        %v9018 = vshll.u32 %v8115, 16
        %v9020 = vrot.slane %v9018, 5
        %v9021 = vsel %vm2581, %v9016, %v9020
        %v9023 = vshrl.u32 %v8116, 16
        %v9025 = vrot.slane %v9023, 4
        %v9026 = vshll.u32 %v8116, 16
        %v9028 = vrot.slane %v9026, 5
        %v9029 = vor.u32 %v9025, %v9028
        %v9030 = vrot.slane %v9029, 4
        %v9032 = vshll.u32 %v8118, 16
        %v9034 = vrot.slane %v9032, 5
        %v9035 = vsel %vm2581, %v9030, %v9034
        %v9037 = vshrl.u32 %v8117, 16
        %v9039 = vrot.slane %v9037, 4
        %v9040 = vshll.u32 %v8117, 16
        %v9042 = vrot.slane %v9040, 5
        %v9043 = vor.u32 %v9039, %v9042
        %v9044 = vrot.slane %v9043, 4
        %v9046 = vshll.u32 %v8119, 16
        %v9048 = vrot.slane %v9046, 5
        %v9049 = vsel %vm2581, %v9044, %v9048
        %v9050 = vshrl.u32 %v8118, 16
        %v9052 = vrot.slane %v9050, 4
        %v9053 = vor.u32 %v9052, %v9034
        %v9054 = vrot.slane %v9053, 4
        %v9056 = vshll.u32 %v8120, 16
        %v9058 = vrot.slane %v9056, 5
        %v9059 = vsel %vm2581, %v9054, %v9058
        %v9060 = vshrl.u32 %v8119, 16
        %v9062 = vrot.slane %v9060, 4
        %v9063 = vor.u32 %v9062, %v9048
        %v9064 = vrot.slane %v9063, 4
        %v9066 = vshll.u32 %v8121, 16
        %v9068 = vrot.slane %v9066, 5
        %v9069 = vsel %vm2581, %v9064, %v9068
        %v9071 = vshrl.u32 %v8122, 16
        %v9073 = vrot.slane %v9071, 4
        %v9074 = vshll.u32 %v8122, 16
        %v9076 = vrot.slane %v9074, 5
        %v9077 = vor.u32 %v9073, %v9076
        %v9078 = vrot.slane %v9077, 4
        %v9080 = vshll.u32 %v8124, 16
        %v9082 = vrot.slane %v9080, 5
        %v9083 = vsel %vm2581, %v9078, %v9082
        %v9085 = vshrl.u32 %v8123, 16
        %v9087 = vrot.slane %v9085, 4
        %v9088 = vshll.u32 %v8123, 16
        %v9090 = vrot.slane %v9088, 5
        %v9091 = vor.u32 %v9087, %v9090
        %v9092 = vrot.slane %v9091, 4
        %v9094 = vshll.u32 %v8125, 16
        %v9096 = vrot.slane %v9094, 5
        %v9097 = vsel %vm2581, %v9092, %v9096
        %v9098 = vshrl.u32 %v8124, 16
        %v9100 = vrot.slane %v9098, 4
        %v9101 = vor.u32 %v9100, %v9082
        %v9102 = vrot.slane %v9101, 4
        %v9104 = vshll.u32 %v8126, 16
        %v9106 = vrot.slane %v9104, 5
        %v9107 = vsel %vm2581, %v9102, %v9106
        %v9108 = vshrl.u32 %v8125, 16
        %v9110 = vrot.slane %v9108, 4
        %v9111 = vor.u32 %v9110, %v9096
        %v9112 = vrot.slane %v9111, 4
        %v9114 = vshll.u32 %v8127, 16
        %v9116 = vrot.slane %v9114, 5
        %v9117 = vsel %vm2581, %v9112, %v9116
        %v9119 = vshrl.u32 %v8128, 16
        %v9121 = vrot.slane %v9119, 4
        %v9122 = vshll.u32 %v8128, 16
        %v9124 = vrot.slane %v9122, 5
        %v9125 = vor.u32 %v9121, %v9124
        %v9126 = vrot.slane %v9125, 4
        %v9128 = vshll.u32 %v8130, 16
        %v9130 = vrot.slane %v9128, 5
        %v9131 = vsel %vm2581, %v9126, %v9130
        %v9133 = vshrl.u32 %v8129, 16
        %v9135 = vrot.slane %v9133, 4
        %v9136 = vshll.u32 %v8129, 16
        %v9138 = vrot.slane %v9136, 5
        %v9139 = vor.u32 %v9135, %v9138
        %v9140 = vrot.slane %v9139, 4
        %v9142 = vshll.u32 %v8131, 16
        %v9144 = vrot.slane %v9142, 5
        %v9145 = vsel %vm2581, %v9140, %v9144
        %v9146 = vshrl.u32 %v8130, 16
        %v9148 = vrot.slane %v9146, 4
        %v9149 = vor.u32 %v9148, %v9130
        %v9150 = vrot.slane %v9149, 4
        %v9152 = vshll.u32 %v8132, 16
        %v9154 = vrot.slane %v9152, 5
        %v9155 = vsel %vm2581, %v9150, %v9154
        %v9156 = vshrl.u32 %v8131, 16
        %v9158 = vrot.slane %v9156, 4
        %v9159 = vor.u32 %v9158, %v9144
        %v9160 = vrot.slane %v9159, 4
        %v9162 = vshll.u32 %v8133, 16
        %v9164 = vrot.slane %v9162, 5
        %v9165 = vsel %vm2581, %v9160, %v9164
        %v9167 = vshrl.u32 %v8134, 16
        %v9169 = vrot.slane %v9167, 4
        %v9170 = vshll.u32 %v8134, 16
        %v9172 = vrot.slane %v9170, 5
        %v9173 = vor.u32 %v9169, %v9172
        %v9174 = vrot.slane %v9173, 4
        %v9176 = vshll.u32 %v8136, 16
        %v9178 = vrot.slane %v9176, 5
        %v9179 = vsel %vm2581, %v9174, %v9178
        %v9181 = vshrl.u32 %v8135, 16
        %v9183 = vrot.slane %v9181, 4
        %v9184 = vshll.u32 %v8135, 16
        %v9186 = vrot.slane %v9184, 5
        %v9187 = vor.u32 %v9183, %v9186
        %v9188 = vrot.slane %v9187, 4
        %v9190 = vshll.u32 %v8137, 16
        %v9192 = vrot.slane %v9190, 5
        %v9193 = vsel %vm2581, %v9188, %v9192
        %v9194 = vshrl.u32 %v8136, 16
        %v9196 = vrot.slane %v9194, 4
        %v9197 = vor.u32 %v9196, %v9178
        %v9198 = vrot.slane %v9197, 4
        %v9200 = vshll.u32 %v8138, 16
        %v9202 = vrot.slane %v9200, 5
        %v9203 = vsel %vm2581, %v9198, %v9202
        %v9204 = vshrl.u32 %v8137, 16
        %v9206 = vrot.slane %v9204, 4
        %v9207 = vor.u32 %v9206, %v9192
        %v9208 = vrot.slane %v9207, 4
        %v9210 = vshll.u32 %v8139, 16
        %v9212 = vrot.slane %v9210, 5
        %v9213 = vsel %vm2581, %v9208, %v9212
        %v9215 = vshrl.u32 %v8140, 16
        %v9217 = vrot.slane %v9215, 4
        %v9218 = vshll.u32 %v8140, 16
        %v9220 = vrot.slane %v9218, 5
        %v9221 = vor.u32 %v9217, %v9220
        %v9222 = vrot.slane %v9221, 4
        %v9224 = vshll.u32 %v8142, 16
        %v9226 = vrot.slane %v9224, 5
        %v9227 = vsel %vm2581, %v9222, %v9226
        %v9229 = vshrl.u32 %v8141, 16
        %v9231 = vrot.slane %v9229, 4
        %v9232 = vshll.u32 %v8141, 16
        %v9234 = vrot.slane %v9232, 5
        %v9235 = vor.u32 %v9231, %v9234
        %v9236 = vrot.slane %v9235, 4
        %v9238 = vshll.u32 %v8143, 16
        %v9240 = vrot.slane %v9238, 5
        %v9241 = vsel %vm2581, %v9236, %v9240
        %v9242 = vshrl.u32 %v8142, 16
        %v9244 = vrot.slane %v9242, 4
        %v9245 = vor.u32 %v9244, %v9226
        %v9246 = vrot.slane %v9245, 4
        %v9248 = vshll.u32 %v8144, 16
        %v9250 = vrot.slane %v9248, 5
        %v9251 = vsel %vm2581, %v9246, %v9250
        %v9252 = vshrl.u32 %v8143, 16
        %v9254 = vrot.slane %v9252, 4
        %v9255 = vor.u32 %v9254, %v9240
        %v9256 = vrot.slane %v9255, 4
        %v9258 = vshll.u32 %v8145, 16
        %v9260 = vrot.slane %v9258, 5
        %v9261 = vsel %vm2581, %v9256, %v9260
        %v9263 = vshrl.u32 %v8146, 16
        %v9265 = vrot.slane %v9263, 4
        %v9266 = vshll.u32 %v8146, 16
        %v9268 = vrot.slane %v9266, 5
        %v9269 = vor.u32 %v9265, %v9268
        %v9270 = vrot.slane %v9269, 4
        %v9272 = vshll.u32 %v8148, 16
        %v9274 = vrot.slane %v9272, 5
        %v9275 = vsel %vm2581, %v9270, %v9274
        %v9277 = vshrl.u32 %v8147, 16
        %v9279 = vrot.slane %v9277, 4
        %v9280 = vshll.u32 %v8147, 16
        %v9282 = vrot.slane %v9280, 5
        %v9283 = vor.u32 %v9279, %v9282
        %v9284 = vrot.slane %v9283, 4
        %v9286 = vshll.u32 %v8149, 16
        %v9288 = vrot.slane %v9286, 5
        %v9289 = vsel %vm2581, %v9284, %v9288
        %v9290 = vshrl.u32 %v8148, 16
        %v9292 = vrot.slane %v9290, 4
        %v9293 = vor.u32 %v9292, %v9274
        %v9294 = vrot.slane %v9293, 4
        %v9296 = vshll.u32 %v8150, 16
        %v9298 = vrot.slane %v9296, 5
        %v9299 = vsel %vm2581, %v9294, %v9298
        %v9300 = vshrl.u32 %v8149, 16
        %v9302 = vrot.slane %v9300, 4
        %v9303 = vor.u32 %v9302, %v9288
        %v9304 = vrot.slane %v9303, 4
        %v9306 = vshll.u32 %v8151, 16
        %v9308 = vrot.slane %v9306, 5
        %v9309 = vsel %vm2581, %v9304, %v9308
        %v9311 = vshrl.u32 %v8152, 16
        %v9313 = vrot.slane %v9311, 4
        %v9314 = vshll.u32 %v8152, 16
        %v9316 = vrot.slane %v9314, 5
        %v9317 = vor.u32 %v9313, %v9316
        %v9318 = vrot.slane %v9317, 4
        %v9320 = vshll.u32 %v8154, 16
        %v9322 = vrot.slane %v9320, 5
        %v9323 = vsel %vm2581, %v9318, %v9322
        %v9325 = vshrl.u32 %v8153, 16
        %v9327 = vrot.slane %v9325, 4
        %v9328 = vshll.u32 %v8153, 16
        %v9330 = vrot.slane %v9328, 5
        %v9331 = vor.u32 %v9327, %v9330
        %v9332 = vrot.slane %v9331, 4
        %v9334 = vshll.u32 %v8155, 16
        %v9336 = vrot.slane %v9334, 5
        %v9337 = vsel %vm2581, %v9332, %v9336
        %v9338 = vshrl.u32 %v8154, 16
        %v9340 = vrot.slane %v9338, 4
        %v9341 = vor.u32 %v9340, %v9322
        %v9342 = vrot.slane %v9341, 4
        %v9344 = vshll.u32 %v8156, 16
        %v9346 = vrot.slane %v9344, 5
        %v9347 = vsel %vm2581, %v9342, %v9346
        %v9348 = vshrl.u32 %v8155, 16
        %v9350 = vrot.slane %v9348, 4
        %v9351 = vor.u32 %v9350, %v9336
        %v9352 = vrot.slane %v9351, 4
        %v9354 = vshll.u32 %v8157, 16
        %v9356 = vrot.slane %v9354, 5
        %v9357 = vsel %vm2581, %v9352, %v9356
        %v9359 = vshrl.u32 %v8158, 16
        %v9361 = vrot.slane %v9359, 4
        %v9362 = vshll.u32 %v8158, 16
        %v9364 = vrot.slane %v9362, 5
        %v9365 = vor.u32 %v9361, %v9364
        %v9366 = vrot.slane %v9365, 4
        %v9368 = vshll.u32 %v8160, 16
        %v9370 = vrot.slane %v9368, 5
        %v9371 = vsel %vm2581, %v9366, %v9370
        %v9373 = vshrl.u32 %v8159, 16
        %v9375 = vrot.slane %v9373, 4
        %v9376 = vshll.u32 %v8159, 16
        %v9378 = vrot.slane %v9376, 5
        %v9379 = vor.u32 %v9375, %v9378
        %v9380 = vrot.slane %v9379, 4
        %v9382 = vshll.u32 %v8161, 16
        %v9384 = vrot.slane %v9382, 5
        %v9385 = vsel %vm2581, %v9380, %v9384
        %v9386 = vshrl.u32 %v8160, 16
        %v9388 = vrot.slane %v9386, 4
        %v9389 = vor.u32 %v9388, %v9370
        %v9390 = vrot.slane %v9389, 4
        %v9392 = vshll.u32 %v8162, 16
        %v9394 = vrot.slane %v9392, 5
        %v9395 = vsel %vm2581, %v9390, %v9394
        %v9396 = vshrl.u32 %v8161, 16
        %v9398 = vrot.slane %v9396, 4
        %v9399 = vor.u32 %v9398, %v9384
        %v9400 = vrot.slane %v9399, 4
        %v9402 = vshll.u32 %v8163, 16
        %v9404 = vrot.slane %v9402, 5
        %v9405 = vsel %vm2581, %v9400, %v9404
        %v9407 = vshrl.u32 %v8164, 16
        %v9409 = vrot.slane %v9407, 4
        %v9410 = vshll.u32 %v8164, 16
        %v9412 = vrot.slane %v9410, 5
        %v9413 = vor.u32 %v9409, %v9412
        %v9414 = vrot.slane %v9413, 4
        %v9416 = vshll.u32 %v8166, 16
        %v9418 = vrot.slane %v9416, 5
        %v9419 = vsel %vm2581, %v9414, %v9418
        %v9421 = vshrl.u32 %v8165, 16
        %v9423 = vrot.slane %v9421, 4
        %v9424 = vshll.u32 %v8165, 16
        %v9426 = vrot.slane %v9424, 5
        %v9427 = vor.u32 %v9423, %v9426
        %v9428 = vrot.slane %v9427, 4
        %v9430 = vshll.u32 %v8167, 16
        %v9432 = vrot.slane %v9430, 5
        %v9433 = vsel %vm2581, %v9428, %v9432
        %v9434 = vshrl.u32 %v8166, 16
        %v9436 = vrot.slane %v9434, 4
        %v9437 = vor.u32 %v9436, %v9418
        %v9438 = vrot.slane %v9437, 4
        %v9440 = vshll.u32 %v8168, 16
        %v9442 = vrot.slane %v9440, 5
        %v9443 = vsel %vm2581, %v9438, %v9442
        %v9444 = vshrl.u32 %v8167, 16
        %v9446 = vrot.slane %v9444, 4
        %v9447 = vor.u32 %v9446, %v9432
        %v9448 = vrot.slane %v9447, 4
        %v9450 = vshll.u32 %v8169, 16
        %v9452 = vrot.slane %v9450, 5
        %v9453 = vsel %vm2581, %v9448, %v9452
        %v9455 = vshrl.u32 %v8170, 16
        %v9457 = vrot.slane %v9455, 4
        %v9458 = vshll.u32 %v8170, 16
        %v9460 = vrot.slane %v9458, 5
        %v9461 = vor.u32 %v9457, %v9460
        %v9462 = vrot.slane %v9461, 4
        %v9464 = vshll.u32 %v8172, 16
        %v9466 = vrot.slane %v9464, 5
        %v9467 = vsel %vm2581, %v9462, %v9466
        %v9469 = vshrl.u32 %v8171, 16
        %v9471 = vrot.slane %v9469, 4
        %v9472 = vshll.u32 %v8171, 16
        %v9474 = vrot.slane %v9472, 5
        %v9475 = vor.u32 %v9471, %v9474
        %v9476 = vrot.slane %v9475, 4
        %v9478 = vshll.u32 %v8173, 16
        %v9480 = vrot.slane %v9478, 5
        %v9481 = vsel %vm2581, %v9476, %v9480
        %v9482 = vshrl.u32 %v8172, 16
        %v9484 = vrot.slane %v9482, 4
        %v9485 = vor.u32 %v9484, %v9466
        %v9486 = vrot.slane %v9485, 4
        %v9488 = vshll.u32 %v8174, 16
        %v9490 = vrot.slane %v9488, 5
        %v9491 = vsel %vm2581, %v9486, %v9490
        %v9492 = vshrl.u32 %v8173, 16
        %v9494 = vrot.slane %v9492, 4
        %v9495 = vor.u32 %v9494, %v9480
        %v9496 = vrot.slane %v9495, 4
        %v9498 = vshll.u32 %v8175, 16
        %v9500 = vrot.slane %v9498, 5
        %v9501 = vsel %vm2581, %v9496, %v9500
        %v9503 = vshrl.u32 %v8176, 16
        %v9505 = vrot.slane %v9503, 4
        %v9506 = vshll.u32 %v8176, 16
        %v9508 = vrot.slane %v9506, 5
        %v9509 = vor.u32 %v9505, %v9508
        %v9510 = vrot.slane %v9509, 4
        %v9512 = vshll.u32 %v8178, 16
        %v9514 = vrot.slane %v9512, 5
        %v9515 = vsel %vm2581, %v9510, %v9514
        %v9517 = vshrl.u32 %v8177, 16
        %v9519 = vrot.slane %v9517, 4
        %v9520 = vshll.u32 %v8177, 16
        %v9522 = vrot.slane %v9520, 5
        %v9523 = vor.u32 %v9519, %v9522
        %v9524 = vrot.slane %v9523, 4
        %v9526 = vshll.u32 %v8179, 16
        %v9528 = vrot.slane %v9526, 5
        %v9529 = vsel %vm2581, %v9524, %v9528
        %v9530 = vshrl.u32 %v8178, 16
        %v9532 = vrot.slane %v9530, 4
        %v9533 = vor.u32 %v9532, %v9514
        %v9534 = vrot.slane %v9533, 4
        %v9536 = vshll.u32 %v8180, 16
        %v9538 = vrot.slane %v9536, 5
        %v9539 = vsel %vm2581, %v9534, %v9538
        %v9540 = vshrl.u32 %v8179, 16
        %v9542 = vrot.slane %v9540, 4
        %v9543 = vor.u32 %v9542, %v9528
        %v9544 = vrot.slane %v9543, 4
        %v9546 = vshll.u32 %v8181, 16
        %v9548 = vrot.slane %v9546, 5
        %v9549 = vsel %vm2581, %v9544, %v9548
        %v9551 = vshrl.u32 %v8182, 16
        %v9553 = vrot.slane %v9551, 4
        %v9554 = vshll.u32 %v8182, 16
        %v9556 = vrot.slane %v9554, 5
        %v9557 = vor.u32 %v9553, %v9556
        %v9558 = vrot.slane %v9557, 4
        %v9560 = vshll.u32 %v8184, 16
        %v9562 = vrot.slane %v9560, 5
        %v9563 = vsel %vm2581, %v9558, %v9562
        %v9565 = vshrl.u32 %v8183, 16
        %v9567 = vrot.slane %v9565, 4
        %v9568 = vshll.u32 %v8183, 16
        %v9570 = vrot.slane %v9568, 5
        %v9571 = vor.u32 %v9567, %v9570
        %v9572 = vrot.slane %v9571, 4
        %v9574 = vshll.u32 %v8185, 16
        %v9576 = vrot.slane %v9574, 5
        %v9577 = vsel %vm2581, %v9572, %v9576
        %v9578 = vshrl.u32 %v8184, 16
        %v9580 = vrot.slane %v9578, 4
        %v9581 = vor.u32 %v9580, %v9562
        %v9582 = vrot.slane %v9581, 4
        %v9584 = vshll.u32 %v8186, 16
        %v9586 = vrot.slane %v9584, 5
        %v9587 = vsel %vm2581, %v9582, %v9586
        %v9588 = vshrl.u32 %v8185, 16
        %v9590 = vrot.slane %v9588, 4
        %v9591 = vor.u32 %v9590, %v9576
        %v9592 = vrot.slane %v9591, 4
        %v9594 = vshll.u32 %v8187, 16
        %v9596 = vrot.slane %v9594, 5
        %v9597 = vsel %vm2581, %v9592, %v9596
        %v9599 = vshrl.u32 %v8188, 16
        %v9601 = vrot.slane %v9599, 4
        %v9602 = vshll.u32 %v8188, 16
        %v9604 = vrot.slane %v9602, 5
        %v9605 = vor.u32 %v9601, %v9604
        %v9606 = vrot.slane %v9605, 4
        %v9608 = vshll.u32 %v8190, 16
        %v9610 = vrot.slane %v9608, 5
        %v9611 = vsel %vm2581, %v9606, %v9610
        %v9613 = vshrl.u32 %v8189, 16
        %v9615 = vrot.slane %v9613, 4
        %v9616 = vshll.u32 %v8189, 16
        %v9618 = vrot.slane %v9616, 5
        %v9619 = vor.u32 %v9615, %v9618
        %v9620 = vrot.slane %v9619, 4
        %v9622 = vshll.u32 %v8191, 16
        %v9624 = vrot.slane %v9622, 5
        %v9625 = vsel %vm2581, %v9620, %v9624
        %v9626 = vshrl.u32 %v8190, 16
        %v9628 = vrot.slane %v9626, 4
        %v9629 = vor.u32 %v9628, %v9610
        %v9630 = vrot.slane %v9629, 4
        %v9632 = vshll.u32 %v8192, 16
        %v9634 = vrot.slane %v9632, 5
        %v9635 = vsel %vm2581, %v9630, %v9634
        %v9636 = vshrl.u32 %v8191, 16
        %v9638 = vrot.slane %v9636, 4
        %v9639 = vor.u32 %v9638, %v9624
        %v9640 = vrot.slane %v9639, 4
        %v9642 = vshll.u32 %v8193, 16
        %v9644 = vrot.slane %v9642, 5
        %v9645 = vsel %vm2581, %v9640, %v9644
        %v9647 = vshrl.u32 %v8194, 16
        %v9649 = vrot.slane %v9647, 4
        %v9650 = vshll.u32 %v8194, 16
        %v9652 = vrot.slane %v9650, 5
        %v9653 = vor.u32 %v9649, %v9652
        %v9654 = vrot.slane %v9653, 4
        %v9656 = vshll.u32 %v8196, 16
        %v9658 = vrot.slane %v9656, 5
        %v9659 = vsel %vm2581, %v9654, %v9658
        %v9661 = vshrl.u32 %v8195, 16
        %v9663 = vrot.slane %v9661, 4
        %v9664 = vshll.u32 %v8195, 16
        %v9666 = vrot.slane %v9664, 5
        %v9667 = vor.u32 %v9663, %v9666
        %v9668 = vrot.slane %v9667, 4
        %v9670 = vshll.u32 %v8197, 16
        %v9672 = vrot.slane %v9670, 5
        %v9673 = vsel %vm2581, %v9668, %v9672
        %v9674 = vshrl.u32 %v8196, 16
        %v9676 = vrot.slane %v9674, 4
        %v9677 = vor.u32 %v9676, %v9658
        %v9678 = vrot.slane %v9677, 4
        %v9680 = vshll.u32 %v8198, 16
        %v9682 = vrot.slane %v9680, 5
        %v9683 = vsel %vm2581, %v9678, %v9682
        %v9684 = vshrl.u32 %v8197, 16
        %v9686 = vrot.slane %v9684, 4
        %v9687 = vor.u32 %v9686, %v9672
        %v9688 = vrot.slane %v9687, 4
        %v9690 = vshll.u32 %v8199, 16
        %v9692 = vrot.slane %v9690, 5
        %v9693 = vsel %vm2581, %v9688, %v9692
        %v9695 = vshrl.u32 %v8200, 16
        %v9697 = vrot.slane %v9695, 4
        %v9698 = vshll.u32 %v8200, 16
        %v9700 = vrot.slane %v9698, 5
        %v9701 = vor.u32 %v9697, %v9700
        %v9702 = vrot.slane %v9701, 4
        %v9704 = vshll.u32 %v8202, 16
        %v9706 = vrot.slane %v9704, 5
        %v9707 = vsel %vm2581, %v9702, %v9706
        %v9709 = vshrl.u32 %v8201, 16
        %v9711 = vrot.slane %v9709, 4
        %v9712 = vshll.u32 %v8201, 16
        %v9714 = vrot.slane %v9712, 5
        %v9715 = vor.u32 %v9711, %v9714
        %v9716 = vrot.slane %v9715, 4
        %v9718 = vshll.u32 %v8203, 16
        %v9720 = vrot.slane %v9718, 5
        %v9721 = vsel %vm2581, %v9716, %v9720
        %v9722 = vshrl.u32 %v8202, 16
        %v9724 = vrot.slane %v9722, 4
        %v9725 = vor.u32 %v9724, %v9706
        %v9726 = vrot.slane %v9725, 4
        %v9728 = vshll.u32 %v8204, 16
        %v9730 = vrot.slane %v9728, 5
        %v9731 = vsel %vm2581, %v9726, %v9730
        %v9732 = vshrl.u32 %v8203, 16
        %v9734 = vrot.slane %v9732, 4
        %v9735 = vor.u32 %v9734, %v9720
        %v9736 = vrot.slane %v9735, 4
        %v9738 = vshll.u32 %v8205, 16
        %v9740 = vrot.slane %v9738, 5
        %v9741 = vsel %vm2581, %v9736, %v9740
        %s9742 = scalar_lea.vmem [#allocation8], 384
        %v9743 = vld [vmem:[%s9742] sm:$0xf]
        %v9744 = vld [vmem:[%s9742 + $0x4] sm:$0xf]
        %v9745 = vld [vmem:[%s9742 + $0x8] sm:$0xf]
        %v9746 = vld [vmem:[%s9742 + $0xc] sm:$0xf]
        %v9747 = vld [vmem:[%s9742 + $0x10] sm:$0xf]
        %v9748 = vld [vmem:[%s9742 + $0x14] sm:$0xf]
        %v9749 = vld [vmem:[%s9742 + $0x18] sm:$0xf]
        %v9750 = vld [vmem:[%s9742 + $0x1c] sm:$0xf]
        %v9751 = vld [vmem:[%s9742 + $0x20] sm:$0xf]
        %v9752 = vld [vmem:[%s9742 + $0x24] sm:$0xf]
        %v9753 = vld [vmem:[%s9742 + $0x28] sm:$0xf]
        %v9754 = vld [vmem:[%s9742 + $0x2c] sm:$0xf]
        %v9755 = vld [vmem:[%s9742 + $0x30] sm:$0xf]
        %v9756 = vld [vmem:[%s9742 + $0x34] sm:$0xf]
        %v9757 = vld [vmem:[%s9742 + $0x38] sm:$0xf]
        %v9758 = vld [vmem:[%s9742 + $0x3c] sm:$0xf]
        %v9759 = vld [vmem:[%s9742 + $0x40] sm:$0xf]
        %v9760 = vld [vmem:[%s9742 + $0x44] sm:$0xf]
        %v9761 = vld [vmem:[%s9742 + $0x48] sm:$0xf]
        %v9762 = vld [vmem:[%s9742 + $0x4c] sm:$0xf]
        %v9763 = vld [vmem:[%s9742 + $0x50] sm:$0xf]
        %v9764 = vld [vmem:[%s9742 + $0x54] sm:$0xf]
        %v9765 = vld [vmem:[%s9742 + $0x58] sm:$0xf]
        %v9766 = vld [vmem:[%s9742 + $0x5c] sm:$0xf]
        %v9767 = vld [vmem:[%s9742 + $0x60] sm:$0xf]
        %v9768 = vld [vmem:[%s9742 + $0x64] sm:$0xf]
        %v9769 = vld [vmem:[%s9742 + $0x68] sm:$0xf]
        %v9770 = vld [vmem:[%s9742 + $0x6c] sm:$0xf]
        %v9771 = vld [vmem:[%s9742 + $0x70] sm:$0xf]
        %v9772 = vld [vmem:[%s9742 + $0x74] sm:$0xf]
        %v9773 = vld [vmem:[%s9742 + $0x78] sm:$0xf]
        %v9774 = vld [vmem:[%s9742 + $0x7c] sm:$0xf]
        %v9775 = vld [vmem:[%s9742 + $0x80] sm:$0xf]
        %v9776 = vld [vmem:[%s9742 + $0x84] sm:$0xf]
        %v9777 = vld [vmem:[%s9742 + $0x88] sm:$0xf]
        %v9778 = vld [vmem:[%s9742 + $0x8c] sm:$0xf]
        %v9779 = vld [vmem:[%s9742 + $0x90] sm:$0xf]
        %v9780 = vld [vmem:[%s9742 + $0x94] sm:$0xf]
        %v9781 = vld [vmem:[%s9742 + $0x98] sm:$0xf]
        %v9782 = vld [vmem:[%s9742 + $0x9c] sm:$0xf]
        %v9783 = vld [vmem:[%s9742 + $0xa0] sm:$0xf]
        %v9784 = vld [vmem:[%s9742 + $0xa4] sm:$0xf]
        %v9785 = vld [vmem:[%s9742 + $0xa8] sm:$0xf]
        %v9786 = vld [vmem:[%s9742 + $0xac] sm:$0xf]
        %v9787 = vld [vmem:[%s9742 + $0xb0] sm:$0xf]
        %v9788 = vld [vmem:[%s9742 + $0xb4] sm:$0xf]
        %v9789 = vld [vmem:[%s9742 + $0xb8] sm:$0xf]
        %v9790 = vld [vmem:[%s9742 + $0xbc] sm:$0xf]
        %v9791 = vunpack.c.l.b16 %v8219
        %v9792 = vunpack.c.h.b16 %v8219
        %v9793 = vunpack.c.l.b16 %v8233
        %v9794 = vunpack.c.l.b16 %v8243
        %v9795 = vunpack.c.h.b16 %v8243
        %v9796 = vunpack.c.l.b16 %v8253
        %v9797 = vunpack.c.l.b16 %v8267
        %v9798 = vunpack.c.h.b16 %v8267
        %v9799 = vunpack.c.l.b16 %v8281
        %v9800 = vunpack.c.l.b16 %v8291
        %v9801 = vunpack.c.h.b16 %v8291
        %v9802 = vunpack.c.l.b16 %v8301
        %v9803 = vunpack.c.l.b16 %v8315
        %v9804 = vunpack.c.h.b16 %v8315
        %v9805 = vunpack.c.l.b16 %v8329
        %v9806 = vunpack.c.l.b16 %v8339
        %v9807 = vunpack.c.h.b16 %v8339
        %v9808 = vunpack.c.l.b16 %v8349
        %v9809 = vunpack.c.l.b16 %v8363
        %v9810 = vunpack.c.h.b16 %v8363
        %v9811 = vunpack.c.l.b16 %v8377
        %v9812 = vunpack.c.l.b16 %v8387
        %v9813 = vunpack.c.h.b16 %v8387
        %v9814 = vunpack.c.l.b16 %v8397
        %v9815 = vunpack.c.l.b16 %v8411
        %v9816 = vunpack.c.h.b16 %v8411
        %v9817 = vunpack.c.l.b16 %v8425
        %v9818 = vunpack.c.l.b16 %v8435
        %v9819 = vunpack.c.h.b16 %v8435
        %v9820 = vunpack.c.l.b16 %v8445
        %v9821 = vunpack.c.l.b16 %v8459
        %v9822 = vunpack.c.h.b16 %v8459
        %v9823 = vunpack.c.l.b16 %v8473
        %v9824 = vunpack.c.l.b16 %v8483
        %v9825 = vunpack.c.h.b16 %v8483
        %v9826 = vunpack.c.l.b16 %v8493
        %v9827 = vunpack.c.l.b16 %v8507
        %v9828 = vunpack.c.h.b16 %v8507
        %v9829 = vunpack.c.l.b16 %v8521
        %v9830 = vunpack.c.l.b16 %v8531
        %v9831 = vunpack.c.h.b16 %v8531
        %v9832 = vunpack.c.l.b16 %v8541
        %v9833 = vunpack.c.l.b16 %v8555
        %v9834 = vunpack.c.h.b16 %v8555
        %v9835 = vunpack.c.l.b16 %v8569
        %v9836 = vunpack.c.l.b16 %v8579
        %v9837 = vunpack.c.h.b16 %v8579
        %v9838 = vunpack.c.l.b16 %v8589
        %v9839 = vunpack.c.l.b16 %v8603
        %v9840 = vunpack.c.h.b16 %v8603
        %v9841 = vunpack.c.l.b16 %v8617
        %v9842 = vunpack.c.l.b16 %v8627
        %v9843 = vunpack.c.h.b16 %v8627
        %v9844 = vunpack.c.l.b16 %v8637
        %v9845 = vunpack.c.l.b16 %v8651
        %v9846 = vunpack.c.h.b16 %v8651
        %v9847 = vunpack.c.l.b16 %v8665
        %v9848 = vunpack.c.l.b16 %v8675
        %v9849 = vunpack.c.h.b16 %v8675
        %v9850 = vunpack.c.l.b16 %v8685
        %v9851 = vunpack.c.l.b16 %v8699
        %v9852 = vunpack.c.h.b16 %v8699
        %v9853 = vunpack.c.l.b16 %v8713
        %v9854 = vunpack.c.l.b16 %v8723
        %v9855 = vunpack.c.h.b16 %v8723
        %v9856 = vunpack.c.l.b16 %v8733
        %v9857 = vunpack.c.l.b16 %v8747
        %v9858 = vunpack.c.h.b16 %v8747
        %v9859 = vunpack.c.l.b16 %v8761
        %v9860 = vunpack.c.l.b16 %v8771
        %v9861 = vunpack.c.h.b16 %v8771
        %v9862 = vunpack.c.l.b16 %v8781
        %v9863 = vunpack.c.l.b16 %v8795
        %v9864 = vunpack.c.h.b16 %v8795
        %v9865 = vunpack.c.l.b16 %v8809
        %v9866 = vunpack.c.l.b16 %v8819
        %v9867 = vunpack.c.h.b16 %v8819
        %v9868 = vunpack.c.l.b16 %v8829
        %v9869 = vunpack.c.l.b16 %v8843
        %v9870 = vunpack.c.h.b16 %v8843
        %v9871 = vunpack.c.l.b16 %v8857
        %v9872 = vunpack.c.l.b16 %v8867
        %v9873 = vunpack.c.h.b16 %v8867
        %v9874 = vunpack.c.l.b16 %v8877
        %v9875 = vunpack.c.l.b16 %v8891
        %v9876 = vunpack.c.h.b16 %v8891
        %v9877 = vunpack.c.l.b16 %v8905
        %v9878 = vunpack.c.l.b16 %v8915
        %v9879 = vunpack.c.h.b16 %v8915
        %v9880 = vunpack.c.l.b16 %v8925
        %v9881 = vunpack.c.l.b16 %v8939
        %v9882 = vunpack.c.h.b16 %v8939
        %v9883 = vunpack.c.l.b16 %v8953
        %v9884 = vunpack.c.l.b16 %v8963
        %v9885 = vunpack.c.h.b16 %v8963
        %v9886 = vunpack.c.l.b16 %v8973
        %v9887 = vunpack.c.l.b16 %v8987
        %v9888 = vunpack.c.h.b16 %v8987
        %v9889 = vunpack.c.l.b16 %v9001
        %v9890 = vunpack.c.l.b16 %v9011
        %v9891 = vunpack.c.h.b16 %v9011
        %v9892 = vunpack.c.l.b16 %v9021
        %v9893 = vunpack.c.l.b16 %v9035
        %v9894 = vunpack.c.h.b16 %v9035
        %v9895 = vunpack.c.l.b16 %v9049
        %v9896 = vunpack.c.l.b16 %v9059
        %v9897 = vunpack.c.h.b16 %v9059
        %v9898 = vunpack.c.l.b16 %v9069
        %v9899 = vunpack.c.l.b16 %v9083
        %v9900 = vunpack.c.h.b16 %v9083
        %v9901 = vunpack.c.l.b16 %v9097
        %v9902 = vunpack.c.l.b16 %v9107
        %v9903 = vunpack.c.h.b16 %v9107
        %v9904 = vunpack.c.l.b16 %v9117
        %v9905 = vunpack.c.l.b16 %v9131
        %v9906 = vunpack.c.h.b16 %v9131
        %v9907 = vunpack.c.l.b16 %v9145
        %v9908 = vunpack.c.l.b16 %v9155
        %v9909 = vunpack.c.h.b16 %v9155
        %v9910 = vunpack.c.l.b16 %v9165
        %v9911 = vunpack.c.l.b16 %v9179
        %v9912 = vunpack.c.h.b16 %v9179
        %v9913 = vunpack.c.l.b16 %v9193
        %v9914 = vunpack.c.l.b16 %v9203
        %v9915 = vunpack.c.h.b16 %v9203
        %v9916 = vunpack.c.l.b16 %v9213
        %v9917 = vunpack.c.l.b16 %v9227
        %v9918 = vunpack.c.h.b16 %v9227
        %v9919 = vunpack.c.l.b16 %v9241
        %v9920 = vunpack.c.l.b16 %v9251
        %v9921 = vunpack.c.h.b16 %v9251
        %v9922 = vunpack.c.l.b16 %v9261
        %v9923 = vunpack.c.l.b16 %v9275
        %v9924 = vunpack.c.h.b16 %v9275
        %v9925 = vunpack.c.l.b16 %v9289
        %v9926 = vunpack.c.l.b16 %v9299
        %v9927 = vunpack.c.h.b16 %v9299
        %v9928 = vunpack.c.l.b16 %v9309
        %v9929 = vunpack.c.l.b16 %v9323
        %v9930 = vunpack.c.h.b16 %v9323
        %v9931 = vunpack.c.l.b16 %v9337
        %v9932 = vunpack.c.l.b16 %v9347
        %v9933 = vunpack.c.h.b16 %v9347
        %v9934 = vunpack.c.l.b16 %v9357
        %v9935 = vunpack.c.l.b16 %v9371
        %v9936 = vunpack.c.h.b16 %v9371
        %v9937 = vunpack.c.l.b16 %v9385
        %v9938 = vunpack.c.l.b16 %v9395
        %v9939 = vunpack.c.h.b16 %v9395
        %v9940 = vunpack.c.l.b16 %v9405
        %v9941 = vunpack.c.l.b16 %v9419
        %v9942 = vunpack.c.h.b16 %v9419
        %v9943 = vunpack.c.l.b16 %v9433
        %v9944 = vunpack.c.l.b16 %v9443
        %v9945 = vunpack.c.h.b16 %v9443
        %v9946 = vunpack.c.l.b16 %v9453
        %v9947 = vunpack.c.l.b16 %v9467
        %v9948 = vunpack.c.h.b16 %v9467
        %v9949 = vunpack.c.l.b16 %v9481
        %v9950 = vunpack.c.l.b16 %v9491
        %v9951 = vunpack.c.h.b16 %v9491
        %v9952 = vunpack.c.l.b16 %v9501
        %v9953 = vunpack.c.l.b16 %v9515
        %v9954 = vunpack.c.h.b16 %v9515
        %v9955 = vunpack.c.l.b16 %v9529
        %v9956 = vunpack.c.l.b16 %v9539
        %v9957 = vunpack.c.h.b16 %v9539
        %v9958 = vunpack.c.l.b16 %v9549
        %v9959 = vunpack.c.l.b16 %v9563
        %v9960 = vunpack.c.h.b16 %v9563
        %v9961 = vunpack.c.l.b16 %v9577
        %v9962 = vunpack.c.l.b16 %v9587
        %v9963 = vunpack.c.h.b16 %v9587
        %v9964 = vunpack.c.l.b16 %v9597
        %v9965 = vunpack.c.l.b16 %v9611
        %v9966 = vunpack.c.h.b16 %v9611
        %v9967 = vunpack.c.l.b16 %v9625
        %v9968 = vunpack.c.l.b16 %v9635
        %v9969 = vunpack.c.h.b16 %v9635
        %v9970 = vunpack.c.l.b16 %v9645
        %v9971 = vunpack.c.l.b16 %v9659
        %v9972 = vunpack.c.h.b16 %v9659
        %v9973 = vunpack.c.l.b16 %v9673
        %v9974 = vunpack.c.l.b16 %v9683
        %v9975 = vunpack.c.h.b16 %v9683
        %v9976 = vunpack.c.l.b16 %v9693
        %v9977 = vunpack.c.l.b16 %v9707
        %v9978 = vunpack.c.h.b16 %v9707
        %v9979 = vunpack.c.l.b16 %v9721
        %v9980 = vunpack.c.l.b16 %v9731
        %v9981 = vunpack.c.h.b16 %v9731
        %v9982 = vunpack.c.l.b16 %v9741
        %v9983 = vpack.c.b16 %v9794, %v9791
        %v9984 = vpack.c.b16 %v9795, %v9792
        %v9985 = vpack.c.b16 %v9796, %v9793
        %v9986 = vpack.c.b16 %v9800, %v9797
        %v9987 = vpack.c.b16 %v9801, %v9798
        %v9988 = vpack.c.b16 %v9802, %v9799
        %v9989 = vpack.c.b16 %v9806, %v9803
        %v9990 = vpack.c.b16 %v9807, %v9804
        %v9991 = vpack.c.b16 %v9808, %v9805
        %v9992 = vpack.c.b16 %v9812, %v9809
        %v9993 = vpack.c.b16 %v9813, %v9810
        %v9994 = vpack.c.b16 %v9814, %v9811
        %v9995 = vpack.c.b16 %v9818, %v9815
        %v9996 = vpack.c.b16 %v9819, %v9816
        %v9997 = vpack.c.b16 %v9820, %v9817
        %v9998 = vpack.c.b16 %v9824, %v9821
        %v9999 = vpack.c.b16 %v9825, %v9822
        %v10000 = vpack.c.b16 %v9826, %v9823
        %v10001 = vpack.c.b16 %v9830, %v9827
        %v10002 = vpack.c.b16 %v9831, %v9828
        %v10003 = vpack.c.b16 %v9832, %v9829
        %v10004 = vpack.c.b16 %v9836, %v9833
        %v10005 = vpack.c.b16 %v9837, %v9834
        %v10006 = vpack.c.b16 %v9838, %v9835
        %v10007 = vpack.c.b16 %v9842, %v9839
        %v10008 = vpack.c.b16 %v9843, %v9840
        %v10009 = vpack.c.b16 %v9844, %v9841
        %v10010 = vpack.c.b16 %v9848, %v9845
        %v10011 = vpack.c.b16 %v9849, %v9846
        %v10012 = vpack.c.b16 %v9850, %v9847
        %v10013 = vpack.c.b16 %v9854, %v9851
        %v10014 = vpack.c.b16 %v9855, %v9852
        %v10015 = vpack.c.b16 %v9856, %v9853
        %v10016 = vpack.c.b16 %v9860, %v9857
        %v10017 = vpack.c.b16 %v9861, %v9858
        %v10018 = vpack.c.b16 %v9862, %v9859
        %v10019 = vpack.c.b16 %v9866, %v9863
        %v10020 = vpack.c.b16 %v9867, %v9864
        %v10021 = vpack.c.b16 %v9868, %v9865
        %v10022 = vpack.c.b16 %v9872, %v9869
        %v10023 = vpack.c.b16 %v9873, %v9870
        %v10024 = vpack.c.b16 %v9874, %v9871
        %v10025 = vpack.c.b16 %v9878, %v9875
        %v10026 = vpack.c.b16 %v9879, %v9876
        %v10027 = vpack.c.b16 %v9880, %v9877
        %v10028 = vpack.c.b16 %v9884, %v9881
        %v10029 = vpack.c.b16 %v9885, %v9882
        %v10030 = vpack.c.b16 %v9886, %v9883
        %v10031 = vpack.c.b16 %v9890, %v9887
        %v10032 = vpack.c.b16 %v9891, %v9888
        %v10033 = vpack.c.b16 %v9892, %v9889
        %v10034 = vpack.c.b16 %v9896, %v9893
        %v10035 = vpack.c.b16 %v9897, %v9894
        %v10036 = vpack.c.b16 %v9898, %v9895
        %v10037 = vpack.c.b16 %v9902, %v9899
        %v10038 = vpack.c.b16 %v9903, %v9900
        %v10039 = vpack.c.b16 %v9904, %v9901
        %v10040 = vpack.c.b16 %v9908, %v9905
        %v10041 = vpack.c.b16 %v9909, %v9906
        %v10042 = vpack.c.b16 %v9910, %v9907
        %v10043 = vpack.c.b16 %v9914, %v9911
        %v10044 = vpack.c.b16 %v9915, %v9912
        %v10045 = vpack.c.b16 %v9916, %v9913
        %v10046 = vpack.c.b16 %v9920, %v9917
        %v10047 = vpack.c.b16 %v9921, %v9918
        %v10048 = vpack.c.b16 %v9922, %v9919
        %v10049 = vpack.c.b16 %v9926, %v9923
        %v10050 = vpack.c.b16 %v9927, %v9924
        %v10051 = vpack.c.b16 %v9928, %v9925
        %v10052 = vpack.c.b16 %v9932, %v9929
        %v10053 = vpack.c.b16 %v9933, %v9930
        %v10054 = vpack.c.b16 %v9934, %v9931
        %v10055 = vpack.c.b16 %v9938, %v9935
        %v10056 = vpack.c.b16 %v9939, %v9936
        %v10057 = vpack.c.b16 %v9940, %v9937
        %v10058 = vpack.c.b16 %v9944, %v9941
        %v10059 = vpack.c.b16 %v9945, %v9942
        %v10060 = vpack.c.b16 %v9946, %v9943
        %v10061 = vpack.c.b16 %v9950, %v9947
        %v10062 = vpack.c.b16 %v9951, %v9948
        %v10063 = vpack.c.b16 %v9952, %v9949
        %v10064 = vpack.c.b16 %v9956, %v9953
        %v10065 = vpack.c.b16 %v9957, %v9954
        %v10066 = vpack.c.b16 %v9958, %v9955
        %v10067 = vpack.c.b16 %v9962, %v9959
        %v10068 = vpack.c.b16 %v9963, %v9960
        %v10069 = vpack.c.b16 %v9964, %v9961
        %v10070 = vpack.c.b16 %v9968, %v9965
        %v10071 = vpack.c.b16 %v9969, %v9966
        %v10072 = vpack.c.b16 %v9970, %v9967
        %v10073 = vpack.c.b16 %v9974, %v9971
        %v10074 = vpack.c.b16 %v9975, %v9972
        %v10075 = vpack.c.b16 %v9976, %v9973
        %v10076 = vpack.c.b16 %v9980, %v9977
        %v10077 = vpack.c.b16 %v9981, %v9978
        %v10078 = vpack.c.b16 %v9982, %v9979
        %v10223 = vunpack.c.l.b16 %v9743
        %v10224 = vunpack.c.l.b16 %v9744
        %v10225 = vunpack.c.l.b16 %v9745
        %v10226 = vunpack.c.l.b16 %v9746
        %v10227 = vunpack.c.l.b16 %v9747
        %v10228 = vunpack.c.l.b16 %v9748
        %v10229 = vunpack.c.l.b16 %v9749
        %v10230 = vunpack.c.l.b16 %v9750
        %v10231 = vunpack.c.l.b16 %v9751
        %v10232 = vunpack.c.l.b16 %v9752
        %v10233 = vunpack.c.l.b16 %v9753
        %v10234 = vunpack.c.l.b16 %v9754
        %v10235 = vunpack.c.l.b16 %v9755
        %v10236 = vunpack.c.l.b16 %v9756
        %v10237 = vunpack.c.l.b16 %v9757
        %v10238 = vunpack.c.l.b16 %v9758
        %v10239 = vunpack.c.l.b16 %v9759
        %v10240 = vunpack.c.l.b16 %v9760
        %v10241 = vunpack.c.l.b16 %v9761
        %v10242 = vunpack.c.l.b16 %v9762
        %v10243 = vunpack.c.l.b16 %v9763
        %v10244 = vunpack.c.l.b16 %v9764
        %v10245 = vunpack.c.l.b16 %v9765
        %v10246 = vunpack.c.l.b16 %v9766
        %v10247 = vunpack.c.l.b16 %v9767
        %v10248 = vunpack.c.l.b16 %v9768
        %v10249 = vunpack.c.l.b16 %v9769
        %v10250 = vunpack.c.l.b16 %v9770
        %v10251 = vunpack.c.l.b16 %v9771
        %v10252 = vunpack.c.l.b16 %v9772
        %v10253 = vunpack.c.l.b16 %v9773
        %v10254 = vunpack.c.l.b16 %v9774
        %v10255 = vunpack.c.l.b16 %v9775
        %v10256 = vunpack.c.l.b16 %v9776
        %v10257 = vunpack.c.l.b16 %v9777
        %v10258 = vunpack.c.l.b16 %v9778
        %v10259 = vunpack.c.l.b16 %v9779
        %v10260 = vunpack.c.l.b16 %v9780
        %v10261 = vunpack.c.l.b16 %v9781
        %v10262 = vunpack.c.l.b16 %v9782
        %v10263 = vunpack.c.l.b16 %v9783
        %v10264 = vunpack.c.l.b16 %v9784
        %v10265 = vunpack.c.l.b16 %v9785
        %v10266 = vunpack.c.l.b16 %v9786
        %v10267 = vunpack.c.l.b16 %v9787
        %v10268 = vunpack.c.l.b16 %v9788
        %v10269 = vunpack.c.l.b16 %v9789
        %v10270 = vunpack.c.l.b16 %v9790
        %v10271 = vpack.c.b16 %v10224, %v10223
        %v10272 = vpack.c.b16 %v10226, %v10225
        %v10273 = vpack.c.b16 %v10228, %v10227
        %v10274 = vpack.c.b16 %v10230, %v10229
        %v10275 = vpack.c.b16 %v10232, %v10231
        %v10276 = vpack.c.b16 %v10234, %v10233
        %v10277 = vpack.c.b16 %v10236, %v10235
        %v10278 = vpack.c.b16 %v10238, %v10237
        %v10279 = vpack.c.b16 %v10240, %v10239
        %v10280 = vpack.c.b16 %v10242, %v10241
        %v10281 = vpack.c.b16 %v10244, %v10243
        %v10282 = vpack.c.b16 %v10246, %v10245
        %v10283 = vpack.c.b16 %v10248, %v10247
        %v10284 = vpack.c.b16 %v10250, %v10249
        %v10285 = vpack.c.b16 %v10252, %v10251
        %v10286 = vpack.c.b16 %v10254, %v10253
        %v10287 = vpack.c.b16 %v10256, %v10255
        %v10288 = vpack.c.b16 %v10258, %v10257
        %v10289 = vpack.c.b16 %v10260, %v10259
        %v10290 = vpack.c.b16 %v10262, %v10261
        %v10291 = vpack.c.b16 %v10264, %v10263
        %v10292 = vpack.c.b16 %v10266, %v10265
        %v10293 = vpack.c.b16 %v10268, %v10267
        %v10294 = vpack.c.b16 %v10270, %v10269
        %10319 = vmatpush.bf16.msra.mxu0 %v10278
        %10320 = vmatpush.bf16.msra.mxu0 %v10277
        %10321 = vmatpush.bf16.msra.mxu0 %v10276
        %10322 = vmatpush.bf16.msra.mxu0 %v10275
        %10323 = vmatpush.bf16.msra.mxu0 %v10274
        %10324 = vmatpush.bf16.msra.mxu0 %v10273
        %10325 = vmatpush.bf16.msra.mxu0 %v10272
        %10326 = vmatpush.bf16.msra.mxu0 %v10271
        %10327 = vmatmul.bf16.gmra.mxu0 %v9983
        %v10328 = vpop.f32.mrf.mxu0
        %v10329 = vadd.f32 0.0, %v10328
        %v10330 = vpop.f32.mrf.mxu0
        %v10331 = vadd.f32 0.0, %v10330
        %10332 = vmatmul.bf16.gmra.mxu0 %v9986
        %v10333 = vpop.f32.mrf.mxu0
        %v10334 = vadd.f32 0.0, %v10333
        %v10335 = vpop.f32.mrf.mxu0
        %v10336 = vadd.f32 0.0, %v10335
        %10337 = vmatmul.bf16.gmra.mxu0 %v9989
        %v10338 = vpop.f32.mrf.mxu0
        %v10339 = vadd.f32 0.0, %v10338
        %v10340 = vpop.f32.mrf.mxu0
        %v10341 = vadd.f32 0.0, %v10340
        %10342 = vmatmul.bf16.gmra.mxu0 %v9992
        %v10343 = vpop.f32.mrf.mxu0
        %v10344 = vadd.f32 0.0, %v10343
        %v10345 = vpop.f32.mrf.mxu0
        %v10346 = vadd.f32 0.0, %v10345
        %10347 = vmatmul.bf16.gmra.mxu0 %v9995
        %v10348 = vpop.f32.mrf.mxu0
        %v10349 = vadd.f32 0.0, %v10348
        %v10350 = vpop.f32.mrf.mxu0
        %v10351 = vadd.f32 0.0, %v10350
        %10352 = vmatmul.bf16.gmra.mxu0 %v9998
        %v10353 = vpop.f32.mrf.mxu0
        %v10354 = vadd.f32 0.0, %v10353
        %v10355 = vpop.f32.mrf.mxu0
        %v10356 = vadd.f32 0.0, %v10355
        %10357 = vmatmul.bf16.gmra.mxu0 %v10001
        %v10358 = vpop.f32.mrf.mxu0
        %v10359 = vadd.f32 0.0, %v10358
        %v10360 = vpop.f32.mrf.mxu0
        %v10361 = vadd.f32 0.0, %v10360
        %10362 = vmatmul.bf16.gmra.mxu0 %v10004
        %v10363 = vpop.f32.mrf.mxu0
        %v10364 = vadd.f32 0.0, %v10363
        %v10365 = vpop.f32.mrf.mxu0
        %v10366 = vadd.f32 0.0, %v10365
        %10367 = vmatmul.bf16.gmra.mxu0 %v10007
        %v10368 = vpop.f32.mrf.mxu0
        %v10369 = vadd.f32 0.0, %v10368
        %v10370 = vpop.f32.mrf.mxu0
        %v10371 = vadd.f32 0.0, %v10370
        %10372 = vmatmul.bf16.gmra.mxu0 %v10010
        %v10373 = vpop.f32.mrf.mxu0
        %v10374 = vadd.f32 0.0, %v10373
        %v10375 = vpop.f32.mrf.mxu0
        %v10376 = vadd.f32 0.0, %v10375
        %10377 = vmatmul.bf16.gmra.mxu0 %v10013
        %v10378 = vpop.f32.mrf.mxu0
        %v10379 = vadd.f32 0.0, %v10378
        %v10380 = vpop.f32.mrf.mxu0
        %v10381 = vadd.f32 0.0, %v10380
        %10382 = vmatmul.bf16.gmra.mxu0 %v10016
        %v10383 = vpop.f32.mrf.mxu0
        %v10384 = vadd.f32 0.0, %v10383
        %v10385 = vpop.f32.mrf.mxu0
        %v10386 = vadd.f32 0.0, %v10385
        %10387 = vmatmul.bf16.gmra.mxu0 %v10019
        %v10388 = vpop.f32.mrf.mxu0
        %v10389 = vadd.f32 0.0, %v10388
        %v10390 = vpop.f32.mrf.mxu0
        %v10391 = vadd.f32 0.0, %v10390
        %10392 = vmatmul.bf16.gmra.mxu0 %v10022
        %v10393 = vpop.f32.mrf.mxu0
        %v10394 = vadd.f32 0.0, %v10393
        %v10395 = vpop.f32.mrf.mxu0
        %v10396 = vadd.f32 0.0, %v10395
        %10397 = vmatmul.bf16.gmra.mxu0 %v10025
        %v10398 = vpop.f32.mrf.mxu0
        %v10399 = vadd.f32 0.0, %v10398
        %v10400 = vpop.f32.mrf.mxu0
        %v10401 = vadd.f32 0.0, %v10400
        %10402 = vmatmul.bf16.gmra.mxu0 %v10028
        %v10403 = vpop.f32.mrf.mxu0
        %v10404 = vadd.f32 0.0, %v10403
        %v10405 = vpop.f32.mrf.mxu0
        %v10406 = vadd.f32 0.0, %v10405
        %10407 = vmatmul.bf16.gmra.mxu0 %v10031
        %v10408 = vpop.f32.mrf.mxu0
        %v10409 = vadd.f32 0.0, %v10408
        %v10410 = vpop.f32.mrf.mxu0
        %v10411 = vadd.f32 0.0, %v10410
        %10412 = vmatmul.bf16.gmra.mxu0 %v10034
        %v10413 = vpop.f32.mrf.mxu0
        %v10414 = vadd.f32 0.0, %v10413
        %v10415 = vpop.f32.mrf.mxu0
        %v10416 = vadd.f32 0.0, %v10415
        %10417 = vmatmul.bf16.gmra.mxu0 %v10037
        %v10418 = vpop.f32.mrf.mxu0
        %v10419 = vadd.f32 0.0, %v10418
        %v10420 = vpop.f32.mrf.mxu0
        %v10421 = vadd.f32 0.0, %v10420
        %10422 = vmatmul.bf16.gmra.mxu0 %v10040
        %v10423 = vpop.f32.mrf.mxu0
        %v10424 = vadd.f32 0.0, %v10423
        %v10425 = vpop.f32.mrf.mxu0
        %v10426 = vadd.f32 0.0, %v10425
        %10427 = vmatmul.bf16.gmra.mxu0 %v10043
        %v10428 = vpop.f32.mrf.mxu0
        %v10429 = vadd.f32 0.0, %v10428
        %v10430 = vpop.f32.mrf.mxu0
        %v10431 = vadd.f32 0.0, %v10430
        %10432 = vmatmul.bf16.gmra.mxu0 %v10046
        %v10433 = vpop.f32.mrf.mxu0
        %v10434 = vadd.f32 0.0, %v10433
        %v10435 = vpop.f32.mrf.mxu0
        %v10436 = vadd.f32 0.0, %v10435
        %10437 = vmatmul.bf16.gmra.mxu0 %v10049
        %v10438 = vpop.f32.mrf.mxu0
        %v10439 = vadd.f32 0.0, %v10438
        %v10440 = vpop.f32.mrf.mxu0
        %v10441 = vadd.f32 0.0, %v10440
        %10442 = vmatmul.bf16.gmra.mxu0 %v10052
        %v10443 = vpop.f32.mrf.mxu0
        %v10444 = vadd.f32 0.0, %v10443
        %v10445 = vpop.f32.mrf.mxu0
        %v10446 = vadd.f32 0.0, %v10445
        %10447 = vmatmul.bf16.gmra.mxu0 %v10055
        %v10448 = vpop.f32.mrf.mxu0
        %v10449 = vadd.f32 0.0, %v10448
        %v10450 = vpop.f32.mrf.mxu0
        %v10451 = vadd.f32 0.0, %v10450
        %10452 = vmatmul.bf16.gmra.mxu0 %v10058
        %v10453 = vpop.f32.mrf.mxu0
        %v10454 = vadd.f32 0.0, %v10453
        %v10455 = vpop.f32.mrf.mxu0
        %v10456 = vadd.f32 0.0, %v10455
        %10457 = vmatmul.bf16.gmra.mxu0 %v10061
        %v10458 = vpop.f32.mrf.mxu0
        %v10459 = vadd.f32 0.0, %v10458
        %v10460 = vpop.f32.mrf.mxu0
        %v10461 = vadd.f32 0.0, %v10460
        %10462 = vmatmul.bf16.gmra.mxu0 %v10064
        %v10463 = vpop.f32.mrf.mxu0
        %v10464 = vadd.f32 0.0, %v10463
        %v10465 = vpop.f32.mrf.mxu0
        %v10466 = vadd.f32 0.0, %v10465
        %10467 = vmatmul.bf16.gmra.mxu0 %v10067
        %v10468 = vpop.f32.mrf.mxu0
        %v10469 = vadd.f32 0.0, %v10468
        %v10470 = vpop.f32.mrf.mxu0
        %v10471 = vadd.f32 0.0, %v10470
        %10472 = vmatmul.bf16.gmra.mxu0 %v10070
        %v10473 = vpop.f32.mrf.mxu0
        %v10474 = vadd.f32 0.0, %v10473
        %v10475 = vpop.f32.mrf.mxu0
        %v10476 = vadd.f32 0.0, %v10475
        %10477 = vmatmul.bf16.gmra.mxu0 %v10073
        %v10478 = vpop.f32.mrf.mxu0
        %v10479 = vadd.f32 0.0, %v10478
        %v10480 = vpop.f32.mrf.mxu0
        %v10481 = vadd.f32 0.0, %v10480
        %10482 = vmatmul.bf16.gmra.mxu0 %v10076
        %v10483 = vpop.f32.mrf.mxu0
        %v10484 = vadd.f32 0.0, %v10483
        %v10485 = vpop.f32.mrf.mxu0
        %v10486 = vadd.f32 0.0, %v10485
        %10487 = vdwg.mxu0
        %10488 = vmatpush.bf16.msra.mxu0 %v10286
        %10489 = vmatpush.bf16.msra.mxu0 %v10285
        %10490 = vmatpush.bf16.msra.mxu0 %v10284
        %10491 = vmatpush.bf16.msra.mxu0 %v10283
        %10492 = vmatpush.bf16.msra.mxu0 %v10282
        %10493 = vmatpush.bf16.msra.mxu0 %v10281
        %10494 = vmatpush.bf16.msra.mxu0 %v10280
        %10495 = vmatpush.bf16.msra.mxu0 %v10279
        %10496 = vmatmul.bf16.gmra.mxu0 %v9984
        %v10497 = vpop.f32.mrf.mxu0
        %v10498 = vadd.f32 %v10329, %v10497
        %v10499 = vpop.f32.mrf.mxu0
        %v10500 = vadd.f32 %v10331, %v10499
        %10501 = vmatmul.bf16.gmra.mxu0 %v9987
        %v10502 = vpop.f32.mrf.mxu0
        %v10503 = vadd.f32 %v10334, %v10502
        %v10504 = vpop.f32.mrf.mxu0
        %v10505 = vadd.f32 %v10336, %v10504
        %10506 = vmatmul.bf16.gmra.mxu0 %v9990
        %v10507 = vpop.f32.mrf.mxu0
        %v10508 = vadd.f32 %v10339, %v10507
        %v10509 = vpop.f32.mrf.mxu0
        %v10510 = vadd.f32 %v10341, %v10509
        %10511 = vmatmul.bf16.gmra.mxu0 %v9993
        %v10512 = vpop.f32.mrf.mxu0
        %v10513 = vadd.f32 %v10344, %v10512
        %v10514 = vpop.f32.mrf.mxu0
        %v10515 = vadd.f32 %v10346, %v10514
        %10516 = vmatmul.bf16.gmra.mxu0 %v9996
        %v10517 = vpop.f32.mrf.mxu0
        %v10518 = vadd.f32 %v10349, %v10517
        %v10519 = vpop.f32.mrf.mxu0
        %v10520 = vadd.f32 %v10351, %v10519
        %10521 = vmatmul.bf16.gmra.mxu0 %v9999
        %v10522 = vpop.f32.mrf.mxu0
        %v10523 = vadd.f32 %v10354, %v10522
        %v10524 = vpop.f32.mrf.mxu0
        %v10525 = vadd.f32 %v10356, %v10524
        %10526 = vmatmul.bf16.gmra.mxu0 %v10002
        %v10527 = vpop.f32.mrf.mxu0
        %v10528 = vadd.f32 %v10359, %v10527
        %v10529 = vpop.f32.mrf.mxu0
        %v10530 = vadd.f32 %v10361, %v10529
        %10531 = vmatmul.bf16.gmra.mxu0 %v10005
        %v10532 = vpop.f32.mrf.mxu0
        %v10533 = vadd.f32 %v10364, %v10532
        %v10534 = vpop.f32.mrf.mxu0
        %v10535 = vadd.f32 %v10366, %v10534
        %10536 = vmatmul.bf16.gmra.mxu0 %v10008
        %v10537 = vpop.f32.mrf.mxu0
        %v10538 = vadd.f32 %v10369, %v10537
        %v10539 = vpop.f32.mrf.mxu0
        %v10540 = vadd.f32 %v10371, %v10539
        %10541 = vmatmul.bf16.gmra.mxu0 %v10011
        %v10542 = vpop.f32.mrf.mxu0
        %v10543 = vadd.f32 %v10374, %v10542
        %v10544 = vpop.f32.mrf.mxu0
        %v10545 = vadd.f32 %v10376, %v10544
        %10546 = vmatmul.bf16.gmra.mxu0 %v10014
        %v10547 = vpop.f32.mrf.mxu0
        %v10548 = vadd.f32 %v10379, %v10547
        %v10549 = vpop.f32.mrf.mxu0
        %v10550 = vadd.f32 %v10381, %v10549
        %10551 = vmatmul.bf16.gmra.mxu0 %v10017
        %v10552 = vpop.f32.mrf.mxu0
        %v10553 = vadd.f32 %v10384, %v10552
        %v10554 = vpop.f32.mrf.mxu0
        %v10555 = vadd.f32 %v10386, %v10554
        %10556 = vmatmul.bf16.gmra.mxu0 %v10020
        %v10557 = vpop.f32.mrf.mxu0
        %v10558 = vadd.f32 %v10389, %v10557
        %v10559 = vpop.f32.mrf.mxu0
        %v10560 = vadd.f32 %v10391, %v10559
        %10561 = vmatmul.bf16.gmra.mxu0 %v10023
        %v10562 = vpop.f32.mrf.mxu0
        %v10563 = vadd.f32 %v10394, %v10562
        %v10564 = vpop.f32.mrf.mxu0
        %v10565 = vadd.f32 %v10396, %v10564
        %10566 = vmatmul.bf16.gmra.mxu0 %v10026
        %v10567 = vpop.f32.mrf.mxu0
        %v10568 = vadd.f32 %v10399, %v10567
        %v10569 = vpop.f32.mrf.mxu0
        %v10570 = vadd.f32 %v10401, %v10569
        %10571 = vmatmul.bf16.gmra.mxu0 %v10029
        %v10572 = vpop.f32.mrf.mxu0
        %v10573 = vadd.f32 %v10404, %v10572
        %v10574 = vpop.f32.mrf.mxu0
        %v10575 = vadd.f32 %v10406, %v10574
        %10576 = vmatmul.bf16.gmra.mxu0 %v10032
        %v10577 = vpop.f32.mrf.mxu0
        %v10578 = vadd.f32 %v10409, %v10577
        %v10579 = vpop.f32.mrf.mxu0
        %v10580 = vadd.f32 %v10411, %v10579
        %10581 = vmatmul.bf16.gmra.mxu0 %v10035
        %v10582 = vpop.f32.mrf.mxu0
        %v10583 = vadd.f32 %v10414, %v10582
        %v10584 = vpop.f32.mrf.mxu0
        %v10585 = vadd.f32 %v10416, %v10584
        %10586 = vmatmul.bf16.gmra.mxu0 %v10038
        %v10587 = vpop.f32.mrf.mxu0
        %v10588 = vadd.f32 %v10419, %v10587
        %v10589 = vpop.f32.mrf.mxu0
        %v10590 = vadd.f32 %v10421, %v10589
        %10591 = vmatmul.bf16.gmra.mxu0 %v10041
        %v10592 = vpop.f32.mrf.mxu0
        %v10593 = vadd.f32 %v10424, %v10592
        %v10594 = vpop.f32.mrf.mxu0
        %v10595 = vadd.f32 %v10426, %v10594
        %10596 = vmatmul.bf16.gmra.mxu0 %v10044
        %v10597 = vpop.f32.mrf.mxu0
        %v10598 = vadd.f32 %v10429, %v10597
        %v10599 = vpop.f32.mrf.mxu0
        %v10600 = vadd.f32 %v10431, %v10599
        %10601 = vmatmul.bf16.gmra.mxu0 %v10047
        %v10602 = vpop.f32.mrf.mxu0
        %v10603 = vadd.f32 %v10434, %v10602
        %v10604 = vpop.f32.mrf.mxu0
        %v10605 = vadd.f32 %v10436, %v10604
        %10606 = vmatmul.bf16.gmra.mxu0 %v10050
        %v10607 = vpop.f32.mrf.mxu0
        %v10608 = vadd.f32 %v10439, %v10607
        %v10609 = vpop.f32.mrf.mxu0
        %v10610 = vadd.f32 %v10441, %v10609
        %10611 = vmatmul.bf16.gmra.mxu0 %v10053
        %v10612 = vpop.f32.mrf.mxu0
        %v10613 = vadd.f32 %v10444, %v10612
        %v10614 = vpop.f32.mrf.mxu0
        %v10615 = vadd.f32 %v10446, %v10614
        %10616 = vmatmul.bf16.gmra.mxu0 %v10056
        %v10617 = vpop.f32.mrf.mxu0
        %v10618 = vadd.f32 %v10449, %v10617
        %v10619 = vpop.f32.mrf.mxu0
        %v10620 = vadd.f32 %v10451, %v10619
        %10621 = vmatmul.bf16.gmra.mxu0 %v10059
        %v10622 = vpop.f32.mrf.mxu0
        %v10623 = vadd.f32 %v10454, %v10622
        %v10624 = vpop.f32.mrf.mxu0
        %v10625 = vadd.f32 %v10456, %v10624
        %10626 = vmatmul.bf16.gmra.mxu0 %v10062
        %v10627 = vpop.f32.mrf.mxu0
        %v10628 = vadd.f32 %v10459, %v10627
        %v10629 = vpop.f32.mrf.mxu0
        %v10630 = vadd.f32 %v10461, %v10629
        %10631 = vmatmul.bf16.gmra.mxu0 %v10065
        %v10632 = vpop.f32.mrf.mxu0
        %v10633 = vadd.f32 %v10464, %v10632
        %v10634 = vpop.f32.mrf.mxu0
        %v10635 = vadd.f32 %v10466, %v10634
        %10636 = vmatmul.bf16.gmra.mxu0 %v10068
        %v10637 = vpop.f32.mrf.mxu0
        %v10638 = vadd.f32 %v10469, %v10637
        %v10639 = vpop.f32.mrf.mxu0
        %v10640 = vadd.f32 %v10471, %v10639
        %10641 = vmatmul.bf16.gmra.mxu0 %v10071
        %v10642 = vpop.f32.mrf.mxu0
        %v10643 = vadd.f32 %v10474, %v10642
        %v10644 = vpop.f32.mrf.mxu0
        %v10645 = vadd.f32 %v10476, %v10644
        %10646 = vmatmul.bf16.gmra.mxu0 %v10074
        %v10647 = vpop.f32.mrf.mxu0
        %v10648 = vadd.f32 %v10479, %v10647
        %v10649 = vpop.f32.mrf.mxu0
        %v10650 = vadd.f32 %v10481, %v10649
        %10651 = vmatmul.bf16.gmra.mxu0 %v10077
        %v10652 = vpop.f32.mrf.mxu0
        %v10653 = vadd.f32 %v10484, %v10652
        %v10654 = vpop.f32.mrf.mxu0
        %v10655 = vadd.f32 %v10486, %v10654
        %10656 = vdwg.mxu0
        %10657 = vmatpush.bf16.msra.mxu0 %v10294
        %10658 = vmatpush.bf16.msra.mxu0 %v10293
        %10659 = vmatpush.bf16.msra.mxu0 %v10292
        %10660 = vmatpush.bf16.msra.mxu0 %v10291
        %10661 = vmatpush.bf16.msra.mxu0 %v10290
        %10662 = vmatpush.bf16.msra.mxu0 %v10289
        %10663 = vmatpush.bf16.msra.mxu0 %v10288
        %10664 = vmatpush.bf16.msra.mxu0 %v10287
        %10665 = vmatmul.bf16.gmra.mxu0 %v9985
        %v10666 = vpop.f32.mrf.mxu0
        %v10667 = vadd.f32 %v10498, %v10666
        %v10668 = vpop.f32.mrf.mxu0
        %v10669 = vadd.f32 %v10500, %v10668
        %10670 = vmatmul.bf16.gmra.mxu0 %v9988
        %v10671 = vpop.f32.mrf.mxu0
        %v10672 = vadd.f32 %v10503, %v10671
        %v10673 = vpop.f32.mrf.mxu0
        %v10674 = vadd.f32 %v10505, %v10673
        %10675 = vmatmul.bf16.gmra.mxu0 %v9991
        %v10676 = vpop.f32.mrf.mxu0
        %v10677 = vadd.f32 %v10508, %v10676
        %v10678 = vpop.f32.mrf.mxu0
        %v10679 = vadd.f32 %v10510, %v10678
        %10680 = vmatmul.bf16.gmra.mxu0 %v9994
        %v10681 = vpop.f32.mrf.mxu0
        %v10682 = vadd.f32 %v10513, %v10681
        %v10683 = vpop.f32.mrf.mxu0
        %v10684 = vadd.f32 %v10515, %v10683
        %10685 = vmatmul.bf16.gmra.mxu0 %v9997
        %v10686 = vpop.f32.mrf.mxu0
        %v10687 = vadd.f32 %v10518, %v10686
        %v10688 = vpop.f32.mrf.mxu0
        %v10689 = vadd.f32 %v10520, %v10688
        %10690 = vmatmul.bf16.gmra.mxu0 %v10000
        %v10691 = vpop.f32.mrf.mxu0
        %v10692 = vadd.f32 %v10523, %v10691
        %v10693 = vpop.f32.mrf.mxu0
        %v10694 = vadd.f32 %v10525, %v10693
        %10695 = vmatmul.bf16.gmra.mxu0 %v10003
        %v10696 = vpop.f32.mrf.mxu0
        %v10697 = vadd.f32 %v10528, %v10696
        %v10698 = vpop.f32.mrf.mxu0
        %v10699 = vadd.f32 %v10530, %v10698
        %10700 = vmatmul.bf16.gmra.mxu0 %v10006
        %v10701 = vpop.f32.mrf.mxu0
        %v10702 = vadd.f32 %v10533, %v10701
        %v10703 = vpop.f32.mrf.mxu0
        %v10704 = vadd.f32 %v10535, %v10703
        %10705 = vmatmul.bf16.gmra.mxu0 %v10009
        %v10706 = vpop.f32.mrf.mxu0
        %v10707 = vadd.f32 %v10538, %v10706
        %v10708 = vpop.f32.mrf.mxu0
        %v10709 = vadd.f32 %v10540, %v10708
        %10710 = vmatmul.bf16.gmra.mxu0 %v10012
        %v10711 = vpop.f32.mrf.mxu0
        %v10712 = vadd.f32 %v10543, %v10711
        %v10713 = vpop.f32.mrf.mxu0
        %v10714 = vadd.f32 %v10545, %v10713
        %10715 = vmatmul.bf16.gmra.mxu0 %v10015
        %v10716 = vpop.f32.mrf.mxu0
        %v10717 = vadd.f32 %v10548, %v10716
        %v10718 = vpop.f32.mrf.mxu0
        %v10719 = vadd.f32 %v10550, %v10718
        %10720 = vmatmul.bf16.gmra.mxu0 %v10018
        %v10721 = vpop.f32.mrf.mxu0
        %v10722 = vadd.f32 %v10553, %v10721
        %v10723 = vpop.f32.mrf.mxu0
        %v10724 = vadd.f32 %v10555, %v10723
        %10725 = vmatmul.bf16.gmra.mxu0 %v10021
        %v10726 = vpop.f32.mrf.mxu0
        %v10727 = vadd.f32 %v10558, %v10726
        %v10728 = vpop.f32.mrf.mxu0
        %v10729 = vadd.f32 %v10560, %v10728
        %10730 = vmatmul.bf16.gmra.mxu0 %v10024
        %v10731 = vpop.f32.mrf.mxu0
        %v10732 = vadd.f32 %v10563, %v10731
        %v10733 = vpop.f32.mrf.mxu0
        %v10734 = vadd.f32 %v10565, %v10733
        %10735 = vmatmul.bf16.gmra.mxu0 %v10027
        %v10736 = vpop.f32.mrf.mxu0
        %v10737 = vadd.f32 %v10568, %v10736
        %v10738 = vpop.f32.mrf.mxu0
        %v10739 = vadd.f32 %v10570, %v10738
        %10740 = vmatmul.bf16.gmra.mxu0 %v10030
        %v10741 = vpop.f32.mrf.mxu0
        %v10742 = vadd.f32 %v10573, %v10741
        %v10743 = vpop.f32.mrf.mxu0
        %v10744 = vadd.f32 %v10575, %v10743
        %10745 = vmatmul.bf16.gmra.mxu0 %v10033
        %v10746 = vpop.f32.mrf.mxu0
        %v10747 = vadd.f32 %v10578, %v10746
        %v10748 = vpop.f32.mrf.mxu0
        %v10749 = vadd.f32 %v10580, %v10748
        %10750 = vmatmul.bf16.gmra.mxu0 %v10036
        %v10751 = vpop.f32.mrf.mxu0
        %v10752 = vadd.f32 %v10583, %v10751
        %v10753 = vpop.f32.mrf.mxu0
        %v10754 = vadd.f32 %v10585, %v10753
        %10755 = vmatmul.bf16.gmra.mxu0 %v10039
        %v10756 = vpop.f32.mrf.mxu0
        %v10757 = vadd.f32 %v10588, %v10756
        %v10758 = vpop.f32.mrf.mxu0
        %v10759 = vadd.f32 %v10590, %v10758
        %10760 = vmatmul.bf16.gmra.mxu0 %v10042
        %v10761 = vpop.f32.mrf.mxu0
        %v10762 = vadd.f32 %v10593, %v10761
        %v10763 = vpop.f32.mrf.mxu0
        %v10764 = vadd.f32 %v10595, %v10763
        %10765 = vmatmul.bf16.gmra.mxu0 %v10045
        %v10766 = vpop.f32.mrf.mxu0
        %v10767 = vadd.f32 %v10598, %v10766
        %v10768 = vpop.f32.mrf.mxu0
        %v10769 = vadd.f32 %v10600, %v10768
        %10770 = vmatmul.bf16.gmra.mxu0 %v10048
        %v10771 = vpop.f32.mrf.mxu0
        %v10772 = vadd.f32 %v10603, %v10771
        %v10773 = vpop.f32.mrf.mxu0
        %v10774 = vadd.f32 %v10605, %v10773
        %10775 = vmatmul.bf16.gmra.mxu0 %v10051
        %v10776 = vpop.f32.mrf.mxu0
        %v10777 = vadd.f32 %v10608, %v10776
        %v10778 = vpop.f32.mrf.mxu0
        %v10779 = vadd.f32 %v10610, %v10778
        %10780 = vmatmul.bf16.gmra.mxu0 %v10054
        %v10781 = vpop.f32.mrf.mxu0
        %v10782 = vadd.f32 %v10613, %v10781
        %v10783 = vpop.f32.mrf.mxu0
        %v10784 = vadd.f32 %v10615, %v10783
        %10785 = vmatmul.bf16.gmra.mxu0 %v10057
        %v10786 = vpop.f32.mrf.mxu0
        %v10787 = vadd.f32 %v10618, %v10786
        %v10788 = vpop.f32.mrf.mxu0
        %v10789 = vadd.f32 %v10620, %v10788
        %10790 = vmatmul.bf16.gmra.mxu0 %v10060
        %v10791 = vpop.f32.mrf.mxu0
        %v10792 = vadd.f32 %v10623, %v10791
        %v10793 = vpop.f32.mrf.mxu0
        %v10794 = vadd.f32 %v10625, %v10793
        %10795 = vmatmul.bf16.gmra.mxu0 %v10063
        %v10796 = vpop.f32.mrf.mxu0
        %v10797 = vadd.f32 %v10628, %v10796
        %v10798 = vpop.f32.mrf.mxu0
        %v10799 = vadd.f32 %v10630, %v10798
        %10800 = vmatmul.bf16.gmra.mxu0 %v10066
        %v10801 = vpop.f32.mrf.mxu0
        %v10802 = vadd.f32 %v10633, %v10801
        %v10803 = vpop.f32.mrf.mxu0
        %v10804 = vadd.f32 %v10635, %v10803
        %10805 = vmatmul.bf16.gmra.mxu0 %v10069
        %v10806 = vpop.f32.mrf.mxu0
        %v10807 = vadd.f32 %v10638, %v10806
        %v10808 = vpop.f32.mrf.mxu0
        %v10809 = vadd.f32 %v10640, %v10808
        %10810 = vmatmul.bf16.gmra.mxu0 %v10072
        %v10811 = vpop.f32.mrf.mxu0
        %v10812 = vadd.f32 %v10643, %v10811
        %v10813 = vpop.f32.mrf.mxu0
        %v10814 = vadd.f32 %v10645, %v10813
        %10815 = vmatmul.bf16.gmra.mxu0 %v10075
        %v10816 = vpop.f32.mrf.mxu0
        %v10817 = vadd.f32 %v10648, %v10816
        %v10818 = vpop.f32.mrf.mxu0
        %v10819 = vadd.f32 %v10650, %v10818
        %10820 = vmatmul.bf16.gmra.mxu0 %v10078
        %v10821 = vpop.f32.mrf.mxu0
        %v10822 = vadd.f32 %v10653, %v10821
        %v10823 = vpop.f32.mrf.mxu0
        %v10824 = vadd.f32 %v10655, %v10823
        %10825 = vdwg.mxu0
        %v10826 = vadd.f32 %v7854, %v10667
        %v10827 = vadd.f32 %v7856, %v10669
        %v10828 = vadd.f32 %v7859, %v10672
        %v10829 = vadd.f32 %v7861, %v10674
        %v10830 = vadd.f32 %v7864, %v10677
        %v10831 = vadd.f32 %v7866, %v10679
        %v10832 = vadd.f32 %v7869, %v10682
        %v10833 = vadd.f32 %v7871, %v10684
        %v10834 = vadd.f32 %v7874, %v10687
        %v10835 = vadd.f32 %v7876, %v10689
        %v10836 = vadd.f32 %v7879, %v10692
        %v10837 = vadd.f32 %v7881, %v10694
        %v10838 = vadd.f32 %v7884, %v10697
        %v10839 = vadd.f32 %v7886, %v10699
        %v10840 = vadd.f32 %v7889, %v10702
        %v10841 = vadd.f32 %v7891, %v10704
        %v10842 = vadd.f32 %v7894, %v10707
        %v10843 = vadd.f32 %v7896, %v10709
        %v10844 = vadd.f32 %v7899, %v10712
        %v10845 = vadd.f32 %v7901, %v10714
        %v10846 = vadd.f32 %v7904, %v10717
        %v10847 = vadd.f32 %v7906, %v10719
        %v10848 = vadd.f32 %v7909, %v10722
        %v10849 = vadd.f32 %v7911, %v10724
        %v10850 = vadd.f32 %v7914, %v10727
        %v10851 = vadd.f32 %v7916, %v10729
        %v10852 = vadd.f32 %v7919, %v10732
        %v10853 = vadd.f32 %v7921, %v10734
        %v10854 = vadd.f32 %v7924, %v10737
        %v10855 = vadd.f32 %v7926, %v10739
        %v10856 = vadd.f32 %v7929, %v10742
        %v10857 = vadd.f32 %v7931, %v10744
        %v10858 = vadd.f32 %v7934, %v10747
        %v10859 = vadd.f32 %v7936, %v10749
        %v10860 = vadd.f32 %v7939, %v10752
        %v10861 = vadd.f32 %v7941, %v10754
        %v10862 = vadd.f32 %v7944, %v10757
        %v10863 = vadd.f32 %v7946, %v10759
        %v10864 = vadd.f32 %v7949, %v10762
        %v10865 = vadd.f32 %v7951, %v10764
        %v10866 = vadd.f32 %v7954, %v10767
        %v10867 = vadd.f32 %v7956, %v10769
        %v10868 = vadd.f32 %v7959, %v10772
        %v10869 = vadd.f32 %v7961, %v10774
        %v10870 = vadd.f32 %v7964, %v10777
        %v10871 = vadd.f32 %v7966, %v10779
        %v10872 = vadd.f32 %v7969, %v10782
        %v10873 = vadd.f32 %v7971, %v10784
        %v10874 = vadd.f32 %v7974, %v10787
        %v10875 = vadd.f32 %v7976, %v10789
        %v10876 = vadd.f32 %v7979, %v10792
        %v10877 = vadd.f32 %v7981, %v10794
        %v10878 = vadd.f32 %v7984, %v10797
        %v10879 = vadd.f32 %v7986, %v10799
        %v10880 = vadd.f32 %v7989, %v10802
        %v10881 = vadd.f32 %v7991, %v10804
        %v10882 = vadd.f32 %v7994, %v10807
        %v10883 = vadd.f32 %v7996, %v10809
        %v10884 = vadd.f32 %v7999, %v10812
        %v10885 = vadd.f32 %v8001, %v10814
        %v10886 = vadd.f32 %v8004, %v10817
        %v10887 = vadd.f32 %v8006, %v10819
        %v10888 = vadd.f32 %v8009, %v10822
        %v10889 = vadd.f32 %v8011, %v10824
        %v10890 = vld [vmem:[%s4] sm:$0x1]
        %v10892 = vperm.slane %v10890, 0
        %v10894 = vadd.f32 %v10826, %v10892
        %v10895 = vadd.f32 %v10827, %v10892
        %v10896 = vadd.f32 %v10828, %v10892
        %v10897 = vadd.f32 %v10829, %v10892
        %v10898 = vadd.f32 %v10830, %v10892
        %v10899 = vadd.f32 %v10831, %v10892
        %v10900 = vadd.f32 %v10832, %v10892
        %v10901 = vadd.f32 %v10833, %v10892
        %v10902 = vadd.f32 %v10834, %v10892
        %v10903 = vadd.f32 %v10835, %v10892
        %v10904 = vadd.f32 %v10836, %v10892
        %v10905 = vadd.f32 %v10837, %v10892
        %v10906 = vadd.f32 %v10838, %v10892
        %v10907 = vadd.f32 %v10839, %v10892
        %v10908 = vadd.f32 %v10840, %v10892
        %v10909 = vadd.f32 %v10841, %v10892
        %v10910 = vadd.f32 %v10842, %v10892
        %v10911 = vadd.f32 %v10843, %v10892
        %v10912 = vadd.f32 %v10844, %v10892
        %v10913 = vadd.f32 %v10845, %v10892
        %v10914 = vadd.f32 %v10846, %v10892
        %v10915 = vadd.f32 %v10847, %v10892
        %v10916 = vadd.f32 %v10848, %v10892
        %v10917 = vadd.f32 %v10849, %v10892
        %v10918 = vadd.f32 %v10850, %v10892
        %v10919 = vadd.f32 %v10851, %v10892
        %v10920 = vadd.f32 %v10852, %v10892
        %v10921 = vadd.f32 %v10853, %v10892
        %v10922 = vadd.f32 %v10854, %v10892
        %v10923 = vadd.f32 %v10855, %v10892
        %v10924 = vadd.f32 %v10856, %v10892
        %v10925 = vadd.f32 %v10857, %v10892
        %v10926 = vadd.f32 %v10858, %v10892
        %v10927 = vadd.f32 %v10859, %v10892
        %v10928 = vadd.f32 %v10860, %v10892
        %v10929 = vadd.f32 %v10861, %v10892
        %v10930 = vadd.f32 %v10862, %v10892
        %v10931 = vadd.f32 %v10863, %v10892
        %v10932 = vadd.f32 %v10864, %v10892
        %v10933 = vadd.f32 %v10865, %v10892
        %v10934 = vadd.f32 %v10866, %v10892
        %v10935 = vadd.f32 %v10867, %v10892
        %v10936 = vadd.f32 %v10868, %v10892
        %v10937 = vadd.f32 %v10869, %v10892
        %v10938 = vadd.f32 %v10870, %v10892
        %v10939 = vadd.f32 %v10871, %v10892
        %v10940 = vadd.f32 %v10872, %v10892
        %v10941 = vadd.f32 %v10873, %v10892
        %v10942 = vadd.f32 %v10874, %v10892
        %v10943 = vadd.f32 %v10875, %v10892
        %v10944 = vadd.f32 %v10876, %v10892
        %v10945 = vadd.f32 %v10877, %v10892
        %v10946 = vadd.f32 %v10878, %v10892
        %v10947 = vadd.f32 %v10879, %v10892
        %v10948 = vadd.f32 %v10880, %v10892
        %v10949 = vadd.f32 %v10881, %v10892
        %v10950 = vadd.f32 %v10882, %v10892
        %v10951 = vadd.f32 %v10883, %v10892
        %v10952 = vadd.f32 %v10884, %v10892
        %v10953 = vadd.f32 %v10885, %v10892
        %v10954 = vadd.f32 %v10886, %v10892
        %v10955 = vadd.f32 %v10887, %v10892
        %v10956 = vadd.f32 %v10888, %v10892
        %v10957 = vadd.f32 %v10889, %v10892
        %v10958 = vmax.f32 %v10894, 0.0
        %v10959 = vmax.f32 %v10895, 0.0
        %v10960 = vmax.f32 %v10896, 0.0
        %v10961 = vmax.f32 %v10897, 0.0
        %v10962 = vmax.f32 %v10898, 0.0
        %v10963 = vmax.f32 %v10899, 0.0
        %v10964 = vmax.f32 %v10900, 0.0
        %v10965 = vmax.f32 %v10901, 0.0
        %v10966 = vmax.f32 %v10902, 0.0
        %v10967 = vmax.f32 %v10903, 0.0
        %v10968 = vmax.f32 %v10904, 0.0
        %v10969 = vmax.f32 %v10905, 0.0
        %v10970 = vmax.f32 %v10906, 0.0
        %v10971 = vmax.f32 %v10907, 0.0
        %v10972 = vmax.f32 %v10908, 0.0
        %v10973 = vmax.f32 %v10909, 0.0
        %v10974 = vmax.f32 %v10910, 0.0
        %v10975 = vmax.f32 %v10911, 0.0
        %v10976 = vmax.f32 %v10912, 0.0
        %v10977 = vmax.f32 %v10913, 0.0
        %v10978 = vmax.f32 %v10914, 0.0
        %v10979 = vmax.f32 %v10915, 0.0
        %v10980 = vmax.f32 %v10916, 0.0
        %v10981 = vmax.f32 %v10917, 0.0
        %v10982 = vmax.f32 %v10918, 0.0
        %v10983 = vmax.f32 %v10919, 0.0
        %v10984 = vmax.f32 %v10920, 0.0
        %v10985 = vmax.f32 %v10921, 0.0
        %v10986 = vmax.f32 %v10922, 0.0
        %v10987 = vmax.f32 %v10923, 0.0
        %v10988 = vmax.f32 %v10924, 0.0
        %v10989 = vmax.f32 %v10925, 0.0
        %v10990 = vmax.f32 %v10926, 0.0
        %v10991 = vmax.f32 %v10927, 0.0
        %v10992 = vmax.f32 %v10928, 0.0
        %v10993 = vmax.f32 %v10929, 0.0
        %v10994 = vmax.f32 %v10930, 0.0
        %v10995 = vmax.f32 %v10931, 0.0
        %v10996 = vmax.f32 %v10932, 0.0
        %v10997 = vmax.f32 %v10933, 0.0
        %v10998 = vmax.f32 %v10934, 0.0
        %v10999 = vmax.f32 %v10935, 0.0
        %v11000 = vmax.f32 %v10936, 0.0
        %v11001 = vmax.f32 %v10937, 0.0
        %v11002 = vmax.f32 %v10938, 0.0
        %v11003 = vmax.f32 %v10939, 0.0
        %v11004 = vmax.f32 %v10940, 0.0
        %v11005 = vmax.f32 %v10941, 0.0
        %v11006 = vmax.f32 %v10942, 0.0
        %v11007 = vmax.f32 %v10943, 0.0
        %v11008 = vmax.f32 %v10944, 0.0
        %v11009 = vmax.f32 %v10945, 0.0
        %v11010 = vmax.f32 %v10946, 0.0
        %v11011 = vmax.f32 %v10947, 0.0
        %v11012 = vmax.f32 %v10948, 0.0
        %v11013 = vmax.f32 %v10949, 0.0
        %v11014 = vmax.f32 %v10950, 0.0
        %v11015 = vmax.f32 %v10951, 0.0
        %v11016 = vmax.f32 %v10952, 0.0
        %v11017 = vmax.f32 %v10953, 0.0
        %v11018 = vmax.f32 %v10954, 0.0
        %v11019 = vmax.f32 %v10955, 0.0
        %v11020 = vmax.f32 %v10956, 0.0
        %v11021 = vmax.f32 %v10957, 0.0
        %v11022 = vpack.c.bf16 %v10959, %v10958
        %v11023 = vpack.c.bf16 %v10961, %v10960
        %v11024 = vpack.c.bf16 %v10963, %v10962
        %v11025 = vpack.c.bf16 %v10965, %v10964
        %v11026 = vpack.c.bf16 %v10967, %v10966
        %v11027 = vpack.c.bf16 %v10969, %v10968
        %v11028 = vpack.c.bf16 %v10971, %v10970
        %v11029 = vpack.c.bf16 %v10973, %v10972
        %v11030 = vpack.c.bf16 %v10975, %v10974
        %v11031 = vpack.c.bf16 %v10977, %v10976
        %v11032 = vpack.c.bf16 %v10979, %v10978
        %v11033 = vpack.c.bf16 %v10981, %v10980
        %v11034 = vpack.c.bf16 %v10983, %v10982
        %v11035 = vpack.c.bf16 %v10985, %v10984
        %v11036 = vpack.c.bf16 %v10987, %v10986
        %v11037 = vpack.c.bf16 %v10989, %v10988
        %v11038 = vpack.c.bf16 %v10991, %v10990
        %v11039 = vpack.c.bf16 %v10993, %v10992
        %v11040 = vpack.c.bf16 %v10995, %v10994
        %v11041 = vpack.c.bf16 %v10997, %v10996
        %v11042 = vpack.c.bf16 %v10999, %v10998
        %v11043 = vpack.c.bf16 %v11001, %v11000
        %v11044 = vpack.c.bf16 %v11003, %v11002
        %v11045 = vpack.c.bf16 %v11005, %v11004
        %v11046 = vpack.c.bf16 %v11007, %v11006
        %v11047 = vpack.c.bf16 %v11009, %v11008
        %v11048 = vpack.c.bf16 %v11011, %v11010
        %v11049 = vpack.c.bf16 %v11013, %v11012
        %v11050 = vpack.c.bf16 %v11015, %v11014
        %v11051 = vpack.c.bf16 %v11017, %v11016
        %v11052 = vpack.c.bf16 %v11019, %v11018
        %v11053 = vpack.c.bf16 %v11021, %v11020
        %v11054 = vld [vmem:[#allocation9] sm:$0xf]
        %v11055 = vld [vmem:[#allocation9 + $0x4] sm:$0xf]
        %v11056 = vld [vmem:[#allocation9 + $0x8] sm:$0xf]
        %v11057 = vld [vmem:[#allocation9 + $0xc] sm:$0xf]
        %v11058 = vld [vmem:[#allocation9 + $0x10] sm:$0xf]
        %v11059 = vld [vmem:[#allocation9 + $0x14] sm:$0xf]
        %v11060 = vld [vmem:[#allocation9 + $0x18] sm:$0xf]
        %v11061 = vld [vmem:[#allocation9 + $0x1c] sm:$0xf]
        %v11062 = vld [vmem:[#allocation9 + $0x20] sm:$0xf]
        %v11063 = vld [vmem:[#allocation9 + $0x24] sm:$0xf]
        %v11064 = vld [vmem:[#allocation9 + $0x28] sm:$0xf]
        %v11065 = vld [vmem:[#allocation9 + $0x2c] sm:$0xf]
        %v11066 = vld [vmem:[#allocation9 + $0x30] sm:$0xf]
        %v11067 = vld [vmem:[#allocation9 + $0x34] sm:$0xf]
        %v11068 = vld [vmem:[#allocation9 + $0x38] sm:$0xf]
        %v11069 = vld [vmem:[#allocation9 + $0x3c] sm:$0xf]
        %v11070 = vld [vmem:[%s6] sm:$0x1]
        %v11072 = vperm.slane %v11070, 0
        %v11090 = vunpack.c.l.b16 %v11054
        %v11091 = vunpack.c.l.b16 %v11055
        %v11092 = vunpack.c.l.b16 %v11056
        %v11093 = vunpack.c.l.b16 %v11057
        %v11094 = vunpack.c.l.b16 %v11058
        %v11095 = vunpack.c.l.b16 %v11059
        %v11096 = vunpack.c.l.b16 %v11060
        %v11097 = vunpack.c.l.b16 %v11061
        %v11098 = vunpack.c.l.b16 %v11062
        %v11099 = vunpack.c.l.b16 %v11063
        %v11100 = vunpack.c.l.b16 %v11064
        %v11101 = vunpack.c.l.b16 %v11065
        %v11102 = vunpack.c.l.b16 %v11066
        %v11103 = vunpack.c.l.b16 %v11067
        %v11104 = vunpack.c.l.b16 %v11068
        %v11105 = vunpack.c.l.b16 %v11069
        %v11106 = vpack.c.b16 %v11091, %v11090
        %v11107 = vpack.c.b16 %v11093, %v11092
        %v11108 = vpack.c.b16 %v11095, %v11094
        %v11109 = vpack.c.b16 %v11097, %v11096
        %v11110 = vpack.c.b16 %v11099, %v11098
        %v11111 = vpack.c.b16 %v11101, %v11100
        %v11112 = vpack.c.b16 %v11103, %v11102
        %v11113 = vpack.c.b16 %v11105, %v11104
        %11122 = vmatpush.bf16.msra.mxu0 %v11113
        %11123 = vmatpush.bf16.msra.mxu0 %v11112
        %11124 = vmatpush.bf16.msra.mxu0 %v11111
        %11125 = vmatpush.bf16.msra.mxu0 %v11110
        %11126 = vmatpush.bf16.msra.mxu0 %v11109
        %11127 = vmatpush.bf16.msra.mxu0 %v11108
        %11128 = vmatpush.bf16.msra.mxu0 %v11107
        %11129 = vmatpush.bf16.msra.mxu0 %v11106
        %11130 = vmatmul.bf16.gmra.mxu0 %v11022
        %v11131 = vpop.f32.mrf.mxu0
        %v11132 = vadd.f32 %v11072, %v11131
        %v11133 = vpop.f32.mrf.mxu0
        %v11134 = vadd.f32 %v11072, %v11133
        %11135 = vmatmul.bf16.gmra.mxu0 %v11023
        %v11136 = vpop.f32.mrf.mxu0
        %v11137 = vadd.f32 %v11072, %v11136
        %v11138 = vpop.f32.mrf.mxu0
        %v11139 = vadd.f32 %v11072, %v11138
        %11140 = vmatmul.bf16.gmra.mxu0 %v11024
        %v11141 = vpop.f32.mrf.mxu0
        %v11142 = vadd.f32 %v11072, %v11141
        %v11143 = vpop.f32.mrf.mxu0
        %v11144 = vadd.f32 %v11072, %v11143
        %11145 = vmatmul.bf16.gmra.mxu0 %v11025
        %v11146 = vpop.f32.mrf.mxu0
        %v11147 = vadd.f32 %v11072, %v11146
        %v11148 = vpop.f32.mrf.mxu0
        %v11149 = vadd.f32 %v11072, %v11148
        %11150 = vmatmul.bf16.gmra.mxu0 %v11026
        %v11151 = vpop.f32.mrf.mxu0
        %v11152 = vadd.f32 %v11072, %v11151
        %v11153 = vpop.f32.mrf.mxu0
        %v11154 = vadd.f32 %v11072, %v11153
        %11155 = vmatmul.bf16.gmra.mxu0 %v11027
        %v11156 = vpop.f32.mrf.mxu0
        %v11157 = vadd.f32 %v11072, %v11156
        %v11158 = vpop.f32.mrf.mxu0
        %v11159 = vadd.f32 %v11072, %v11158
        %11160 = vmatmul.bf16.gmra.mxu0 %v11028
        %v11161 = vpop.f32.mrf.mxu0
        %v11162 = vadd.f32 %v11072, %v11161
        %v11163 = vpop.f32.mrf.mxu0
        %v11164 = vadd.f32 %v11072, %v11163
        %11165 = vmatmul.bf16.gmra.mxu0 %v11029
        %v11166 = vpop.f32.mrf.mxu0
        %v11167 = vadd.f32 %v11072, %v11166
        %v11168 = vpop.f32.mrf.mxu0
        %v11169 = vadd.f32 %v11072, %v11168
        %11170 = vmatmul.bf16.gmra.mxu0 %v11030
        %v11171 = vpop.f32.mrf.mxu0
        %v11172 = vadd.f32 %v11072, %v11171
        %v11173 = vpop.f32.mrf.mxu0
        %v11174 = vadd.f32 %v11072, %v11173
        %11175 = vmatmul.bf16.gmra.mxu0 %v11031
        %v11176 = vpop.f32.mrf.mxu0
        %v11177 = vadd.f32 %v11072, %v11176
        %v11178 = vpop.f32.mrf.mxu0
        %v11179 = vadd.f32 %v11072, %v11178
        %11180 = vmatmul.bf16.gmra.mxu0 %v11032
        %v11181 = vpop.f32.mrf.mxu0
        %v11182 = vadd.f32 %v11072, %v11181
        %v11183 = vpop.f32.mrf.mxu0
        %v11184 = vadd.f32 %v11072, %v11183
        %11185 = vmatmul.bf16.gmra.mxu0 %v11033
        %v11186 = vpop.f32.mrf.mxu0
        %v11187 = vadd.f32 %v11072, %v11186
        %v11188 = vpop.f32.mrf.mxu0
        %v11189 = vadd.f32 %v11072, %v11188
        %11190 = vmatmul.bf16.gmra.mxu0 %v11034
        %v11191 = vpop.f32.mrf.mxu0
        %v11192 = vadd.f32 %v11072, %v11191
        %v11193 = vpop.f32.mrf.mxu0
        %v11194 = vadd.f32 %v11072, %v11193
        %11195 = vmatmul.bf16.gmra.mxu0 %v11035
        %v11196 = vpop.f32.mrf.mxu0
        %v11197 = vadd.f32 %v11072, %v11196
        %v11198 = vpop.f32.mrf.mxu0
        %v11199 = vadd.f32 %v11072, %v11198
        %11200 = vmatmul.bf16.gmra.mxu0 %v11036
        %v11201 = vpop.f32.mrf.mxu0
        %v11202 = vadd.f32 %v11072, %v11201
        %v11203 = vpop.f32.mrf.mxu0
        %v11204 = vadd.f32 %v11072, %v11203
        %11205 = vmatmul.bf16.gmra.mxu0 %v11037
        %v11206 = vpop.f32.mrf.mxu0
        %v11207 = vadd.f32 %v11072, %v11206
        %v11208 = vpop.f32.mrf.mxu0
        %v11209 = vadd.f32 %v11072, %v11208
        %11210 = vmatmul.bf16.gmra.mxu0 %v11038
        %v11211 = vpop.f32.mrf.mxu0
        %v11212 = vadd.f32 %v11072, %v11211
        %v11213 = vpop.f32.mrf.mxu0
        %v11214 = vadd.f32 %v11072, %v11213
        %11215 = vmatmul.bf16.gmra.mxu0 %v11039
        %v11216 = vpop.f32.mrf.mxu0
        %v11217 = vadd.f32 %v11072, %v11216
        %v11218 = vpop.f32.mrf.mxu0
        %v11219 = vadd.f32 %v11072, %v11218
        %11220 = vmatmul.bf16.gmra.mxu0 %v11040
        %v11221 = vpop.f32.mrf.mxu0
        %v11222 = vadd.f32 %v11072, %v11221
        %v11223 = vpop.f32.mrf.mxu0
        %v11224 = vadd.f32 %v11072, %v11223
        %11225 = vmatmul.bf16.gmra.mxu0 %v11041
        %v11226 = vpop.f32.mrf.mxu0
        %v11227 = vadd.f32 %v11072, %v11226
        %v11228 = vpop.f32.mrf.mxu0
        %v11229 = vadd.f32 %v11072, %v11228
        %11230 = vmatmul.bf16.gmra.mxu0 %v11042
        %v11231 = vpop.f32.mrf.mxu0
        %v11232 = vadd.f32 %v11072, %v11231
        %v11233 = vpop.f32.mrf.mxu0
        %v11234 = vadd.f32 %v11072, %v11233
        %11235 = vmatmul.bf16.gmra.mxu0 %v11043
        %v11236 = vpop.f32.mrf.mxu0
        %v11237 = vadd.f32 %v11072, %v11236
        %v11238 = vpop.f32.mrf.mxu0
        %v11239 = vadd.f32 %v11072, %v11238
        %11240 = vmatmul.bf16.gmra.mxu0 %v11044
        %v11241 = vpop.f32.mrf.mxu0
        %v11242 = vadd.f32 %v11072, %v11241
        %v11243 = vpop.f32.mrf.mxu0
        %v11244 = vadd.f32 %v11072, %v11243
        %11245 = vmatmul.bf16.gmra.mxu0 %v11045
        %v11246 = vpop.f32.mrf.mxu0
        %v11247 = vadd.f32 %v11072, %v11246
        %v11248 = vpop.f32.mrf.mxu0
        %v11249 = vadd.f32 %v11072, %v11248
        %11250 = vmatmul.bf16.gmra.mxu0 %v11046
        %v11251 = vpop.f32.mrf.mxu0
        %v11252 = vadd.f32 %v11072, %v11251
        %v11253 = vpop.f32.mrf.mxu0
        %v11254 = vadd.f32 %v11072, %v11253
        %11255 = vmatmul.bf16.gmra.mxu0 %v11047
        %v11256 = vpop.f32.mrf.mxu0
        %v11257 = vadd.f32 %v11072, %v11256
        %v11258 = vpop.f32.mrf.mxu0
        %v11259 = vadd.f32 %v11072, %v11258
        %11260 = vmatmul.bf16.gmra.mxu0 %v11048
        %v11261 = vpop.f32.mrf.mxu0
        %v11262 = vadd.f32 %v11072, %v11261
        %v11263 = vpop.f32.mrf.mxu0
        %v11264 = vadd.f32 %v11072, %v11263
        %11265 = vmatmul.bf16.gmra.mxu0 %v11049
        %v11266 = vpop.f32.mrf.mxu0
        %v11267 = vadd.f32 %v11072, %v11266
        %v11268 = vpop.f32.mrf.mxu0
        %v11269 = vadd.f32 %v11072, %v11268
        %11270 = vmatmul.bf16.gmra.mxu0 %v11050
        %v11271 = vpop.f32.mrf.mxu0
        %v11272 = vadd.f32 %v11072, %v11271
        %v11273 = vpop.f32.mrf.mxu0
        %v11274 = vadd.f32 %v11072, %v11273
        %11275 = vmatmul.bf16.gmra.mxu0 %v11051
        %v11276 = vpop.f32.mrf.mxu0
        %v11277 = vadd.f32 %v11072, %v11276
        %v11278 = vpop.f32.mrf.mxu0
        %v11279 = vadd.f32 %v11072, %v11278
        %11280 = vmatmul.bf16.gmra.mxu0 %v11052
        %v11281 = vpop.f32.mrf.mxu0
        %v11282 = vadd.f32 %v11072, %v11281
        %v11283 = vpop.f32.mrf.mxu0
        %v11284 = vadd.f32 %v11072, %v11283
        %11285 = vmatmul.bf16.gmra.mxu0 %v11053
        %v11286 = vpop.f32.mrf.mxu0
        %v11287 = vadd.f32 %v11072, %v11286
        %v11288 = vpop.f32.mrf.mxu0
        %v11289 = vadd.f32 %v11072, %v11288
        %11290 = vdwg.mxu0
        %v11291 = vadd.f32 %v11132, %v353
        %v11292 = vadd.f32 %v11134, %v354
        %v11293 = vadd.f32 %v11137, %v355
        %v11294 = vadd.f32 %v11139, %v356
        %v11295 = vadd.f32 %v11142, %v357
        %v11296 = vadd.f32 %v11144, %v358
        %v11297 = vadd.f32 %v11147, %v359
        %v11298 = vadd.f32 %v11149, %v360
        %v11299 = vadd.f32 %v11152, %v361
        %v11300 = vadd.f32 %v11154, %v362
        %v11301 = vadd.f32 %v11157, %v363
        %v11302 = vadd.f32 %v11159, %v364
        %v11303 = vadd.f32 %v11162, %v365
        %v11304 = vadd.f32 %v11164, %v366
        %v11305 = vadd.f32 %v11167, %v367
        %v11306 = vadd.f32 %v11169, %v368
        %v11307 = vadd.f32 %v11172, %v369
        %v11308 = vadd.f32 %v11174, %v370
        %v11309 = vadd.f32 %v11177, %v371
        %v11310 = vadd.f32 %v11179, %v372
        %v11311 = vadd.f32 %v11182, %v373
        %v11312 = vadd.f32 %v11184, %v374
        %v11313 = vadd.f32 %v11187, %v375
        %v11314 = vadd.f32 %v11189, %v376
        %v11315 = vadd.f32 %v11192, %v377
        %v11316 = vadd.f32 %v11194, %v378
        %v11317 = vadd.f32 %v11197, %v379
        %v11318 = vadd.f32 %v11199, %v380
        %v11319 = vadd.f32 %v11202, %v381
        %v11320 = vadd.f32 %v11204, %v382
        %v11321 = vadd.f32 %v11207, %v383
        %v11322 = vadd.f32 %v11209, %v384
        %v11323 = vadd.f32 %v11212, %v385
        %v11324 = vadd.f32 %v11214, %v386
        %v11325 = vadd.f32 %v11217, %v387
        %v11326 = vadd.f32 %v11219, %v388
        %v11327 = vadd.f32 %v11222, %v389
        %v11328 = vadd.f32 %v11224, %v390
        %v11329 = vadd.f32 %v11227, %v391
        %v11330 = vadd.f32 %v11229, %v392
        %v11331 = vadd.f32 %v11232, %v393
        %v11332 = vadd.f32 %v11234, %v394
        %v11333 = vadd.f32 %v11237, %v395
        %v11334 = vadd.f32 %v11239, %v396
        %v11335 = vadd.f32 %v11242, %v397
        %v11336 = vadd.f32 %v11244, %v398
        %v11337 = vadd.f32 %v11247, %v399
        %v11338 = vadd.f32 %v11249, %v400
        %v11339 = vadd.f32 %v11252, %v401
        %v11340 = vadd.f32 %v11254, %v402
        %v11341 = vadd.f32 %v11257, %v403
        %v11342 = vadd.f32 %v11259, %v404
        %v11343 = vadd.f32 %v11262, %v405
        %v11344 = vadd.f32 %v11264, %v406
        %v11345 = vadd.f32 %v11267, %v407
        %v11346 = vadd.f32 %v11269, %v408
        %v11347 = vadd.f32 %v11272, %v409
        %v11348 = vadd.f32 %v11274, %v410
        %v11349 = vadd.f32 %v11277, %v411
        %v11350 = vadd.f32 %v11279, %v412
        %v11351 = vadd.f32 %v11282, %v413
        %v11352 = vadd.f32 %v11284, %v414
        %v11353 = vadd.f32 %v11287, %v415
        %v11354 = vadd.f32 %v11289, %v416
        %v11355 = vmax.f32 %v11291, 0.0
        %v11356 = vmax.f32 %v11292, 0.0
        %v11357 = vmax.f32 %v11293, 0.0
        %v11358 = vmax.f32 %v11294, 0.0
        %v11359 = vmax.f32 %v11295, 0.0
        %v11360 = vmax.f32 %v11296, 0.0
        %v11361 = vmax.f32 %v11297, 0.0
        %v11362 = vmax.f32 %v11298, 0.0
        %v11363 = vmax.f32 %v11299, 0.0
        %v11364 = vmax.f32 %v11300, 0.0
        %v11365 = vmax.f32 %v11301, 0.0
        %v11366 = vmax.f32 %v11302, 0.0
        %v11367 = vmax.f32 %v11303, 0.0
        %v11368 = vmax.f32 %v11304, 0.0
        %v11369 = vmax.f32 %v11305, 0.0
        %v11370 = vmax.f32 %v11306, 0.0
        %v11371 = vmax.f32 %v11307, 0.0
        %v11372 = vmax.f32 %v11308, 0.0
        %v11373 = vmax.f32 %v11309, 0.0
        %v11374 = vmax.f32 %v11310, 0.0
        %v11375 = vmax.f32 %v11311, 0.0
        %v11376 = vmax.f32 %v11312, 0.0
        %v11377 = vmax.f32 %v11313, 0.0
        %v11378 = vmax.f32 %v11314, 0.0
        %v11379 = vmax.f32 %v11315, 0.0
        %v11380 = vmax.f32 %v11316, 0.0
        %v11381 = vmax.f32 %v11317, 0.0
        %v11382 = vmax.f32 %v11318, 0.0
        %v11383 = vmax.f32 %v11319, 0.0
        %v11384 = vmax.f32 %v11320, 0.0
        %v11385 = vmax.f32 %v11321, 0.0
        %v11386 = vmax.f32 %v11322, 0.0
        %v11387 = vmax.f32 %v11323, 0.0
        %v11388 = vmax.f32 %v11324, 0.0
        %v11389 = vmax.f32 %v11325, 0.0
        %v11390 = vmax.f32 %v11326, 0.0
        %v11391 = vmax.f32 %v11327, 0.0
        %v11392 = vmax.f32 %v11328, 0.0
        %v11393 = vmax.f32 %v11329, 0.0
        %v11394 = vmax.f32 %v11330, 0.0
        %v11395 = vmax.f32 %v11331, 0.0
        %v11396 = vmax.f32 %v11332, 0.0
        %v11397 = vmax.f32 %v11333, 0.0
        %v11398 = vmax.f32 %v11334, 0.0
        %v11399 = vmax.f32 %v11335, 0.0
        %v11400 = vmax.f32 %v11336, 0.0
        %v11401 = vmax.f32 %v11337, 0.0
        %v11402 = vmax.f32 %v11338, 0.0
        %v11403 = vmax.f32 %v11339, 0.0
        %v11404 = vmax.f32 %v11340, 0.0
        %v11405 = vmax.f32 %v11341, 0.0
        %v11406 = vmax.f32 %v11342, 0.0
        %v11407 = vmax.f32 %v11343, 0.0
        %v11408 = vmax.f32 %v11344, 0.0
        %v11409 = vmax.f32 %v11345, 0.0
        %v11410 = vmax.f32 %v11346, 0.0
        %v11411 = vmax.f32 %v11347, 0.0
        %v11412 = vmax.f32 %v11348, 0.0
        %v11413 = vmax.f32 %v11349, 0.0
        %v11414 = vmax.f32 %v11350, 0.0
        %v11415 = vmax.f32 %v11351, 0.0
        %v11416 = vmax.f32 %v11352, 0.0
        %v11417 = vmax.f32 %v11353, 0.0
        %v11418 = vmax.f32 %v11354, 0.0
        %11419 = vst [vmem:[%s349] sm:$0xff] %v11355
        %11420 = vst [vmem:[%s349 + $0x8] sm:$0xff] %v11356
        %11421 = vst [vmem:[%s349 + $0x10] sm:$0xff] %v11357
        %11422 = vst [vmem:[%s349 + $0x18] sm:$0xff] %v11358
        %11423 = vst [vmem:[%s349 + $0x20] sm:$0xff] %v11359
        %11424 = vst [vmem:[%s349 + $0x28] sm:$0xff] %v11360
        %11425 = vst [vmem:[%s349 + $0x30] sm:$0xff] %v11361
        %11426 = vst [vmem:[%s349 + $0x38] sm:$0xff] %v11362
        %11427 = vst [vmem:[%s349 + $0x40] sm:$0xff] %v11363
        %11428 = vst [vmem:[%s349 + $0x48] sm:$0xff] %v11364
        %11429 = vst [vmem:[%s349 + $0x50] sm:$0xff] %v11365
        %11430 = vst [vmem:[%s349 + $0x58] sm:$0xff] %v11366
        %11431 = vst [vmem:[%s349 + $0x60] sm:$0xff] %v11367
        %11432 = vst [vmem:[%s349 + $0x68] sm:$0xff] %v11368
        %11433 = vst [vmem:[%s349 + $0x70] sm:$0xff] %v11369
        %11434 = vst [vmem:[%s349 + $0x78] sm:$0xff] %v11370
        %11435 = vst [vmem:[%s349 + $0x80] sm:$0xff] %v11371
        %11436 = vst [vmem:[%s349 + $0x88] sm:$0xff] %v11372
        %11437 = vst [vmem:[%s349 + $0x90] sm:$0xff] %v11373
        %11438 = vst [vmem:[%s349 + $0x98] sm:$0xff] %v11374
        %11439 = vst [vmem:[%s349 + $0xa0] sm:$0xff] %v11375
        %11440 = vst [vmem:[%s349 + $0xa8] sm:$0xff] %v11376
        %11441 = vst [vmem:[%s349 + $0xb0] sm:$0xff] %v11377
        %11442 = vst [vmem:[%s349 + $0xb8] sm:$0xff] %v11378
        %11443 = vst [vmem:[%s349 + $0xc0] sm:$0xff] %v11379
        %11444 = vst [vmem:[%s349 + $0xc8] sm:$0xff] %v11380
        %11445 = vst [vmem:[%s349 + $0xd0] sm:$0xff] %v11381
        %11446 = vst [vmem:[%s349 + $0xd8] sm:$0xff] %v11382
        %11447 = vst [vmem:[%s349 + $0xe0] sm:$0xff] %v11383
        %11448 = vst [vmem:[%s349 + $0xe8] sm:$0xff] %v11384
        %11449 = vst [vmem:[%s349 + $0xf0] sm:$0xff] %v11385
        %11450 = vst [vmem:[%s349 + $0xf8] sm:$0xff] %v11386
        %11451 = vst [vmem:[%s349 + $0x100] sm:$0xff] %v11387
        %11452 = vst [vmem:[%s349 + $0x108] sm:$0xff] %v11388
        %11453 = vst [vmem:[%s349 + $0x110] sm:$0xff] %v11389
        %11454 = vst [vmem:[%s349 + $0x118] sm:$0xff] %v11390
        %11455 = vst [vmem:[%s349 + $0x120] sm:$0xff] %v11391
        %11456 = vst [vmem:[%s349 + $0x128] sm:$0xff] %v11392
        %11457 = vst [vmem:[%s349 + $0x130] sm:$0xff] %v11393
        %11458 = vst [vmem:[%s349 + $0x138] sm:$0xff] %v11394
        %11459 = vst [vmem:[%s349 + $0x140] sm:$0xff] %v11395
        %11460 = vst [vmem:[%s349 + $0x148] sm:$0xff] %v11396
        %11461 = vst [vmem:[%s349 + $0x150] sm:$0xff] %v11397
        %11462 = vst [vmem:[%s349 + $0x158] sm:$0xff] %v11398
        %11463 = vst [vmem:[%s349 + $0x160] sm:$0xff] %v11399
        %11464 = vst [vmem:[%s349 + $0x168] sm:$0xff] %v11400
        %11465 = vst [vmem:[%s349 + $0x170] sm:$0xff] %v11401
        %11466 = vst [vmem:[%s349 + $0x178] sm:$0xff] %v11402
        %11467 = vst [vmem:[%s349 + $0x180] sm:$0xff] %v11403
        %11468 = vst [vmem:[%s349 + $0x188] sm:$0xff] %v11404
        %11469 = vst [vmem:[%s349 + $0x190] sm:$0xff] %v11405
        %11470 = vst [vmem:[%s349 + $0x198] sm:$0xff] %v11406
        %11471 = vst [vmem:[%s349 + $0x1a0] sm:$0xff] %v11407
        %11472 = vst [vmem:[%s349 + $0x1a8] sm:$0xff] %v11408
        %11473 = vst [vmem:[%s349 + $0x1b0] sm:$0xff] %v11409
        %11474 = vst [vmem:[%s349 + $0x1b8] sm:$0xff] %v11410
        %11475 = vst [vmem:[%s349 + $0x1c0] sm:$0xff] %v11411
        %11476 = vst [vmem:[%s349 + $0x1c8] sm:$0xff] %v11412
        %11477 = vst [vmem:[%s349 + $0x1d0] sm:$0xff] %v11413
        %11478 = vst [vmem:[%s349 + $0x1d8] sm:$0xff] %v11414
        %11479 = vst [vmem:[%s349 + $0x1e0] sm:$0xff] %v11415
        %11480 = vst [vmem:[%s349 + $0x1e8] sm:$0xff] %v11416
        %11481 = vst [vmem:[%s349 + $0x1f0] sm:$0xff] %v11417
        %11482 = vst [vmem:[%s349 + $0x1f8] sm:$0xff] %v11418
        %s11483 = sand.u32 %s186, 1
        %s11484 = scalar_lea.sflag [#allocation5], %s11483
        %s11485 = sand.u32 %s186, 1
        %s11486 = smul.addr %s11485, 512
        %s11487 = scalar_lea.vmem [#allocation11], %s11486
        // Predicated region
        $region65: #{tpu_custom_call.1} parent=47 // pred_check
          %p11488 = pneg %p196
        $region66: #{tpu_custom_call.1} parent=47 // pred_check_branch
          %11490 = sbr.rel (%p11488) target = $region68
        $region67: #{tpu_custom_call.1} parent=47 // pred_region
          %s11491 = smul.u32 2, %s26
          %11493 = vsyncadd %s11484, 0
          %s11494 = smul.addr %s11491, 32
          %s11495 = smul.addr %s11494, 8
          %s11496 = scalar_lea.hbm %s7, %s11495
          %s11497 = sshll.u32 %s11487, 4
          %s11498 = int_to_ptr.vmem [resolvable:$true] %s11497
          %s11499 = sshll.u32 %s11496, 4
          %s11500 = int_to_ptr.hbm [resolvable:$true] %s11499
          %11505 = dma.vmem_to_hbm [thread:$0]  %s11498, 8192, %s11500, %s11484, 128, 128, 8
        $region68: #{tpu_custom_call.1} parent=47 // pred_fallthru
          _
      $region48: #{tpu_custom_call.1} parent=5 // pred_fallthru
        _
      %p11506 = scmp.le.s32.totalorder 2, %s21
      // Predicated region
      $region69: #{tpu_custom_call.1} parent=5 // pred_check
        %p11507 = pneg %p11506
      $region70: #{tpu_custom_call.1} parent=5 // pred_check_branch
        %11509 = sbr.rel (%p11507) target = $region72
      $region71: #{tpu_custom_call.1} parent=5 // pred_region
        %s11510 = ssub.s32 %s21, 2
        // Predicated region
        $region73: #{tpu_custom_call.1} parent=71 // pred_check
          %p11511 = pneg %p202
        $region74: #{tpu_custom_call.1} parent=71 // pred_check_branch
          %11513 = sbr.rel (%p11511) target = $region76
        $region75: #{tpu_custom_call.1} parent=71 // pred_region
          %s11514 = sand.u32 %s187, 1
          %s11515 = scalar_lea.sflag [#allocation5], %s11514
          %s11516 = sand.u32 %s187, 1
          %s11517 = smul.addr %s11516, 512
          %s11518 = scalar_lea.vmem [#allocation11], %s11517
          %11520 = dma.done %s11515, 8192
        $region76: #{tpu_custom_call.1} parent=71 // pred_fallthru
          _
      $region72: #{tpu_custom_call.1} parent=5 // pred_fallthru
        _
    $region6: #{tpu_custom_call.1} parent=1 // loop_footer
      %s25 = sadd.s32 1, %s21
    $region7: #{tpu_custom_call.1} parent=1 // loop_footer_branch
      %20 = sbr.rel target = $region3
    $region8: #{tpu_custom_call.1} parent=1 // loop_exit
      _
    %11521 = vsyncpa [#allocation4], 1
    %s11522 = scalar_lea.sflag [#allocation4], 1
    %11523 = vsyncpa %s11522, 1
    %11524 = vsyncpa [#allocation7], 1
    %11525 = vsyncpa [#allocation10], 1
    %11526 = vsyncpa [#allocation5], 1
    %s11527 = scalar_lea.sflag [#allocation5], 1
    %11528 = vsyncpa %s11527, 1

</llo_original>
